<compile_context>
chip_gen: v7x
topology: tpu7x:2x2x1
jax: 0.10.0
libtpu: 0.0.40
codegen_flags: <defaults>
</compile_context>

<pallas_src>
import functools

import jax
import jax.numpy as jnp
from jax.experimental import pallas as pl
from jax.experimental.pallas import tpu as pltpu

Lc = 16
Lq = 41
ctx_dim = 2048
ctx_dim_m = 512
D = ctx_dim_m          # question hidden dim (w4Q is (D, 1); Ques_enc.transpose gives (B, Lq, D))
OUT_D = 4 * ctx_dim_m  # concat([V, A, V*A, V*B]) along the feature axis
NEG_INF = -1e30


def _mask_logits(t, m):
    # standard PSAC mask_logits: keep where mask==1, push to -1e30 where mask==0
    return t * m + (1.0 - m) * NEG_INF


def _softmax(x, axis):
    m = jnp.max(x, axis=axis, keepdims=True)
    e = jnp.exp(x - m)
    return e * pl.reciprocal(jnp.sum(e, axis=axis, keepdims=True), approx=True)


def vqatt_kernel(vid_ref, ques_ref, vmask_ref, qmask_ref, scnt_ref,
                 wtrans_ref, btrans_ref, w4v_ref, w4q_ref, w4mlu_ref, bias_ref,
                 out_ref, vidm_ref, outc_ref, *, tb):
    # --- weight-normalized "trans" linear: one big MXU matmul over TB*Lc rows (bf16 in, f32 acc)
    vid_flat = vid_ref[...].reshape(tb * Lc, ctx_dim)                       # bf16
    v_flat = jnp.dot(vid_flat, wtrans_ref[...],
                     preferred_element_type=jnp.float32) + btrans_ref[...]
    V = v_flat.reshape(tb, Lc, ctx_dim_m)                                   # (TB, Lc, 512) f32

    Q = ques_ref[...]                                                       # (TB, Lq, D) f32
    vmask = vmask_ref[...]                                                  # (TB, Lc, 1)
    qmask = qmask_ref[...]                                                  # (TB, 1, Lq)
    scnt = scnt_ref[...]                                                    # (TB, Lc, Lq)

    w4v = w4v_ref[...].reshape(1, 1, ctx_dim_m)
    w4q = w4q_ref[...].reshape(1, 1, D)
    w4mlu = w4mlu_ref[...].reshape(1, 1, ctx_dim_m)
    bias = bias_ref[0, 0]                                                   # SMEM scalar

    # --- trilinear_for_attention (dropout == identity in eval mode)
    sub0 = jnp.sum(V * w4v, axis=-1, keepdims=True)                         # (TB, Lc, 1)  VPU reduce
    sub1 = jnp.sum(Q * w4q, axis=-1)[:, None, :]                            # (TB, 1, Lq)  VPU reduce
    sub2 = jnp.einsum('bld,bqd->blq', V * w4mlu, Q,
                      preferred_element_type=jnp.float32)                   # (TB, Lc, Lq)
    S = sub0 + sub1 + sub2 + bias

    def attend(smat):
        s1 = _softmax(_mask_logits(smat, qmask), axis=2)                    # softmax over Lq
        s2 = _softmax(_mask_logits(smat, vmask), axis=1)                    # softmax over Lc
        a = jnp.einsum('blq,bqd->bld', s1, Q, preferred_element_type=jnp.float32)
        t = jnp.einsum('blq,bkq->blk', s1, s2, preferred_element_type=jnp.float32)  # S1 @ S2^T
        b = jnp.einsum('blk,bkd->bld', t, V, preferred_element_type=jnp.float32)
        return a, b

    A, Bm = attend(S)
    Ac, Bc = attend(scnt)
    dA = A - Ac
    dB = Bm - Bc

    # --- lane-aligned slice stores (each slab is 512 lanes = 4 lane tiles wide)
    vidm_ref[...] = V
    out_ref[:, :, 0 * ctx_dim_m:1 * ctx_dim_m] = V
    out_ref[:, :, 1 * ctx_dim_m:2 * ctx_dim_m] = A
    out_ref[:, :, 2 * ctx_dim_m:3 * ctx_dim_m] = V * A
    out_ref[:, :, 3 * ctx_dim_m:4 * ctx_dim_m] = V * Bm
    outc_ref[:, :, 0 * ctx_dim_m:1 * ctx_dim_m] = V
    outc_ref[:, :, 1 * ctx_dim_m:2 * ctx_dim_m] = dA
    outc_ref[:, :, 2 * ctx_dim_m:3 * ctx_dim_m] = V * dA
    outc_ref[:, :, 3 * ctx_dim_m:4 * ctx_dim_m] = V * dB


@functools.partial(jax.jit, static_argnames=("tb",))
def vq_attention_counter(vid_enc, ques_enc, v_mask, q_mask, s_counter,
                         w_trans_t, b_trans, w4v, w4q, w4mlu, bias, *, tb=1):
    B = vid_enc.shape[0]
    assert B % tb == 0, "batch must be divisible by the batch tile"

    ques_t = jnp.transpose(ques_enc, (0, 2, 1)).astype(jnp.float32)         # (B, Lq, D)
    vid_bf = vid_enc.astype(jnp.bfloat16)                                   # bf16 MXU input
    w_bf = w_trans_t.astype(jnp.bfloat16)
    vmask3 = v_mask.reshape(B, Lc, 1).astype(jnp.float32)
    qmask3 = q_mask.reshape(B, 1, Lq).astype(jnp.float32)

    batched = lambda bs: pl.BlockSpec(bs, lambda b: (b, 0, 0))
    shared = lambda bs: pl.BlockSpec(bs, lambda b: (0, 0))   # constant index_map -> single fetch

    out, vid_m, out_c = pl.pallas_call(
        functools.partial(vqatt_kernel, tb=tb),
        out_shape=(
            jax.ShapeDtypeStruct((B, Lc, OUT_D), jnp.float32),
            jax.ShapeDtypeStruct((B, Lc, ctx_dim_m), jnp.float32),
            jax.ShapeDtypeStruct((B, Lc, OUT_D), jnp.float32),
        ),
        grid_spec=pltpu.PrefetchScalarGridSpec(
            num_scalar_prefetch=0,
            grid=(B // tb,),
            in_specs=[
                batched((tb, Lc, ctx_dim)),      # Vid_enc raw (bf16)
                batched((tb, Lq, D)),            # Ques_enc (transposed)
                batched((tb, Lc, 1)),            # V_mask
                batched((tb, 1, Lq)),            # Q_mask
                batched((tb, Lc, Lq)),           # S_counter uniform noise
                shared((ctx_dim, ctx_dim_m)),    # effective weight-norm W^T (bf16), resident
                shared((1, ctx_dim_m)),          # linear bias
                shared((1, ctx_dim_m)),          # w4V (row)
                shared((1, D)),                  # w4Q (row)
                shared((1, ctx_dim_m)),          # w4mlu (row)
                pl.BlockSpec(memory_space=pltpu.MemorySpace.SMEM),  # scalar trilinear bias
            ],
            out_specs=[
                batched((tb, Lc, OUT_D)),
                batched((tb, Lc, ctx_dim_m)),
                batched((tb, Lc, OUT_D)),
            ],
        ),
        compiler_params=pltpu.CompilerParams(
            dimension_semantics=("parallel",),
            vmem_limit_bytes=32 * 1024 * 1024,
        ),
    )(vid_bf, ques_t, vmask3, qmask3, s_counter,
      w_bf, b_trans, w4v, w4q, w4mlu, bias)

    # torch returns (out.transpose(1,2), Vid_enc (projected), out_counter.transpose(1,2))
    return jnp.transpose(out, (0, 2, 1)), vid_m, jnp.transpose(out_c, (0, 2, 1))


def reference_fwd(vid_enc, ques_enc, v_mask, q_mask, s_counter,
                  w_trans_t, b_trans, w4v, w4q, w4mlu, bias):
    # pure-JAX f32 reference of the torch forward (eval mode)
    B = vid_enc.shape[0]
    V = jnp.einsum('blc,cd->bld', vid_enc, w_trans_t) + b_trans
    Q = jnp.transpose(ques_enc, (0, 2, 1))
    vm = v_mask.reshape(B, Lc, 1)
    qm = q_mask.reshape(B, 1, Lq)
    sub0 = jnp.sum(V * w4v.reshape(1, 1, -1), axis=-1, keepdims=True)
    sub1 = jnp.sum(Q * w4q.reshape(1, 1, -1), axis=-1)[:, None, :]
    sub2 = jnp.einsum('bld,bqd->blq', V * w4mlu.reshape(1, 1, -1), Q)
    S = sub0 + sub1 + sub2 + bias.reshape(())

    def mask_logits(t, m):
        return t * m + (1.0 - m) * NEG_INF

    def attend(smat):
        s1 = jax.nn.softmax(mask_logits(smat, qm), axis=2)
        s2 = jax.nn.softmax(mask_logits(smat, vm), axis=1)
        a = jnp.einsum('blq,bqd->bld', s1, Q)
        b = jnp.einsum('blq,bkq,bkd->bld', s1, s2, V)
        return a, b

    A, Bm = attend(S)
    Ac, Bc = attend(s_counter)
    out = jnp.concatenate([V, A, V * A, V * Bm], axis=2)
    outc = jnp.concatenate([V, A - Ac, V * (A - Ac), V * (Bm - Bc)], axis=2)
    return jnp.transpose(out, (0, 2, 1)), V, jnp.transpose(outc, (0, 2, 1))


def init_params(key):
    k1, k2, k3, k4, k5 = jax.random.split(key, 5)

    def xavier(k, shape, fan_in, fan_out):
        bound = (6.0 / (fan_in + fan_out)) ** 0.5
        return jax.random.uniform(k, shape, jnp.float32, -bound, bound)

    # torch shapes: w4V (ctx_dim_m, 1), w4Q (D, 1), w4mlu (1, 1, ctx_dim_m) -> row vectors here
    w4V = xavier(k1, (ctx_dim_m, 1), 1, ctx_dim_m).reshape(1, ctx_dim_m)
    w4Q = xavier(k2, (D, 1), 1, D).reshape(1, D)
    w4mlu = xavier(k3, (1, 1, ctx_dim_m), ctx_dim_m, ctx_dim_m).reshape(1, ctx_dim_m)

    # weight_norm(nn.Linear(ctx_dim, ctx_dim_m)): effective weight at init equals v.
    bound = 1.0 / (ctx_dim ** 0.5)
    v = jax.random.uniform(k4, (ctx_dim_m, ctx_dim), jnp.float32, -bound, bound)
    g = jnp.linalg.norm(v, axis=1, keepdims=True)
    w_eff = g * v / jnp.linalg.norm(v, axis=1, keepdims=True)
    w_trans_t = jnp.transpose(w_eff)                                        # (ctx_dim, ctx_dim_m)
    b_trans = jax.random.uniform(k5, (1, ctx_dim_m), jnp.float32, -bound, bound)

    bias = jnp.zeros((1, 1), jnp.float32)                                   # nn.init.constant_(bias, 0)
    return w_trans_t, b_trans, w4V, w4Q, w4mlu, bias


if __name__ == "__main__":
    key = jax.random.PRNGKey(0)
    kp, kv, kq, ks = jax.random.split(key, 4)

    B, TB = 4, 2          # grid = B // TB = 2 -> both v7x TensorCores get a step
    params = init_params(kp)

    vid_enc = jax.random.normal(kv, (B, Lc, ctx_dim), jnp.float32)
    ques_enc = jax.random.normal(kq, (B, D, Lq), jnp.float32)               # torch-style (B, D, Lq)

    # {0,1} masks: first n positions valid
    v_len = jnp.array([Lc, 12, 9, Lc])
    q_len = jnp.array([Lq, 30, 17, 25])
    v_mask = (jnp.arange(Lc)[None, :] < v_len[:, None]).astype(jnp.float32)     # (B, Lc)
    q_mask = (jnp.arange(Lq)[None, :] < q_len[:, None]).astype(jnp.float32)     # (B, Lq)

    # torch: torch.zeros_like(S).uniform_(0, 1) -- generated deterministically here
    s_counter = jax.random.uniform(ks, (B, Lc, Lq), jnp.float32)

    out, vid_m, out_counter = vq_attention_counter(
        vid_enc, ques_enc, v_mask, q_mask, s_counter, *params, tb=TB)
    jax.block_until_ready((out, vid_m, out_counter))

    assert out.shape == (B, OUT_D, Lc)
    assert vid_m.shape == (B, Lc, ctx_dim_m)
    assert out_counter.shape == (B, OUT_D, Lc)

    # correctness vs. f32 reference (bf16 matmul + approx reciprocal => loose tolerance)
    ref_out, ref_vid, ref_outc = reference_fwd(
        vid_enc, ques_enc, v_mask, q_mask, s_counter, *params)
    for got, want in ((out, ref_out), (vid_m, ref_vid), (out_counter, ref_outc)):
        assert jnp.allclose(got, want, rtol=5e-2, atol=5e-2), float(
            jnp.max(jnp.abs(got - want)))

    print("KERNEL_OK")
</pallas_src>

<mosaic_0001>
module attributes {stable_mosaic.version = 11 : i64} {
  func.func @vqatt_kernel(%arg0: i32, %arg1: memref<2x16x2048xbf16, #tpu.memory_space<vmem>>, %arg2: memref<2x41x512xf32, #tpu.memory_space<vmem>>, %arg3: memref<2x16x1xf32, #tpu.memory_space<vmem>>, %arg4: memref<2x1x41xf32, #tpu.memory_space<vmem>>, %arg5: memref<2x16x41xf32, #tpu.memory_space<vmem>>, %arg6: memref<2048x512xbf16, #tpu.memory_space<vmem>>, %arg7: memref<1x512xf32, #tpu.memory_space<vmem>>, %arg8: memref<1x512xf32, #tpu.memory_space<vmem>>, %arg9: memref<1x512xf32, #tpu.memory_space<vmem>>, %arg10: memref<1x512xf32, #tpu.memory_space<vmem>>, %arg11: memref<1x1xf32, #tpu.memory_space<smem>>, %arg12: memref<2x16x2048xf32, #tpu.memory_space<vmem>>, %arg13: memref<2x16x512xf32, #tpu.memory_space<vmem>>, %arg14: memref<2x16x2048xf32, #tpu.memory_space<vmem>>) attributes {dimension_semantics = [#tpu.dimension_semantics<parallel>], iteration_bounds = array<i64: 2>, scalar_prefetch = 0 : i64, scratch_operands = 0 : i64, tpu.core_type = #tpu.core_type<tc>, window_params = [{transform_indices = @transform_0, window_bounds = array<i64: 2, 16, 2048>}, {transform_indices = @transform_1, window_bounds = array<i64: 2, 41, 512>}, {transform_indices = @transform_2, window_bounds = array<i64: 2, 16, 1>}, {transform_indices = @transform_3, window_bounds = array<i64: 2, 1, 41>}, {transform_indices = @transform_4, window_bounds = array<i64: 2, 16, 41>}, {pipeline_mode = #tpu.pipeline_mode<synchronous>, transform_indices = @transform_5, window_bounds = array<i64: 2048, 512>}, {pipeline_mode = #tpu.pipeline_mode<synchronous>, transform_indices = @transform_6, window_bounds = array<i64: 1, 512>}, {pipeline_mode = #tpu.pipeline_mode<synchronous>, transform_indices = @transform_7, window_bounds = array<i64: 1, 512>}, {pipeline_mode = #tpu.pipeline_mode<synchronous>, transform_indices = @transform_8, window_bounds = array<i64: 1, 512>}, {pipeline_mode = #tpu.pipeline_mode<synchronous>, transform_indices = @transform_9, window_bounds = array<i64: 1, 512>}, {transform_indices = @transform_10, window_bounds = array<i64: 1, 1>}, {transform_indices = @transform_11, window_bounds = array<i64: 2, 16, 2048>}, {transform_indices = @transform_12, window_bounds = array<i64: 2, 16, 512>}, {transform_indices = @transform_13, window_bounds = array<i64: 2, 16, 2048>}]} {
    %c0 = arith.constant 0 : index
    %c0_0 = arith.constant 0 : index
    %c0_1 = arith.constant 0 : index
    %0 = vector.load %arg1[%c0, %c0_0, %c0_1] : memref<2x16x2048xbf16, #tpu.memory_space<vmem>>, vector<2x16x2048xbf16>
    %1 = vector.shape_cast %0 : vector<2x16x2048xbf16> to vector<32x2048xbf16>
    %c0_2 = arith.constant 0 : index
    %c0_3 = arith.constant 0 : index
    %2 = vector.load %arg6[%c0_2, %c0_3] : memref<2048x512xbf16, #tpu.memory_space<vmem>>, vector<2048x512xbf16>
    %cst = arith.constant dense<0.000000e+00> : vector<32x512xf32>
    %3 = tpu.matmul %1, %2, %cst {dimension_numbers = #tpu.dot_dimension_numbers<[1], [0], [0], [1], [0, 0, 1, 1], [], []>} : vector<32x2048xbf16>, vector<2048x512xbf16>, vector<32x512xf32> -> vector<32x512xf32>
    %c0_4 = arith.constant 0 : index
    %c0_5 = arith.constant 0 : index
    %4 = vector.load %arg7[%c0_4, %c0_5] : memref<1x512xf32, #tpu.memory_space<vmem>>, vector<1x512xf32>
    %5 = vector.broadcast %4 : vector<1x512xf32> to vector<32x512xf32>
    %6 = arith.addf %3, %5 : vector<32x512xf32>
    %7 = vector.shape_cast %6 : vector<32x512xf32> to vector<2x16x512xf32>
    %c0_6 = arith.constant 0 : index
    %c0_7 = arith.constant 0 : index
    %c0_8 = arith.constant 0 : index
    %8 = vector.load %arg2[%c0_6, %c0_7, %c0_8] : memref<2x41x512xf32, #tpu.memory_space<vmem>>, vector<2x41x512xf32>
    %c0_9 = arith.constant 0 : index
    %c0_10 = arith.constant 0 : index
    %c0_11 = arith.constant 0 : index
    %9 = vector.load %arg3[%c0_9, %c0_10, %c0_11] : memref<2x16x1xf32, #tpu.memory_space<vmem>>, vector<2x16x1xf32>
    %c0_12 = arith.constant 0 : index
    %c0_13 = arith.constant 0 : index
    %c0_14 = arith.constant 0 : index
    %10 = vector.load %arg4[%c0_12, %c0_13, %c0_14] : memref<2x1x41xf32, #tpu.memory_space<vmem>>, vector<2x1x41xf32>
    %c0_15 = arith.constant 0 : index
    %c0_16 = arith.constant 0 : index
    %c0_17 = arith.constant 0 : index
    %11 = vector.load %arg5[%c0_15, %c0_16, %c0_17] : memref<2x16x41xf32, #tpu.memory_space<vmem>>, vector<2x16x41xf32>
    %c0_18 = arith.constant 0 : index
    %c0_19 = arith.constant 0 : index
    %12 = vector.load %arg8[%c0_18, %c0_19] : memref<1x512xf32, #tpu.memory_space<vmem>>, vector<1x512xf32>
    %13 = vector.shape_cast %12 : vector<1x512xf32> to vector<1x1x512xf32>
    %c0_20 = arith.constant 0 : index
    %c0_21 = arith.constant 0 : index
    %14 = vector.load %arg9[%c0_20, %c0_21] : memref<1x512xf32, #tpu.memory_space<vmem>>, vector<1x512xf32>
    %15 = vector.shape_cast %14 : vector<1x512xf32> to vector<1x1x512xf32>
    %c0_22 = arith.constant 0 : index
    %c0_23 = arith.constant 0 : index
    %16 = vector.load %arg10[%c0_22, %c0_23] : memref<1x512xf32, #tpu.memory_space<vmem>>, vector<1x512xf32>
    %17 = vector.shape_cast %16 : vector<1x512xf32> to vector<1x1x512xf32>
    %c0_24 = arith.constant 0 : index
    %c0_25 = arith.constant 0 : index
    %18 = memref.load %arg11[%c0_24, %c0_25] : memref<1x1xf32, #tpu.memory_space<smem>>
    %19 = vector.broadcast %13 : vector<1x1x512xf32> to vector<2x16x512xf32>
    %20 = arith.mulf %7, %19 : vector<2x16x512xf32>
    %cst_26 = arith.constant dense<0.000000e+00> : vector<2x16xf32>
    %21 = vector.multi_reduction <add>, %20, %cst_26 [2] : vector<2x16x512xf32> to vector<2x16xf32>
    %22 = vector.shape_cast %21 : vector<2x16xf32> to vector<2x16x1xf32>
    %23 = vector.broadcast %15 : vector<1x1x512xf32> to vector<2x41x512xf32>
    %24 = arith.mulf %8, %23 : vector<2x41x512xf32>
    %cst_27 = arith.constant dense<0.000000e+00> : vector<2x41xf32>
    %25 = vector.multi_reduction <add>, %24, %cst_27 [2] : vector<2x41x512xf32> to vector<2x41xf32>
    %26 = vector.shape_cast %25 : vector<2x41xf32> to vector<2x1x41xf32>
    %27 = vector.broadcast %17 : vector<1x1x512xf32> to vector<2x16x512xf32>
    %28 = arith.mulf %7, %27 : vector<2x16x512xf32>
    "tpu.trace_start"() <{level = 10 : i32, message = "bld,bqd->blq"}> : () -> ()
    %cst_28 = arith.constant dense<0.000000e+00> : vector<2x16x41xf32>
    %29 = tpu.matmul %28, %8, %cst_28 {dimension_numbers = #tpu.dot_dimension_numbers<[2], [2], [1], [1], [0, 0, 0, 1, 1, 1], [0], [0]>} : vector<2x16x512xf32>, vector<2x41x512xf32>, vector<2x16x41xf32> -> vector<2x16x41xf32>
    "tpu.trace_stop"() : () -> ()
    %30 = vector.broadcast %22 : vector<2x16x1xf32> to vector<2x16x41xf32>
    %31 = vector.broadcast %26 : vector<2x1x41xf32> to vector<2x16x41xf32>
    %32 = arith.addf %30, %31 : vector<2x16x41xf32>
    %33 = arith.addf %32, %29 : vector<2x16x41xf32>
    %34 = vector.broadcast %18 : f32 to vector<2x16x41xf32>
    %35 = arith.addf %33, %34 : vector<2x16x41xf32>
    %36 = vector.broadcast %10 : vector<2x1x41xf32> to vector<2x16x41xf32>
    %37 = arith.mulf %35, %36 : vector<2x16x41xf32>
    %cst_29 = arith.constant 1.000000e+00 : f32
    %38 = vector.broadcast %cst_29 : f32 to vector<2x1x41xf32>
    %39 = arith.subf %38, %10 : vector<2x1x41xf32>
    %cst_30 = arith.constant -1.000000e+30 : f32
    %40 = vector.broadcast %cst_30 : f32 to vector<2x1x41xf32>
    %41 = arith.mulf %39, %40 : vector<2x1x41xf32>
    %42 = vector.broadcast %41 : vector<2x1x41xf32> to vector<2x16x41xf32>
    %43 = arith.addf %37, %42 : vector<2x16x41xf32>
    %cst_31 = arith.constant dense<0xFF800000> : vector<2x16xf32>
    %44 = vector.multi_reduction <maximumf>, %43, %cst_31 [2] : vector<2x16x41xf32> to vector<2x16xf32>
    %45 = vector.shape_cast %44 : vector<2x16xf32> to vector<2x16x1xf32>
    %46 = vector.broadcast %45 : vector<2x16x1xf32> to vector<2x16x41xf32>
    %47 = arith.subf %43, %46 : vector<2x16x41xf32>
    %48 = math.exp %47 : vector<2x16x41xf32>
    %cst_32 = arith.constant dense<0.000000e+00> : vector<2x16xf32>
    %49 = vector.multi_reduction <add>, %48, %cst_32 [2] : vector<2x16x41xf32> to vector<2x16xf32>
    %50 = vector.shape_cast %49 : vector<2x16xf32> to vector<2x16x1xf32>
    %51 = tpu.reciprocal %50 {approx = true} : vector<2x16x1xf32> -> vector<2x16x1xf32>
    %52 = vector.broadcast %51 : vector<2x16x1xf32> to vector<2x16x41xf32>
    %53 = arith.mulf %48, %52 : vector<2x16x41xf32>
    %54 = vector.broadcast %9 : vector<2x16x1xf32> to vector<2x16x41xf32>
    %55 = arith.mulf %35, %54 : vector<2x16x41xf32>
    %cst_33 = arith.constant 1.000000e+00 : f32
    %56 = vector.broadcast %cst_33 : f32 to vector<2x16x1xf32>
    %57 = arith.subf %56, %9 : vector<2x16x1xf32>
    %cst_34 = arith.constant -1.000000e+30 : f32
    %58 = vector.broadcast %cst_34 : f32 to vector<2x16x1xf32>
    %59 = arith.mulf %57, %58 : vector<2x16x1xf32>
    %60 = vector.broadcast %59 : vector<2x16x1xf32> to vector<2x16x41xf32>
    %61 = arith.addf %55, %60 : vector<2x16x41xf32>
    %cst_35 = arith.constant dense<0xFF800000> : vector<2x41xf32>
    %62 = vector.multi_reduction <maximumf>, %61, %cst_35 [1] : vector<2x16x41xf32> to vector<2x41xf32>
    %63 = vector.shape_cast %62 : vector<2x41xf32> to vector<2x1x41xf32>
    %64 = vector.broadcast %63 : vector<2x1x41xf32> to vector<2x16x41xf32>
    %65 = arith.subf %61, %64 : vector<2x16x41xf32>
    %66 = math.exp %65 : vector<2x16x41xf32>
    %cst_36 = arith.constant dense<0.000000e+00> : vector<2x41xf32>
    %67 = vector.multi_reduction <add>, %66, %cst_36 [1] : vector<2x16x41xf32> to vector<2x41xf32>
    %68 = vector.shape_cast %67 : vector<2x41xf32> to vector<2x1x41xf32>
    %69 = tpu.reciprocal %68 {approx = true} : vector<2x1x41xf32> -> vector<2x1x41xf32>
    %70 = vector.broadcast %69 : vector<2x1x41xf32> to vector<2x16x41xf32>
    %71 = arith.mulf %66, %70 : vector<2x16x41xf32>
    "tpu.trace_start"() <{level = 10 : i32, message = "blq,bqd->bld"}> : () -> ()
    %cst_37 = arith.constant dense<0.000000e+00> : vector<2x16x512xf32>
    %72 = tpu.matmul %53, %8, %cst_37 {dimension_numbers = #tpu.dot_dimension_numbers<[2], [1], [1], [2], [0, 0, 0, 1, 1, 2], [0], [0]>} : vector<2x16x41xf32>, vector<2x41x512xf32>, vector<2x16x512xf32> -> vector<2x16x512xf32>
    "tpu.trace_stop"() : () -> ()
    "tpu.trace_start"() <{level = 10 : i32, message = "blq,bkq->blk"}> : () -> ()
    %cst_38 = arith.constant dense<0.000000e+00> : vector<2x16x16xf32>
    %73 = tpu.matmul %53, %71, %cst_38 {dimension_numbers = #tpu.dot_dimension_numbers<[2], [2], [1], [1], [0, 0, 0, 1, 1, 1], [0], [0]>} : vector<2x16x41xf32>, vector<2x16x41xf32>, vector<2x16x16xf32> -> vector<2x16x16xf32>
    "tpu.trace_stop"() : () -> ()
    "tpu.trace_start"() <{level = 10 : i32, message = "blk,bkd->bld"}> : () -> ()
    %cst_39 = arith.constant dense<0.000000e+00> : vector<2x16x512xf32>
    %74 = tpu.matmul %73, %7, %cst_39 {dimension_numbers = #tpu.dot_dimension_numbers<[2], [1], [1], [2], [0, 0, 0, 1, 1, 2], [0], [0]>} : vector<2x16x16xf32>, vector<2x16x512xf32>, vector<2x16x512xf32> -> vector<2x16x512xf32>
    "tpu.trace_stop"() : () -> ()
    %75 = vector.broadcast %10 : vector<2x1x41xf32> to vector<2x16x41xf32>
    %76 = arith.mulf %11, %75 : vector<2x16x41xf32>
    %cst_40 = arith.constant 1.000000e+00 : f32
    %77 = vector.broadcast %cst_40 : f32 to vector<2x1x41xf32>
    %78 = arith.subf %77, %10 : vector<2x1x41xf32>
    %cst_41 = arith.constant -1.000000e+30 : f32
    %79 = vector.broadcast %cst_41 : f32 to vector<2x1x41xf32>
    %80 = arith.mulf %78, %79 : vector<2x1x41xf32>
    %81 = vector.broadcast %80 : vector<2x1x41xf32> to vector<2x16x41xf32>
    %82 = arith.addf %76, %81 : vector<2x16x41xf32>
    %cst_42 = arith.constant dense<0xFF800000> : vector<2x16xf32>
    %83 = vector.multi_reduction <maximumf>, %82, %cst_42 [2] : vector<2x16x41xf32> to vector<2x16xf32>
    %84 = vector.shape_cast %83 : vector<2x16xf32> to vector<2x16x1xf32>
    %85 = vector.broadcast %84 : vector<2x16x1xf32> to vector<2x16x41xf32>
    %86 = arith.subf %82, %85 : vector<2x16x41xf32>
    %87 = math.exp %86 : vector<2x16x41xf32>
    %cst_43 = arith.constant dense<0.000000e+00> : vector<2x16xf32>
    %88 = vector.multi_reduction <add>, %87, %cst_43 [2] : vector<2x16x41xf32> to vector<2x16xf32>
    %89 = vector.shape_cast %88 : vector<2x16xf32> to vector<2x16x1xf32>
    %90 = tpu.reciprocal %89 {approx = true} : vector<2x16x1xf32> -> vector<2x16x1xf32>
    %91 = vector.broadcast %90 : vector<2x16x1xf32> to vector<2x16x41xf32>
    %92 = arith.mulf %87, %91 : vector<2x16x41xf32>
    %93 = vector.broadcast %9 : vector<2x16x1xf32> to vector<2x16x41xf32>
    %94 = arith.mulf %11, %93 : vector<2x16x41xf32>
    %cst_44 = arith.constant 1.000000e+00 : f32
    %95 = vector.broadcast %cst_44 : f32 to vector<2x16x1xf32>
    %96 = arith.subf %95, %9 : vector<2x16x1xf32>
    %cst_45 = arith.constant -1.000000e+30 : f32
    %97 = vector.broadcast %cst_45 : f32 to vector<2x16x1xf32>
    %98 = arith.mulf %96, %97 : vector<2x16x1xf32>
    %99 = vector.broadcast %98 : vector<2x16x1xf32> to vector<2x16x41xf32>
    %100 = arith.addf %94, %99 : vector<2x16x41xf32>
    %cst_46 = arith.constant dense<0xFF800000> : vector<2x41xf32>
    %101 = vector.multi_reduction <maximumf>, %100, %cst_46 [1] : vector<2x16x41xf32> to vector<2x41xf32>
    %102 = vector.shape_cast %101 : vector<2x41xf32> to vector<2x1x41xf32>
    %103 = vector.broadcast %102 : vector<2x1x41xf32> to vector<2x16x41xf32>
    %104 = arith.subf %100, %103 : vector<2x16x41xf32>
    %105 = math.exp %104 : vector<2x16x41xf32>
    %cst_47 = arith.constant dense<0.000000e+00> : vector<2x41xf32>
    %106 = vector.multi_reduction <add>, %105, %cst_47 [1] : vector<2x16x41xf32> to vector<2x41xf32>
    %107 = vector.shape_cast %106 : vector<2x41xf32> to vector<2x1x41xf32>
    %108 = tpu.reciprocal %107 {approx = true} : vector<2x1x41xf32> -> vector<2x1x41xf32>
    %109 = vector.broadcast %108 : vector<2x1x41xf32> to vector<2x16x41xf32>
    %110 = arith.mulf %105, %109 : vector<2x16x41xf32>
    "tpu.trace_start"() <{level = 10 : i32, message = "blq,bqd->bld"}> : () -> ()
    %cst_48 = arith.constant dense<0.000000e+00> : vector<2x16x512xf32>
    %111 = tpu.matmul %92, %8, %cst_48 {dimension_numbers = #tpu.dot_dimension_numbers<[2], [1], [1], [2], [0, 0, 0, 1, 1, 2], [0], [0]>} : vector<2x16x41xf32>, vector<2x41x512xf32>, vector<2x16x512xf32> -> vector<2x16x512xf32>
    "tpu.trace_stop"() : () -> ()
    "tpu.trace_start"() <{level = 10 : i32, message = "blq,bkq->blk"}> : () -> ()
    %cst_49 = arith.constant dense<0.000000e+00> : vector<2x16x16xf32>
    %112 = tpu.matmul %92, %110, %cst_49 {dimension_numbers = #tpu.dot_dimension_numbers<[2], [2], [1], [1], [0, 0, 0, 1, 1, 1], [0], [0]>} : vector<2x16x41xf32>, vector<2x16x41xf32>, vector<2x16x16xf32> -> vector<2x16x16xf32>
    "tpu.trace_stop"() : () -> ()
    "tpu.trace_start"() <{level = 10 : i32, message = "blk,bkd->bld"}> : () -> ()
    %cst_50 = arith.constant dense<0.000000e+00> : vector<2x16x512xf32>
    %113 = tpu.matmul %112, %7, %cst_50 {dimension_numbers = #tpu.dot_dimension_numbers<[2], [1], [1], [2], [0, 0, 0, 1, 1, 2], [0], [0]>} : vector<2x16x16xf32>, vector<2x16x512xf32>, vector<2x16x512xf32> -> vector<2x16x512xf32>
    "tpu.trace_stop"() : () -> ()
    %114 = arith.subf %72, %111 : vector<2x16x512xf32>
    %115 = arith.subf %74, %113 : vector<2x16x512xf32>
    %c0_51 = arith.constant 0 : index
    %c0_52 = arith.constant 0 : index
    %c0_53 = arith.constant 0 : index
    %116 = vector.load %arg13[%c0_51, %c0_52, %c0_53] : memref<2x16x512xf32, #tpu.memory_space<vmem>>, vector<2x16x512xf32>
    tpu.vector_store %arg13[%c0_51, %c0_52, %c0_53], %7 {strides = array<i32>} : memref<2x16x512xf32, #tpu.memory_space<vmem>>, vector<2x16x512xf32>,
    %c0_54 = arith.constant 0 : index
    %c0_55 = arith.constant 0 : index
    %c0_56 = arith.constant 0 : index
    %117 = vector.load %arg12[%c0_54, %c0_55, %c0_56] : memref<2x16x2048xf32, #tpu.memory_space<vmem>>, vector<2x16x512xf32>
    tpu.vector_store %arg12[%c0_54, %c0_55, %c0_56], %7 {strides = array<i32>} : memref<2x16x2048xf32, #tpu.memory_space<vmem>>, vector<2x16x512xf32>,
    %c0_57 = arith.constant 0 : index
    %c0_58 = arith.constant 0 : index
    %c512 = arith.constant 512 : index
    %118 = vector.load %arg12[%c0_57, %c0_58, %c512] : memref<2x16x2048xf32, #tpu.memory_space<vmem>>, vector<2x16x512xf32>
    tpu.vector_store %arg12[%c0_57, %c0_58, %c512], %72 {strides = array<i32>} : memref<2x16x2048xf32, #tpu.memory_space<vmem>>, vector<2x16x512xf32>,
    %119 = arith.mulf %7, %72 : vector<2x16x512xf32>
    %c0_59 = arith.constant 0 : index
    %c0_60 = arith.constant 0 : index
    %c1024 = arith.constant 1024 : index
    %120 = vector.load %arg12[%c0_59, %c0_60, %c1024] : memref<2x16x2048xf32, #tpu.memory_space<vmem>>, vector<2x16x512xf32>
    tpu.vector_store %arg12[%c0_59, %c0_60, %c1024], %119 {strides = array<i32>} : memref<2x16x2048xf32, #tpu.memory_space<vmem>>, vector<2x16x512xf32>,
    %121 = arith.mulf %7, %74 : vector<2x16x512xf32>
    %c0_61 = arith.constant 0 : index
    %c0_62 = arith.constant 0 : index
    %c1536 = arith.constant 1536 : index
    %122 = vector.load %arg12[%c0_61, %c0_62, %c1536] : memref<2x16x2048xf32, #tpu.memory_space<vmem>>, vector<2x16x512xf32>
    tpu.vector_store %arg12[%c0_61, %c0_62, %c1536], %121 {strides = array<i32>} : memref<2x16x2048xf32, #tpu.memory_space<vmem>>, vector<2x16x512xf32>,
    %c0_63 = arith.constant 0 : index
    %c0_64 = arith.constant 0 : index
    %c0_65 = arith.constant 0 : index
    %123 = vector.load %arg14[%c0_63, %c0_64, %c0_65] : memref<2x16x2048xf32, #tpu.memory_space<vmem>>, vector<2x16x512xf32>
    tpu.vector_store %arg14[%c0_63, %c0_64, %c0_65], %7 {strides = array<i32>} : memref<2x16x2048xf32, #tpu.memory_space<vmem>>, vector<2x16x512xf32>,
    %c0_66 = arith.constant 0 : index
    %c0_67 = arith.constant 0 : index
    %c512_68 = arith.constant 512 : index
    %124 = vector.load %arg14[%c0_66, %c0_67, %c512_68] : memref<2x16x2048xf32, #tpu.memory_space<vmem>>, vector<2x16x512xf32>
    tpu.vector_store %arg14[%c0_66, %c0_67, %c512_68], %114 {strides = array<i32>} : memref<2x16x2048xf32, #tpu.memory_space<vmem>>, vector<2x16x512xf32>,
    %125 = arith.mulf %7, %114 : vector<2x16x512xf32>
    %c0_69 = arith.constant 0 : index
    %c0_70 = arith.constant 0 : index
    %c1024_71 = arith.constant 1024 : index
    %126 = vector.load %arg14[%c0_69, %c0_70, %c1024_71] : memref<2x16x2048xf32, #tpu.memory_space<vmem>>, vector<2x16x512xf32>
    tpu.vector_store %arg14[%c0_69, %c0_70, %c1024_71], %125 {strides = array<i32>} : memref<2x16x2048xf32, #tpu.memory_space<vmem>>, vector<2x16x512xf32>,
    %127 = arith.mulf %7, %115 : vector<2x16x512xf32>
    %c0_72 = arith.constant 0 : index
    %c0_73 = arith.constant 0 : index
    %c1536_74 = arith.constant 1536 : index
    %128 = vector.load %arg14[%c0_72, %c0_73, %c1536_74] : memref<2x16x2048xf32, #tpu.memory_space<vmem>>, vector<2x16x512xf32>
    tpu.vector_store %arg14[%c0_72, %c0_73, %c1536_74], %127 {strides = array<i32>} : memref<2x16x2048xf32, #tpu.memory_space<vmem>>, vector<2x16x512xf32>,
    return
  }
  func.func @transform_0(%arg0: i32) -> (i32, i32, i32) {
    %c0_i32 = arith.constant 0 : i32
    %c0_i32_0 = arith.constant 0 : i32
    %c0_i32_1 = arith.constant 0 : i32
    return %arg0, %c0_i32, %c0_i32_0 : i32, i32, i32
  }
  func.func @transform_1(%arg0: i32) -> (i32, i32, i32) {
    %c0_i32 = arith.constant 0 : i32
    %c0_i32_0 = arith.constant 0 : i32
    %c0_i32_1 = arith.constant 0 : i32
    return %arg0, %c0_i32, %c0_i32_0 : i32, i32, i32
  }
  func.func @transform_2(%arg0: i32) -> (i32, i32, i32) {
    %c0_i32 = arith.constant 0 : i32
    %c0_i32_0 = arith.constant 0 : i32
    %c0_i32_1 = arith.constant 0 : i32
    return %arg0, %c0_i32, %c0_i32_0 : i32, i32, i32
  }
  func.func @transform_3(%arg0: i32) -> (i32, i32, i32) {
    %c0_i32 = arith.constant 0 : i32
    %c0_i32_0 = arith.constant 0 : i32
    %c0_i32_1 = arith.constant 0 : i32
    return %arg0, %c0_i32, %c0_i32_0 : i32, i32, i32
  }
  func.func @transform_4(%arg0: i32) -> (i32, i32, i32) {
    %c0_i32 = arith.constant 0 : i32
    %c0_i32_0 = arith.constant 0 : i32
    %c0_i32_1 = arith.constant 0 : i32
    return %arg0, %c0_i32, %c0_i32_0 : i32, i32, i32
  }
  func.func @transform_5(%arg0: i32) -> (i32, i32) {
    %c0_i32 = arith.constant 0 : i32
    %c0_i32_0 = arith.constant 0 : i32
    %c0_i32_1 = arith.constant 0 : i32
    return %c0_i32, %c0_i32_0 : i32, i32
  }
  func.func @transform_6(%arg0: i32) -> (i32, i32) {
    %c0_i32 = arith.constant 0 : i32
    %c0_i32_0 = arith.constant 0 : i32
    %c0_i32_1 = arith.constant 0 : i32
    return %c0_i32, %c0_i32_0 : i32, i32
  }
  func.func @transform_7(%arg0: i32) -> (i32, i32) {
    %c0_i32 = arith.constant 0 : i32
    %c0_i32_0 = arith.constant 0 : i32
    %c0_i32_1 = arith.constant 0 : i32
    return %c0_i32, %c0_i32_0 : i32, i32
  }
  func.func @transform_8(%arg0: i32) -> (i32, i32) {
    %c0_i32 = arith.constant 0 : i32
    %c0_i32_0 = arith.constant 0 : i32
    %c0_i32_1 = arith.constant 0 : i32
    return %c0_i32, %c0_i32_0 : i32, i32
  }
  func.func @transform_9(%arg0: i32) -> (i32, i32) {
    %c0_i32 = arith.constant 0 : i32
    %c0_i32_0 = arith.constant 0 : i32
    %c0_i32_1 = arith.constant 0 : i32
    return %c0_i32, %c0_i32_0 : i32, i32
  }
  func.func @transform_10(%arg0: i32) -> (i32, i32) {
    %c0_i32 = arith.constant 0 : i32
    %c0_i32_0 = arith.constant 0 : i32
    %c0_i32_1 = arith.constant 0 : i32
    return %c0_i32, %c0_i32_0 : i32, i32
  }
  func.func @transform_11(%arg0: i32) -> (i32, i32, i32) {
    %c0_i32 = arith.constant 0 : i32
    %c0_i32_0 = arith.constant 0 : i32
    %c0_i32_1 = arith.constant 0 : i32
    return %arg0, %c0_i32, %c0_i32_0 : i32, i32, i32
  }
  func.func @transform_12(%arg0: i32) -> (i32, i32, i32) {
    %c0_i32 = arith.constant 0 : i32
    %c0_i32_0 = arith.constant 0 : i32
    %c0_i32_1 = arith.constant 0 : i32
    return %arg0, %c0_i32, %c0_i32_0 : i32, i32, i32
  }
  func.func @transform_13(%arg0: i32) -> (i32, i32, i32) {
    %c0_i32 = arith.constant 0 : i32
    %c0_i32_0 = arith.constant 0 : i32
    %c0_i32_1 = arith.constant 0 : i32
    return %arg0, %c0_i32, %c0_i32_0 : i32, i32, i32
  }
}

</mosaic_0001>

<llo_original>
// kernel: vq_attention_counter.1
$region0: #{vq_attention_counter.1}
  #allocation0 [shape = 'u32[]', space=smem, size = 0x4, offset = 0x4, fixed_abs, tag = 'smem constant byte address 0x4 - core index']
  #allocation1 [shape = 'u32[144,128]{1,0:T(1,128)}', space=vmem, size = 0x12000, scoped, tag = 'internal scratch']
  #allocation2 [shape = 'f32[1,1]{1,0:T(1,128)S(6)}', space=smem, size = 0x200, scoped, tag = 'scoped memory for vq_attention_counter.1']
  %s0 = inlined_call_operand.vmem [shape: bf16[4,16,2048], index: 0, kind: input, shape index: {}]
  %s1 = inlined_call_operand.vmem [shape: f32[4,41,512], index: 1, kind: input, shape index: {}]
  %s2 = inlined_call_operand.vmem [shape: f32[4,16,1], index: 2, kind: input, shape index: {}]
  %s3 = inlined_call_operand.vmem [shape: f32[4,1,41], index: 3, kind: input, shape index: {}]
  %s4 = inlined_call_operand.vmem [shape: f32[4,16,41], index: 4, kind: input, shape index: {}]
  %s5 = inlined_call_operand.vmem [shape: bf16[2048,512], index: 5, kind: input, shape index: {}]
  %s6 = inlined_call_operand.vmem [shape: f32[1,512], index: 6, kind: input, shape index: {}]
  %s7 = inlined_call_operand.vmem [shape: f32[1,512], index: 7, kind: input, shape index: {}]
  %s8 = inlined_call_operand.vmem [shape: f32[1,512], index: 8, kind: input, shape index: {}]
  %s9 = inlined_call_operand.vmem [shape: f32[1,512], index: 9, kind: input, shape index: {}]
  %s10 = inlined_call_operand.<no memory space> [shape: f32[1,1], index: 10, kind: input, shape index: {}]
  %s11 = inlined_call_operand.hbm [shape: f32[4,16,2048], index: 11, kind: output, shape index: {0}]
  %s12 = inlined_call_operand.hbm [shape: f32[4,16,512], index: 12, kind: output, shape index: {1}]
  %s13 = inlined_call_operand.hbm [shape: f32[4,16,2048], index: 13, kind: output, shape index: {2}]
  %14 = xla_tuple %s11, %s12, %s13
  %s15 = sld [smem:[#allocation0]]
  $region93: #{vq_attention_counter.1} parent=0
    _
  %s17 = ssub.s32 1, %s15
  %s18 = scalar_select 0, %s17, %s15
  %19 = sst [smem:[#allocation2]] %s10
  $region1: #{vq_attention_counter.1} parent=0
    #allocation3 [shape = 'u8[524288]{0}', space=vmem, size = 0x80000, scoped, tag = 'output window, operand 0']
    #allocation4 [shape = 's32[2]{0}', space=sflag, size = 0x8, scoped, tag = 'scoped memory for vq_attention_counter.1']
    #allocation5 [shape = 'u8[131072]{0}', space=vmem, size = 0x20000, scoped, tag = 'output window, operand 1']
    #allocation6 [shape = 's32[2]{0}', space=sflag, size = 0x8, scoped, tag = 'scoped memory for vq_attention_counter.1']
    #allocation7 [shape = 'u8[524288]{0}', space=vmem, size = 0x80000, scoped, tag = 'output window, operand 2']
    %20 = vsyncpa [#allocation4], 0
    %s21 = scalar_lea.sflag [#allocation4], 1
    %22 = vsyncpa %s21, 0
    %23 = vsyncpa [#allocation6], 0
    %s24 = scalar_lea.sflag [#allocation6], 1
    %25 = vsyncpa %s24, 0
    loop: start=0, step=1, limit=4
    $region2: #{vq_attention_counter.1} parent=1 // loop_pre_header
      _
    $region3: #{vq_attention_counter.1} parent=1 // loop_header
      %s27 = sphi 0, %s31
      %p28 = scmp.ge.s32.totalorder %s27, 4
      %s37 = sphi 0, %s39
      %s40 = sphi 0, %s37
      %s41 = sphi 0, %s40
      %s57 = sphi 0, %s41
      %s63 = sphi 0, %s65
      %s66 = sphi 0, %s63
      %s67 = sphi 0, %s66
      %s83 = sphi 0, %s67
      %s89 = sphi 0, %s91
      %s92 = sphi 0, %s89
      %s93 = sphi 0, %s92
      %s109 = sphi 0, %s93
      %s115 = sphi 0, %s117
      %s118 = sphi 0, %s115
      %s119 = sphi 0, %s118
      %s135 = sphi 0, %s119
      %s141 = sphi 0, %s143
      %s144 = sphi 0, %s141
      %s145 = sphi 0, %s144
      %s161 = sphi 0, %s145
      %s165 = sphi 0, %s165
      %s167 = sphi 0, %s165
      %s168 = sphi 0, %s167
      %s182 = sphi 0, %s168
      %s186 = sphi 0, %s186
      %s188 = sphi 0, %s186
      %s189 = sphi 0, %s188
      %s203 = sphi 0, %s189
      %s207 = sphi 0, %s207
      %s209 = sphi 0, %s207
      %s210 = sphi 0, %s209
      %s224 = sphi 0, %s210
      %s228 = sphi 0, %s228
      %s230 = sphi 0, %s228
      %s231 = sphi 0, %s230
      %s245 = sphi 0, %s231
      %s249 = sphi 0, %s249
      %s251 = sphi 0, %s249
      %s252 = sphi 0, %s251
      %s266 = sphi 0, %s252
      %s270 = sphi 0, %s270
      %s272 = sphi 0, %s270
      %s273 = sphi 0, %s272
      %s287 = sphi 0, %s273
      %s293 = sphi 0, %s295
      %s296 = sphi 0, %s293
      %s297 = sphi 0, %s296
      %s313 = sphi 0, %s297
      %s319 = sphi 0, %s321
      %s322 = sphi 0, %s319
      %s323 = sphi 0, %s322
      %s339 = sphi 0, %s323
      %s345 = sphi 0, %s347
      %s348 = sphi 0, %s345
      %s349 = sphi 0, %s348
      %s365 = sphi 0, %s349
    $region4: #{vq_attention_counter.1} parent=1 // loop_header_branch
      %30 = sbr.rel (%p28) target = $region8
    $region5: #{vq_attention_counter.1} parent=1 // loop_body
      %s32 = ssub.s32 %s27, 1
      %s33 = ssub.s32 %s27, 2
      %s34 = sadd.s32 %s27, 1
      %s35 = ssub.s32 %s27, %s34
      %p36 = scmp.eq.s32.totalorder %s35, 0
      %s38 = sadd.s32 %s37, 1
      %s39 = scalar_select %p36, %s37, %s38
      %p42 = pneg %p36
      %p43 = scmp.eq.s32.totalorder %s27, 1
      %p44 = por %p42, %p43
      %p45 = scmp.ne.s32.totalorder %s37, %s40
      %p46 = scmp.eq.s32.totalorder %s27, 0
      %p47 = por %p45, %p46
      %p48 = scmp.ne.s32.totalorder %s37, %s40
      %p49 = scmp.eq.s32.totalorder %s32, 1
      %p50 = por %p48, %p49
      %p51 = scmp.ne.s32.totalorder %s40, %s41
      %p52 = scmp.eq.s32.totalorder %s32, 0
      %p53 = por %p51, %p52
      %p54 = scmp.ne.s32.totalorder %s40, %s41
      %p55 = scmp.eq.s32.totalorder %s33, 1
      %p56 = por %p54, %p55
      %p58 = scmp.ne.s32.totalorder %s41, %s57
      %p59 = scmp.eq.s32.totalorder %s33, 0
      %p60 = por %p58, %p59
      %s61 = ssub.s32 %s27, %s34
      %p62 = scmp.eq.s32.totalorder %s61, 0
      %s64 = sadd.s32 %s63, 1
      %s65 = scalar_select %p62, %s63, %s64
      %p68 = pneg %p62
      %p69 = scmp.eq.s32.totalorder %s27, 1
      %p70 = por %p68, %p69
      %p71 = scmp.ne.s32.totalorder %s63, %s66
      %p72 = scmp.eq.s32.totalorder %s27, 0
      %p73 = por %p71, %p72
      %p74 = scmp.ne.s32.totalorder %s63, %s66
      %p75 = scmp.eq.s32.totalorder %s32, 1
      %p76 = por %p74, %p75
      %p77 = scmp.ne.s32.totalorder %s66, %s67
      %p78 = scmp.eq.s32.totalorder %s32, 0
      %p79 = por %p77, %p78
      %p80 = scmp.ne.s32.totalorder %s66, %s67
      %p81 = scmp.eq.s32.totalorder %s33, 1
      %p82 = por %p80, %p81
      %p84 = scmp.ne.s32.totalorder %s67, %s83
      %p85 = scmp.eq.s32.totalorder %s33, 0
      %p86 = por %p84, %p85
      %s87 = ssub.s32 %s27, %s34
      %p88 = scmp.eq.s32.totalorder %s87, 0
      %s90 = sadd.s32 %s89, 1
      %s91 = scalar_select %p88, %s89, %s90
      %p94 = pneg %p88
      %p95 = scmp.eq.s32.totalorder %s27, 1
      %p96 = por %p94, %p95
      %p97 = scmp.ne.s32.totalorder %s89, %s92
      %p98 = scmp.eq.s32.totalorder %s27, 0
      %p99 = por %p97, %p98
      %p100 = scmp.ne.s32.totalorder %s89, %s92
      %p101 = scmp.eq.s32.totalorder %s32, 1
      %p102 = por %p100, %p101
      %p103 = scmp.ne.s32.totalorder %s92, %s93
      %p104 = scmp.eq.s32.totalorder %s32, 0
      %p105 = por %p103, %p104
      %p106 = scmp.ne.s32.totalorder %s92, %s93
      %p107 = scmp.eq.s32.totalorder %s33, 1
      %p108 = por %p106, %p107
      %p110 = scmp.ne.s32.totalorder %s93, %s109
      %p111 = scmp.eq.s32.totalorder %s33, 0
      %p112 = por %p110, %p111
      %s113 = ssub.s32 %s27, %s34
      %p114 = scmp.eq.s32.totalorder %s113, 0
      %s116 = sadd.s32 %s115, 1
      %s117 = scalar_select %p114, %s115, %s116
      %p120 = pneg %p114
      %p121 = scmp.eq.s32.totalorder %s27, 1
      %p122 = por %p120, %p121
      %p123 = scmp.ne.s32.totalorder %s115, %s118
      %p124 = scmp.eq.s32.totalorder %s27, 0
      %p125 = por %p123, %p124
      %p126 = scmp.ne.s32.totalorder %s115, %s118
      %p127 = scmp.eq.s32.totalorder %s32, 1
      %p128 = por %p126, %p127
      %p129 = scmp.ne.s32.totalorder %s118, %s119
      %p130 = scmp.eq.s32.totalorder %s32, 0
      %p131 = por %p129, %p130
      %p132 = scmp.ne.s32.totalorder %s118, %s119
      %p133 = scmp.eq.s32.totalorder %s33, 1
      %p134 = por %p132, %p133
      %p136 = scmp.ne.s32.totalorder %s119, %s135
      %p137 = scmp.eq.s32.totalorder %s33, 0
      %p138 = por %p136, %p137
      %s139 = ssub.s32 %s27, %s34
      %p140 = scmp.eq.s32.totalorder %s139, 0
      %s142 = sadd.s32 %s141, 1
      %s143 = scalar_select %p140, %s141, %s142
      %p146 = pneg %p140
      %p147 = scmp.eq.s32.totalorder %s27, 1
      %p148 = por %p146, %p147
      %p149 = scmp.ne.s32.totalorder %s141, %s144
      %p150 = scmp.eq.s32.totalorder %s27, 0
      %p151 = por %p149, %p150
      %p152 = scmp.ne.s32.totalorder %s141, %s144
      %p153 = scmp.eq.s32.totalorder %s32, 1
      %p154 = por %p152, %p153
      %p155 = scmp.ne.s32.totalorder %s144, %s145
      %p156 = scmp.eq.s32.totalorder %s32, 0
      %p157 = por %p155, %p156
      %p158 = scmp.ne.s32.totalorder %s144, %s145
      %p159 = scmp.eq.s32.totalorder %s33, 1
      %p160 = por %p158, %p159
      %p162 = scmp.ne.s32.totalorder %s145, %s161
      %p163 = scmp.eq.s32.totalorder %s33, 0
      %p164 = por %p162, %p163
      %s166 = sadd.s32 %s165, 1
      %p169 = scmp.eq.s32.totalorder %s27, 1
      %p170 = scmp.ne.s32.totalorder %s165, %s167
      %p171 = scmp.eq.s32.totalorder %s27, 0
      %p172 = por %p170, %p171
      %p173 = scmp.ne.s32.totalorder %s165, %s167
      %p174 = scmp.eq.s32.totalorder %s32, 1
      %p175 = por %p173, %p174
      %p176 = scmp.ne.s32.totalorder %s167, %s168
      %p177 = scmp.eq.s32.totalorder %s32, 0
      %p178 = por %p176, %p177
      %p179 = scmp.ne.s32.totalorder %s167, %s168
      %p180 = scmp.eq.s32.totalorder %s33, 1
      %p181 = por %p179, %p180
      %p183 = scmp.ne.s32.totalorder %s168, %s182
      %p184 = scmp.eq.s32.totalorder %s33, 0
      %p185 = por %p183, %p184
      %s187 = sadd.s32 %s186, 1
      %p190 = scmp.eq.s32.totalorder %s27, 1
      %p191 = scmp.ne.s32.totalorder %s186, %s188
      %p192 = scmp.eq.s32.totalorder %s27, 0
      %p193 = por %p191, %p192
      %p194 = scmp.ne.s32.totalorder %s186, %s188
      %p195 = scmp.eq.s32.totalorder %s32, 1
      %p196 = por %p194, %p195
      %p197 = scmp.ne.s32.totalorder %s188, %s189
      %p198 = scmp.eq.s32.totalorder %s32, 0
      %p199 = por %p197, %p198
      %p200 = scmp.ne.s32.totalorder %s188, %s189
      %p201 = scmp.eq.s32.totalorder %s33, 1
      %p202 = por %p200, %p201
      %p204 = scmp.ne.s32.totalorder %s189, %s203
      %p205 = scmp.eq.s32.totalorder %s33, 0
      %p206 = por %p204, %p205
      %s208 = sadd.s32 %s207, 1
      %p211 = scmp.eq.s32.totalorder %s27, 1
      %p212 = scmp.ne.s32.totalorder %s207, %s209
      %p213 = scmp.eq.s32.totalorder %s27, 0
      %p214 = por %p212, %p213
      %p215 = scmp.ne.s32.totalorder %s207, %s209
      %p216 = scmp.eq.s32.totalorder %s32, 1
      %p217 = por %p215, %p216
      %p218 = scmp.ne.s32.totalorder %s209, %s210
      %p219 = scmp.eq.s32.totalorder %s32, 0
      %p220 = por %p218, %p219
      %p221 = scmp.ne.s32.totalorder %s209, %s210
      %p222 = scmp.eq.s32.totalorder %s33, 1
      %p223 = por %p221, %p222
      %p225 = scmp.ne.s32.totalorder %s210, %s224
      %p226 = scmp.eq.s32.totalorder %s33, 0
      %p227 = por %p225, %p226
      %s229 = sadd.s32 %s228, 1
      %p232 = scmp.eq.s32.totalorder %s27, 1
      %p233 = scmp.ne.s32.totalorder %s228, %s230
      %p234 = scmp.eq.s32.totalorder %s27, 0
      %p235 = por %p233, %p234
      %p236 = scmp.ne.s32.totalorder %s228, %s230
      %p237 = scmp.eq.s32.totalorder %s32, 1
      %p238 = por %p236, %p237
      %p239 = scmp.ne.s32.totalorder %s230, %s231
      %p240 = scmp.eq.s32.totalorder %s32, 0
      %p241 = por %p239, %p240
      %p242 = scmp.ne.s32.totalorder %s230, %s231
      %p243 = scmp.eq.s32.totalorder %s33, 1
      %p244 = por %p242, %p243
      %p246 = scmp.ne.s32.totalorder %s231, %s245
      %p247 = scmp.eq.s32.totalorder %s33, 0
      %p248 = por %p246, %p247
      %s250 = sadd.s32 %s249, 1
      %p253 = scmp.eq.s32.totalorder %s27, 1
      %p254 = scmp.ne.s32.totalorder %s249, %s251
      %p255 = scmp.eq.s32.totalorder %s27, 0
      %p256 = por %p254, %p255
      %p257 = scmp.ne.s32.totalorder %s249, %s251
      %p258 = scmp.eq.s32.totalorder %s32, 1
      %p259 = por %p257, %p258
      %p260 = scmp.ne.s32.totalorder %s251, %s252
      %p261 = scmp.eq.s32.totalorder %s32, 0
      %p262 = por %p260, %p261
      %p263 = scmp.ne.s32.totalorder %s251, %s252
      %p264 = scmp.eq.s32.totalorder %s33, 1
      %p265 = por %p263, %p264
      %p267 = scmp.ne.s32.totalorder %s252, %s266
      %p268 = scmp.eq.s32.totalorder %s33, 0
      %p269 = por %p267, %p268
      %s271 = sadd.s32 %s270, 1
      %p274 = scmp.eq.s32.totalorder %s27, 1
      %p275 = scmp.ne.s32.totalorder %s270, %s272
      %p276 = scmp.eq.s32.totalorder %s27, 0
      %p277 = por %p275, %p276
      %p278 = scmp.ne.s32.totalorder %s270, %s272
      %p279 = scmp.eq.s32.totalorder %s32, 1
      %p280 = por %p278, %p279
      %p281 = scmp.ne.s32.totalorder %s272, %s273
      %p282 = scmp.eq.s32.totalorder %s32, 0
      %p283 = por %p281, %p282
      %p284 = scmp.ne.s32.totalorder %s272, %s273
      %p285 = scmp.eq.s32.totalorder %s33, 1
      %p286 = por %p284, %p285
      %p288 = scmp.ne.s32.totalorder %s273, %s287
      %p289 = scmp.eq.s32.totalorder %s33, 0
      %p290 = por %p288, %p289
      %s291 = ssub.s32 %s27, %s34
      %p292 = scmp.eq.s32.totalorder %s291, 0
      %s294 = sadd.s32 %s293, 1
      %s295 = scalar_select %p292, %s293, %s294
      %p298 = pneg %p292
      %p299 = scmp.eq.s32.totalorder %s27, 1
      %p300 = por %p298, %p299
      %p301 = scmp.ne.s32.totalorder %s293, %s296
      %p302 = scmp.eq.s32.totalorder %s27, 0
      %p303 = por %p301, %p302
      %p304 = scmp.ne.s32.totalorder %s293, %s296
      %p305 = scmp.eq.s32.totalorder %s32, 1
      %p306 = por %p304, %p305
      %p307 = scmp.ne.s32.totalorder %s296, %s297
      %p308 = scmp.eq.s32.totalorder %s32, 0
      %p309 = por %p307, %p308
      %p310 = scmp.ne.s32.totalorder %s296, %s297
      %p311 = scmp.eq.s32.totalorder %s33, 1
      %p312 = por %p310, %p311
      %p314 = scmp.ne.s32.totalorder %s297, %s313
      %p315 = scmp.eq.s32.totalorder %s33, 0
      %p316 = por %p314, %p315
      %s317 = ssub.s32 %s27, %s34
      %p318 = scmp.eq.s32.totalorder %s317, 0
      %s320 = sadd.s32 %s319, 1
      %s321 = scalar_select %p318, %s319, %s320
      %p324 = pneg %p318
      %p325 = scmp.eq.s32.totalorder %s27, 1
      %p326 = por %p324, %p325
      %p327 = scmp.ne.s32.totalorder %s319, %s322
      %p328 = scmp.eq.s32.totalorder %s27, 0
      %p329 = por %p327, %p328
      %p330 = scmp.ne.s32.totalorder %s319, %s322
      %p331 = scmp.eq.s32.totalorder %s32, 1
      %p332 = por %p330, %p331
      %p333 = scmp.ne.s32.totalorder %s322, %s323
      %p334 = scmp.eq.s32.totalorder %s32, 0
      %p335 = por %p333, %p334
      %p336 = scmp.ne.s32.totalorder %s322, %s323
      %p337 = scmp.eq.s32.totalorder %s33, 1
      %p338 = por %p336, %p337
      %p340 = scmp.ne.s32.totalorder %s323, %s339
      %p341 = scmp.eq.s32.totalorder %s33, 0
      %p342 = por %p340, %p341
      %s343 = ssub.s32 %s27, %s34
      %p344 = scmp.eq.s32.totalorder %s343, 0
      %s346 = sadd.s32 %s345, 1
      %s347 = scalar_select %p344, %s345, %s346
      %p350 = pneg %p344
      %p351 = scmp.eq.s32.totalorder %s27, 1
      %p352 = por %p350, %p351
      %p353 = scmp.ne.s32.totalorder %s345, %s348
      %p354 = scmp.eq.s32.totalorder %s27, 0
      %p355 = por %p353, %p354
      %p356 = scmp.ne.s32.totalorder %s345, %s348
      %p357 = scmp.eq.s32.totalorder %s32, 1
      %p358 = por %p356, %p357
      %p359 = scmp.ne.s32.totalorder %s348, %s349
      %p360 = scmp.eq.s32.totalorder %s32, 0
      %p361 = por %p359, %p360
      %p362 = scmp.ne.s32.totalorder %s348, %s349
      %p363 = scmp.eq.s32.totalorder %s33, 1
      %p364 = por %p362, %p363
      %p366 = scmp.ne.s32.totalorder %s349, %s365
      %p367 = scmp.eq.s32.totalorder %s33, 0
      %p368 = por %p366, %p367
      %p369 = scmp.le.s32.totalorder 1, %s27
      %p370 = scmp.lt.s32.totalorder %s27, 3
      %p371 = pnand %p369, %p370
      %p372 = pneg %p371
      // Predicated region
      $region9: #{vq_attention_counter.1} parent=5 // pred_check
        _
      $region10: #{vq_attention_counter.1} parent=5 // pred_check_branch
        %374 = sbr.rel (%p371) target = $region12
      $region11: #{vq_attention_counter.1} parent=5 // pred_region
        %s375 = ssub.s32 %s27, 1
        // Predicated region
        $region13: #{vq_attention_counter.1} parent=11 // pred_check
          %p376 = pneg %p178
        $region14: #{vq_attention_counter.1} parent=11 // pred_check_branch
          %378 = sbr.rel (%p376) target = $region16
        $region15: #{vq_attention_counter.1} parent=11 // pred_region
          _
        $region16: #{vq_attention_counter.1} parent=11 // pred_fallthru
          _
        // Predicated region
        $region17: #{vq_attention_counter.1} parent=11 // pred_check
          %p379 = pneg %p199
        $region18: #{vq_attention_counter.1} parent=11 // pred_check_branch
          %381 = sbr.rel (%p379) target = $region20
        $region19: #{vq_attention_counter.1} parent=11 // pred_region
          _
        $region20: #{vq_attention_counter.1} parent=11 // pred_fallthru
          _
        // Predicated region
        $region21: #{vq_attention_counter.1} parent=11 // pred_check
          %p382 = pneg %p220
        $region22: #{vq_attention_counter.1} parent=11 // pred_check_branch
          %384 = sbr.rel (%p382) target = $region24
        $region23: #{vq_attention_counter.1} parent=11 // pred_region
          _
        $region24: #{vq_attention_counter.1} parent=11 // pred_fallthru
          _
        // Predicated region
        $region25: #{vq_attention_counter.1} parent=11 // pred_check
          %p385 = pneg %p241
        $region26: #{vq_attention_counter.1} parent=11 // pred_check_branch
          %387 = sbr.rel (%p385) target = $region28
        $region27: #{vq_attention_counter.1} parent=11 // pred_region
          _
        $region28: #{vq_attention_counter.1} parent=11 // pred_fallthru
          _
        // Predicated region
        $region29: #{vq_attention_counter.1} parent=11 // pred_check
          %p388 = pneg %p262
        $region30: #{vq_attention_counter.1} parent=11 // pred_check_branch
          %390 = sbr.rel (%p388) target = $region32
        $region31: #{vq_attention_counter.1} parent=11 // pred_region
          _
        $region32: #{vq_attention_counter.1} parent=11 // pred_fallthru
          _
        // Predicated region
        $region33: #{vq_attention_counter.1} parent=11 // pred_check
          %p391 = pneg %p283
        $region34: #{vq_attention_counter.1} parent=11 // pred_check_branch
          %393 = sbr.rel (%p391) target = $region36
        $region35: #{vq_attention_counter.1} parent=11 // pred_region
          _
        $region36: #{vq_attention_counter.1} parent=11 // pred_fallthru
          _
      $region12: #{vq_attention_counter.1} parent=5 // pred_fallthru
        _
      %p394 = scmp.lt.s32.totalorder %s27, 2
      // Predicated region
      $region37: #{vq_attention_counter.1} parent=5 // pred_check
        %p395 = pneg %p394
      $region38: #{vq_attention_counter.1} parent=5 // pred_check_branch
        %397 = sbr.rel (%p395) target = $region40
      $region39: #{vq_attention_counter.1} parent=5 // pred_region
        // Predicated region
        $region41: #{vq_attention_counter.1} parent=39 // pred_check
          %p398 = pneg %p47
        $region42: #{vq_attention_counter.1} parent=39 // pred_check_branch
          %400 = sbr.rel (%p398) target = $region44
        $region43: #{vq_attention_counter.1} parent=39 // pred_region
          %s401 = smul.u32 2, %s27
          %p402 = scmp.lt.s32.totalorder %s401, 3
          %s403 = scalar_select %p402, %s401, 3
          %s404 = smul.addr %s403, 32
          %s405 = smul.addr %s404, 4
          %s406 = scalar_lea.vmem %s0, %s405
          %s407 = smul.u32 2, %s27
        $region44: #{vq_attention_counter.1} parent=39 // pred_fallthru
          _
        // Predicated region
        $region45: #{vq_attention_counter.1} parent=39 // pred_check
          %p408 = pneg %p73
        $region46: #{vq_attention_counter.1} parent=39 // pred_check_branch
          %410 = sbr.rel (%p408) target = $region48
        $region47: #{vq_attention_counter.1} parent=39 // pred_region
          %s411 = smul.u32 2, %s27
          %p412 = scmp.lt.s32.totalorder %s411, 3
          %s413 = scalar_select %p412, %s411, 3
          %s414 = smul.addr %s413, 24
          %s415 = smul.addr %s414, 8
          %s416 = scalar_lea.vmem %s1, %s415
          %s417 = smul.u32 2, %s27
        $region48: #{vq_attention_counter.1} parent=39 // pred_fallthru
          _
        // Predicated region
        $region49: #{vq_attention_counter.1} parent=39 // pred_check
          %p418 = pneg %p99
        $region50: #{vq_attention_counter.1} parent=39 // pred_check_branch
          %420 = sbr.rel (%p418) target = $region52
        $region51: #{vq_attention_counter.1} parent=39 // pred_region
          %s421 = smul.u32 2, %s27
          %p422 = scmp.lt.s32.totalorder %s421, 3
          %s423 = scalar_select %p422, %s421, 3
          %s424 = smul.addr %s423, 2
          %s425 = smul.addr %s424, 8
          %s426 = scalar_lea.vmem %s2, %s425
          %s427 = smul.u32 2, %s27
        $region52: #{vq_attention_counter.1} parent=39 // pred_fallthru
          _
        // Predicated region
        $region53: #{vq_attention_counter.1} parent=39 // pred_check
          %p428 = pneg %p125
        $region54: #{vq_attention_counter.1} parent=39 // pred_check_branch
          %430 = sbr.rel (%p428) target = $region56
        $region55: #{vq_attention_counter.1} parent=39 // pred_region
          %s431 = smul.u32 2, %s27
          %p432 = scmp.lt.s32.totalorder %s431, 3
          %s433 = scalar_select %p432, %s431, 3
          %s434 = scalar_lea.vmem %s3, %s433
          %s435 = smul.u32 2, %s27
        $region56: #{vq_attention_counter.1} parent=39 // pred_fallthru
          _
        // Predicated region
        $region57: #{vq_attention_counter.1} parent=39 // pred_check
          %p436 = pneg %p151
        $region58: #{vq_attention_counter.1} parent=39 // pred_check_branch
          %438 = sbr.rel (%p436) target = $region60
        $region59: #{vq_attention_counter.1} parent=39 // pred_region
          %s439 = smul.u32 2, %s27
          %p440 = scmp.lt.s32.totalorder %s439, 3
          %s441 = scalar_select %p440, %s439, 3
          %s442 = smul.addr %s441, 2
          %s443 = smul.addr %s442, 8
          %s444 = scalar_lea.vmem %s4, %s443
          %s445 = smul.u32 2, %s27
        $region60: #{vq_attention_counter.1} parent=39 // pred_fallthru
          _
      $region40: #{vq_attention_counter.1} parent=5 // pred_fallthru
        _
      %p446 = scmp.le.s32.totalorder 1, %s27
      %p447 = scmp.lt.s32.totalorder %s27, 3
      %p448 = pnand %p446, %p447
      %p449 = pneg %p448
      // Predicated region
      $region61: #{vq_attention_counter.1} parent=5 // pred_check
        _
      $region62: #{vq_attention_counter.1} parent=5 // pred_check_branch
        %451 = sbr.rel (%p448) target = $region64
      $region63: #{vq_attention_counter.1} parent=5 // pred_region
        %s452 = ssub.s32 %s27, 1
        %s453 = smul.u32 2, %s32
        %p454 = scmp.lt.s32.totalorder %s453, 3
        %s455 = scalar_select %p454, %s453, 3
        %s456 = smul.addr %s455, 32
        %s457 = smul.addr %s456, 4
        %s458 = scalar_lea.vmem %s0, %s457
        %p459 = pneg %p53
        %p460 = pneg %p50
        %s461 = smul.u32 2, %s32
        %p462 = scmp.lt.s32.totalorder %s461, 3
        %s463 = scalar_select %p462, %s461, 3
        %s464 = smul.addr %s463, 24
        %s465 = smul.addr %s464, 8
        %s466 = scalar_lea.vmem %s1, %s465
        %p467 = pneg %p79
        %p468 = pneg %p76
        %s469 = smul.u32 2, %s32
        %p470 = scmp.lt.s32.totalorder %s469, 3
        %s471 = scalar_select %p470, %s469, 3
        %s472 = smul.addr %s471, 2
        %s473 = smul.addr %s472, 8
        %s474 = scalar_lea.vmem %s2, %s473
        %p475 = pneg %p105
        %p476 = pneg %p102
        %s477 = smul.u32 2, %s32
        %p478 = scmp.lt.s32.totalorder %s477, 3
        %s479 = scalar_select %p478, %s477, 3
        %s480 = scalar_lea.vmem %s3, %s479
        %p481 = pneg %p131
        %p482 = pneg %p128
        %s483 = smul.u32 2, %s32
        %p484 = scmp.lt.s32.totalorder %s483, 3
        %s485 = scalar_select %p484, %s483, 3
        %s486 = smul.addr %s485, 2
        %s487 = smul.addr %s486, 8
        %s488 = scalar_lea.vmem %s4, %s487
        %p489 = pneg %p157
        %p490 = pneg %p154
        %p491 = pneg %p178
        %p492 = pneg %p175
        %p493 = pneg %p199
        %p494 = pneg %p196
        %p495 = pneg %p220
        %p496 = pneg %p217
        %p497 = pneg %p241
        %p498 = pneg %p238
        %p499 = pneg %p262
        %p500 = pneg %p259
        %p501 = pneg %p283
        %p502 = pneg %p280
        %p503 = pneg %p309
        %p504 = pneg %p306
        %s505 = sand.u32 %s296, 1
        %s506 = scalar_lea.sflag [#allocation4], %s505
        %s507 = sand.u32 %s296, 1
        %s508 = smul.addr %s507, 512
        %s509 = scalar_lea.vmem [#allocation3], %s508
        %p510 = pneg %p335
        %p511 = pneg %p332
        %s512 = sand.u32 %s32, 1
        %s513 = scalar_lea.sflag [#allocation6], %s512
        %s514 = sand.u32 %s322, 1
        %s515 = smul.addr %s514, 128
        %s516 = scalar_lea.vmem [#allocation5], %s515
        %p517 = pneg %p361
        %p518 = pneg %p358
        %s519 = sand.u32 %s32, 1
        %s520 = scalar_lea.sflag [#allocation6], %s519
        %s521 = sand.u32 %s348, 1
        %s522 = smul.addr %s521, 512
        %s523 = scalar_lea.vmem [#allocation7], %s522
        %s524 = smul.u32 2, %s32
        %p525 = scmp.lt.s32.totalorder %s524, 3
        %s526 = scalar_select %p525, %s524, 3
        %s527 = smul.addr %s526, 32
        %s528 = smul.addr %s527, 4
        %s529 = scalar_lea.vmem %s0, %s528
        %s530 = smul.u32 2, %s32
        %s531 = smul.u32 2, %s32
        %p532 = scmp.lt.s32.totalorder %s531, 3
        %s533 = scalar_select %p532, %s531, 3
        %s534 = smul.addr %s533, 24
        %s535 = smul.addr %s534, 8
        %s536 = scalar_lea.vmem %s1, %s535
        %s537 = smul.u32 2, %s32
        %s538 = smul.u32 2, %s32
        %p539 = scmp.lt.s32.totalorder %s538, 3
        %s540 = scalar_select %p539, %s538, 3
        %s541 = smul.addr %s540, 2
        %s542 = smul.addr %s541, 8
        %s543 = scalar_lea.vmem %s2, %s542
        %s544 = smul.u32 2, %s32
        %s545 = smul.u32 2, %s32
        %p546 = scmp.lt.s32.totalorder %s545, 3
        %s547 = scalar_select %p546, %s545, 3
        %s548 = scalar_lea.vmem %s3, %s547
        %s549 = smul.u32 2, %s32
        %s550 = smul.u32 2, %s32
        %p551 = scmp.lt.s32.totalorder %s550, 3
        %s552 = scalar_select %p551, %s550, 3
        %s553 = smul.addr %s552, 2
        %s554 = smul.addr %s553, 8
        %s555 = scalar_lea.vmem %s4, %s554
        %s556 = smul.u32 2, %s32
        %s557 = smul.u32 2, %s32
        %s558 = smul.u32 2, %s32
        %s559 = smul.u32 2, %s32
        %v560 = vld [vmem:[%s529] sm:$0xff]
        %v561 = vld [vmem:[%s529 + $0x8] sm:$0xff]
        %v562 = vld [vmem:[%s529 + $0x10] sm:$0xff]
        %v563 = vld [vmem:[%s529 + $0x18] sm:$0xff]
        %v564 = vld [vmem:[%s529 + $0x20] sm:$0xff]
        %v565 = vld [vmem:[%s529 + $0x28] sm:$0xff]
        %v566 = vld [vmem:[%s529 + $0x30] sm:$0xff]
        %v567 = vld [vmem:[%s529 + $0x38] sm:$0xff]
        %v568 = vld [vmem:[%s529 + $0x40] sm:$0xff]
        %v569 = vld [vmem:[%s529 + $0x48] sm:$0xff]
        %v570 = vld [vmem:[%s529 + $0x50] sm:$0xff]
        %v571 = vld [vmem:[%s529 + $0x58] sm:$0xff]
        %v572 = vld [vmem:[%s529 + $0x60] sm:$0xff]
        %v573 = vld [vmem:[%s529 + $0x68] sm:$0xff]
        %v574 = vld [vmem:[%s529 + $0x70] sm:$0xff]
        %v575 = vld [vmem:[%s529 + $0x78] sm:$0xff]
        %v576 = vld [vmem:[%s529 + $0x80] sm:$0xff]
        %v577 = vld [vmem:[%s529 + $0x88] sm:$0xff]
        %v578 = vld [vmem:[%s529 + $0x90] sm:$0xff]
        %v579 = vld [vmem:[%s529 + $0x98] sm:$0xff]
        %v580 = vld [vmem:[%s529 + $0xa0] sm:$0xff]
        %v581 = vld [vmem:[%s529 + $0xa8] sm:$0xff]
        %v582 = vld [vmem:[%s529 + $0xb0] sm:$0xff]
        %v583 = vld [vmem:[%s529 + $0xb8] sm:$0xff]
        %v584 = vld [vmem:[%s529 + $0xc0] sm:$0xff]
        %v585 = vld [vmem:[%s529 + $0xc8] sm:$0xff]
        %v586 = vld [vmem:[%s529 + $0xd0] sm:$0xff]
        %v587 = vld [vmem:[%s529 + $0xd8] sm:$0xff]
        %v588 = vld [vmem:[%s529 + $0xe0] sm:$0xff]
        %v589 = vld [vmem:[%s529 + $0xe8] sm:$0xff]
        %v590 = vld [vmem:[%s529 + $0xf0] sm:$0xff]
        %v591 = vld [vmem:[%s529 + $0xf8] sm:$0xff]
        %v592 = vld [vmem:[%s5] sm:$0xff]
        %v593 = vld [vmem:[%s5 + $0x8] sm:$0xff]
        %v594 = vld [vmem:[%s5 + $0x10] sm:$0xff]
        %v595 = vld [vmem:[%s5 + $0x18] sm:$0xff]
        %v596 = vld [vmem:[%s5 + $0x20] sm:$0xff]
        %v597 = vld [vmem:[%s5 + $0x28] sm:$0xff]
        %v598 = vld [vmem:[%s5 + $0x30] sm:$0xff]
        %v599 = vld [vmem:[%s5 + $0x38] sm:$0xff]
        %v600 = vld [vmem:[%s5 + $0x40] sm:$0xff]
        %v601 = vld [vmem:[%s5 + $0x48] sm:$0xff]
        %v602 = vld [vmem:[%s5 + $0x50] sm:$0xff]
        %v603 = vld [vmem:[%s5 + $0x58] sm:$0xff]
        %v604 = vld [vmem:[%s5 + $0x60] sm:$0xff]
        %v605 = vld [vmem:[%s5 + $0x68] sm:$0xff]
        %v606 = vld [vmem:[%s5 + $0x70] sm:$0xff]
        %v607 = vld [vmem:[%s5 + $0x78] sm:$0xff]
        %v608 = vld [vmem:[%s5 + $0x80] sm:$0xff]
        %v609 = vld [vmem:[%s5 + $0x88] sm:$0xff]
        %v610 = vld [vmem:[%s5 + $0x90] sm:$0xff]
        %v611 = vld [vmem:[%s5 + $0x98] sm:$0xff]
        %v612 = vld [vmem:[%s5 + $0xa0] sm:$0xff]
        %v613 = vld [vmem:[%s5 + $0xa8] sm:$0xff]
        %v614 = vld [vmem:[%s5 + $0xb0] sm:$0xff]
        %v615 = vld [vmem:[%s5 + $0xb8] sm:$0xff]
        %v616 = vld [vmem:[%s5 + $0xc0] sm:$0xff]
        %v617 = vld [vmem:[%s5 + $0xc8] sm:$0xff]
        %v618 = vld [vmem:[%s5 + $0xd0] sm:$0xff]
        %v619 = vld [vmem:[%s5 + $0xd8] sm:$0xff]
        %v620 = vld [vmem:[%s5 + $0xe0] sm:$0xff]
        %v621 = vld [vmem:[%s5 + $0xe8] sm:$0xff]
        %v622 = vld [vmem:[%s5 + $0xf0] sm:$0xff]
        %v623 = vld [vmem:[%s5 + $0xf8] sm:$0xff]
        %v624 = vld [vmem:[%s5 + $0x100] sm:$0xff]
        %v625 = vld [vmem:[%s5 + $0x108] sm:$0xff]
        %v626 = vld [vmem:[%s5 + $0x110] sm:$0xff]
        %v627 = vld [vmem:[%s5 + $0x118] sm:$0xff]
        %v628 = vld [vmem:[%s5 + $0x120] sm:$0xff]
        %v629 = vld [vmem:[%s5 + $0x128] sm:$0xff]
        %v630 = vld [vmem:[%s5 + $0x130] sm:$0xff]
        %v631 = vld [vmem:[%s5 + $0x138] sm:$0xff]
        %v632 = vld [vmem:[%s5 + $0x140] sm:$0xff]
        %v633 = vld [vmem:[%s5 + $0x148] sm:$0xff]
        %v634 = vld [vmem:[%s5 + $0x150] sm:$0xff]
        %v635 = vld [vmem:[%s5 + $0x158] sm:$0xff]
        %v636 = vld [vmem:[%s5 + $0x160] sm:$0xff]
        %v637 = vld [vmem:[%s5 + $0x168] sm:$0xff]
        %v638 = vld [vmem:[%s5 + $0x170] sm:$0xff]
        %v639 = vld [vmem:[%s5 + $0x178] sm:$0xff]
        %v640 = vld [vmem:[%s5 + $0x180] sm:$0xff]
        %v641 = vld [vmem:[%s5 + $0x188] sm:$0xff]
        %v642 = vld [vmem:[%s5 + $0x190] sm:$0xff]
        %v643 = vld [vmem:[%s5 + $0x198] sm:$0xff]
        %v644 = vld [vmem:[%s5 + $0x1a0] sm:$0xff]
        %v645 = vld [vmem:[%s5 + $0x1a8] sm:$0xff]
        %v646 = vld [vmem:[%s5 + $0x1b0] sm:$0xff]
        %v647 = vld [vmem:[%s5 + $0x1b8] sm:$0xff]
        %v648 = vld [vmem:[%s5 + $0x1c0] sm:$0xff]
        %v649 = vld [vmem:[%s5 + $0x1c8] sm:$0xff]
        %v650 = vld [vmem:[%s5 + $0x1d0] sm:$0xff]
        %v651 = vld [vmem:[%s5 + $0x1d8] sm:$0xff]
        %v652 = vld [vmem:[%s5 + $0x1e0] sm:$0xff]
        %v653 = vld [vmem:[%s5 + $0x1e8] sm:$0xff]
        %v654 = vld [vmem:[%s5 + $0x1f0] sm:$0xff]
        %v655 = vld [vmem:[%s5 + $0x1f8] sm:$0xff]
        %v656 = vld [vmem:[%s5 + $0x200] sm:$0xff]
        %v657 = vld [vmem:[%s5 + $0x208] sm:$0xff]
        %v658 = vld [vmem:[%s5 + $0x210] sm:$0xff]
        %v659 = vld [vmem:[%s5 + $0x218] sm:$0xff]
        %v660 = vld [vmem:[%s5 + $0x220] sm:$0xff]
        %v661 = vld [vmem:[%s5 + $0x228] sm:$0xff]
        %v662 = vld [vmem:[%s5 + $0x230] sm:$0xff]
        %v663 = vld [vmem:[%s5 + $0x238] sm:$0xff]
        %v664 = vld [vmem:[%s5 + $0x240] sm:$0xff]
        %v665 = vld [vmem:[%s5 + $0x248] sm:$0xff]
        %v666 = vld [vmem:[%s5 + $0x250] sm:$0xff]
        %v667 = vld [vmem:[%s5 + $0x258] sm:$0xff]
        %v668 = vld [vmem:[%s5 + $0x260] sm:$0xff]
        %v669 = vld [vmem:[%s5 + $0x268] sm:$0xff]
        %v670 = vld [vmem:[%s5 + $0x270] sm:$0xff]
        %v671 = vld [vmem:[%s5 + $0x278] sm:$0xff]
        %v672 = vld [vmem:[%s5 + $0x280] sm:$0xff]
        %v673 = vld [vmem:[%s5 + $0x288] sm:$0xff]
        %v674 = vld [vmem:[%s5 + $0x290] sm:$0xff]
        %v675 = vld [vmem:[%s5 + $0x298] sm:$0xff]
        %v676 = vld [vmem:[%s5 + $0x2a0] sm:$0xff]
        %v677 = vld [vmem:[%s5 + $0x2a8] sm:$0xff]
        %v678 = vld [vmem:[%s5 + $0x2b0] sm:$0xff]
        %v679 = vld [vmem:[%s5 + $0x2b8] sm:$0xff]
        %v680 = vld [vmem:[%s5 + $0x2c0] sm:$0xff]
        %v681 = vld [vmem:[%s5 + $0x2c8] sm:$0xff]
        %v682 = vld [vmem:[%s5 + $0x2d0] sm:$0xff]
        %v683 = vld [vmem:[%s5 + $0x2d8] sm:$0xff]
        %v684 = vld [vmem:[%s5 + $0x2e0] sm:$0xff]
        %v685 = vld [vmem:[%s5 + $0x2e8] sm:$0xff]
        %v686 = vld [vmem:[%s5 + $0x2f0] sm:$0xff]
        %v687 = vld [vmem:[%s5 + $0x2f8] sm:$0xff]
        %v688 = vld [vmem:[%s5 + $0x300] sm:$0xff]
        %v689 = vld [vmem:[%s5 + $0x308] sm:$0xff]
        %v690 = vld [vmem:[%s5 + $0x310] sm:$0xff]
        %v691 = vld [vmem:[%s5 + $0x318] sm:$0xff]
        %v692 = vld [vmem:[%s5 + $0x320] sm:$0xff]
        %v693 = vld [vmem:[%s5 + $0x328] sm:$0xff]
        %v694 = vld [vmem:[%s5 + $0x330] sm:$0xff]
        %v695 = vld [vmem:[%s5 + $0x338] sm:$0xff]
        %v696 = vld [vmem:[%s5 + $0x340] sm:$0xff]
        %v697 = vld [vmem:[%s5 + $0x348] sm:$0xff]
        %v698 = vld [vmem:[%s5 + $0x350] sm:$0xff]
        %v699 = vld [vmem:[%s5 + $0x358] sm:$0xff]
        %v700 = vld [vmem:[%s5 + $0x360] sm:$0xff]
        %v701 = vld [vmem:[%s5 + $0x368] sm:$0xff]
        %v702 = vld [vmem:[%s5 + $0x370] sm:$0xff]
        %v703 = vld [vmem:[%s5 + $0x378] sm:$0xff]
        %v704 = vld [vmem:[%s5 + $0x380] sm:$0xff]
        %v705 = vld [vmem:[%s5 + $0x388] sm:$0xff]
        %v706 = vld [vmem:[%s5 + $0x390] sm:$0xff]
        %v707 = vld [vmem:[%s5 + $0x398] sm:$0xff]
        %v708 = vld [vmem:[%s5 + $0x3a0] sm:$0xff]
        %v709 = vld [vmem:[%s5 + $0x3a8] sm:$0xff]
        %v710 = vld [vmem:[%s5 + $0x3b0] sm:$0xff]
        %v711 = vld [vmem:[%s5 + $0x3b8] sm:$0xff]
        %v712 = vld [vmem:[%s5 + $0x3c0] sm:$0xff]
        %v713 = vld [vmem:[%s5 + $0x3c8] sm:$0xff]
        %v714 = vld [vmem:[%s5 + $0x3d0] sm:$0xff]
        %v715 = vld [vmem:[%s5 + $0x3d8] sm:$0xff]
        %v716 = vld [vmem:[%s5 + $0x3e0] sm:$0xff]
        %v717 = vld [vmem:[%s5 + $0x3e8] sm:$0xff]
        %v718 = vld [vmem:[%s5 + $0x3f0] sm:$0xff]
        %v719 = vld [vmem:[%s5 + $0x3f8] sm:$0xff]
        %v720 = vld [vmem:[%s5 + $0x400] sm:$0xff]
        %v721 = vld [vmem:[%s5 + $0x408] sm:$0xff]
        %v722 = vld [vmem:[%s5 + $0x410] sm:$0xff]
        %v723 = vld [vmem:[%s5 + $0x418] sm:$0xff]
        %v724 = vld [vmem:[%s5 + $0x420] sm:$0xff]
        %v725 = vld [vmem:[%s5 + $0x428] sm:$0xff]
        %v726 = vld [vmem:[%s5 + $0x430] sm:$0xff]
        %v727 = vld [vmem:[%s5 + $0x438] sm:$0xff]
        %v728 = vld [vmem:[%s5 + $0x440] sm:$0xff]
        %v729 = vld [vmem:[%s5 + $0x448] sm:$0xff]
        %v730 = vld [vmem:[%s5 + $0x450] sm:$0xff]
        %v731 = vld [vmem:[%s5 + $0x458] sm:$0xff]
        %v732 = vld [vmem:[%s5 + $0x460] sm:$0xff]
        %v733 = vld [vmem:[%s5 + $0x468] sm:$0xff]
        %v734 = vld [vmem:[%s5 + $0x470] sm:$0xff]
        %v735 = vld [vmem:[%s5 + $0x478] sm:$0xff]
        %v736 = vld [vmem:[%s5 + $0x480] sm:$0xff]
        %v737 = vld [vmem:[%s5 + $0x488] sm:$0xff]
        %v738 = vld [vmem:[%s5 + $0x490] sm:$0xff]
        %v739 = vld [vmem:[%s5 + $0x498] sm:$0xff]
        %v740 = vld [vmem:[%s5 + $0x4a0] sm:$0xff]
        %v741 = vld [vmem:[%s5 + $0x4a8] sm:$0xff]
        %v742 = vld [vmem:[%s5 + $0x4b0] sm:$0xff]
        %v743 = vld [vmem:[%s5 + $0x4b8] sm:$0xff]
        %v744 = vld [vmem:[%s5 + $0x4c0] sm:$0xff]
        %v745 = vld [vmem:[%s5 + $0x4c8] sm:$0xff]
        %v746 = vld [vmem:[%s5 + $0x4d0] sm:$0xff]
        %v747 = vld [vmem:[%s5 + $0x4d8] sm:$0xff]
        %v748 = vld [vmem:[%s5 + $0x4e0] sm:$0xff]
        %v749 = vld [vmem:[%s5 + $0x4e8] sm:$0xff]
        %v750 = vld [vmem:[%s5 + $0x4f0] sm:$0xff]
        %v751 = vld [vmem:[%s5 + $0x4f8] sm:$0xff]
        %v752 = vld [vmem:[%s5 + $0x500] sm:$0xff]
        %v753 = vld [vmem:[%s5 + $0x508] sm:$0xff]
        %v754 = vld [vmem:[%s5 + $0x510] sm:$0xff]
        %v755 = vld [vmem:[%s5 + $0x518] sm:$0xff]
        %v756 = vld [vmem:[%s5 + $0x520] sm:$0xff]
        %v757 = vld [vmem:[%s5 + $0x528] sm:$0xff]
        %v758 = vld [vmem:[%s5 + $0x530] sm:$0xff]
        %v759 = vld [vmem:[%s5 + $0x538] sm:$0xff]
        %v760 = vld [vmem:[%s5 + $0x540] sm:$0xff]
        %v761 = vld [vmem:[%s5 + $0x548] sm:$0xff]
        %v762 = vld [vmem:[%s5 + $0x550] sm:$0xff]
        %v763 = vld [vmem:[%s5 + $0x558] sm:$0xff]
        %v764 = vld [vmem:[%s5 + $0x560] sm:$0xff]
        %v765 = vld [vmem:[%s5 + $0x568] sm:$0xff]
        %v766 = vld [vmem:[%s5 + $0x570] sm:$0xff]
        %v767 = vld [vmem:[%s5 + $0x578] sm:$0xff]
        %v768 = vld [vmem:[%s5 + $0x580] sm:$0xff]
        %v769 = vld [vmem:[%s5 + $0x588] sm:$0xff]
        %v770 = vld [vmem:[%s5 + $0x590] sm:$0xff]
        %v771 = vld [vmem:[%s5 + $0x598] sm:$0xff]
        %v772 = vld [vmem:[%s5 + $0x5a0] sm:$0xff]
        %v773 = vld [vmem:[%s5 + $0x5a8] sm:$0xff]
        %v774 = vld [vmem:[%s5 + $0x5b0] sm:$0xff]
        %v775 = vld [vmem:[%s5 + $0x5b8] sm:$0xff]
        %v776 = vld [vmem:[%s5 + $0x5c0] sm:$0xff]
        %v777 = vld [vmem:[%s5 + $0x5c8] sm:$0xff]
        %v778 = vld [vmem:[%s5 + $0x5d0] sm:$0xff]
        %v779 = vld [vmem:[%s5 + $0x5d8] sm:$0xff]
        %v780 = vld [vmem:[%s5 + $0x5e0] sm:$0xff]
        %v781 = vld [vmem:[%s5 + $0x5e8] sm:$0xff]
        %v782 = vld [vmem:[%s5 + $0x5f0] sm:$0xff]
        %v783 = vld [vmem:[%s5 + $0x5f8] sm:$0xff]
        %v784 = vld [vmem:[%s5 + $0x600] sm:$0xff]
        %v785 = vld [vmem:[%s5 + $0x608] sm:$0xff]
        %v786 = vld [vmem:[%s5 + $0x610] sm:$0xff]
        %v787 = vld [vmem:[%s5 + $0x618] sm:$0xff]
        %v788 = vld [vmem:[%s5 + $0x620] sm:$0xff]
        %v789 = vld [vmem:[%s5 + $0x628] sm:$0xff]
        %v790 = vld [vmem:[%s5 + $0x630] sm:$0xff]
        %v791 = vld [vmem:[%s5 + $0x638] sm:$0xff]
        %v792 = vld [vmem:[%s5 + $0x640] sm:$0xff]
        %v793 = vld [vmem:[%s5 + $0x648] sm:$0xff]
        %v794 = vld [vmem:[%s5 + $0x650] sm:$0xff]
        %v795 = vld [vmem:[%s5 + $0x658] sm:$0xff]
        %v796 = vld [vmem:[%s5 + $0x660] sm:$0xff]
        %v797 = vld [vmem:[%s5 + $0x668] sm:$0xff]
        %v798 = vld [vmem:[%s5 + $0x670] sm:$0xff]
        %v799 = vld [vmem:[%s5 + $0x678] sm:$0xff]
        %v800 = vld [vmem:[%s5 + $0x680] sm:$0xff]
        %v801 = vld [vmem:[%s5 + $0x688] sm:$0xff]
        %v802 = vld [vmem:[%s5 + $0x690] sm:$0xff]
        %v803 = vld [vmem:[%s5 + $0x698] sm:$0xff]
        %v804 = vld [vmem:[%s5 + $0x6a0] sm:$0xff]
        %v805 = vld [vmem:[%s5 + $0x6a8] sm:$0xff]
        %v806 = vld [vmem:[%s5 + $0x6b0] sm:$0xff]
        %v807 = vld [vmem:[%s5 + $0x6b8] sm:$0xff]
        %v808 = vld [vmem:[%s5 + $0x6c0] sm:$0xff]
        %v809 = vld [vmem:[%s5 + $0x6c8] sm:$0xff]
        %v810 = vld [vmem:[%s5 + $0x6d0] sm:$0xff]
        %v811 = vld [vmem:[%s5 + $0x6d8] sm:$0xff]
        %v812 = vld [vmem:[%s5 + $0x6e0] sm:$0xff]
        %v813 = vld [vmem:[%s5 + $0x6e8] sm:$0xff]
        %v814 = vld [vmem:[%s5 + $0x6f0] sm:$0xff]
        %v815 = vld [vmem:[%s5 + $0x6f8] sm:$0xff]
        %v816 = vld [vmem:[%s5 + $0x700] sm:$0xff]
        %v817 = vld [vmem:[%s5 + $0x708] sm:$0xff]
        %v818 = vld [vmem:[%s5 + $0x710] sm:$0xff]
        %v819 = vld [vmem:[%s5 + $0x718] sm:$0xff]
        %v820 = vld [vmem:[%s5 + $0x720] sm:$0xff]
        %v821 = vld [vmem:[%s5 + $0x728] sm:$0xff]
        %v822 = vld [vmem:[%s5 + $0x730] sm:$0xff]
        %v823 = vld [vmem:[%s5 + $0x738] sm:$0xff]
        %v824 = vld [vmem:[%s5 + $0x740] sm:$0xff]
        %v825 = vld [vmem:[%s5 + $0x748] sm:$0xff]
        %v826 = vld [vmem:[%s5 + $0x750] sm:$0xff]
        %v827 = vld [vmem:[%s5 + $0x758] sm:$0xff]
        %v828 = vld [vmem:[%s5 + $0x760] sm:$0xff]
        %v829 = vld [vmem:[%s5 + $0x768] sm:$0xff]
        %v830 = vld [vmem:[%s5 + $0x770] sm:$0xff]
        %v831 = vld [vmem:[%s5 + $0x778] sm:$0xff]
        %v832 = vld [vmem:[%s5 + $0x780] sm:$0xff]
        %v833 = vld [vmem:[%s5 + $0x788] sm:$0xff]
        %v834 = vld [vmem:[%s5 + $0x790] sm:$0xff]
        %v835 = vld [vmem:[%s5 + $0x798] sm:$0xff]
        %v836 = vld [vmem:[%s5 + $0x7a0] sm:$0xff]
        %v837 = vld [vmem:[%s5 + $0x7a8] sm:$0xff]
        %v838 = vld [vmem:[%s5 + $0x7b0] sm:$0xff]
        %v839 = vld [vmem:[%s5 + $0x7b8] sm:$0xff]
        %v840 = vld [vmem:[%s5 + $0x7c0] sm:$0xff]
        %v841 = vld [vmem:[%s5 + $0x7c8] sm:$0xff]
        %v842 = vld [vmem:[%s5 + $0x7d0] sm:$0xff]
        %v843 = vld [vmem:[%s5 + $0x7d8] sm:$0xff]
        %v844 = vld [vmem:[%s5 + $0x7e0] sm:$0xff]
        %v845 = vld [vmem:[%s5 + $0x7e8] sm:$0xff]
        %v846 = vld [vmem:[%s5 + $0x7f0] sm:$0xff]
        %v847 = vld [vmem:[%s5 + $0x7f8] sm:$0xff]
        %v848 = vld [vmem:[%s5 + $0x800] sm:$0xff]
        %v849 = vld [vmem:[%s5 + $0x808] sm:$0xff]
        %v850 = vld [vmem:[%s5 + $0x810] sm:$0xff]
        %v851 = vld [vmem:[%s5 + $0x818] sm:$0xff]
        %v852 = vld [vmem:[%s5 + $0x820] sm:$0xff]
        %v853 = vld [vmem:[%s5 + $0x828] sm:$0xff]
        %v854 = vld [vmem:[%s5 + $0x830] sm:$0xff]
        %v855 = vld [vmem:[%s5 + $0x838] sm:$0xff]
        %v856 = vld [vmem:[%s5 + $0x840] sm:$0xff]
        %v857 = vld [vmem:[%s5 + $0x848] sm:$0xff]
        %v858 = vld [vmem:[%s5 + $0x850] sm:$0xff]
        %v859 = vld [vmem:[%s5 + $0x858] sm:$0xff]
        %v860 = vld [vmem:[%s5 + $0x860] sm:$0xff]
        %v861 = vld [vmem:[%s5 + $0x868] sm:$0xff]
        %v862 = vld [vmem:[%s5 + $0x870] sm:$0xff]
        %v863 = vld [vmem:[%s5 + $0x878] sm:$0xff]
        %v864 = vld [vmem:[%s5 + $0x880] sm:$0xff]
        %v865 = vld [vmem:[%s5 + $0x888] sm:$0xff]
        %v866 = vld [vmem:[%s5 + $0x890] sm:$0xff]
        %v867 = vld [vmem:[%s5 + $0x898] sm:$0xff]
        %v868 = vld [vmem:[%s5 + $0x8a0] sm:$0xff]
        %v869 = vld [vmem:[%s5 + $0x8a8] sm:$0xff]
        %v870 = vld [vmem:[%s5 + $0x8b0] sm:$0xff]
        %v871 = vld [vmem:[%s5 + $0x8b8] sm:$0xff]
        %v872 = vld [vmem:[%s5 + $0x8c0] sm:$0xff]
        %v873 = vld [vmem:[%s5 + $0x8c8] sm:$0xff]
        %v874 = vld [vmem:[%s5 + $0x8d0] sm:$0xff]
        %v875 = vld [vmem:[%s5 + $0x8d8] sm:$0xff]
        %v876 = vld [vmem:[%s5 + $0x8e0] sm:$0xff]
        %v877 = vld [vmem:[%s5 + $0x8e8] sm:$0xff]
        %v878 = vld [vmem:[%s5 + $0x8f0] sm:$0xff]
        %v879 = vld [vmem:[%s5 + $0x8f8] sm:$0xff]
        %v880 = vld [vmem:[%s5 + $0x900] sm:$0xff]
        %v881 = vld [vmem:[%s5 + $0x908] sm:$0xff]
        %v882 = vld [vmem:[%s5 + $0x910] sm:$0xff]
        %v883 = vld [vmem:[%s5 + $0x918] sm:$0xff]
        %v884 = vld [vmem:[%s5 + $0x920] sm:$0xff]
        %v885 = vld [vmem:[%s5 + $0x928] sm:$0xff]
        %v886 = vld [vmem:[%s5 + $0x930] sm:$0xff]
        %v887 = vld [vmem:[%s5 + $0x938] sm:$0xff]
        %v888 = vld [vmem:[%s5 + $0x940] sm:$0xff]
        %v889 = vld [vmem:[%s5 + $0x948] sm:$0xff]
        %v890 = vld [vmem:[%s5 + $0x950] sm:$0xff]
        %v891 = vld [vmem:[%s5 + $0x958] sm:$0xff]
        %v892 = vld [vmem:[%s5 + $0x960] sm:$0xff]
        %v893 = vld [vmem:[%s5 + $0x968] sm:$0xff]
        %v894 = vld [vmem:[%s5 + $0x970] sm:$0xff]
        %v895 = vld [vmem:[%s5 + $0x978] sm:$0xff]
        %v896 = vld [vmem:[%s5 + $0x980] sm:$0xff]
        %v897 = vld [vmem:[%s5 + $0x988] sm:$0xff]
        %v898 = vld [vmem:[%s5 + $0x990] sm:$0xff]
        %v899 = vld [vmem:[%s5 + $0x998] sm:$0xff]
        %v900 = vld [vmem:[%s5 + $0x9a0] sm:$0xff]
        %v901 = vld [vmem:[%s5 + $0x9a8] sm:$0xff]
        %v902 = vld [vmem:[%s5 + $0x9b0] sm:$0xff]
        %v903 = vld [vmem:[%s5 + $0x9b8] sm:$0xff]
        %v904 = vld [vmem:[%s5 + $0x9c0] sm:$0xff]
        %v905 = vld [vmem:[%s5 + $0x9c8] sm:$0xff]
        %v906 = vld [vmem:[%s5 + $0x9d0] sm:$0xff]
        %v907 = vld [vmem:[%s5 + $0x9d8] sm:$0xff]
        %v908 = vld [vmem:[%s5 + $0x9e0] sm:$0xff]
        %v909 = vld [vmem:[%s5 + $0x9e8] sm:$0xff]
        %v910 = vld [vmem:[%s5 + $0x9f0] sm:$0xff]
        %v911 = vld [vmem:[%s5 + $0x9f8] sm:$0xff]
        %v912 = vld [vmem:[%s5 + $0xa00] sm:$0xff]
        %v913 = vld [vmem:[%s5 + $0xa08] sm:$0xff]
        %v914 = vld [vmem:[%s5 + $0xa10] sm:$0xff]
        %v915 = vld [vmem:[%s5 + $0xa18] sm:$0xff]
        %v916 = vld [vmem:[%s5 + $0xa20] sm:$0xff]
        %v917 = vld [vmem:[%s5 + $0xa28] sm:$0xff]
        %v918 = vld [vmem:[%s5 + $0xa30] sm:$0xff]
        %v919 = vld [vmem:[%s5 + $0xa38] sm:$0xff]
        %v920 = vld [vmem:[%s5 + $0xa40] sm:$0xff]
        %v921 = vld [vmem:[%s5 + $0xa48] sm:$0xff]
        %v922 = vld [vmem:[%s5 + $0xa50] sm:$0xff]
        %v923 = vld [vmem:[%s5 + $0xa58] sm:$0xff]
        %v924 = vld [vmem:[%s5 + $0xa60] sm:$0xff]
        %v925 = vld [vmem:[%s5 + $0xa68] sm:$0xff]
        %v926 = vld [vmem:[%s5 + $0xa70] sm:$0xff]
        %v927 = vld [vmem:[%s5 + $0xa78] sm:$0xff]
        %v928 = vld [vmem:[%s5 + $0xa80] sm:$0xff]
        %v929 = vld [vmem:[%s5 + $0xa88] sm:$0xff]
        %v930 = vld [vmem:[%s5 + $0xa90] sm:$0xff]
        %v931 = vld [vmem:[%s5 + $0xa98] sm:$0xff]
        %v932 = vld [vmem:[%s5 + $0xaa0] sm:$0xff]
        %v933 = vld [vmem:[%s5 + $0xaa8] sm:$0xff]
        %v934 = vld [vmem:[%s5 + $0xab0] sm:$0xff]
        %v935 = vld [vmem:[%s5 + $0xab8] sm:$0xff]
        %v936 = vld [vmem:[%s5 + $0xac0] sm:$0xff]
        %v937 = vld [vmem:[%s5 + $0xac8] sm:$0xff]
        %v938 = vld [vmem:[%s5 + $0xad0] sm:$0xff]
        %v939 = vld [vmem:[%s5 + $0xad8] sm:$0xff]
        %v940 = vld [vmem:[%s5 + $0xae0] sm:$0xff]
        %v941 = vld [vmem:[%s5 + $0xae8] sm:$0xff]
        %v942 = vld [vmem:[%s5 + $0xaf0] sm:$0xff]
        %v943 = vld [vmem:[%s5 + $0xaf8] sm:$0xff]
        %v944 = vld [vmem:[%s5 + $0xb00] sm:$0xff]
        %v945 = vld [vmem:[%s5 + $0xb08] sm:$0xff]
        %v946 = vld [vmem:[%s5 + $0xb10] sm:$0xff]
        %v947 = vld [vmem:[%s5 + $0xb18] sm:$0xff]
        %v948 = vld [vmem:[%s5 + $0xb20] sm:$0xff]
        %v949 = vld [vmem:[%s5 + $0xb28] sm:$0xff]
        %v950 = vld [vmem:[%s5 + $0xb30] sm:$0xff]
        %v951 = vld [vmem:[%s5 + $0xb38] sm:$0xff]
        %v952 = vld [vmem:[%s5 + $0xb40] sm:$0xff]
        %v953 = vld [vmem:[%s5 + $0xb48] sm:$0xff]
        %v954 = vld [vmem:[%s5 + $0xb50] sm:$0xff]
        %v955 = vld [vmem:[%s5 + $0xb58] sm:$0xff]
        %v956 = vld [vmem:[%s5 + $0xb60] sm:$0xff]
        %v957 = vld [vmem:[%s5 + $0xb68] sm:$0xff]
        %v958 = vld [vmem:[%s5 + $0xb70] sm:$0xff]
        %v959 = vld [vmem:[%s5 + $0xb78] sm:$0xff]
        %v960 = vld [vmem:[%s5 + $0xb80] sm:$0xff]
        %v961 = vld [vmem:[%s5 + $0xb88] sm:$0xff]
        %v962 = vld [vmem:[%s5 + $0xb90] sm:$0xff]
        %v963 = vld [vmem:[%s5 + $0xb98] sm:$0xff]
        %v964 = vld [vmem:[%s5 + $0xba0] sm:$0xff]
        %v965 = vld [vmem:[%s5 + $0xba8] sm:$0xff]
        %v966 = vld [vmem:[%s5 + $0xbb0] sm:$0xff]
        %v967 = vld [vmem:[%s5 + $0xbb8] sm:$0xff]
        %v968 = vld [vmem:[%s5 + $0xbc0] sm:$0xff]
        %v969 = vld [vmem:[%s5 + $0xbc8] sm:$0xff]
        %v970 = vld [vmem:[%s5 + $0xbd0] sm:$0xff]
        %v971 = vld [vmem:[%s5 + $0xbd8] sm:$0xff]
        %v972 = vld [vmem:[%s5 + $0xbe0] sm:$0xff]
        %v973 = vld [vmem:[%s5 + $0xbe8] sm:$0xff]
        %v974 = vld [vmem:[%s5 + $0xbf0] sm:$0xff]
        %v975 = vld [vmem:[%s5 + $0xbf8] sm:$0xff]
        %v976 = vld [vmem:[%s5 + $0xc00] sm:$0xff]
        %v977 = vld [vmem:[%s5 + $0xc08] sm:$0xff]
        %v978 = vld [vmem:[%s5 + $0xc10] sm:$0xff]
        %v979 = vld [vmem:[%s5 + $0xc18] sm:$0xff]
        %v980 = vld [vmem:[%s5 + $0xc20] sm:$0xff]
        %v981 = vld [vmem:[%s5 + $0xc28] sm:$0xff]
        %v982 = vld [vmem:[%s5 + $0xc30] sm:$0xff]
        %v983 = vld [vmem:[%s5 + $0xc38] sm:$0xff]
        %v984 = vld [vmem:[%s5 + $0xc40] sm:$0xff]
        %v985 = vld [vmem:[%s5 + $0xc48] sm:$0xff]
        %v986 = vld [vmem:[%s5 + $0xc50] sm:$0xff]
        %v987 = vld [vmem:[%s5 + $0xc58] sm:$0xff]
        %v988 = vld [vmem:[%s5 + $0xc60] sm:$0xff]
        %v989 = vld [vmem:[%s5 + $0xc68] sm:$0xff]
        %v990 = vld [vmem:[%s5 + $0xc70] sm:$0xff]
        %v991 = vld [vmem:[%s5 + $0xc78] sm:$0xff]
        %v992 = vld [vmem:[%s5 + $0xc80] sm:$0xff]
        %v993 = vld [vmem:[%s5 + $0xc88] sm:$0xff]
        %v994 = vld [vmem:[%s5 + $0xc90] sm:$0xff]
        %v995 = vld [vmem:[%s5 + $0xc98] sm:$0xff]
        %v996 = vld [vmem:[%s5 + $0xca0] sm:$0xff]
        %v997 = vld [vmem:[%s5 + $0xca8] sm:$0xff]
        %v998 = vld [vmem:[%s5 + $0xcb0] sm:$0xff]
        %v999 = vld [vmem:[%s5 + $0xcb8] sm:$0xff]
        %v1000 = vld [vmem:[%s5 + $0xcc0] sm:$0xff]
        %v1001 = vld [vmem:[%s5 + $0xcc8] sm:$0xff]
        %v1002 = vld [vmem:[%s5 + $0xcd0] sm:$0xff]
        %v1003 = vld [vmem:[%s5 + $0xcd8] sm:$0xff]
        %v1004 = vld [vmem:[%s5 + $0xce0] sm:$0xff]
        %v1005 = vld [vmem:[%s5 + $0xce8] sm:$0xff]
        %v1006 = vld [vmem:[%s5 + $0xcf0] sm:$0xff]
        %v1007 = vld [vmem:[%s5 + $0xcf8] sm:$0xff]
        %v1008 = vld [vmem:[%s5 + $0xd00] sm:$0xff]
        %v1009 = vld [vmem:[%s5 + $0xd08] sm:$0xff]
        %v1010 = vld [vmem:[%s5 + $0xd10] sm:$0xff]
        %v1011 = vld [vmem:[%s5 + $0xd18] sm:$0xff]
        %v1012 = vld [vmem:[%s5 + $0xd20] sm:$0xff]
        %v1013 = vld [vmem:[%s5 + $0xd28] sm:$0xff]
        %v1014 = vld [vmem:[%s5 + $0xd30] sm:$0xff]
        %v1015 = vld [vmem:[%s5 + $0xd38] sm:$0xff]
        %v1016 = vld [vmem:[%s5 + $0xd40] sm:$0xff]
        %v1017 = vld [vmem:[%s5 + $0xd48] sm:$0xff]
        %v1018 = vld [vmem:[%s5 + $0xd50] sm:$0xff]
        %v1019 = vld [vmem:[%s5 + $0xd58] sm:$0xff]
        %v1020 = vld [vmem:[%s5 + $0xd60] sm:$0xff]
        %v1021 = vld [vmem:[%s5 + $0xd68] sm:$0xff]
        %v1022 = vld [vmem:[%s5 + $0xd70] sm:$0xff]
        %v1023 = vld [vmem:[%s5 + $0xd78] sm:$0xff]
        %v1024 = vld [vmem:[%s5 + $0xd80] sm:$0xff]
        %v1025 = vld [vmem:[%s5 + $0xd88] sm:$0xff]
        %v1026 = vld [vmem:[%s5 + $0xd90] sm:$0xff]
        %v1027 = vld [vmem:[%s5 + $0xd98] sm:$0xff]
        %v1028 = vld [vmem:[%s5 + $0xda0] sm:$0xff]
        %v1029 = vld [vmem:[%s5 + $0xda8] sm:$0xff]
        %v1030 = vld [vmem:[%s5 + $0xdb0] sm:$0xff]
        %v1031 = vld [vmem:[%s5 + $0xdb8] sm:$0xff]
        %v1032 = vld [vmem:[%s5 + $0xdc0] sm:$0xff]
        %v1033 = vld [vmem:[%s5 + $0xdc8] sm:$0xff]
        %v1034 = vld [vmem:[%s5 + $0xdd0] sm:$0xff]
        %v1035 = vld [vmem:[%s5 + $0xdd8] sm:$0xff]
        %v1036 = vld [vmem:[%s5 + $0xde0] sm:$0xff]
        %v1037 = vld [vmem:[%s5 + $0xde8] sm:$0xff]
        %v1038 = vld [vmem:[%s5 + $0xdf0] sm:$0xff]
        %v1039 = vld [vmem:[%s5 + $0xdf8] sm:$0xff]
        %v1040 = vld [vmem:[%s5 + $0xe00] sm:$0xff]
        %v1041 = vld [vmem:[%s5 + $0xe08] sm:$0xff]
        %v1042 = vld [vmem:[%s5 + $0xe10] sm:$0xff]
        %v1043 = vld [vmem:[%s5 + $0xe18] sm:$0xff]
        %v1044 = vld [vmem:[%s5 + $0xe20] sm:$0xff]
        %v1045 = vld [vmem:[%s5 + $0xe28] sm:$0xff]
        %v1046 = vld [vmem:[%s5 + $0xe30] sm:$0xff]
        %v1047 = vld [vmem:[%s5 + $0xe38] sm:$0xff]
        %v1048 = vld [vmem:[%s5 + $0xe40] sm:$0xff]
        %v1049 = vld [vmem:[%s5 + $0xe48] sm:$0xff]
        %v1050 = vld [vmem:[%s5 + $0xe50] sm:$0xff]
        %v1051 = vld [vmem:[%s5 + $0xe58] sm:$0xff]
        %v1052 = vld [vmem:[%s5 + $0xe60] sm:$0xff]
        %v1053 = vld [vmem:[%s5 + $0xe68] sm:$0xff]
        %v1054 = vld [vmem:[%s5 + $0xe70] sm:$0xff]
        %v1055 = vld [vmem:[%s5 + $0xe78] sm:$0xff]
        %v1056 = vld [vmem:[%s5 + $0xe80] sm:$0xff]
        %v1057 = vld [vmem:[%s5 + $0xe88] sm:$0xff]
        %v1058 = vld [vmem:[%s5 + $0xe90] sm:$0xff]
        %v1059 = vld [vmem:[%s5 + $0xe98] sm:$0xff]
        %v1060 = vld [vmem:[%s5 + $0xea0] sm:$0xff]
        %v1061 = vld [vmem:[%s5 + $0xea8] sm:$0xff]
        %v1062 = vld [vmem:[%s5 + $0xeb0] sm:$0xff]
        %v1063 = vld [vmem:[%s5 + $0xeb8] sm:$0xff]
        %v1064 = vld [vmem:[%s5 + $0xec0] sm:$0xff]
        %v1065 = vld [vmem:[%s5 + $0xec8] sm:$0xff]
        %v1066 = vld [vmem:[%s5 + $0xed0] sm:$0xff]
        %v1067 = vld [vmem:[%s5 + $0xed8] sm:$0xff]
        %v1068 = vld [vmem:[%s5 + $0xee0] sm:$0xff]
        %v1069 = vld [vmem:[%s5 + $0xee8] sm:$0xff]
        %v1070 = vld [vmem:[%s5 + $0xef0] sm:$0xff]
        %v1071 = vld [vmem:[%s5 + $0xef8] sm:$0xff]
        %v1072 = vld [vmem:[%s5 + $0xf00] sm:$0xff]
        %v1073 = vld [vmem:[%s5 + $0xf08] sm:$0xff]
        %v1074 = vld [vmem:[%s5 + $0xf10] sm:$0xff]
        %v1075 = vld [vmem:[%s5 + $0xf18] sm:$0xff]
        %v1076 = vld [vmem:[%s5 + $0xf20] sm:$0xff]
        %v1077 = vld [vmem:[%s5 + $0xf28] sm:$0xff]
        %v1078 = vld [vmem:[%s5 + $0xf30] sm:$0xff]
        %v1079 = vld [vmem:[%s5 + $0xf38] sm:$0xff]
        %v1080 = vld [vmem:[%s5 + $0xf40] sm:$0xff]
        %v1081 = vld [vmem:[%s5 + $0xf48] sm:$0xff]
        %v1082 = vld [vmem:[%s5 + $0xf50] sm:$0xff]
        %v1083 = vld [vmem:[%s5 + $0xf58] sm:$0xff]
        %v1084 = vld [vmem:[%s5 + $0xf60] sm:$0xff]
        %v1085 = vld [vmem:[%s5 + $0xf68] sm:$0xff]
        %v1086 = vld [vmem:[%s5 + $0xf70] sm:$0xff]
        %v1087 = vld [vmem:[%s5 + $0xf78] sm:$0xff]
        %v1088 = vld [vmem:[%s5 + $0xf80] sm:$0xff]
        %v1089 = vld [vmem:[%s5 + $0xf88] sm:$0xff]
        %v1090 = vld [vmem:[%s5 + $0xf90] sm:$0xff]
        %v1091 = vld [vmem:[%s5 + $0xf98] sm:$0xff]
        %v1092 = vld [vmem:[%s5 + $0xfa0] sm:$0xff]
        %v1093 = vld [vmem:[%s5 + $0xfa8] sm:$0xff]
        %v1094 = vld [vmem:[%s5 + $0xfb0] sm:$0xff]
        %v1095 = vld [vmem:[%s5 + $0xfb8] sm:$0xff]
        %v1096 = vld [vmem:[%s5 + $0xfc0] sm:$0xff]
        %v1097 = vld [vmem:[%s5 + $0xfc8] sm:$0xff]
        %v1098 = vld [vmem:[%s5 + $0xfd0] sm:$0xff]
        %v1099 = vld [vmem:[%s5 + $0xfd8] sm:$0xff]
        %v1100 = vld [vmem:[%s5 + $0xfe0] sm:$0xff]
        %v1101 = vld [vmem:[%s5 + $0xfe8] sm:$0xff]
        %v1102 = vld [vmem:[%s5 + $0xff0] sm:$0xff]
        %v1103 = vld [vmem:[%s5 + $0xff8] sm:$0xff]
        %v1104 = vld [vmem:[%s6] sm:$0xf]
        %v1106 = vlaneseq
        %v1107 = vshrl.u32 %v1106, 7
        %v1108 = vsub.s32 0, %v1107
        %v1109 = vrot.slane %v1104, %v1108
        %v1110 = vlaneseq
        %v1111 = vshrl.u32 %v1110, 7
        %v1112 = vsub.s32 1, %v1111
        %v1113 = vrot.slane %v1104, %v1112
        %v1114 = vlaneseq
        %v1115 = vshrl.u32 %v1114, 7
        %v1116 = vsub.s32 2, %v1115
        %v1117 = vrot.slane %v1104, %v1116
        %v1118 = vlaneseq
        %v1119 = vshrl.u32 %v1118, 7
        %v1120 = vsub.s32 3, %v1119
        %v1121 = vrot.slane %v1104, %v1120
        %v1158 = vunpack.c.l.b16 %v560
        %v1159 = vunpack.c.h.b16 %v560
        %v1160 = vunpack.c.l.b16 %v561
        %v1161 = vunpack.c.h.b16 %v561
        %v1162 = vunpack.c.l.b16 %v562
        %v1163 = vunpack.c.h.b16 %v562
        %v1164 = vunpack.c.l.b16 %v563
        %v1165 = vunpack.c.h.b16 %v563
        %v1166 = vunpack.c.l.b16 %v564
        %v1167 = vunpack.c.h.b16 %v564
        %v1168 = vunpack.c.l.b16 %v565
        %v1169 = vunpack.c.h.b16 %v565
        %v1170 = vunpack.c.l.b16 %v566
        %v1171 = vunpack.c.h.b16 %v566
        %v1172 = vunpack.c.l.b16 %v567
        %v1173 = vunpack.c.h.b16 %v567
        %v1174 = vunpack.c.l.b16 %v568
        %v1175 = vunpack.c.h.b16 %v568
        %v1176 = vunpack.c.l.b16 %v569
        %v1177 = vunpack.c.h.b16 %v569
        %v1178 = vunpack.c.l.b16 %v570
        %v1179 = vunpack.c.h.b16 %v570
        %v1180 = vunpack.c.l.b16 %v571
        %v1181 = vunpack.c.h.b16 %v571
        %v1182 = vunpack.c.l.b16 %v572
        %v1183 = vunpack.c.h.b16 %v572
        %v1184 = vunpack.c.l.b16 %v573
        %v1185 = vunpack.c.h.b16 %v573
        %v1186 = vunpack.c.l.b16 %v574
        %v1187 = vunpack.c.h.b16 %v574
        %v1188 = vunpack.c.l.b16 %v575
        %v1189 = vunpack.c.h.b16 %v575
        %v1190 = vunpack.c.l.b16 %v576
        %v1191 = vunpack.c.h.b16 %v576
        %v1192 = vunpack.c.l.b16 %v577
        %v1193 = vunpack.c.h.b16 %v577
        %v1194 = vunpack.c.l.b16 %v578
        %v1195 = vunpack.c.h.b16 %v578
        %v1196 = vunpack.c.l.b16 %v579
        %v1197 = vunpack.c.h.b16 %v579
        %v1198 = vunpack.c.l.b16 %v580
        %v1199 = vunpack.c.h.b16 %v580
        %v1200 = vunpack.c.l.b16 %v581
        %v1201 = vunpack.c.h.b16 %v581
        %v1202 = vunpack.c.l.b16 %v582
        %v1203 = vunpack.c.h.b16 %v582
        %v1204 = vunpack.c.l.b16 %v583
        %v1205 = vunpack.c.h.b16 %v583
        %v1206 = vunpack.c.l.b16 %v584
        %v1207 = vunpack.c.h.b16 %v584
        %v1208 = vunpack.c.l.b16 %v585
        %v1209 = vunpack.c.h.b16 %v585
        %v1210 = vunpack.c.l.b16 %v586
        %v1211 = vunpack.c.h.b16 %v586
        %v1212 = vunpack.c.l.b16 %v587
        %v1213 = vunpack.c.h.b16 %v587
        %v1214 = vunpack.c.l.b16 %v588
        %v1215 = vunpack.c.h.b16 %v588
        %v1216 = vunpack.c.l.b16 %v589
        %v1217 = vunpack.c.h.b16 %v589
        %v1218 = vunpack.c.l.b16 %v590
        %v1219 = vunpack.c.h.b16 %v590
        %v1220 = vunpack.c.l.b16 %v591
        %v1221 = vunpack.c.h.b16 %v591
        %v1222 = vpack.c.b16 %v1174, %v1158
        %v1223 = vpack.c.b16 %v1175, %v1159
        %v1224 = vpack.c.b16 %v1176, %v1160
        %v1225 = vpack.c.b16 %v1177, %v1161
        %v1226 = vpack.c.b16 %v1178, %v1162
        %v1227 = vpack.c.b16 %v1179, %v1163
        %v1228 = vpack.c.b16 %v1180, %v1164
        %v1229 = vpack.c.b16 %v1181, %v1165
        %v1230 = vpack.c.b16 %v1182, %v1166
        %v1231 = vpack.c.b16 %v1183, %v1167
        %v1232 = vpack.c.b16 %v1184, %v1168
        %v1233 = vpack.c.b16 %v1185, %v1169
        %v1234 = vpack.c.b16 %v1186, %v1170
        %v1235 = vpack.c.b16 %v1187, %v1171
        %v1236 = vpack.c.b16 %v1188, %v1172
        %v1237 = vpack.c.b16 %v1189, %v1173
        %v1238 = vpack.c.b16 %v1206, %v1190
        %v1239 = vpack.c.b16 %v1207, %v1191
        %v1240 = vpack.c.b16 %v1208, %v1192
        %v1241 = vpack.c.b16 %v1209, %v1193
        %v1242 = vpack.c.b16 %v1210, %v1194
        %v1243 = vpack.c.b16 %v1211, %v1195
        %v1244 = vpack.c.b16 %v1212, %v1196
        %v1245 = vpack.c.b16 %v1213, %v1197
        %v1246 = vpack.c.b16 %v1214, %v1198
        %v1247 = vpack.c.b16 %v1215, %v1199
        %v1248 = vpack.c.b16 %v1216, %v1200
        %v1249 = vpack.c.b16 %v1217, %v1201
        %v1250 = vpack.c.b16 %v1218, %v1202
        %v1251 = vpack.c.b16 %v1219, %v1203
        %v1252 = vpack.c.b16 %v1220, %v1204
        %v1253 = vpack.c.b16 %v1221, %v1205
        %v1798 = vunpack.c.l.b16 %v592
        %v1799 = vunpack.c.h.b16 %v592
        %v1800 = vunpack.c.l.b16 %v593
        %v1801 = vunpack.c.h.b16 %v593
        %v1802 = vunpack.c.l.b16 %v594
        %v1803 = vunpack.c.h.b16 %v594
        %v1804 = vunpack.c.l.b16 %v595
        %v1805 = vunpack.c.h.b16 %v595
        %v1806 = vunpack.c.l.b16 %v596
        %v1807 = vunpack.c.h.b16 %v596
        %v1808 = vunpack.c.l.b16 %v597
        %v1809 = vunpack.c.h.b16 %v597
        %v1810 = vunpack.c.l.b16 %v598
        %v1811 = vunpack.c.h.b16 %v598
        %v1812 = vunpack.c.l.b16 %v599
        %v1813 = vunpack.c.h.b16 %v599
        %v1814 = vunpack.c.l.b16 %v600
        %v1815 = vunpack.c.h.b16 %v600
        %v1816 = vunpack.c.l.b16 %v601
        %v1817 = vunpack.c.h.b16 %v601
        %v1818 = vunpack.c.l.b16 %v602
        %v1819 = vunpack.c.h.b16 %v602
        %v1820 = vunpack.c.l.b16 %v603
        %v1821 = vunpack.c.h.b16 %v603
        %v1822 = vunpack.c.l.b16 %v604
        %v1823 = vunpack.c.h.b16 %v604
        %v1824 = vunpack.c.l.b16 %v605
        %v1825 = vunpack.c.h.b16 %v605
        %v1826 = vunpack.c.l.b16 %v606
        %v1827 = vunpack.c.h.b16 %v606
        %v1828 = vunpack.c.l.b16 %v607
        %v1829 = vunpack.c.h.b16 %v607
        %v1830 = vunpack.c.l.b16 %v608
        %v1831 = vunpack.c.h.b16 %v608
        %v1832 = vunpack.c.l.b16 %v609
        %v1833 = vunpack.c.h.b16 %v609
        %v1834 = vunpack.c.l.b16 %v610
        %v1835 = vunpack.c.h.b16 %v610
        %v1836 = vunpack.c.l.b16 %v611
        %v1837 = vunpack.c.h.b16 %v611
        %v1838 = vunpack.c.l.b16 %v612
        %v1839 = vunpack.c.h.b16 %v612
        %v1840 = vunpack.c.l.b16 %v613
        %v1841 = vunpack.c.h.b16 %v613
        %v1842 = vunpack.c.l.b16 %v614
        %v1843 = vunpack.c.h.b16 %v614
        %v1844 = vunpack.c.l.b16 %v615
        %v1845 = vunpack.c.h.b16 %v615
        %v1846 = vunpack.c.l.b16 %v616
        %v1847 = vunpack.c.h.b16 %v616
        %v1848 = vunpack.c.l.b16 %v617
        %v1849 = vunpack.c.h.b16 %v617
        %v1850 = vunpack.c.l.b16 %v618
        %v1851 = vunpack.c.h.b16 %v618
        %v1852 = vunpack.c.l.b16 %v619
        %v1853 = vunpack.c.h.b16 %v619
        %v1854 = vunpack.c.l.b16 %v620
        %v1855 = vunpack.c.h.b16 %v620
        %v1856 = vunpack.c.l.b16 %v621
        %v1857 = vunpack.c.h.b16 %v621
        %v1858 = vunpack.c.l.b16 %v622
        %v1859 = vunpack.c.h.b16 %v622
        %v1860 = vunpack.c.l.b16 %v623
        %v1861 = vunpack.c.h.b16 %v623
        %v1862 = vunpack.c.l.b16 %v624
        %v1863 = vunpack.c.h.b16 %v624
        %v1864 = vunpack.c.l.b16 %v625
        %v1865 = vunpack.c.h.b16 %v625
        %v1866 = vunpack.c.l.b16 %v626
        %v1867 = vunpack.c.h.b16 %v626
        %v1868 = vunpack.c.l.b16 %v627
        %v1869 = vunpack.c.h.b16 %v627
        %v1870 = vunpack.c.l.b16 %v628
        %v1871 = vunpack.c.h.b16 %v628
        %v1872 = vunpack.c.l.b16 %v629
        %v1873 = vunpack.c.h.b16 %v629
        %v1874 = vunpack.c.l.b16 %v630
        %v1875 = vunpack.c.h.b16 %v630
        %v1876 = vunpack.c.l.b16 %v631
        %v1877 = vunpack.c.h.b16 %v631
        %v1878 = vunpack.c.l.b16 %v632
        %v1879 = vunpack.c.h.b16 %v632
        %v1880 = vunpack.c.l.b16 %v633
        %v1881 = vunpack.c.h.b16 %v633
        %v1882 = vunpack.c.l.b16 %v634
        %v1883 = vunpack.c.h.b16 %v634
        %v1884 = vunpack.c.l.b16 %v635
        %v1885 = vunpack.c.h.b16 %v635
        %v1886 = vunpack.c.l.b16 %v636
        %v1887 = vunpack.c.h.b16 %v636
        %v1888 = vunpack.c.l.b16 %v637
        %v1889 = vunpack.c.h.b16 %v637
        %v1890 = vunpack.c.l.b16 %v638
        %v1891 = vunpack.c.h.b16 %v638
        %v1892 = vunpack.c.l.b16 %v639
        %v1893 = vunpack.c.h.b16 %v639
        %v1894 = vunpack.c.l.b16 %v640
        %v1895 = vunpack.c.h.b16 %v640
        %v1896 = vunpack.c.l.b16 %v641
        %v1897 = vunpack.c.h.b16 %v641
        %v1898 = vunpack.c.l.b16 %v642
        %v1899 = vunpack.c.h.b16 %v642
        %v1900 = vunpack.c.l.b16 %v643
        %v1901 = vunpack.c.h.b16 %v643
        %v1902 = vunpack.c.l.b16 %v644
        %v1903 = vunpack.c.h.b16 %v644
        %v1904 = vunpack.c.l.b16 %v645
        %v1905 = vunpack.c.h.b16 %v645
        %v1906 = vunpack.c.l.b16 %v646
        %v1907 = vunpack.c.h.b16 %v646
        %v1908 = vunpack.c.l.b16 %v647
        %v1909 = vunpack.c.h.b16 %v647
        %v1910 = vunpack.c.l.b16 %v648
        %v1911 = vunpack.c.h.b16 %v648
        %v1912 = vunpack.c.l.b16 %v649
        %v1913 = vunpack.c.h.b16 %v649
        %v1914 = vunpack.c.l.b16 %v650
        %v1915 = vunpack.c.h.b16 %v650
        %v1916 = vunpack.c.l.b16 %v651
        %v1917 = vunpack.c.h.b16 %v651
        %v1918 = vunpack.c.l.b16 %v652
        %v1919 = vunpack.c.h.b16 %v652
        %v1920 = vunpack.c.l.b16 %v653
        %v1921 = vunpack.c.h.b16 %v653
        %v1922 = vunpack.c.l.b16 %v654
        %v1923 = vunpack.c.h.b16 %v654
        %v1924 = vunpack.c.l.b16 %v655
        %v1925 = vunpack.c.h.b16 %v655
        %v1926 = vunpack.c.l.b16 %v656
        %v1927 = vunpack.c.h.b16 %v656
        %v1928 = vunpack.c.l.b16 %v657
        %v1929 = vunpack.c.h.b16 %v657
        %v1930 = vunpack.c.l.b16 %v658
        %v1931 = vunpack.c.h.b16 %v658
        %v1932 = vunpack.c.l.b16 %v659
        %v1933 = vunpack.c.h.b16 %v659
        %v1934 = vunpack.c.l.b16 %v660
        %v1935 = vunpack.c.h.b16 %v660
        %v1936 = vunpack.c.l.b16 %v661
        %v1937 = vunpack.c.h.b16 %v661
        %v1938 = vunpack.c.l.b16 %v662
        %v1939 = vunpack.c.h.b16 %v662
        %v1940 = vunpack.c.l.b16 %v663
        %v1941 = vunpack.c.h.b16 %v663
        %v1942 = vunpack.c.l.b16 %v664
        %v1943 = vunpack.c.h.b16 %v664
        %v1944 = vunpack.c.l.b16 %v665
        %v1945 = vunpack.c.h.b16 %v665
        %v1946 = vunpack.c.l.b16 %v666
        %v1947 = vunpack.c.h.b16 %v666
        %v1948 = vunpack.c.l.b16 %v667
        %v1949 = vunpack.c.h.b16 %v667
        %v1950 = vunpack.c.l.b16 %v668
        %v1951 = vunpack.c.h.b16 %v668
        %v1952 = vunpack.c.l.b16 %v669
        %v1953 = vunpack.c.h.b16 %v669
        %v1954 = vunpack.c.l.b16 %v670
        %v1955 = vunpack.c.h.b16 %v670
        %v1956 = vunpack.c.l.b16 %v671
        %v1957 = vunpack.c.h.b16 %v671
        %v1958 = vunpack.c.l.b16 %v672
        %v1959 = vunpack.c.h.b16 %v672
        %v1960 = vunpack.c.l.b16 %v673
        %v1961 = vunpack.c.h.b16 %v673
        %v1962 = vunpack.c.l.b16 %v674
        %v1963 = vunpack.c.h.b16 %v674
        %v1964 = vunpack.c.l.b16 %v675
        %v1965 = vunpack.c.h.b16 %v675
        %v1966 = vunpack.c.l.b16 %v676
        %v1967 = vunpack.c.h.b16 %v676
        %v1968 = vunpack.c.l.b16 %v677
        %v1969 = vunpack.c.h.b16 %v677
        %v1970 = vunpack.c.l.b16 %v678
        %v1971 = vunpack.c.h.b16 %v678
        %v1972 = vunpack.c.l.b16 %v679
        %v1973 = vunpack.c.h.b16 %v679
        %v1974 = vunpack.c.l.b16 %v680
        %v1975 = vunpack.c.h.b16 %v680
        %v1976 = vunpack.c.l.b16 %v681
        %v1977 = vunpack.c.h.b16 %v681
        %v1978 = vunpack.c.l.b16 %v682
        %v1979 = vunpack.c.h.b16 %v682
        %v1980 = vunpack.c.l.b16 %v683
        %v1981 = vunpack.c.h.b16 %v683
        %v1982 = vunpack.c.l.b16 %v684
        %v1983 = vunpack.c.h.b16 %v684
        %v1984 = vunpack.c.l.b16 %v685
        %v1985 = vunpack.c.h.b16 %v685
        %v1986 = vunpack.c.l.b16 %v686
        %v1987 = vunpack.c.h.b16 %v686
        %v1988 = vunpack.c.l.b16 %v687
        %v1989 = vunpack.c.h.b16 %v687
        %v1990 = vunpack.c.l.b16 %v688
        %v1991 = vunpack.c.h.b16 %v688
        %v1992 = vunpack.c.l.b16 %v689
        %v1993 = vunpack.c.h.b16 %v689
        %v1994 = vunpack.c.l.b16 %v690
        %v1995 = vunpack.c.h.b16 %v690
        %v1996 = vunpack.c.l.b16 %v691
        %v1997 = vunpack.c.h.b16 %v691
        %v1998 = vunpack.c.l.b16 %v692
        %v1999 = vunpack.c.h.b16 %v692
        %v2000 = vunpack.c.l.b16 %v693
        %v2001 = vunpack.c.h.b16 %v693
        %v2002 = vunpack.c.l.b16 %v694
        %v2003 = vunpack.c.h.b16 %v694
        %v2004 = vunpack.c.l.b16 %v695
        %v2005 = vunpack.c.h.b16 %v695
        %v2006 = vunpack.c.l.b16 %v696
        %v2007 = vunpack.c.h.b16 %v696
        %v2008 = vunpack.c.l.b16 %v697
        %v2009 = vunpack.c.h.b16 %v697
        %v2010 = vunpack.c.l.b16 %v698
        %v2011 = vunpack.c.h.b16 %v698
        %v2012 = vunpack.c.l.b16 %v699
        %v2013 = vunpack.c.h.b16 %v699
        %v2014 = vunpack.c.l.b16 %v700
        %v2015 = vunpack.c.h.b16 %v700
        %v2016 = vunpack.c.l.b16 %v701
        %v2017 = vunpack.c.h.b16 %v701
        %v2018 = vunpack.c.l.b16 %v702
        %v2019 = vunpack.c.h.b16 %v702
        %v2020 = vunpack.c.l.b16 %v703
        %v2021 = vunpack.c.h.b16 %v703
        %v2022 = vunpack.c.l.b16 %v704
        %v2023 = vunpack.c.h.b16 %v704
        %v2024 = vunpack.c.l.b16 %v705
        %v2025 = vunpack.c.h.b16 %v705
        %v2026 = vunpack.c.l.b16 %v706
        %v2027 = vunpack.c.h.b16 %v706
        %v2028 = vunpack.c.l.b16 %v707
        %v2029 = vunpack.c.h.b16 %v707
        %v2030 = vunpack.c.l.b16 %v708
        %v2031 = vunpack.c.h.b16 %v708
        %v2032 = vunpack.c.l.b16 %v709
        %v2033 = vunpack.c.h.b16 %v709
        %v2034 = vunpack.c.l.b16 %v710
        %v2035 = vunpack.c.h.b16 %v710
        %v2036 = vunpack.c.l.b16 %v711
        %v2037 = vunpack.c.h.b16 %v711
        %v2038 = vunpack.c.l.b16 %v712
        %v2039 = vunpack.c.h.b16 %v712
        %v2040 = vunpack.c.l.b16 %v713
        %v2041 = vunpack.c.h.b16 %v713
        %v2042 = vunpack.c.l.b16 %v714
        %v2043 = vunpack.c.h.b16 %v714
        %v2044 = vunpack.c.l.b16 %v715
        %v2045 = vunpack.c.h.b16 %v715
        %v2046 = vunpack.c.l.b16 %v716
        %v2047 = vunpack.c.h.b16 %v716
        %v2048 = vunpack.c.l.b16 %v717
        %v2049 = vunpack.c.h.b16 %v717
        %v2050 = vunpack.c.l.b16 %v718
        %v2051 = vunpack.c.h.b16 %v718
        %v2052 = vunpack.c.l.b16 %v719
        %v2053 = vunpack.c.h.b16 %v719
        %v2054 = vunpack.c.l.b16 %v720
        %v2055 = vunpack.c.h.b16 %v720
        %v2056 = vunpack.c.l.b16 %v721
        %v2057 = vunpack.c.h.b16 %v721
        %v2058 = vunpack.c.l.b16 %v722
        %v2059 = vunpack.c.h.b16 %v722
        %v2060 = vunpack.c.l.b16 %v723
        %v2061 = vunpack.c.h.b16 %v723
        %v2062 = vunpack.c.l.b16 %v724
        %v2063 = vunpack.c.h.b16 %v724
        %v2064 = vunpack.c.l.b16 %v725
        %v2065 = vunpack.c.h.b16 %v725
        %v2066 = vunpack.c.l.b16 %v726
        %v2067 = vunpack.c.h.b16 %v726
        %v2068 = vunpack.c.l.b16 %v727
        %v2069 = vunpack.c.h.b16 %v727
        %v2070 = vunpack.c.l.b16 %v728
        %v2071 = vunpack.c.h.b16 %v728
        %v2072 = vunpack.c.l.b16 %v729
        %v2073 = vunpack.c.h.b16 %v729
        %v2074 = vunpack.c.l.b16 %v730
        %v2075 = vunpack.c.h.b16 %v730
        %v2076 = vunpack.c.l.b16 %v731
        %v2077 = vunpack.c.h.b16 %v731
        %v2078 = vunpack.c.l.b16 %v732
        %v2079 = vunpack.c.h.b16 %v732
        %v2080 = vunpack.c.l.b16 %v733
        %v2081 = vunpack.c.h.b16 %v733
        %v2082 = vunpack.c.l.b16 %v734
        %v2083 = vunpack.c.h.b16 %v734
        %v2084 = vunpack.c.l.b16 %v735
        %v2085 = vunpack.c.h.b16 %v735
        %v2086 = vunpack.c.l.b16 %v736
        %v2087 = vunpack.c.h.b16 %v736
        %v2088 = vunpack.c.l.b16 %v737
        %v2089 = vunpack.c.h.b16 %v737
        %v2090 = vunpack.c.l.b16 %v738
        %v2091 = vunpack.c.h.b16 %v738
        %v2092 = vunpack.c.l.b16 %v739
        %v2093 = vunpack.c.h.b16 %v739
        %v2094 = vunpack.c.l.b16 %v740
        %v2095 = vunpack.c.h.b16 %v740
        %v2096 = vunpack.c.l.b16 %v741
        %v2097 = vunpack.c.h.b16 %v741
        %v2098 = vunpack.c.l.b16 %v742
        %v2099 = vunpack.c.h.b16 %v742
        %v2100 = vunpack.c.l.b16 %v743
        %v2101 = vunpack.c.h.b16 %v743
        %v2102 = vunpack.c.l.b16 %v744
        %v2103 = vunpack.c.h.b16 %v744
        %v2104 = vunpack.c.l.b16 %v745
        %v2105 = vunpack.c.h.b16 %v745
        %v2106 = vunpack.c.l.b16 %v746
        %v2107 = vunpack.c.h.b16 %v746
        %v2108 = vunpack.c.l.b16 %v747
        %v2109 = vunpack.c.h.b16 %v747
        %v2110 = vunpack.c.l.b16 %v748
        %v2111 = vunpack.c.h.b16 %v748
        %v2112 = vunpack.c.l.b16 %v749
        %v2113 = vunpack.c.h.b16 %v749
        %v2114 = vunpack.c.l.b16 %v750
        %v2115 = vunpack.c.h.b16 %v750
        %v2116 = vunpack.c.l.b16 %v751
        %v2117 = vunpack.c.h.b16 %v751
        %v2118 = vunpack.c.l.b16 %v752
        %v2119 = vunpack.c.h.b16 %v752
        %v2120 = vunpack.c.l.b16 %v753
        %v2121 = vunpack.c.h.b16 %v753
        %v2122 = vunpack.c.l.b16 %v754
        %v2123 = vunpack.c.h.b16 %v754
        %v2124 = vunpack.c.l.b16 %v755
        %v2125 = vunpack.c.h.b16 %v755
        %v2126 = vunpack.c.l.b16 %v756
        %v2127 = vunpack.c.h.b16 %v756
        %v2128 = vunpack.c.l.b16 %v757
        %v2129 = vunpack.c.h.b16 %v757
        %v2130 = vunpack.c.l.b16 %v758
        %v2131 = vunpack.c.h.b16 %v758
        %v2132 = vunpack.c.l.b16 %v759
        %v2133 = vunpack.c.h.b16 %v759
        %v2134 = vunpack.c.l.b16 %v760
        %v2135 = vunpack.c.h.b16 %v760
        %v2136 = vunpack.c.l.b16 %v761
        %v2137 = vunpack.c.h.b16 %v761
        %v2138 = vunpack.c.l.b16 %v762
        %v2139 = vunpack.c.h.b16 %v762
        %v2140 = vunpack.c.l.b16 %v763
        %v2141 = vunpack.c.h.b16 %v763
        %v2142 = vunpack.c.l.b16 %v764
        %v2143 = vunpack.c.h.b16 %v764
        %v2144 = vunpack.c.l.b16 %v765
        %v2145 = vunpack.c.h.b16 %v765
        %v2146 = vunpack.c.l.b16 %v766
        %v2147 = vunpack.c.h.b16 %v766
        %v2148 = vunpack.c.l.b16 %v767
        %v2149 = vunpack.c.h.b16 %v767
        %v2150 = vunpack.c.l.b16 %v768
        %v2151 = vunpack.c.h.b16 %v768
        %v2152 = vunpack.c.l.b16 %v769
        %v2153 = vunpack.c.h.b16 %v769
        %v2154 = vunpack.c.l.b16 %v770
        %v2155 = vunpack.c.h.b16 %v770
        %v2156 = vunpack.c.l.b16 %v771
        %v2157 = vunpack.c.h.b16 %v771
        %v2158 = vunpack.c.l.b16 %v772
        %v2159 = vunpack.c.h.b16 %v772
        %v2160 = vunpack.c.l.b16 %v773
        %v2161 = vunpack.c.h.b16 %v773
        %v2162 = vunpack.c.l.b16 %v774
        %v2163 = vunpack.c.h.b16 %v774
        %v2164 = vunpack.c.l.b16 %v775
        %v2165 = vunpack.c.h.b16 %v775
        %v2166 = vunpack.c.l.b16 %v776
        %v2167 = vunpack.c.h.b16 %v776
        %v2168 = vunpack.c.l.b16 %v777
        %v2169 = vunpack.c.h.b16 %v777
        %v2170 = vunpack.c.l.b16 %v778
        %v2171 = vunpack.c.h.b16 %v778
        %v2172 = vunpack.c.l.b16 %v779
        %v2173 = vunpack.c.h.b16 %v779
        %v2174 = vunpack.c.l.b16 %v780
        %v2175 = vunpack.c.h.b16 %v780
        %v2176 = vunpack.c.l.b16 %v781
        %v2177 = vunpack.c.h.b16 %v781
        %v2178 = vunpack.c.l.b16 %v782
        %v2179 = vunpack.c.h.b16 %v782
        %v2180 = vunpack.c.l.b16 %v783
        %v2181 = vunpack.c.h.b16 %v783
        %v2182 = vunpack.c.l.b16 %v784
        %v2183 = vunpack.c.h.b16 %v784
        %v2184 = vunpack.c.l.b16 %v785
        %v2185 = vunpack.c.h.b16 %v785
        %v2186 = vunpack.c.l.b16 %v786
        %v2187 = vunpack.c.h.b16 %v786
        %v2188 = vunpack.c.l.b16 %v787
        %v2189 = vunpack.c.h.b16 %v787
        %v2190 = vunpack.c.l.b16 %v788
        %v2191 = vunpack.c.h.b16 %v788
        %v2192 = vunpack.c.l.b16 %v789
        %v2193 = vunpack.c.h.b16 %v789
        %v2194 = vunpack.c.l.b16 %v790
        %v2195 = vunpack.c.h.b16 %v790
        %v2196 = vunpack.c.l.b16 %v791
        %v2197 = vunpack.c.h.b16 %v791
        %v2198 = vunpack.c.l.b16 %v792
        %v2199 = vunpack.c.h.b16 %v792
        %v2200 = vunpack.c.l.b16 %v793
        %v2201 = vunpack.c.h.b16 %v793
        %v2202 = vunpack.c.l.b16 %v794
        %v2203 = vunpack.c.h.b16 %v794
        %v2204 = vunpack.c.l.b16 %v795
        %v2205 = vunpack.c.h.b16 %v795
        %v2206 = vunpack.c.l.b16 %v796
        %v2207 = vunpack.c.h.b16 %v796
        %v2208 = vunpack.c.l.b16 %v797
        %v2209 = vunpack.c.h.b16 %v797
        %v2210 = vunpack.c.l.b16 %v798
        %v2211 = vunpack.c.h.b16 %v798
        %v2212 = vunpack.c.l.b16 %v799
        %v2213 = vunpack.c.h.b16 %v799
        %v2214 = vunpack.c.l.b16 %v800
        %v2215 = vunpack.c.h.b16 %v800
        %v2216 = vunpack.c.l.b16 %v801
        %v2217 = vunpack.c.h.b16 %v801
        %v2218 = vunpack.c.l.b16 %v802
        %v2219 = vunpack.c.h.b16 %v802
        %v2220 = vunpack.c.l.b16 %v803
        %v2221 = vunpack.c.h.b16 %v803
        %v2222 = vunpack.c.l.b16 %v804
        %v2223 = vunpack.c.h.b16 %v804
        %v2224 = vunpack.c.l.b16 %v805
        %v2225 = vunpack.c.h.b16 %v805
        %v2226 = vunpack.c.l.b16 %v806
        %v2227 = vunpack.c.h.b16 %v806
        %v2228 = vunpack.c.l.b16 %v807
        %v2229 = vunpack.c.h.b16 %v807
        %v2230 = vunpack.c.l.b16 %v808
        %v2231 = vunpack.c.h.b16 %v808
        %v2232 = vunpack.c.l.b16 %v809
        %v2233 = vunpack.c.h.b16 %v809
        %v2234 = vunpack.c.l.b16 %v810
        %v2235 = vunpack.c.h.b16 %v810
        %v2236 = vunpack.c.l.b16 %v811
        %v2237 = vunpack.c.h.b16 %v811
        %v2238 = vunpack.c.l.b16 %v812
        %v2239 = vunpack.c.h.b16 %v812
        %v2240 = vunpack.c.l.b16 %v813
        %v2241 = vunpack.c.h.b16 %v813
        %v2242 = vunpack.c.l.b16 %v814
        %v2243 = vunpack.c.h.b16 %v814
        %v2244 = vunpack.c.l.b16 %v815
        %v2245 = vunpack.c.h.b16 %v815
        %v2246 = vunpack.c.l.b16 %v816
        %v2247 = vunpack.c.h.b16 %v816
        %v2248 = vunpack.c.l.b16 %v817
        %v2249 = vunpack.c.h.b16 %v817
        %v2250 = vunpack.c.l.b16 %v818
        %v2251 = vunpack.c.h.b16 %v818
        %v2252 = vunpack.c.l.b16 %v819
        %v2253 = vunpack.c.h.b16 %v819
        %v2254 = vunpack.c.l.b16 %v820
        %v2255 = vunpack.c.h.b16 %v820
        %v2256 = vunpack.c.l.b16 %v821
        %v2257 = vunpack.c.h.b16 %v821
        %v2258 = vunpack.c.l.b16 %v822
        %v2259 = vunpack.c.h.b16 %v822
        %v2260 = vunpack.c.l.b16 %v823
        %v2261 = vunpack.c.h.b16 %v823
        %v2262 = vunpack.c.l.b16 %v824
        %v2263 = vunpack.c.h.b16 %v824
        %v2264 = vunpack.c.l.b16 %v825
        %v2265 = vunpack.c.h.b16 %v825
        %v2266 = vunpack.c.l.b16 %v826
        %v2267 = vunpack.c.h.b16 %v826
        %v2268 = vunpack.c.l.b16 %v827
        %v2269 = vunpack.c.h.b16 %v827
        %v2270 = vunpack.c.l.b16 %v828
        %v2271 = vunpack.c.h.b16 %v828
        %v2272 = vunpack.c.l.b16 %v829
        %v2273 = vunpack.c.h.b16 %v829
        %v2274 = vunpack.c.l.b16 %v830
        %v2275 = vunpack.c.h.b16 %v830
        %v2276 = vunpack.c.l.b16 %v831
        %v2277 = vunpack.c.h.b16 %v831
        %v2278 = vunpack.c.l.b16 %v832
        %v2279 = vunpack.c.h.b16 %v832
        %v2280 = vunpack.c.l.b16 %v833
        %v2281 = vunpack.c.h.b16 %v833
        %v2282 = vunpack.c.l.b16 %v834
        %v2283 = vunpack.c.h.b16 %v834
        %v2284 = vunpack.c.l.b16 %v835
        %v2285 = vunpack.c.h.b16 %v835
        %v2286 = vunpack.c.l.b16 %v836
        %v2287 = vunpack.c.h.b16 %v836
        %v2288 = vunpack.c.l.b16 %v837
        %v2289 = vunpack.c.h.b16 %v837
        %v2290 = vunpack.c.l.b16 %v838
        %v2291 = vunpack.c.h.b16 %v838
        %v2292 = vunpack.c.l.b16 %v839
        %v2293 = vunpack.c.h.b16 %v839
        %v2294 = vunpack.c.l.b16 %v840
        %v2295 = vunpack.c.h.b16 %v840
        %v2296 = vunpack.c.l.b16 %v841
        %v2297 = vunpack.c.h.b16 %v841
        %v2298 = vunpack.c.l.b16 %v842
        %v2299 = vunpack.c.h.b16 %v842
        %v2300 = vunpack.c.l.b16 %v843
        %v2301 = vunpack.c.h.b16 %v843
        %v2302 = vunpack.c.l.b16 %v844
        %v2303 = vunpack.c.h.b16 %v844
        %v2304 = vunpack.c.l.b16 %v845
        %v2305 = vunpack.c.h.b16 %v845
        %v2306 = vunpack.c.l.b16 %v846
        %v2307 = vunpack.c.h.b16 %v846
        %v2308 = vunpack.c.l.b16 %v847
        %v2309 = vunpack.c.h.b16 %v847
        %v2310 = vunpack.c.l.b16 %v848
        %v2311 = vunpack.c.h.b16 %v848
        %v2312 = vunpack.c.l.b16 %v849
        %v2313 = vunpack.c.h.b16 %v849
        %v2314 = vunpack.c.l.b16 %v850
        %v2315 = vunpack.c.h.b16 %v850
        %v2316 = vunpack.c.l.b16 %v851
        %v2317 = vunpack.c.h.b16 %v851
        %v2318 = vunpack.c.l.b16 %v852
        %v2319 = vunpack.c.h.b16 %v852
        %v2320 = vunpack.c.l.b16 %v853
        %v2321 = vunpack.c.h.b16 %v853
        %v2322 = vunpack.c.l.b16 %v854
        %v2323 = vunpack.c.h.b16 %v854
        %v2324 = vunpack.c.l.b16 %v855
        %v2325 = vunpack.c.h.b16 %v855
        %v2326 = vunpack.c.l.b16 %v856
        %v2327 = vunpack.c.h.b16 %v856
        %v2328 = vunpack.c.l.b16 %v857
        %v2329 = vunpack.c.h.b16 %v857
        %v2330 = vunpack.c.l.b16 %v858
        %v2331 = vunpack.c.h.b16 %v858
        %v2332 = vunpack.c.l.b16 %v859
        %v2333 = vunpack.c.h.b16 %v859
        %v2334 = vunpack.c.l.b16 %v860
        %v2335 = vunpack.c.h.b16 %v860
        %v2336 = vunpack.c.l.b16 %v861
        %v2337 = vunpack.c.h.b16 %v861
        %v2338 = vunpack.c.l.b16 %v862
        %v2339 = vunpack.c.h.b16 %v862
        %v2340 = vunpack.c.l.b16 %v863
        %v2341 = vunpack.c.h.b16 %v863
        %v2342 = vunpack.c.l.b16 %v864
        %v2343 = vunpack.c.h.b16 %v864
        %v2344 = vunpack.c.l.b16 %v865
        %v2345 = vunpack.c.h.b16 %v865
        %v2346 = vunpack.c.l.b16 %v866
        %v2347 = vunpack.c.h.b16 %v866
        %v2348 = vunpack.c.l.b16 %v867
        %v2349 = vunpack.c.h.b16 %v867
        %v2350 = vunpack.c.l.b16 %v868
        %v2351 = vunpack.c.h.b16 %v868
        %v2352 = vunpack.c.l.b16 %v869
        %v2353 = vunpack.c.h.b16 %v869
        %v2354 = vunpack.c.l.b16 %v870
        %v2355 = vunpack.c.h.b16 %v870
        %v2356 = vunpack.c.l.b16 %v871
        %v2357 = vunpack.c.h.b16 %v871
        %v2358 = vunpack.c.l.b16 %v872
        %v2359 = vunpack.c.h.b16 %v872
        %v2360 = vunpack.c.l.b16 %v873
        %v2361 = vunpack.c.h.b16 %v873
        %v2362 = vunpack.c.l.b16 %v874
        %v2363 = vunpack.c.h.b16 %v874
        %v2364 = vunpack.c.l.b16 %v875
        %v2365 = vunpack.c.h.b16 %v875
        %v2366 = vunpack.c.l.b16 %v876
        %v2367 = vunpack.c.h.b16 %v876
        %v2368 = vunpack.c.l.b16 %v877
        %v2369 = vunpack.c.h.b16 %v877
        %v2370 = vunpack.c.l.b16 %v878
        %v2371 = vunpack.c.h.b16 %v878
        %v2372 = vunpack.c.l.b16 %v879
        %v2373 = vunpack.c.h.b16 %v879
        %v2374 = vunpack.c.l.b16 %v880
        %v2375 = vunpack.c.h.b16 %v880
        %v2376 = vunpack.c.l.b16 %v881
        %v2377 = vunpack.c.h.b16 %v881
        %v2378 = vunpack.c.l.b16 %v882
        %v2379 = vunpack.c.h.b16 %v882
        %v2380 = vunpack.c.l.b16 %v883
        %v2381 = vunpack.c.h.b16 %v883
        %v2382 = vunpack.c.l.b16 %v884
        %v2383 = vunpack.c.h.b16 %v884
        %v2384 = vunpack.c.l.b16 %v885
        %v2385 = vunpack.c.h.b16 %v885
        %v2386 = vunpack.c.l.b16 %v886
        %v2387 = vunpack.c.h.b16 %v886
        %v2388 = vunpack.c.l.b16 %v887
        %v2389 = vunpack.c.h.b16 %v887
        %v2390 = vunpack.c.l.b16 %v888
        %v2391 = vunpack.c.h.b16 %v888
        %v2392 = vunpack.c.l.b16 %v889
        %v2393 = vunpack.c.h.b16 %v889
        %v2394 = vunpack.c.l.b16 %v890
        %v2395 = vunpack.c.h.b16 %v890
        %v2396 = vunpack.c.l.b16 %v891
        %v2397 = vunpack.c.h.b16 %v891
        %v2398 = vunpack.c.l.b16 %v892
        %v2399 = vunpack.c.h.b16 %v892
        %v2400 = vunpack.c.l.b16 %v893
        %v2401 = vunpack.c.h.b16 %v893
        %v2402 = vunpack.c.l.b16 %v894
        %v2403 = vunpack.c.h.b16 %v894
        %v2404 = vunpack.c.l.b16 %v895
        %v2405 = vunpack.c.h.b16 %v895
        %v2406 = vunpack.c.l.b16 %v896
        %v2407 = vunpack.c.h.b16 %v896
        %v2408 = vunpack.c.l.b16 %v897
        %v2409 = vunpack.c.h.b16 %v897
        %v2410 = vunpack.c.l.b16 %v898
        %v2411 = vunpack.c.h.b16 %v898
        %v2412 = vunpack.c.l.b16 %v899
        %v2413 = vunpack.c.h.b16 %v899
        %v2414 = vunpack.c.l.b16 %v900
        %v2415 = vunpack.c.h.b16 %v900
        %v2416 = vunpack.c.l.b16 %v901
        %v2417 = vunpack.c.h.b16 %v901
        %v2418 = vunpack.c.l.b16 %v902
        %v2419 = vunpack.c.h.b16 %v902
        %v2420 = vunpack.c.l.b16 %v903
        %v2421 = vunpack.c.h.b16 %v903
        %v2422 = vunpack.c.l.b16 %v904
        %v2423 = vunpack.c.h.b16 %v904
        %v2424 = vunpack.c.l.b16 %v905
        %v2425 = vunpack.c.h.b16 %v905
        %v2426 = vunpack.c.l.b16 %v906
        %v2427 = vunpack.c.h.b16 %v906
        %v2428 = vunpack.c.l.b16 %v907
        %v2429 = vunpack.c.h.b16 %v907
        %v2430 = vunpack.c.l.b16 %v908
        %v2431 = vunpack.c.h.b16 %v908
        %v2432 = vunpack.c.l.b16 %v909
        %v2433 = vunpack.c.h.b16 %v909
        %v2434 = vunpack.c.l.b16 %v910
        %v2435 = vunpack.c.h.b16 %v910
        %v2436 = vunpack.c.l.b16 %v911
        %v2437 = vunpack.c.h.b16 %v911
        %v2438 = vunpack.c.l.b16 %v912
        %v2439 = vunpack.c.h.b16 %v912
        %v2440 = vunpack.c.l.b16 %v913
        %v2441 = vunpack.c.h.b16 %v913
        %v2442 = vunpack.c.l.b16 %v914
        %v2443 = vunpack.c.h.b16 %v914
        %v2444 = vunpack.c.l.b16 %v915
        %v2445 = vunpack.c.h.b16 %v915
        %v2446 = vunpack.c.l.b16 %v916
        %v2447 = vunpack.c.h.b16 %v916
        %v2448 = vunpack.c.l.b16 %v917
        %v2449 = vunpack.c.h.b16 %v917
        %v2450 = vunpack.c.l.b16 %v918
        %v2451 = vunpack.c.h.b16 %v918
        %v2452 = vunpack.c.l.b16 %v919
        %v2453 = vunpack.c.h.b16 %v919
        %v2454 = vunpack.c.l.b16 %v920
        %v2455 = vunpack.c.h.b16 %v920
        %v2456 = vunpack.c.l.b16 %v921
        %v2457 = vunpack.c.h.b16 %v921
        %v2458 = vunpack.c.l.b16 %v922
        %v2459 = vunpack.c.h.b16 %v922
        %v2460 = vunpack.c.l.b16 %v923
        %v2461 = vunpack.c.h.b16 %v923
        %v2462 = vunpack.c.l.b16 %v924
        %v2463 = vunpack.c.h.b16 %v924
        %v2464 = vunpack.c.l.b16 %v925
        %v2465 = vunpack.c.h.b16 %v925
        %v2466 = vunpack.c.l.b16 %v926
        %v2467 = vunpack.c.h.b16 %v926
        %v2468 = vunpack.c.l.b16 %v927
        %v2469 = vunpack.c.h.b16 %v927
        %v2470 = vunpack.c.l.b16 %v928
        %v2471 = vunpack.c.h.b16 %v928
        %v2472 = vunpack.c.l.b16 %v929
        %v2473 = vunpack.c.h.b16 %v929
        %v2474 = vunpack.c.l.b16 %v930
        %v2475 = vunpack.c.h.b16 %v930
        %v2476 = vunpack.c.l.b16 %v931
        %v2477 = vunpack.c.h.b16 %v931
        %v2478 = vunpack.c.l.b16 %v932
        %v2479 = vunpack.c.h.b16 %v932
        %v2480 = vunpack.c.l.b16 %v933
        %v2481 = vunpack.c.h.b16 %v933
        %v2482 = vunpack.c.l.b16 %v934
        %v2483 = vunpack.c.h.b16 %v934
        %v2484 = vunpack.c.l.b16 %v935
        %v2485 = vunpack.c.h.b16 %v935
        %v2486 = vunpack.c.l.b16 %v936
        %v2487 = vunpack.c.h.b16 %v936
        %v2488 = vunpack.c.l.b16 %v937
        %v2489 = vunpack.c.h.b16 %v937
        %v2490 = vunpack.c.l.b16 %v938
        %v2491 = vunpack.c.h.b16 %v938
        %v2492 = vunpack.c.l.b16 %v939
        %v2493 = vunpack.c.h.b16 %v939
        %v2494 = vunpack.c.l.b16 %v940
        %v2495 = vunpack.c.h.b16 %v940
        %v2496 = vunpack.c.l.b16 %v941
        %v2497 = vunpack.c.h.b16 %v941
        %v2498 = vunpack.c.l.b16 %v942
        %v2499 = vunpack.c.h.b16 %v942
        %v2500 = vunpack.c.l.b16 %v943
        %v2501 = vunpack.c.h.b16 %v943
        %v2502 = vunpack.c.l.b16 %v944
        %v2503 = vunpack.c.h.b16 %v944
        %v2504 = vunpack.c.l.b16 %v945
        %v2505 = vunpack.c.h.b16 %v945
        %v2506 = vunpack.c.l.b16 %v946
        %v2507 = vunpack.c.h.b16 %v946
        %v2508 = vunpack.c.l.b16 %v947
        %v2509 = vunpack.c.h.b16 %v947
        %v2510 = vunpack.c.l.b16 %v948
        %v2511 = vunpack.c.h.b16 %v948
        %v2512 = vunpack.c.l.b16 %v949
        %v2513 = vunpack.c.h.b16 %v949
        %v2514 = vunpack.c.l.b16 %v950
        %v2515 = vunpack.c.h.b16 %v950
        %v2516 = vunpack.c.l.b16 %v951
        %v2517 = vunpack.c.h.b16 %v951
        %v2518 = vunpack.c.l.b16 %v952
        %v2519 = vunpack.c.h.b16 %v952
        %v2520 = vunpack.c.l.b16 %v953
        %v2521 = vunpack.c.h.b16 %v953
        %v2522 = vunpack.c.l.b16 %v954
        %v2523 = vunpack.c.h.b16 %v954
        %v2524 = vunpack.c.l.b16 %v955
        %v2525 = vunpack.c.h.b16 %v955
        %v2526 = vunpack.c.l.b16 %v956
        %v2527 = vunpack.c.h.b16 %v956
        %v2528 = vunpack.c.l.b16 %v957
        %v2529 = vunpack.c.h.b16 %v957
        %v2530 = vunpack.c.l.b16 %v958
        %v2531 = vunpack.c.h.b16 %v958
        %v2532 = vunpack.c.l.b16 %v959
        %v2533 = vunpack.c.h.b16 %v959
        %v2534 = vunpack.c.l.b16 %v960
        %v2535 = vunpack.c.h.b16 %v960
        %v2536 = vunpack.c.l.b16 %v961
        %v2537 = vunpack.c.h.b16 %v961
        %v2538 = vunpack.c.l.b16 %v962
        %v2539 = vunpack.c.h.b16 %v962
        %v2540 = vunpack.c.l.b16 %v963
        %v2541 = vunpack.c.h.b16 %v963
        %v2542 = vunpack.c.l.b16 %v964
        %v2543 = vunpack.c.h.b16 %v964
        %v2544 = vunpack.c.l.b16 %v965
        %v2545 = vunpack.c.h.b16 %v965
        %v2546 = vunpack.c.l.b16 %v966
        %v2547 = vunpack.c.h.b16 %v966
        %v2548 = vunpack.c.l.b16 %v967
        %v2549 = vunpack.c.h.b16 %v967
        %v2550 = vunpack.c.l.b16 %v968
        %v2551 = vunpack.c.h.b16 %v968
        %v2552 = vunpack.c.l.b16 %v969
        %v2553 = vunpack.c.h.b16 %v969
        %v2554 = vunpack.c.l.b16 %v970
        %v2555 = vunpack.c.h.b16 %v970
        %v2556 = vunpack.c.l.b16 %v971
        %v2557 = vunpack.c.h.b16 %v971
        %v2558 = vunpack.c.l.b16 %v972
        %v2559 = vunpack.c.h.b16 %v972
        %v2560 = vunpack.c.l.b16 %v973
        %v2561 = vunpack.c.h.b16 %v973
        %v2562 = vunpack.c.l.b16 %v974
        %v2563 = vunpack.c.h.b16 %v974
        %v2564 = vunpack.c.l.b16 %v975
        %v2565 = vunpack.c.h.b16 %v975
        %v2566 = vunpack.c.l.b16 %v976
        %v2567 = vunpack.c.h.b16 %v976
        %v2568 = vunpack.c.l.b16 %v977
        %v2569 = vunpack.c.h.b16 %v977
        %v2570 = vunpack.c.l.b16 %v978
        %v2571 = vunpack.c.h.b16 %v978
        %v2572 = vunpack.c.l.b16 %v979
        %v2573 = vunpack.c.h.b16 %v979
        %v2574 = vunpack.c.l.b16 %v980
        %v2575 = vunpack.c.h.b16 %v980
        %v2576 = vunpack.c.l.b16 %v981
        %v2577 = vunpack.c.h.b16 %v981
        %v2578 = vunpack.c.l.b16 %v982
        %v2579 = vunpack.c.h.b16 %v982
        %v2580 = vunpack.c.l.b16 %v983
        %v2581 = vunpack.c.h.b16 %v983
        %v2582 = vunpack.c.l.b16 %v984
        %v2583 = vunpack.c.h.b16 %v984
        %v2584 = vunpack.c.l.b16 %v985
        %v2585 = vunpack.c.h.b16 %v985
        %v2586 = vunpack.c.l.b16 %v986
        %v2587 = vunpack.c.h.b16 %v986
        %v2588 = vunpack.c.l.b16 %v987
        %v2589 = vunpack.c.h.b16 %v987
        %v2590 = vunpack.c.l.b16 %v988
        %v2591 = vunpack.c.h.b16 %v988
        %v2592 = vunpack.c.l.b16 %v989
        %v2593 = vunpack.c.h.b16 %v989
        %v2594 = vunpack.c.l.b16 %v990
        %v2595 = vunpack.c.h.b16 %v990
        %v2596 = vunpack.c.l.b16 %v991
        %v2597 = vunpack.c.h.b16 %v991
        %v2598 = vunpack.c.l.b16 %v992
        %v2599 = vunpack.c.h.b16 %v992
        %v2600 = vunpack.c.l.b16 %v993
        %v2601 = vunpack.c.h.b16 %v993
        %v2602 = vunpack.c.l.b16 %v994
        %v2603 = vunpack.c.h.b16 %v994
        %v2604 = vunpack.c.l.b16 %v995
        %v2605 = vunpack.c.h.b16 %v995
        %v2606 = vunpack.c.l.b16 %v996
        %v2607 = vunpack.c.h.b16 %v996
        %v2608 = vunpack.c.l.b16 %v997
        %v2609 = vunpack.c.h.b16 %v997
        %v2610 = vunpack.c.l.b16 %v998
        %v2611 = vunpack.c.h.b16 %v998
        %v2612 = vunpack.c.l.b16 %v999
        %v2613 = vunpack.c.h.b16 %v999
        %v2614 = vunpack.c.l.b16 %v1000
        %v2615 = vunpack.c.h.b16 %v1000
        %v2616 = vunpack.c.l.b16 %v1001
        %v2617 = vunpack.c.h.b16 %v1001
        %v2618 = vunpack.c.l.b16 %v1002
        %v2619 = vunpack.c.h.b16 %v1002
        %v2620 = vunpack.c.l.b16 %v1003
        %v2621 = vunpack.c.h.b16 %v1003
        %v2622 = vunpack.c.l.b16 %v1004
        %v2623 = vunpack.c.h.b16 %v1004
        %v2624 = vunpack.c.l.b16 %v1005
        %v2625 = vunpack.c.h.b16 %v1005
        %v2626 = vunpack.c.l.b16 %v1006
        %v2627 = vunpack.c.h.b16 %v1006
        %v2628 = vunpack.c.l.b16 %v1007
        %v2629 = vunpack.c.h.b16 %v1007
        %v2630 = vunpack.c.l.b16 %v1008
        %v2631 = vunpack.c.h.b16 %v1008
        %v2632 = vunpack.c.l.b16 %v1009
        %v2633 = vunpack.c.h.b16 %v1009
        %v2634 = vunpack.c.l.b16 %v1010
        %v2635 = vunpack.c.h.b16 %v1010
        %v2636 = vunpack.c.l.b16 %v1011
        %v2637 = vunpack.c.h.b16 %v1011
        %v2638 = vunpack.c.l.b16 %v1012
        %v2639 = vunpack.c.h.b16 %v1012
        %v2640 = vunpack.c.l.b16 %v1013
        %v2641 = vunpack.c.h.b16 %v1013
        %v2642 = vunpack.c.l.b16 %v1014
        %v2643 = vunpack.c.h.b16 %v1014
        %v2644 = vunpack.c.l.b16 %v1015
        %v2645 = vunpack.c.h.b16 %v1015
        %v2646 = vunpack.c.l.b16 %v1016
        %v2647 = vunpack.c.h.b16 %v1016
        %v2648 = vunpack.c.l.b16 %v1017
        %v2649 = vunpack.c.h.b16 %v1017
        %v2650 = vunpack.c.l.b16 %v1018
        %v2651 = vunpack.c.h.b16 %v1018
        %v2652 = vunpack.c.l.b16 %v1019
        %v2653 = vunpack.c.h.b16 %v1019
        %v2654 = vunpack.c.l.b16 %v1020
        %v2655 = vunpack.c.h.b16 %v1020
        %v2656 = vunpack.c.l.b16 %v1021
        %v2657 = vunpack.c.h.b16 %v1021
        %v2658 = vunpack.c.l.b16 %v1022
        %v2659 = vunpack.c.h.b16 %v1022
        %v2660 = vunpack.c.l.b16 %v1023
        %v2661 = vunpack.c.h.b16 %v1023
        %v2662 = vunpack.c.l.b16 %v1024
        %v2663 = vunpack.c.h.b16 %v1024
        %v2664 = vunpack.c.l.b16 %v1025
        %v2665 = vunpack.c.h.b16 %v1025
        %v2666 = vunpack.c.l.b16 %v1026
        %v2667 = vunpack.c.h.b16 %v1026
        %v2668 = vunpack.c.l.b16 %v1027
        %v2669 = vunpack.c.h.b16 %v1027
        %v2670 = vunpack.c.l.b16 %v1028
        %v2671 = vunpack.c.h.b16 %v1028
        %v2672 = vunpack.c.l.b16 %v1029
        %v2673 = vunpack.c.h.b16 %v1029
        %v2674 = vunpack.c.l.b16 %v1030
        %v2675 = vunpack.c.h.b16 %v1030
        %v2676 = vunpack.c.l.b16 %v1031
        %v2677 = vunpack.c.h.b16 %v1031
        %v2678 = vunpack.c.l.b16 %v1032
        %v2679 = vunpack.c.h.b16 %v1032
        %v2680 = vunpack.c.l.b16 %v1033
        %v2681 = vunpack.c.h.b16 %v1033
        %v2682 = vunpack.c.l.b16 %v1034
        %v2683 = vunpack.c.h.b16 %v1034
        %v2684 = vunpack.c.l.b16 %v1035
        %v2685 = vunpack.c.h.b16 %v1035
        %v2686 = vunpack.c.l.b16 %v1036
        %v2687 = vunpack.c.h.b16 %v1036
        %v2688 = vunpack.c.l.b16 %v1037
        %v2689 = vunpack.c.h.b16 %v1037
        %v2690 = vunpack.c.l.b16 %v1038
        %v2691 = vunpack.c.h.b16 %v1038
        %v2692 = vunpack.c.l.b16 %v1039
        %v2693 = vunpack.c.h.b16 %v1039
        %v2694 = vunpack.c.l.b16 %v1040
        %v2695 = vunpack.c.h.b16 %v1040
        %v2696 = vunpack.c.l.b16 %v1041
        %v2697 = vunpack.c.h.b16 %v1041
        %v2698 = vunpack.c.l.b16 %v1042
        %v2699 = vunpack.c.h.b16 %v1042
        %v2700 = vunpack.c.l.b16 %v1043
        %v2701 = vunpack.c.h.b16 %v1043
        %v2702 = vunpack.c.l.b16 %v1044
        %v2703 = vunpack.c.h.b16 %v1044
        %v2704 = vunpack.c.l.b16 %v1045
        %v2705 = vunpack.c.h.b16 %v1045
        %v2706 = vunpack.c.l.b16 %v1046
        %v2707 = vunpack.c.h.b16 %v1046
        %v2708 = vunpack.c.l.b16 %v1047
        %v2709 = vunpack.c.h.b16 %v1047
        %v2710 = vunpack.c.l.b16 %v1048
        %v2711 = vunpack.c.h.b16 %v1048
        %v2712 = vunpack.c.l.b16 %v1049
        %v2713 = vunpack.c.h.b16 %v1049
        %v2714 = vunpack.c.l.b16 %v1050
        %v2715 = vunpack.c.h.b16 %v1050
        %v2716 = vunpack.c.l.b16 %v1051
        %v2717 = vunpack.c.h.b16 %v1051
        %v2718 = vunpack.c.l.b16 %v1052
        %v2719 = vunpack.c.h.b16 %v1052
        %v2720 = vunpack.c.l.b16 %v1053
        %v2721 = vunpack.c.h.b16 %v1053
        %v2722 = vunpack.c.l.b16 %v1054
        %v2723 = vunpack.c.h.b16 %v1054
        %v2724 = vunpack.c.l.b16 %v1055
        %v2725 = vunpack.c.h.b16 %v1055
        %v2726 = vunpack.c.l.b16 %v1056
        %v2727 = vunpack.c.h.b16 %v1056
        %v2728 = vunpack.c.l.b16 %v1057
        %v2729 = vunpack.c.h.b16 %v1057
        %v2730 = vunpack.c.l.b16 %v1058
        %v2731 = vunpack.c.h.b16 %v1058
        %v2732 = vunpack.c.l.b16 %v1059
        %v2733 = vunpack.c.h.b16 %v1059
        %v2734 = vunpack.c.l.b16 %v1060
        %v2735 = vunpack.c.h.b16 %v1060
        %v2736 = vunpack.c.l.b16 %v1061
        %v2737 = vunpack.c.h.b16 %v1061
        %v2738 = vunpack.c.l.b16 %v1062
        %v2739 = vunpack.c.h.b16 %v1062
        %v2740 = vunpack.c.l.b16 %v1063
        %v2741 = vunpack.c.h.b16 %v1063
        %v2742 = vunpack.c.l.b16 %v1064
        %v2743 = vunpack.c.h.b16 %v1064
        %v2744 = vunpack.c.l.b16 %v1065
        %v2745 = vunpack.c.h.b16 %v1065
        %v2746 = vunpack.c.l.b16 %v1066
        %v2747 = vunpack.c.h.b16 %v1066
        %v2748 = vunpack.c.l.b16 %v1067
        %v2749 = vunpack.c.h.b16 %v1067
        %v2750 = vunpack.c.l.b16 %v1068
        %v2751 = vunpack.c.h.b16 %v1068
        %v2752 = vunpack.c.l.b16 %v1069
        %v2753 = vunpack.c.h.b16 %v1069
        %v2754 = vunpack.c.l.b16 %v1070
        %v2755 = vunpack.c.h.b16 %v1070
        %v2756 = vunpack.c.l.b16 %v1071
        %v2757 = vunpack.c.h.b16 %v1071
        %v2758 = vunpack.c.l.b16 %v1072
        %v2759 = vunpack.c.h.b16 %v1072
        %v2760 = vunpack.c.l.b16 %v1073
        %v2761 = vunpack.c.h.b16 %v1073
        %v2762 = vunpack.c.l.b16 %v1074
        %v2763 = vunpack.c.h.b16 %v1074
        %v2764 = vunpack.c.l.b16 %v1075
        %v2765 = vunpack.c.h.b16 %v1075
        %v2766 = vunpack.c.l.b16 %v1076
        %v2767 = vunpack.c.h.b16 %v1076
        %v2768 = vunpack.c.l.b16 %v1077
        %v2769 = vunpack.c.h.b16 %v1077
        %v2770 = vunpack.c.l.b16 %v1078
        %v2771 = vunpack.c.h.b16 %v1078
        %v2772 = vunpack.c.l.b16 %v1079
        %v2773 = vunpack.c.h.b16 %v1079
        %v2774 = vunpack.c.l.b16 %v1080
        %v2775 = vunpack.c.h.b16 %v1080
        %v2776 = vunpack.c.l.b16 %v1081
        %v2777 = vunpack.c.h.b16 %v1081
        %v2778 = vunpack.c.l.b16 %v1082
        %v2779 = vunpack.c.h.b16 %v1082
        %v2780 = vunpack.c.l.b16 %v1083
        %v2781 = vunpack.c.h.b16 %v1083
        %v2782 = vunpack.c.l.b16 %v1084
        %v2783 = vunpack.c.h.b16 %v1084
        %v2784 = vunpack.c.l.b16 %v1085
        %v2785 = vunpack.c.h.b16 %v1085
        %v2786 = vunpack.c.l.b16 %v1086
        %v2787 = vunpack.c.h.b16 %v1086
        %v2788 = vunpack.c.l.b16 %v1087
        %v2789 = vunpack.c.h.b16 %v1087
        %v2790 = vunpack.c.l.b16 %v1088
        %v2791 = vunpack.c.h.b16 %v1088
        %v2792 = vunpack.c.l.b16 %v1089
        %v2793 = vunpack.c.h.b16 %v1089
        %v2794 = vunpack.c.l.b16 %v1090
        %v2795 = vunpack.c.h.b16 %v1090
        %v2796 = vunpack.c.l.b16 %v1091
        %v2797 = vunpack.c.h.b16 %v1091
        %v2798 = vunpack.c.l.b16 %v1092
        %v2799 = vunpack.c.h.b16 %v1092
        %v2800 = vunpack.c.l.b16 %v1093
        %v2801 = vunpack.c.h.b16 %v1093
        %v2802 = vunpack.c.l.b16 %v1094
        %v2803 = vunpack.c.h.b16 %v1094
        %v2804 = vunpack.c.l.b16 %v1095
        %v2805 = vunpack.c.h.b16 %v1095
        %v2806 = vunpack.c.l.b16 %v1096
        %v2807 = vunpack.c.h.b16 %v1096
        %v2808 = vunpack.c.l.b16 %v1097
        %v2809 = vunpack.c.h.b16 %v1097
        %v2810 = vunpack.c.l.b16 %v1098
        %v2811 = vunpack.c.h.b16 %v1098
        %v2812 = vunpack.c.l.b16 %v1099
        %v2813 = vunpack.c.h.b16 %v1099
        %v2814 = vunpack.c.l.b16 %v1100
        %v2815 = vunpack.c.h.b16 %v1100
        %v2816 = vunpack.c.l.b16 %v1101
        %v2817 = vunpack.c.h.b16 %v1101
        %v2818 = vunpack.c.l.b16 %v1102
        %v2819 = vunpack.c.h.b16 %v1102
        %v2820 = vunpack.c.l.b16 %v1103
        %v2821 = vunpack.c.h.b16 %v1103
        %v2822 = vpack.c.b16 %v1802, %v1798
        %v2823 = vpack.c.b16 %v1803, %v1799
        %v2824 = vpack.c.b16 %v1804, %v1800
        %v2825 = vpack.c.b16 %v1805, %v1801
        %v2826 = vpack.c.b16 %v1810, %v1806
        %v2827 = vpack.c.b16 %v1811, %v1807
        %v2828 = vpack.c.b16 %v1812, %v1808
        %v2829 = vpack.c.b16 %v1813, %v1809
        %v2830 = vpack.c.b16 %v1818, %v1814
        %v2831 = vpack.c.b16 %v1819, %v1815
        %v2832 = vpack.c.b16 %v1820, %v1816
        %v2833 = vpack.c.b16 %v1821, %v1817
        %v2834 = vpack.c.b16 %v1826, %v1822
        %v2835 = vpack.c.b16 %v1827, %v1823
        %v2836 = vpack.c.b16 %v1828, %v1824
        %v2837 = vpack.c.b16 %v1829, %v1825
        %v2838 = vpack.c.b16 %v1834, %v1830
        %v2839 = vpack.c.b16 %v1835, %v1831
        %v2840 = vpack.c.b16 %v1836, %v1832
        %v2841 = vpack.c.b16 %v1837, %v1833
        %v2842 = vpack.c.b16 %v1842, %v1838
        %v2843 = vpack.c.b16 %v1843, %v1839
        %v2844 = vpack.c.b16 %v1844, %v1840
        %v2845 = vpack.c.b16 %v1845, %v1841
        %v2846 = vpack.c.b16 %v1850, %v1846
        %v2847 = vpack.c.b16 %v1851, %v1847
        %v2848 = vpack.c.b16 %v1852, %v1848
        %v2849 = vpack.c.b16 %v1853, %v1849
        %v2850 = vpack.c.b16 %v1858, %v1854
        %v2851 = vpack.c.b16 %v1859, %v1855
        %v2852 = vpack.c.b16 %v1860, %v1856
        %v2853 = vpack.c.b16 %v1861, %v1857
        %v2854 = vpack.c.b16 %v1866, %v1862
        %v2855 = vpack.c.b16 %v1867, %v1863
        %v2856 = vpack.c.b16 %v1868, %v1864
        %v2857 = vpack.c.b16 %v1869, %v1865
        %v2858 = vpack.c.b16 %v1874, %v1870
        %v2859 = vpack.c.b16 %v1875, %v1871
        %v2860 = vpack.c.b16 %v1876, %v1872
        %v2861 = vpack.c.b16 %v1877, %v1873
        %v2862 = vpack.c.b16 %v1882, %v1878
        %v2863 = vpack.c.b16 %v1883, %v1879
        %v2864 = vpack.c.b16 %v1884, %v1880
        %v2865 = vpack.c.b16 %v1885, %v1881
        %v2866 = vpack.c.b16 %v1890, %v1886
        %v2867 = vpack.c.b16 %v1891, %v1887
        %v2868 = vpack.c.b16 %v1892, %v1888
        %v2869 = vpack.c.b16 %v1893, %v1889
        %v2870 = vpack.c.b16 %v1898, %v1894
        %v2871 = vpack.c.b16 %v1899, %v1895
        %v2872 = vpack.c.b16 %v1900, %v1896
        %v2873 = vpack.c.b16 %v1901, %v1897
        %v2874 = vpack.c.b16 %v1906, %v1902
        %v2875 = vpack.c.b16 %v1907, %v1903
        %v2876 = vpack.c.b16 %v1908, %v1904
        %v2877 = vpack.c.b16 %v1909, %v1905
        %v2878 = vpack.c.b16 %v1914, %v1910
        %v2879 = vpack.c.b16 %v1915, %v1911
        %v2880 = vpack.c.b16 %v1916, %v1912
        %v2881 = vpack.c.b16 %v1917, %v1913
        %v2882 = vpack.c.b16 %v1922, %v1918
        %v2883 = vpack.c.b16 %v1923, %v1919
        %v2884 = vpack.c.b16 %v1924, %v1920
        %v2885 = vpack.c.b16 %v1925, %v1921
        %v2886 = vpack.c.b16 %v1930, %v1926
        %v2887 = vpack.c.b16 %v1931, %v1927
        %v2888 = vpack.c.b16 %v1932, %v1928
        %v2889 = vpack.c.b16 %v1933, %v1929
        %v2890 = vpack.c.b16 %v1938, %v1934
        %v2891 = vpack.c.b16 %v1939, %v1935
        %v2892 = vpack.c.b16 %v1940, %v1936
        %v2893 = vpack.c.b16 %v1941, %v1937
        %v2894 = vpack.c.b16 %v1946, %v1942
        %v2895 = vpack.c.b16 %v1947, %v1943
        %v2896 = vpack.c.b16 %v1948, %v1944
        %v2897 = vpack.c.b16 %v1949, %v1945
        %v2898 = vpack.c.b16 %v1954, %v1950
        %v2899 = vpack.c.b16 %v1955, %v1951
        %v2900 = vpack.c.b16 %v1956, %v1952
        %v2901 = vpack.c.b16 %v1957, %v1953
        %v2902 = vpack.c.b16 %v1962, %v1958
        %v2903 = vpack.c.b16 %v1963, %v1959
        %v2904 = vpack.c.b16 %v1964, %v1960
        %v2905 = vpack.c.b16 %v1965, %v1961
        %v2906 = vpack.c.b16 %v1970, %v1966
        %v2907 = vpack.c.b16 %v1971, %v1967
        %v2908 = vpack.c.b16 %v1972, %v1968
        %v2909 = vpack.c.b16 %v1973, %v1969
        %v2910 = vpack.c.b16 %v1978, %v1974
        %v2911 = vpack.c.b16 %v1979, %v1975
        %v2912 = vpack.c.b16 %v1980, %v1976
        %v2913 = vpack.c.b16 %v1981, %v1977
        %v2914 = vpack.c.b16 %v1986, %v1982
        %v2915 = vpack.c.b16 %v1987, %v1983
        %v2916 = vpack.c.b16 %v1988, %v1984
        %v2917 = vpack.c.b16 %v1989, %v1985
        %v2918 = vpack.c.b16 %v1994, %v1990
        %v2919 = vpack.c.b16 %v1995, %v1991
        %v2920 = vpack.c.b16 %v1996, %v1992
        %v2921 = vpack.c.b16 %v1997, %v1993
        %v2922 = vpack.c.b16 %v2002, %v1998
        %v2923 = vpack.c.b16 %v2003, %v1999
        %v2924 = vpack.c.b16 %v2004, %v2000
        %v2925 = vpack.c.b16 %v2005, %v2001
        %v2926 = vpack.c.b16 %v2010, %v2006
        %v2927 = vpack.c.b16 %v2011, %v2007
        %v2928 = vpack.c.b16 %v2012, %v2008
        %v2929 = vpack.c.b16 %v2013, %v2009
        %v2930 = vpack.c.b16 %v2018, %v2014
        %v2931 = vpack.c.b16 %v2019, %v2015
        %v2932 = vpack.c.b16 %v2020, %v2016
        %v2933 = vpack.c.b16 %v2021, %v2017
        %v2934 = vpack.c.b16 %v2026, %v2022
        %v2935 = vpack.c.b16 %v2027, %v2023
        %v2936 = vpack.c.b16 %v2028, %v2024
        %v2937 = vpack.c.b16 %v2029, %v2025
        %v2938 = vpack.c.b16 %v2034, %v2030
        %v2939 = vpack.c.b16 %v2035, %v2031
        %v2940 = vpack.c.b16 %v2036, %v2032
        %v2941 = vpack.c.b16 %v2037, %v2033
        %v2942 = vpack.c.b16 %v2042, %v2038
        %v2943 = vpack.c.b16 %v2043, %v2039
        %v2944 = vpack.c.b16 %v2044, %v2040
        %v2945 = vpack.c.b16 %v2045, %v2041
        %v2946 = vpack.c.b16 %v2050, %v2046
        %v2947 = vpack.c.b16 %v2051, %v2047
        %v2948 = vpack.c.b16 %v2052, %v2048
        %v2949 = vpack.c.b16 %v2053, %v2049
        %v2950 = vpack.c.b16 %v2058, %v2054
        %v2951 = vpack.c.b16 %v2059, %v2055
        %v2952 = vpack.c.b16 %v2060, %v2056
        %v2953 = vpack.c.b16 %v2061, %v2057
        %v2954 = vpack.c.b16 %v2066, %v2062
        %v2955 = vpack.c.b16 %v2067, %v2063
        %v2956 = vpack.c.b16 %v2068, %v2064
        %v2957 = vpack.c.b16 %v2069, %v2065
        %v2958 = vpack.c.b16 %v2074, %v2070
        %v2959 = vpack.c.b16 %v2075, %v2071
        %v2960 = vpack.c.b16 %v2076, %v2072
        %v2961 = vpack.c.b16 %v2077, %v2073
        %v2962 = vpack.c.b16 %v2082, %v2078
        %v2963 = vpack.c.b16 %v2083, %v2079
        %v2964 = vpack.c.b16 %v2084, %v2080
        %v2965 = vpack.c.b16 %v2085, %v2081
        %v2966 = vpack.c.b16 %v2090, %v2086
        %v2967 = vpack.c.b16 %v2091, %v2087
        %v2968 = vpack.c.b16 %v2092, %v2088
        %v2969 = vpack.c.b16 %v2093, %v2089
        %v2970 = vpack.c.b16 %v2098, %v2094
        %v2971 = vpack.c.b16 %v2099, %v2095
        %v2972 = vpack.c.b16 %v2100, %v2096
        %v2973 = vpack.c.b16 %v2101, %v2097
        %v2974 = vpack.c.b16 %v2106, %v2102
        %v2975 = vpack.c.b16 %v2107, %v2103
        %v2976 = vpack.c.b16 %v2108, %v2104
        %v2977 = vpack.c.b16 %v2109, %v2105
        %v2978 = vpack.c.b16 %v2114, %v2110
        %v2979 = vpack.c.b16 %v2115, %v2111
        %v2980 = vpack.c.b16 %v2116, %v2112
        %v2981 = vpack.c.b16 %v2117, %v2113
        %v2982 = vpack.c.b16 %v2122, %v2118
        %v2983 = vpack.c.b16 %v2123, %v2119
        %v2984 = vpack.c.b16 %v2124, %v2120
        %v2985 = vpack.c.b16 %v2125, %v2121
        %v2986 = vpack.c.b16 %v2130, %v2126
        %v2987 = vpack.c.b16 %v2131, %v2127
        %v2988 = vpack.c.b16 %v2132, %v2128
        %v2989 = vpack.c.b16 %v2133, %v2129
        %v2990 = vpack.c.b16 %v2138, %v2134
        %v2991 = vpack.c.b16 %v2139, %v2135
        %v2992 = vpack.c.b16 %v2140, %v2136
        %v2993 = vpack.c.b16 %v2141, %v2137
        %v2994 = vpack.c.b16 %v2146, %v2142
        %v2995 = vpack.c.b16 %v2147, %v2143
        %v2996 = vpack.c.b16 %v2148, %v2144
        %v2997 = vpack.c.b16 %v2149, %v2145
        %v2998 = vpack.c.b16 %v2154, %v2150
        %v2999 = vpack.c.b16 %v2155, %v2151
        %v3000 = vpack.c.b16 %v2156, %v2152
        %v3001 = vpack.c.b16 %v2157, %v2153
        %v3002 = vpack.c.b16 %v2162, %v2158
        %v3003 = vpack.c.b16 %v2163, %v2159
        %v3004 = vpack.c.b16 %v2164, %v2160
        %v3005 = vpack.c.b16 %v2165, %v2161
        %v3006 = vpack.c.b16 %v2170, %v2166
        %v3007 = vpack.c.b16 %v2171, %v2167
        %v3008 = vpack.c.b16 %v2172, %v2168
        %v3009 = vpack.c.b16 %v2173, %v2169
        %v3010 = vpack.c.b16 %v2178, %v2174
        %v3011 = vpack.c.b16 %v2179, %v2175
        %v3012 = vpack.c.b16 %v2180, %v2176
        %v3013 = vpack.c.b16 %v2181, %v2177
        %v3014 = vpack.c.b16 %v2186, %v2182
        %v3015 = vpack.c.b16 %v2187, %v2183
        %v3016 = vpack.c.b16 %v2188, %v2184
        %v3017 = vpack.c.b16 %v2189, %v2185
        %v3018 = vpack.c.b16 %v2194, %v2190
        %v3019 = vpack.c.b16 %v2195, %v2191
        %v3020 = vpack.c.b16 %v2196, %v2192
        %v3021 = vpack.c.b16 %v2197, %v2193
        %v3022 = vpack.c.b16 %v2202, %v2198
        %v3023 = vpack.c.b16 %v2203, %v2199
        %v3024 = vpack.c.b16 %v2204, %v2200
        %v3025 = vpack.c.b16 %v2205, %v2201
        %v3026 = vpack.c.b16 %v2210, %v2206
        %v3027 = vpack.c.b16 %v2211, %v2207
        %v3028 = vpack.c.b16 %v2212, %v2208
        %v3029 = vpack.c.b16 %v2213, %v2209
        %v3030 = vpack.c.b16 %v2218, %v2214
        %v3031 = vpack.c.b16 %v2219, %v2215
        %v3032 = vpack.c.b16 %v2220, %v2216
        %v3033 = vpack.c.b16 %v2221, %v2217
        %v3034 = vpack.c.b16 %v2226, %v2222
        %v3035 = vpack.c.b16 %v2227, %v2223
        %v3036 = vpack.c.b16 %v2228, %v2224
        %v3037 = vpack.c.b16 %v2229, %v2225
        %v3038 = vpack.c.b16 %v2234, %v2230
        %v3039 = vpack.c.b16 %v2235, %v2231
        %v3040 = vpack.c.b16 %v2236, %v2232
        %v3041 = vpack.c.b16 %v2237, %v2233
        %v3042 = vpack.c.b16 %v2242, %v2238
        %v3043 = vpack.c.b16 %v2243, %v2239
        %v3044 = vpack.c.b16 %v2244, %v2240
        %v3045 = vpack.c.b16 %v2245, %v2241
        %v3046 = vpack.c.b16 %v2250, %v2246
        %v3047 = vpack.c.b16 %v2251, %v2247
        %v3048 = vpack.c.b16 %v2252, %v2248
        %v3049 = vpack.c.b16 %v2253, %v2249
        %v3050 = vpack.c.b16 %v2258, %v2254
        %v3051 = vpack.c.b16 %v2259, %v2255
        %v3052 = vpack.c.b16 %v2260, %v2256
        %v3053 = vpack.c.b16 %v2261, %v2257
        %v3054 = vpack.c.b16 %v2266, %v2262
        %v3055 = vpack.c.b16 %v2267, %v2263
        %v3056 = vpack.c.b16 %v2268, %v2264
        %v3057 = vpack.c.b16 %v2269, %v2265
        %v3058 = vpack.c.b16 %v2274, %v2270
        %v3059 = vpack.c.b16 %v2275, %v2271
        %v3060 = vpack.c.b16 %v2276, %v2272
        %v3061 = vpack.c.b16 %v2277, %v2273
        %v3062 = vpack.c.b16 %v2282, %v2278
        %v3063 = vpack.c.b16 %v2283, %v2279
        %v3064 = vpack.c.b16 %v2284, %v2280
        %v3065 = vpack.c.b16 %v2285, %v2281
        %v3066 = vpack.c.b16 %v2290, %v2286
        %v3067 = vpack.c.b16 %v2291, %v2287
        %v3068 = vpack.c.b16 %v2292, %v2288
        %v3069 = vpack.c.b16 %v2293, %v2289
        %v3070 = vpack.c.b16 %v2298, %v2294
        %v3071 = vpack.c.b16 %v2299, %v2295
        %v3072 = vpack.c.b16 %v2300, %v2296
        %v3073 = vpack.c.b16 %v2301, %v2297
        %v3074 = vpack.c.b16 %v2306, %v2302
        %v3075 = vpack.c.b16 %v2307, %v2303
        %v3076 = vpack.c.b16 %v2308, %v2304
        %v3077 = vpack.c.b16 %v2309, %v2305
        %v3078 = vpack.c.b16 %v2314, %v2310
        %v3079 = vpack.c.b16 %v2315, %v2311
        %v3080 = vpack.c.b16 %v2316, %v2312
        %v3081 = vpack.c.b16 %v2317, %v2313
        %v3082 = vpack.c.b16 %v2322, %v2318
        %v3083 = vpack.c.b16 %v2323, %v2319
        %v3084 = vpack.c.b16 %v2324, %v2320
        %v3085 = vpack.c.b16 %v2325, %v2321
        %v3086 = vpack.c.b16 %v2330, %v2326
        %v3087 = vpack.c.b16 %v2331, %v2327
        %v3088 = vpack.c.b16 %v2332, %v2328
        %v3089 = vpack.c.b16 %v2333, %v2329
        %v3090 = vpack.c.b16 %v2338, %v2334
        %v3091 = vpack.c.b16 %v2339, %v2335
        %v3092 = vpack.c.b16 %v2340, %v2336
        %v3093 = vpack.c.b16 %v2341, %v2337
        %v3094 = vpack.c.b16 %v2346, %v2342
        %v3095 = vpack.c.b16 %v2347, %v2343
        %v3096 = vpack.c.b16 %v2348, %v2344
        %v3097 = vpack.c.b16 %v2349, %v2345
        %v3098 = vpack.c.b16 %v2354, %v2350
        %v3099 = vpack.c.b16 %v2355, %v2351
        %v3100 = vpack.c.b16 %v2356, %v2352
        %v3101 = vpack.c.b16 %v2357, %v2353
        %v3102 = vpack.c.b16 %v2362, %v2358
        %v3103 = vpack.c.b16 %v2363, %v2359
        %v3104 = vpack.c.b16 %v2364, %v2360
        %v3105 = vpack.c.b16 %v2365, %v2361
        %v3106 = vpack.c.b16 %v2370, %v2366
        %v3107 = vpack.c.b16 %v2371, %v2367
        %v3108 = vpack.c.b16 %v2372, %v2368
        %v3109 = vpack.c.b16 %v2373, %v2369
        %v3110 = vpack.c.b16 %v2378, %v2374
        %v3111 = vpack.c.b16 %v2379, %v2375
        %v3112 = vpack.c.b16 %v2380, %v2376
        %v3113 = vpack.c.b16 %v2381, %v2377
        %v3114 = vpack.c.b16 %v2386, %v2382
        %v3115 = vpack.c.b16 %v2387, %v2383
        %v3116 = vpack.c.b16 %v2388, %v2384
        %v3117 = vpack.c.b16 %v2389, %v2385
        %v3118 = vpack.c.b16 %v2394, %v2390
        %v3119 = vpack.c.b16 %v2395, %v2391
        %v3120 = vpack.c.b16 %v2396, %v2392
        %v3121 = vpack.c.b16 %v2397, %v2393
        %v3122 = vpack.c.b16 %v2402, %v2398
        %v3123 = vpack.c.b16 %v2403, %v2399
        %v3124 = vpack.c.b16 %v2404, %v2400
        %v3125 = vpack.c.b16 %v2405, %v2401
        %v3126 = vpack.c.b16 %v2410, %v2406
        %v3127 = vpack.c.b16 %v2411, %v2407
        %v3128 = vpack.c.b16 %v2412, %v2408
        %v3129 = vpack.c.b16 %v2413, %v2409
        %v3130 = vpack.c.b16 %v2418, %v2414
        %v3131 = vpack.c.b16 %v2419, %v2415
        %v3132 = vpack.c.b16 %v2420, %v2416
        %v3133 = vpack.c.b16 %v2421, %v2417
        %v3134 = vpack.c.b16 %v2426, %v2422
        %v3135 = vpack.c.b16 %v2427, %v2423
        %v3136 = vpack.c.b16 %v2428, %v2424
        %v3137 = vpack.c.b16 %v2429, %v2425
        %v3138 = vpack.c.b16 %v2434, %v2430
        %v3139 = vpack.c.b16 %v2435, %v2431
        %v3140 = vpack.c.b16 %v2436, %v2432
        %v3141 = vpack.c.b16 %v2437, %v2433
        %v3142 = vpack.c.b16 %v2442, %v2438
        %v3143 = vpack.c.b16 %v2443, %v2439
        %v3144 = vpack.c.b16 %v2444, %v2440
        %v3145 = vpack.c.b16 %v2445, %v2441
        %v3146 = vpack.c.b16 %v2450, %v2446
        %v3147 = vpack.c.b16 %v2451, %v2447
        %v3148 = vpack.c.b16 %v2452, %v2448
        %v3149 = vpack.c.b16 %v2453, %v2449
        %v3150 = vpack.c.b16 %v2458, %v2454
        %v3151 = vpack.c.b16 %v2459, %v2455
        %v3152 = vpack.c.b16 %v2460, %v2456
        %v3153 = vpack.c.b16 %v2461, %v2457
        %v3154 = vpack.c.b16 %v2466, %v2462
        %v3155 = vpack.c.b16 %v2467, %v2463
        %v3156 = vpack.c.b16 %v2468, %v2464
        %v3157 = vpack.c.b16 %v2469, %v2465
        %v3158 = vpack.c.b16 %v2474, %v2470
        %v3159 = vpack.c.b16 %v2475, %v2471
        %v3160 = vpack.c.b16 %v2476, %v2472
        %v3161 = vpack.c.b16 %v2477, %v2473
        %v3162 = vpack.c.b16 %v2482, %v2478
        %v3163 = vpack.c.b16 %v2483, %v2479
        %v3164 = vpack.c.b16 %v2484, %v2480
        %v3165 = vpack.c.b16 %v2485, %v2481
        %v3166 = vpack.c.b16 %v2490, %v2486
        %v3167 = vpack.c.b16 %v2491, %v2487
        %v3168 = vpack.c.b16 %v2492, %v2488
        %v3169 = vpack.c.b16 %v2493, %v2489
        %v3170 = vpack.c.b16 %v2498, %v2494
        %v3171 = vpack.c.b16 %v2499, %v2495
        %v3172 = vpack.c.b16 %v2500, %v2496
        %v3173 = vpack.c.b16 %v2501, %v2497
        %v3174 = vpack.c.b16 %v2506, %v2502
        %v3175 = vpack.c.b16 %v2507, %v2503
        %v3176 = vpack.c.b16 %v2508, %v2504
        %v3177 = vpack.c.b16 %v2509, %v2505
        %v3178 = vpack.c.b16 %v2514, %v2510
        %v3179 = vpack.c.b16 %v2515, %v2511
        %v3180 = vpack.c.b16 %v2516, %v2512
        %v3181 = vpack.c.b16 %v2517, %v2513
        %v3182 = vpack.c.b16 %v2522, %v2518
        %v3183 = vpack.c.b16 %v2523, %v2519
        %v3184 = vpack.c.b16 %v2524, %v2520
        %v3185 = vpack.c.b16 %v2525, %v2521
        %v3186 = vpack.c.b16 %v2530, %v2526
        %v3187 = vpack.c.b16 %v2531, %v2527
        %v3188 = vpack.c.b16 %v2532, %v2528
        %v3189 = vpack.c.b16 %v2533, %v2529
        %v3190 = vpack.c.b16 %v2538, %v2534
        %v3191 = vpack.c.b16 %v2539, %v2535
        %v3192 = vpack.c.b16 %v2540, %v2536
        %v3193 = vpack.c.b16 %v2541, %v2537
        %v3194 = vpack.c.b16 %v2546, %v2542
        %v3195 = vpack.c.b16 %v2547, %v2543
        %v3196 = vpack.c.b16 %v2548, %v2544
        %v3197 = vpack.c.b16 %v2549, %v2545
        %v3198 = vpack.c.b16 %v2554, %v2550
        %v3199 = vpack.c.b16 %v2555, %v2551
        %v3200 = vpack.c.b16 %v2556, %v2552
        %v3201 = vpack.c.b16 %v2557, %v2553
        %v3202 = vpack.c.b16 %v2562, %v2558
        %v3203 = vpack.c.b16 %v2563, %v2559
        %v3204 = vpack.c.b16 %v2564, %v2560
        %v3205 = vpack.c.b16 %v2565, %v2561
        %v3206 = vpack.c.b16 %v2570, %v2566
        %v3207 = vpack.c.b16 %v2571, %v2567
        %v3208 = vpack.c.b16 %v2572, %v2568
        %v3209 = vpack.c.b16 %v2573, %v2569
        %v3210 = vpack.c.b16 %v2578, %v2574
        %v3211 = vpack.c.b16 %v2579, %v2575
        %v3212 = vpack.c.b16 %v2580, %v2576
        %v3213 = vpack.c.b16 %v2581, %v2577
        %v3214 = vpack.c.b16 %v2586, %v2582
        %v3215 = vpack.c.b16 %v2587, %v2583
        %v3216 = vpack.c.b16 %v2588, %v2584
        %v3217 = vpack.c.b16 %v2589, %v2585
        %v3218 = vpack.c.b16 %v2594, %v2590
        %v3219 = vpack.c.b16 %v2595, %v2591
        %v3220 = vpack.c.b16 %v2596, %v2592
        %v3221 = vpack.c.b16 %v2597, %v2593
        %v3222 = vpack.c.b16 %v2602, %v2598
        %v3223 = vpack.c.b16 %v2603, %v2599
        %v3224 = vpack.c.b16 %v2604, %v2600
        %v3225 = vpack.c.b16 %v2605, %v2601
        %v3226 = vpack.c.b16 %v2610, %v2606
        %v3227 = vpack.c.b16 %v2611, %v2607
        %v3228 = vpack.c.b16 %v2612, %v2608
        %v3229 = vpack.c.b16 %v2613, %v2609
        %v3230 = vpack.c.b16 %v2618, %v2614
        %v3231 = vpack.c.b16 %v2619, %v2615
        %v3232 = vpack.c.b16 %v2620, %v2616
        %v3233 = vpack.c.b16 %v2621, %v2617
        %v3234 = vpack.c.b16 %v2626, %v2622
        %v3235 = vpack.c.b16 %v2627, %v2623
        %v3236 = vpack.c.b16 %v2628, %v2624
        %v3237 = vpack.c.b16 %v2629, %v2625
        %v3238 = vpack.c.b16 %v2634, %v2630
        %v3239 = vpack.c.b16 %v2635, %v2631
        %v3240 = vpack.c.b16 %v2636, %v2632
        %v3241 = vpack.c.b16 %v2637, %v2633
        %v3242 = vpack.c.b16 %v2642, %v2638
        %v3243 = vpack.c.b16 %v2643, %v2639
        %v3244 = vpack.c.b16 %v2644, %v2640
        %v3245 = vpack.c.b16 %v2645, %v2641
        %v3246 = vpack.c.b16 %v2650, %v2646
        %v3247 = vpack.c.b16 %v2651, %v2647
        %v3248 = vpack.c.b16 %v2652, %v2648
        %v3249 = vpack.c.b16 %v2653, %v2649
        %v3250 = vpack.c.b16 %v2658, %v2654
        %v3251 = vpack.c.b16 %v2659, %v2655
        %v3252 = vpack.c.b16 %v2660, %v2656
        %v3253 = vpack.c.b16 %v2661, %v2657
        %v3254 = vpack.c.b16 %v2666, %v2662
        %v3255 = vpack.c.b16 %v2667, %v2663
        %v3256 = vpack.c.b16 %v2668, %v2664
        %v3257 = vpack.c.b16 %v2669, %v2665
        %v3258 = vpack.c.b16 %v2674, %v2670
        %v3259 = vpack.c.b16 %v2675, %v2671
        %v3260 = vpack.c.b16 %v2676, %v2672
        %v3261 = vpack.c.b16 %v2677, %v2673
        %v3262 = vpack.c.b16 %v2682, %v2678
        %v3263 = vpack.c.b16 %v2683, %v2679
        %v3264 = vpack.c.b16 %v2684, %v2680
        %v3265 = vpack.c.b16 %v2685, %v2681
        %v3266 = vpack.c.b16 %v2690, %v2686
        %v3267 = vpack.c.b16 %v2691, %v2687
        %v3268 = vpack.c.b16 %v2692, %v2688
        %v3269 = vpack.c.b16 %v2693, %v2689
        %v3270 = vpack.c.b16 %v2698, %v2694
        %v3271 = vpack.c.b16 %v2699, %v2695
        %v3272 = vpack.c.b16 %v2700, %v2696
        %v3273 = vpack.c.b16 %v2701, %v2697
        %v3274 = vpack.c.b16 %v2706, %v2702
        %v3275 = vpack.c.b16 %v2707, %v2703
        %v3276 = vpack.c.b16 %v2708, %v2704
        %v3277 = vpack.c.b16 %v2709, %v2705
        %v3278 = vpack.c.b16 %v2714, %v2710
        %v3279 = vpack.c.b16 %v2715, %v2711
        %v3280 = vpack.c.b16 %v2716, %v2712
        %v3281 = vpack.c.b16 %v2717, %v2713
        %v3282 = vpack.c.b16 %v2722, %v2718
        %v3283 = vpack.c.b16 %v2723, %v2719
        %v3284 = vpack.c.b16 %v2724, %v2720
        %v3285 = vpack.c.b16 %v2725, %v2721
        %v3286 = vpack.c.b16 %v2730, %v2726
        %v3287 = vpack.c.b16 %v2731, %v2727
        %v3288 = vpack.c.b16 %v2732, %v2728
        %v3289 = vpack.c.b16 %v2733, %v2729
        %v3290 = vpack.c.b16 %v2738, %v2734
        %v3291 = vpack.c.b16 %v2739, %v2735
        %v3292 = vpack.c.b16 %v2740, %v2736
        %v3293 = vpack.c.b16 %v2741, %v2737
        %v3294 = vpack.c.b16 %v2746, %v2742
        %v3295 = vpack.c.b16 %v2747, %v2743
        %v3296 = vpack.c.b16 %v2748, %v2744
        %v3297 = vpack.c.b16 %v2749, %v2745
        %v3298 = vpack.c.b16 %v2754, %v2750
        %v3299 = vpack.c.b16 %v2755, %v2751
        %v3300 = vpack.c.b16 %v2756, %v2752
        %v3301 = vpack.c.b16 %v2757, %v2753
        %v3302 = vpack.c.b16 %v2762, %v2758
        %v3303 = vpack.c.b16 %v2763, %v2759
        %v3304 = vpack.c.b16 %v2764, %v2760
        %v3305 = vpack.c.b16 %v2765, %v2761
        %v3306 = vpack.c.b16 %v2770, %v2766
        %v3307 = vpack.c.b16 %v2771, %v2767
        %v3308 = vpack.c.b16 %v2772, %v2768
        %v3309 = vpack.c.b16 %v2773, %v2769
        %v3310 = vpack.c.b16 %v2778, %v2774
        %v3311 = vpack.c.b16 %v2779, %v2775
        %v3312 = vpack.c.b16 %v2780, %v2776
        %v3313 = vpack.c.b16 %v2781, %v2777
        %v3314 = vpack.c.b16 %v2786, %v2782
        %v3315 = vpack.c.b16 %v2787, %v2783
        %v3316 = vpack.c.b16 %v2788, %v2784
        %v3317 = vpack.c.b16 %v2789, %v2785
        %v3318 = vpack.c.b16 %v2794, %v2790
        %v3319 = vpack.c.b16 %v2795, %v2791
        %v3320 = vpack.c.b16 %v2796, %v2792
        %v3321 = vpack.c.b16 %v2797, %v2793
        %v3322 = vpack.c.b16 %v2802, %v2798
        %v3323 = vpack.c.b16 %v2803, %v2799
        %v3324 = vpack.c.b16 %v2804, %v2800
        %v3325 = vpack.c.b16 %v2805, %v2801
        %v3326 = vpack.c.b16 %v2810, %v2806
        %v3327 = vpack.c.b16 %v2811, %v2807
        %v3328 = vpack.c.b16 %v2812, %v2808
        %v3329 = vpack.c.b16 %v2813, %v2809
        %v3330 = vpack.c.b16 %v2818, %v2814
        %v3331 = vpack.c.b16 %v2819, %v2815
        %v3332 = vpack.c.b16 %v2820, %v2816
        %v3333 = vpack.c.b16 %v2821, %v2817
        %3846 = vmatprep.subr.bf16.mxu0 %v2823
        %3847 = vmatpush1.bf16.msra.mxu0 %v2822
        %3848 = vmatprep.subr.bf16.mxu0 %v2827
        %3849 = vmatpush1.bf16.msra.mxu0 %v2826
        %3850 = vmatprep.subr.bf16.mxu0 %v2831
        %3851 = vmatpush1.bf16.msra.mxu0 %v2830
        %3852 = vmatprep.subr.bf16.mxu0 %v2835
        %3853 = vmatpush1.bf16.msra.mxu0 %v2834
        %3854 = vmatprep.subr.bf16.mxu0 %v2839
        %3855 = vmatpush1.bf16.msra.mxu0 %v2838
        %3856 = vmatprep.subr.bf16.mxu0 %v2843
        %3857 = vmatpush1.bf16.msra.mxu0 %v2842
        %3858 = vmatprep.subr.bf16.mxu0 %v2847
        %3859 = vmatpush1.bf16.msra.mxu0 %v2846
        %3860 = vmatprep.subr.bf16.mxu0 %v2851
        %3861 = vmatpush1.bf16.msra.mxu0 %v2850
        %3862 = vmatprep.subr.bf16.mxu0 %v2855
        %3863 = vmatpush1.bf16.msra.mxu0 %v2854
        %3864 = vmatprep.subr.bf16.mxu0 %v2859
        %3865 = vmatpush1.bf16.msra.mxu0 %v2858
        %3866 = vmatprep.subr.bf16.mxu0 %v2863
        %3867 = vmatpush1.bf16.msra.mxu0 %v2862
        %3868 = vmatprep.subr.bf16.mxu0 %v2867
        %3869 = vmatpush1.bf16.msra.mxu0 %v2866
        %3870 = vmatprep.subr.bf16.mxu0 %v2871
        %3871 = vmatpush1.bf16.msra.mxu0 %v2870
        %3872 = vmatprep.subr.bf16.mxu0 %v2875
        %3873 = vmatpush1.bf16.msra.mxu0 %v2874
        %3874 = vmatprep.subr.bf16.mxu0 %v2879
        %3875 = vmatpush1.bf16.msra.mxu0 %v2878
        %3876 = vmatprep.subr.bf16.mxu0 %v2883
        %3877 = vmatpush1.bf16.msra.mxu0 %v2882
        %3878 = vmatprep.mubr.bf16.mxu0 %v1223
        %3879 = vmatmul.mubr.bf16.gmra.mrb[0].mxu0 %v1222
        %v3880 = vpop.f32.mrb[0].mxu0
        %v3881 = vadd.f32 %v1109, %v3880
        %v3882 = vpop.f32.mrb[0].mxu0
        %v3883 = vadd.f32 %v1113, %v3882
        %v3884 = vpop.f32.mrb[0].mxu0
        %v3885 = vadd.f32 %v1109, %v3884
        %v3886 = vpop.f32.mrb[0].mxu0
        %v3887 = vadd.f32 %v1113, %v3886
        %3888 = vmatprep.mubr.bf16.mxu0 %v1239
        %3889 = vmatmul.mubr.bf16.gmra.mrb[0].mxu0 %v1238
        %v3890 = vpop.f32.mrb[0].mxu0
        %v3891 = vadd.f32 %v1109, %v3890
        %v3892 = vpop.f32.mrb[0].mxu0
        %v3893 = vadd.f32 %v1113, %v3892
        %v3894 = vpop.f32.mrb[0].mxu0
        %v3895 = vadd.f32 %v1109, %v3894
        %v3896 = vpop.f32.mrb[0].mxu0
        %v3897 = vadd.f32 %v1113, %v3896
        %3898 = vdwg.mxu0
        %3899 = vmatprep.subr.bf16.mxu0 %v2887
        %3900 = vmatpush1.bf16.msra.mxu0 %v2886
        %3901 = vmatprep.subr.bf16.mxu0 %v2891
        %3902 = vmatpush1.bf16.msra.mxu0 %v2890
        %3903 = vmatprep.subr.bf16.mxu0 %v2895
        %3904 = vmatpush1.bf16.msra.mxu0 %v2894
        %3905 = vmatprep.subr.bf16.mxu0 %v2899
        %3906 = vmatpush1.bf16.msra.mxu0 %v2898
        %3907 = vmatprep.subr.bf16.mxu0 %v2903
        %3908 = vmatpush1.bf16.msra.mxu0 %v2902
        %3909 = vmatprep.subr.bf16.mxu0 %v2907
        %3910 = vmatpush1.bf16.msra.mxu0 %v2906
        %3911 = vmatprep.subr.bf16.mxu0 %v2911
        %3912 = vmatpush1.bf16.msra.mxu0 %v2910
        %3913 = vmatprep.subr.bf16.mxu0 %v2915
        %3914 = vmatpush1.bf16.msra.mxu0 %v2914
        %3915 = vmatprep.subr.bf16.mxu0 %v2919
        %3916 = vmatpush1.bf16.msra.mxu0 %v2918
        %3917 = vmatprep.subr.bf16.mxu0 %v2923
        %3918 = vmatpush1.bf16.msra.mxu0 %v2922
        %3919 = vmatprep.subr.bf16.mxu0 %v2927
        %3920 = vmatpush1.bf16.msra.mxu0 %v2926
        %3921 = vmatprep.subr.bf16.mxu0 %v2931
        %3922 = vmatpush1.bf16.msra.mxu0 %v2930
        %3923 = vmatprep.subr.bf16.mxu0 %v2935
        %3924 = vmatpush1.bf16.msra.mxu0 %v2934
        %3925 = vmatprep.subr.bf16.mxu0 %v2939
        %3926 = vmatpush1.bf16.msra.mxu0 %v2938
        %3927 = vmatprep.subr.bf16.mxu0 %v2943
        %3928 = vmatpush1.bf16.msra.mxu0 %v2942
        %3929 = vmatprep.subr.bf16.mxu0 %v2947
        %3930 = vmatpush1.bf16.msra.mxu0 %v2946
        %3931 = vmatprep.mubr.bf16.mxu0 %v1225
        %3932 = vmatmul.mubr.bf16.gmra.mrb[0].mxu0 %v1224
        %v3933 = vpop.f32.mrb[0].mxu0
        %v3934 = vadd.f32 %v3881, %v3933
        %v3935 = vpop.f32.mrb[0].mxu0
        %v3936 = vadd.f32 %v3883, %v3935
        %v3937 = vpop.f32.mrb[0].mxu0
        %v3938 = vadd.f32 %v3885, %v3937
        %v3939 = vpop.f32.mrb[0].mxu0
        %v3940 = vadd.f32 %v3887, %v3939
        %3941 = vmatprep.mubr.bf16.mxu0 %v1241
        %3942 = vmatmul.mubr.bf16.gmra.mrb[0].mxu0 %v1240
        %v3943 = vpop.f32.mrb[0].mxu0
        %v3944 = vadd.f32 %v3891, %v3943
        %v3945 = vpop.f32.mrb[0].mxu0
        %v3946 = vadd.f32 %v3893, %v3945
        %v3947 = vpop.f32.mrb[0].mxu0
        %v3948 = vadd.f32 %v3895, %v3947
        %v3949 = vpop.f32.mrb[0].mxu0
        %v3950 = vadd.f32 %v3897, %v3949
        %3951 = vdwg.mxu0
        %3952 = vmatprep.subr.bf16.mxu0 %v2951
        %3953 = vmatpush1.bf16.msra.mxu0 %v2950
        %3954 = vmatprep.subr.bf16.mxu0 %v2955
        %3955 = vmatpush1.bf16.msra.mxu0 %v2954
        %3956 = vmatprep.subr.bf16.mxu0 %v2959
        %3957 = vmatpush1.bf16.msra.mxu0 %v2958
        %3958 = vmatprep.subr.bf16.mxu0 %v2963
        %3959 = vmatpush1.bf16.msra.mxu0 %v2962
        %3960 = vmatprep.subr.bf16.mxu0 %v2967
        %3961 = vmatpush1.bf16.msra.mxu0 %v2966
        %3962 = vmatprep.subr.bf16.mxu0 %v2971
        %3963 = vmatpush1.bf16.msra.mxu0 %v2970
        %3964 = vmatprep.subr.bf16.mxu0 %v2975
        %3965 = vmatpush1.bf16.msra.mxu0 %v2974
        %3966 = vmatprep.subr.bf16.mxu0 %v2979
        %3967 = vmatpush1.bf16.msra.mxu0 %v2978
        %3968 = vmatprep.subr.bf16.mxu0 %v2983
        %3969 = vmatpush1.bf16.msra.mxu0 %v2982
        %3970 = vmatprep.subr.bf16.mxu0 %v2987
        %3971 = vmatpush1.bf16.msra.mxu0 %v2986
        %3972 = vmatprep.subr.bf16.mxu0 %v2991
        %3973 = vmatpush1.bf16.msra.mxu0 %v2990
        %3974 = vmatprep.subr.bf16.mxu0 %v2995
        %3975 = vmatpush1.bf16.msra.mxu0 %v2994
        %3976 = vmatprep.subr.bf16.mxu0 %v2999
        %3977 = vmatpush1.bf16.msra.mxu0 %v2998
        %3978 = vmatprep.subr.bf16.mxu0 %v3003
        %3979 = vmatpush1.bf16.msra.mxu0 %v3002
        %3980 = vmatprep.subr.bf16.mxu0 %v3007
        %3981 = vmatpush1.bf16.msra.mxu0 %v3006
        %3982 = vmatprep.subr.bf16.mxu0 %v3011
        %3983 = vmatpush1.bf16.msra.mxu0 %v3010
        %3984 = vmatprep.mubr.bf16.mxu0 %v1227
        %3985 = vmatmul.mubr.bf16.gmra.mrb[0].mxu0 %v1226
        %v3986 = vpop.f32.mrb[0].mxu0
        %v3987 = vadd.f32 %v3934, %v3986
        %v3988 = vpop.f32.mrb[0].mxu0
        %v3989 = vadd.f32 %v3936, %v3988
        %v3990 = vpop.f32.mrb[0].mxu0
        %v3991 = vadd.f32 %v3938, %v3990
        %v3992 = vpop.f32.mrb[0].mxu0
        %v3993 = vadd.f32 %v3940, %v3992
        %3994 = vmatprep.mubr.bf16.mxu0 %v1243
        %3995 = vmatmul.mubr.bf16.gmra.mrb[0].mxu0 %v1242
        %v3996 = vpop.f32.mrb[0].mxu0
        %v3997 = vadd.f32 %v3944, %v3996
        %v3998 = vpop.f32.mrb[0].mxu0
        %v3999 = vadd.f32 %v3946, %v3998
        %v4000 = vpop.f32.mrb[0].mxu0
        %v4001 = vadd.f32 %v3948, %v4000
        %v4002 = vpop.f32.mrb[0].mxu0
        %v4003 = vadd.f32 %v3950, %v4002
        %4004 = vdwg.mxu0
        %4005 = vmatprep.subr.bf16.mxu0 %v3015
        %4006 = vmatpush1.bf16.msra.mxu0 %v3014
        %4007 = vmatprep.subr.bf16.mxu0 %v3019
        %4008 = vmatpush1.bf16.msra.mxu0 %v3018
        %4009 = vmatprep.subr.bf16.mxu0 %v3023
        %4010 = vmatpush1.bf16.msra.mxu0 %v3022
        %4011 = vmatprep.subr.bf16.mxu0 %v3027
        %4012 = vmatpush1.bf16.msra.mxu0 %v3026
        %4013 = vmatprep.subr.bf16.mxu0 %v3031
        %4014 = vmatpush1.bf16.msra.mxu0 %v3030
        %4015 = vmatprep.subr.bf16.mxu0 %v3035
        %4016 = vmatpush1.bf16.msra.mxu0 %v3034
        %4017 = vmatprep.subr.bf16.mxu0 %v3039
        %4018 = vmatpush1.bf16.msra.mxu0 %v3038
        %4019 = vmatprep.subr.bf16.mxu0 %v3043
        %4020 = vmatpush1.bf16.msra.mxu0 %v3042
        %4021 = vmatprep.subr.bf16.mxu0 %v3047
        %4022 = vmatpush1.bf16.msra.mxu0 %v3046
        %4023 = vmatprep.subr.bf16.mxu0 %v3051
        %4024 = vmatpush1.bf16.msra.mxu0 %v3050
        %4025 = vmatprep.subr.bf16.mxu0 %v3055
        %4026 = vmatpush1.bf16.msra.mxu0 %v3054
        %4027 = vmatprep.subr.bf16.mxu0 %v3059
        %4028 = vmatpush1.bf16.msra.mxu0 %v3058
        %4029 = vmatprep.subr.bf16.mxu0 %v3063
        %4030 = vmatpush1.bf16.msra.mxu0 %v3062
        %4031 = vmatprep.subr.bf16.mxu0 %v3067
        %4032 = vmatpush1.bf16.msra.mxu0 %v3066
        %4033 = vmatprep.subr.bf16.mxu0 %v3071
        %4034 = vmatpush1.bf16.msra.mxu0 %v3070
        %4035 = vmatprep.subr.bf16.mxu0 %v3075
        %4036 = vmatpush1.bf16.msra.mxu0 %v3074
        %4037 = vmatprep.mubr.bf16.mxu0 %v1229
        %4038 = vmatmul.mubr.bf16.gmra.mrb[0].mxu0 %v1228
        %v4039 = vpop.f32.mrb[0].mxu0
        %v4040 = vadd.f32 %v3987, %v4039
        %v4041 = vpop.f32.mrb[0].mxu0
        %v4042 = vadd.f32 %v3989, %v4041
        %v4043 = vpop.f32.mrb[0].mxu0
        %v4044 = vadd.f32 %v3991, %v4043
        %v4045 = vpop.f32.mrb[0].mxu0
        %v4046 = vadd.f32 %v3993, %v4045
        %4047 = vmatprep.mubr.bf16.mxu0 %v1245
        %4048 = vmatmul.mubr.bf16.gmra.mrb[0].mxu0 %v1244
        %v4049 = vpop.f32.mrb[0].mxu0
        %v4050 = vadd.f32 %v3997, %v4049
        %v4051 = vpop.f32.mrb[0].mxu0
        %v4052 = vadd.f32 %v3999, %v4051
        %v4053 = vpop.f32.mrb[0].mxu0
        %v4054 = vadd.f32 %v4001, %v4053
        %v4055 = vpop.f32.mrb[0].mxu0
        %v4056 = vadd.f32 %v4003, %v4055
        %4057 = vdwg.mxu0
        %4058 = vmatprep.subr.bf16.mxu0 %v3079
        %4059 = vmatpush1.bf16.msra.mxu0 %v3078
        %4060 = vmatprep.subr.bf16.mxu0 %v3083
        %4061 = vmatpush1.bf16.msra.mxu0 %v3082
        %4062 = vmatprep.subr.bf16.mxu0 %v3087
        %4063 = vmatpush1.bf16.msra.mxu0 %v3086
        %4064 = vmatprep.subr.bf16.mxu0 %v3091
        %4065 = vmatpush1.bf16.msra.mxu0 %v3090
        %4066 = vmatprep.subr.bf16.mxu0 %v3095
        %4067 = vmatpush1.bf16.msra.mxu0 %v3094
        %4068 = vmatprep.subr.bf16.mxu0 %v3099
        %4069 = vmatpush1.bf16.msra.mxu0 %v3098
        %4070 = vmatprep.subr.bf16.mxu0 %v3103
        %4071 = vmatpush1.bf16.msra.mxu0 %v3102
        %4072 = vmatprep.subr.bf16.mxu0 %v3107
        %4073 = vmatpush1.bf16.msra.mxu0 %v3106
        %4074 = vmatprep.subr.bf16.mxu0 %v3111
        %4075 = vmatpush1.bf16.msra.mxu0 %v3110
        %4076 = vmatprep.subr.bf16.mxu0 %v3115
        %4077 = vmatpush1.bf16.msra.mxu0 %v3114
        %4078 = vmatprep.subr.bf16.mxu0 %v3119
        %4079 = vmatpush1.bf16.msra.mxu0 %v3118
        %4080 = vmatprep.subr.bf16.mxu0 %v3123
        %4081 = vmatpush1.bf16.msra.mxu0 %v3122
        %4082 = vmatprep.subr.bf16.mxu0 %v3127
        %4083 = vmatpush1.bf16.msra.mxu0 %v3126
        %4084 = vmatprep.subr.bf16.mxu0 %v3131
        %4085 = vmatpush1.bf16.msra.mxu0 %v3130
        %4086 = vmatprep.subr.bf16.mxu0 %v3135
        %4087 = vmatpush1.bf16.msra.mxu0 %v3134
        %4088 = vmatprep.subr.bf16.mxu0 %v3139
        %4089 = vmatpush1.bf16.msra.mxu0 %v3138
        %4090 = vmatprep.mubr.bf16.mxu0 %v1231
        %4091 = vmatmul.mubr.bf16.gmra.mrb[0].mxu0 %v1230
        %v4092 = vpop.f32.mrb[0].mxu0
        %v4093 = vadd.f32 %v4040, %v4092
        %v4094 = vpop.f32.mrb[0].mxu0
        %v4095 = vadd.f32 %v4042, %v4094
        %v4096 = vpop.f32.mrb[0].mxu0
        %v4097 = vadd.f32 %v4044, %v4096
        %v4098 = vpop.f32.mrb[0].mxu0
        %v4099 = vadd.f32 %v4046, %v4098
        %4100 = vmatprep.mubr.bf16.mxu0 %v1247
        %4101 = vmatmul.mubr.bf16.gmra.mrb[0].mxu0 %v1246
        %v4102 = vpop.f32.mrb[0].mxu0
        %v4103 = vadd.f32 %v4050, %v4102
        %v4104 = vpop.f32.mrb[0].mxu0
        %v4105 = vadd.f32 %v4052, %v4104
        %v4106 = vpop.f32.mrb[0].mxu0
        %v4107 = vadd.f32 %v4054, %v4106
        %v4108 = vpop.f32.mrb[0].mxu0
        %v4109 = vadd.f32 %v4056, %v4108
        %4110 = vdwg.mxu0
        %4111 = vmatprep.subr.bf16.mxu0 %v3143
        %4112 = vmatpush1.bf16.msra.mxu0 %v3142
        %4113 = vmatprep.subr.bf16.mxu0 %v3147
        %4114 = vmatpush1.bf16.msra.mxu0 %v3146
        %4115 = vmatprep.subr.bf16.mxu0 %v3151
        %4116 = vmatpush1.bf16.msra.mxu0 %v3150
        %4117 = vmatprep.subr.bf16.mxu0 %v3155
        %4118 = vmatpush1.bf16.msra.mxu0 %v3154
        %4119 = vmatprep.subr.bf16.mxu0 %v3159
        %4120 = vmatpush1.bf16.msra.mxu0 %v3158
        %4121 = vmatprep.subr.bf16.mxu0 %v3163
        %4122 = vmatpush1.bf16.msra.mxu0 %v3162
        %4123 = vmatprep.subr.bf16.mxu0 %v3167
        %4124 = vmatpush1.bf16.msra.mxu0 %v3166
        %4125 = vmatprep.subr.bf16.mxu0 %v3171
        %4126 = vmatpush1.bf16.msra.mxu0 %v3170
        %4127 = vmatprep.subr.bf16.mxu0 %v3175
        %4128 = vmatpush1.bf16.msra.mxu0 %v3174
        %4129 = vmatprep.subr.bf16.mxu0 %v3179
        %4130 = vmatpush1.bf16.msra.mxu0 %v3178
        %4131 = vmatprep.subr.bf16.mxu0 %v3183
        %4132 = vmatpush1.bf16.msra.mxu0 %v3182
        %4133 = vmatprep.subr.bf16.mxu0 %v3187
        %4134 = vmatpush1.bf16.msra.mxu0 %v3186
        %4135 = vmatprep.subr.bf16.mxu0 %v3191
        %4136 = vmatpush1.bf16.msra.mxu0 %v3190
        %4137 = vmatprep.subr.bf16.mxu0 %v3195
        %4138 = vmatpush1.bf16.msra.mxu0 %v3194
        %4139 = vmatprep.subr.bf16.mxu0 %v3199
        %4140 = vmatpush1.bf16.msra.mxu0 %v3198
        %4141 = vmatprep.subr.bf16.mxu0 %v3203
        %4142 = vmatpush1.bf16.msra.mxu0 %v3202
        %4143 = vmatprep.mubr.bf16.mxu0 %v1233
        %4144 = vmatmul.mubr.bf16.gmra.mrb[0].mxu0 %v1232
        %v4145 = vpop.f32.mrb[0].mxu0
        %v4146 = vadd.f32 %v4093, %v4145
        %v4147 = vpop.f32.mrb[0].mxu0
        %v4148 = vadd.f32 %v4095, %v4147
        %v4149 = vpop.f32.mrb[0].mxu0
        %v4150 = vadd.f32 %v4097, %v4149
        %v4151 = vpop.f32.mrb[0].mxu0
        %v4152 = vadd.f32 %v4099, %v4151
        %4153 = vmatprep.mubr.bf16.mxu0 %v1249
        %4154 = vmatmul.mubr.bf16.gmra.mrb[0].mxu0 %v1248
        %v4155 = vpop.f32.mrb[0].mxu0
        %v4156 = vadd.f32 %v4103, %v4155
        %v4157 = vpop.f32.mrb[0].mxu0
        %v4158 = vadd.f32 %v4105, %v4157
        %v4159 = vpop.f32.mrb[0].mxu0
        %v4160 = vadd.f32 %v4107, %v4159
        %v4161 = vpop.f32.mrb[0].mxu0
        %v4162 = vadd.f32 %v4109, %v4161
        %4163 = vdwg.mxu0
        %4164 = vmatprep.subr.bf16.mxu0 %v3207
        %4165 = vmatpush1.bf16.msra.mxu0 %v3206
        %4166 = vmatprep.subr.bf16.mxu0 %v3211
        %4167 = vmatpush1.bf16.msra.mxu0 %v3210
        %4168 = vmatprep.subr.bf16.mxu0 %v3215
        %4169 = vmatpush1.bf16.msra.mxu0 %v3214
        %4170 = vmatprep.subr.bf16.mxu0 %v3219
        %4171 = vmatpush1.bf16.msra.mxu0 %v3218
        %4172 = vmatprep.subr.bf16.mxu0 %v3223
        %4173 = vmatpush1.bf16.msra.mxu0 %v3222
        %4174 = vmatprep.subr.bf16.mxu0 %v3227
        %4175 = vmatpush1.bf16.msra.mxu0 %v3226
        %4176 = vmatprep.subr.bf16.mxu0 %v3231
        %4177 = vmatpush1.bf16.msra.mxu0 %v3230
        %4178 = vmatprep.subr.bf16.mxu0 %v3235
        %4179 = vmatpush1.bf16.msra.mxu0 %v3234
        %4180 = vmatprep.subr.bf16.mxu0 %v3239
        %4181 = vmatpush1.bf16.msra.mxu0 %v3238
        %4182 = vmatprep.subr.bf16.mxu0 %v3243
        %4183 = vmatpush1.bf16.msra.mxu0 %v3242
        %4184 = vmatprep.subr.bf16.mxu0 %v3247
        %4185 = vmatpush1.bf16.msra.mxu0 %v3246
        %4186 = vmatprep.subr.bf16.mxu0 %v3251
        %4187 = vmatpush1.bf16.msra.mxu0 %v3250
        %4188 = vmatprep.subr.bf16.mxu0 %v3255
        %4189 = vmatpush1.bf16.msra.mxu0 %v3254
        %4190 = vmatprep.subr.bf16.mxu0 %v3259
        %4191 = vmatpush1.bf16.msra.mxu0 %v3258
        %4192 = vmatprep.subr.bf16.mxu0 %v3263
        %4193 = vmatpush1.bf16.msra.mxu0 %v3262
        %4194 = vmatprep.subr.bf16.mxu0 %v3267
        %4195 = vmatpush1.bf16.msra.mxu0 %v3266
        %4196 = vmatprep.mubr.bf16.mxu0 %v1235
        %4197 = vmatmul.mubr.bf16.gmra.mrb[0].mxu0 %v1234
        %v4198 = vpop.f32.mrb[0].mxu0
        %v4199 = vadd.f32 %v4146, %v4198
        %v4200 = vpop.f32.mrb[0].mxu0
        %v4201 = vadd.f32 %v4148, %v4200
        %v4202 = vpop.f32.mrb[0].mxu0
        %v4203 = vadd.f32 %v4150, %v4202
        %v4204 = vpop.f32.mrb[0].mxu0
        %v4205 = vadd.f32 %v4152, %v4204
        %4206 = vmatprep.mubr.bf16.mxu0 %v1251
        %4207 = vmatmul.mubr.bf16.gmra.mrb[0].mxu0 %v1250
        %v4208 = vpop.f32.mrb[0].mxu0
        %v4209 = vadd.f32 %v4156, %v4208
        %v4210 = vpop.f32.mrb[0].mxu0
        %v4211 = vadd.f32 %v4158, %v4210
        %v4212 = vpop.f32.mrb[0].mxu0
        %v4213 = vadd.f32 %v4160, %v4212
        %v4214 = vpop.f32.mrb[0].mxu0
        %v4215 = vadd.f32 %v4162, %v4214
        %4216 = vdwg.mxu0
        %4217 = vmatprep.subr.bf16.mxu0 %v3271
        %4218 = vmatpush1.bf16.msra.mxu0 %v3270
        %4219 = vmatprep.subr.bf16.mxu0 %v3275
        %4220 = vmatpush1.bf16.msra.mxu0 %v3274
        %4221 = vmatprep.subr.bf16.mxu0 %v3279
        %4222 = vmatpush1.bf16.msra.mxu0 %v3278
        %4223 = vmatprep.subr.bf16.mxu0 %v3283
        %4224 = vmatpush1.bf16.msra.mxu0 %v3282
        %4225 = vmatprep.subr.bf16.mxu0 %v3287
        %4226 = vmatpush1.bf16.msra.mxu0 %v3286
        %4227 = vmatprep.subr.bf16.mxu0 %v3291
        %4228 = vmatpush1.bf16.msra.mxu0 %v3290
        %4229 = vmatprep.subr.bf16.mxu0 %v3295
        %4230 = vmatpush1.bf16.msra.mxu0 %v3294
        %4231 = vmatprep.subr.bf16.mxu0 %v3299
        %4232 = vmatpush1.bf16.msra.mxu0 %v3298
        %4233 = vmatprep.subr.bf16.mxu0 %v3303
        %4234 = vmatpush1.bf16.msra.mxu0 %v3302
        %4235 = vmatprep.subr.bf16.mxu0 %v3307
        %4236 = vmatpush1.bf16.msra.mxu0 %v3306
        %4237 = vmatprep.subr.bf16.mxu0 %v3311
        %4238 = vmatpush1.bf16.msra.mxu0 %v3310
        %4239 = vmatprep.subr.bf16.mxu0 %v3315
        %4240 = vmatpush1.bf16.msra.mxu0 %v3314
        %4241 = vmatprep.subr.bf16.mxu0 %v3319
        %4242 = vmatpush1.bf16.msra.mxu0 %v3318
        %4243 = vmatprep.subr.bf16.mxu0 %v3323
        %4244 = vmatpush1.bf16.msra.mxu0 %v3322
        %4245 = vmatprep.subr.bf16.mxu0 %v3327
        %4246 = vmatpush1.bf16.msra.mxu0 %v3326
        %4247 = vmatprep.subr.bf16.mxu0 %v3331
        %4248 = vmatpush1.bf16.msra.mxu0 %v3330
        %4249 = vmatprep.mubr.bf16.mxu0 %v1237
        %4250 = vmatmul.mubr.bf16.gmra.mrb[0].mxu0 %v1236
        %v4251 = vpop.f32.mrb[0].mxu0
        %v4252 = vadd.f32 %v4199, %v4251
        %v4253 = vpop.f32.mrb[0].mxu0
        %v4254 = vadd.f32 %v4201, %v4253
        %v4255 = vpop.f32.mrb[0].mxu0
        %v4256 = vadd.f32 %v4203, %v4255
        %v4257 = vpop.f32.mrb[0].mxu0
        %v4258 = vadd.f32 %v4205, %v4257
        %4259 = vmatprep.mubr.bf16.mxu0 %v1253
        %4260 = vmatmul.mubr.bf16.gmra.mrb[0].mxu0 %v1252
        %v4261 = vpop.f32.mrb[0].mxu0
        %v4262 = vadd.f32 %v4209, %v4261
        %v4263 = vpop.f32.mrb[0].mxu0
        %v4264 = vadd.f32 %v4211, %v4263
        %v4265 = vpop.f32.mrb[0].mxu0
        %v4266 = vadd.f32 %v4213, %v4265
        %v4267 = vpop.f32.mrb[0].mxu0
        %v4268 = vadd.f32 %v4215, %v4267
        %4269 = vdwg.mxu0
        %4270 = vmatprep.subr.bf16.mxu0 %v2825
        %4271 = vmatpush1.bf16.msra.mxu0 %v2824
        %4272 = vmatprep.subr.bf16.mxu0 %v2829
        %4273 = vmatpush1.bf16.msra.mxu0 %v2828
        %4274 = vmatprep.subr.bf16.mxu0 %v2833
        %4275 = vmatpush1.bf16.msra.mxu0 %v2832
        %4276 = vmatprep.subr.bf16.mxu0 %v2837
        %4277 = vmatpush1.bf16.msra.mxu0 %v2836
        %4278 = vmatprep.subr.bf16.mxu0 %v2841
        %4279 = vmatpush1.bf16.msra.mxu0 %v2840
        %4280 = vmatprep.subr.bf16.mxu0 %v2845
        %4281 = vmatpush1.bf16.msra.mxu0 %v2844
        %4282 = vmatprep.subr.bf16.mxu0 %v2849
        %4283 = vmatpush1.bf16.msra.mxu0 %v2848
        %4284 = vmatprep.subr.bf16.mxu0 %v2853
        %4285 = vmatpush1.bf16.msra.mxu0 %v2852
        %4286 = vmatprep.subr.bf16.mxu0 %v2857
        %4287 = vmatpush1.bf16.msra.mxu0 %v2856
        %4288 = vmatprep.subr.bf16.mxu0 %v2861
        %4289 = vmatpush1.bf16.msra.mxu0 %v2860
        %4290 = vmatprep.subr.bf16.mxu0 %v2865
        %4291 = vmatpush1.bf16.msra.mxu0 %v2864
        %4292 = vmatprep.subr.bf16.mxu0 %v2869
        %4293 = vmatpush1.bf16.msra.mxu0 %v2868
        %4294 = vmatprep.subr.bf16.mxu0 %v2873
        %4295 = vmatpush1.bf16.msra.mxu0 %v2872
        %4296 = vmatprep.subr.bf16.mxu0 %v2877
        %4297 = vmatpush1.bf16.msra.mxu0 %v2876
        %4298 = vmatprep.subr.bf16.mxu0 %v2881
        %4299 = vmatpush1.bf16.msra.mxu0 %v2880
        %4300 = vmatprep.subr.bf16.mxu0 %v2885
        %4301 = vmatpush1.bf16.msra.mxu0 %v2884
        %4302 = vmatprep.mubr.bf16.mxu0 %v1223
        %4303 = vmatmul.mubr.bf16.gmra.mrb[0].mxu0 %v1222
        %v4304 = vpop.f32.mrb[0].mxu0
        %v4305 = vadd.f32 %v1117, %v4304
        %v4306 = vpop.f32.mrb[0].mxu0
        %v4307 = vadd.f32 %v1121, %v4306
        %v4308 = vpop.f32.mrb[0].mxu0
        %v4309 = vadd.f32 %v1117, %v4308
        %v4310 = vpop.f32.mrb[0].mxu0
        %v4311 = vadd.f32 %v1121, %v4310
        %4312 = vmatprep.mubr.bf16.mxu0 %v1239
        %4313 = vmatmul.mubr.bf16.gmra.mrb[0].mxu0 %v1238
        %v4314 = vpop.f32.mrb[0].mxu0
        %v4315 = vadd.f32 %v1117, %v4314
        %v4316 = vpop.f32.mrb[0].mxu0
        %v4317 = vadd.f32 %v1121, %v4316
        %v4318 = vpop.f32.mrb[0].mxu0
        %v4319 = vadd.f32 %v1117, %v4318
        %v4320 = vpop.f32.mrb[0].mxu0
        %v4321 = vadd.f32 %v1121, %v4320
        %4322 = vdwg.mxu0
        %4323 = vmatprep.subr.bf16.mxu0 %v2889
        %4324 = vmatpush1.bf16.msra.mxu0 %v2888
        %4325 = vmatprep.subr.bf16.mxu0 %v2893
        %4326 = vmatpush1.bf16.msra.mxu0 %v2892
        %4327 = vmatprep.subr.bf16.mxu0 %v2897
        %4328 = vmatpush1.bf16.msra.mxu0 %v2896
        %4329 = vmatprep.subr.bf16.mxu0 %v2901
        %4330 = vmatpush1.bf16.msra.mxu0 %v2900
        %4331 = vmatprep.subr.bf16.mxu0 %v2905
        %4332 = vmatpush1.bf16.msra.mxu0 %v2904
        %4333 = vmatprep.subr.bf16.mxu0 %v2909
        %4334 = vmatpush1.bf16.msra.mxu0 %v2908
        %4335 = vmatprep.subr.bf16.mxu0 %v2913
        %4336 = vmatpush1.bf16.msra.mxu0 %v2912
        %4337 = vmatprep.subr.bf16.mxu0 %v2917
        %4338 = vmatpush1.bf16.msra.mxu0 %v2916
        %4339 = vmatprep.subr.bf16.mxu0 %v2921
        %4340 = vmatpush1.bf16.msra.mxu0 %v2920
        %4341 = vmatprep.subr.bf16.mxu0 %v2925
        %4342 = vmatpush1.bf16.msra.mxu0 %v2924
        %4343 = vmatprep.subr.bf16.mxu0 %v2929
        %4344 = vmatpush1.bf16.msra.mxu0 %v2928
        %4345 = vmatprep.subr.bf16.mxu0 %v2933
        %4346 = vmatpush1.bf16.msra.mxu0 %v2932
        %4347 = vmatprep.subr.bf16.mxu0 %v2937
        %4348 = vmatpush1.bf16.msra.mxu0 %v2936
        %4349 = vmatprep.subr.bf16.mxu0 %v2941
        %4350 = vmatpush1.bf16.msra.mxu0 %v2940
        %4351 = vmatprep.subr.bf16.mxu0 %v2945
        %4352 = vmatpush1.bf16.msra.mxu0 %v2944
        %4353 = vmatprep.subr.bf16.mxu0 %v2949
        %4354 = vmatpush1.bf16.msra.mxu0 %v2948
        %4355 = vmatprep.mubr.bf16.mxu0 %v1225
        %4356 = vmatmul.mubr.bf16.gmra.mrb[0].mxu0 %v1224
        %v4357 = vpop.f32.mrb[0].mxu0
        %v4358 = vadd.f32 %v4305, %v4357
        %v4359 = vpop.f32.mrb[0].mxu0
        %v4360 = vadd.f32 %v4307, %v4359
        %v4361 = vpop.f32.mrb[0].mxu0
        %v4362 = vadd.f32 %v4309, %v4361
        %v4363 = vpop.f32.mrb[0].mxu0
        %v4364 = vadd.f32 %v4311, %v4363
        %4365 = vmatprep.mubr.bf16.mxu0 %v1241
        %4366 = vmatmul.mubr.bf16.gmra.mrb[0].mxu0 %v1240
        %v4367 = vpop.f32.mrb[0].mxu0
        %v4368 = vadd.f32 %v4315, %v4367
        %v4369 = vpop.f32.mrb[0].mxu0
        %v4370 = vadd.f32 %v4317, %v4369
        %v4371 = vpop.f32.mrb[0].mxu0
        %v4372 = vadd.f32 %v4319, %v4371
        %v4373 = vpop.f32.mrb[0].mxu0
        %v4374 = vadd.f32 %v4321, %v4373
        %4375 = vdwg.mxu0
        %4376 = vmatprep.subr.bf16.mxu0 %v2953
        %4377 = vmatpush1.bf16.msra.mxu0 %v2952
        %4378 = vmatprep.subr.bf16.mxu0 %v2957
        %4379 = vmatpush1.bf16.msra.mxu0 %v2956
        %4380 = vmatprep.subr.bf16.mxu0 %v2961
        %4381 = vmatpush1.bf16.msra.mxu0 %v2960
        %4382 = vmatprep.subr.bf16.mxu0 %v2965
        %4383 = vmatpush1.bf16.msra.mxu0 %v2964
        %4384 = vmatprep.subr.bf16.mxu0 %v2969
        %4385 = vmatpush1.bf16.msra.mxu0 %v2968
        %4386 = vmatprep.subr.bf16.mxu0 %v2973
        %4387 = vmatpush1.bf16.msra.mxu0 %v2972
        %4388 = vmatprep.subr.bf16.mxu0 %v2977
        %4389 = vmatpush1.bf16.msra.mxu0 %v2976
        %4390 = vmatprep.subr.bf16.mxu0 %v2981
        %4391 = vmatpush1.bf16.msra.mxu0 %v2980
        %4392 = vmatprep.subr.bf16.mxu0 %v2985
        %4393 = vmatpush1.bf16.msra.mxu0 %v2984
        %4394 = vmatprep.subr.bf16.mxu0 %v2989
        %4395 = vmatpush1.bf16.msra.mxu0 %v2988
        %4396 = vmatprep.subr.bf16.mxu0 %v2993
        %4397 = vmatpush1.bf16.msra.mxu0 %v2992
        %4398 = vmatprep.subr.bf16.mxu0 %v2997
        %4399 = vmatpush1.bf16.msra.mxu0 %v2996
        %4400 = vmatprep.subr.bf16.mxu0 %v3001
        %4401 = vmatpush1.bf16.msra.mxu0 %v3000
        %4402 = vmatprep.subr.bf16.mxu0 %v3005
        %4403 = vmatpush1.bf16.msra.mxu0 %v3004
        %4404 = vmatprep.subr.bf16.mxu0 %v3009
        %4405 = vmatpush1.bf16.msra.mxu0 %v3008
        %4406 = vmatprep.subr.bf16.mxu0 %v3013
        %4407 = vmatpush1.bf16.msra.mxu0 %v3012
        %4408 = vmatprep.mubr.bf16.mxu0 %v1227
        %4409 = vmatmul.mubr.bf16.gmra.mrb[0].mxu0 %v1226
        %v4410 = vpop.f32.mrb[0].mxu0
        %v4411 = vadd.f32 %v4358, %v4410
        %v4412 = vpop.f32.mrb[0].mxu0
        %v4413 = vadd.f32 %v4360, %v4412
        %v4414 = vpop.f32.mrb[0].mxu0
        %v4415 = vadd.f32 %v4362, %v4414
        %v4416 = vpop.f32.mrb[0].mxu0
        %v4417 = vadd.f32 %v4364, %v4416
        %4418 = vmatprep.mubr.bf16.mxu0 %v1243
        %4419 = vmatmul.mubr.bf16.gmra.mrb[0].mxu0 %v1242
        %v4420 = vpop.f32.mrb[0].mxu0
        %v4421 = vadd.f32 %v4368, %v4420
        %v4422 = vpop.f32.mrb[0].mxu0
        %v4423 = vadd.f32 %v4370, %v4422
        %v4424 = vpop.f32.mrb[0].mxu0
        %v4425 = vadd.f32 %v4372, %v4424
        %v4426 = vpop.f32.mrb[0].mxu0
        %v4427 = vadd.f32 %v4374, %v4426
        %4428 = vdwg.mxu0
        %4429 = vmatprep.subr.bf16.mxu0 %v3017
        %4430 = vmatpush1.bf16.msra.mxu0 %v3016
        %4431 = vmatprep.subr.bf16.mxu0 %v3021
        %4432 = vmatpush1.bf16.msra.mxu0 %v3020
        %4433 = vmatprep.subr.bf16.mxu0 %v3025
        %4434 = vmatpush1.bf16.msra.mxu0 %v3024
        %4435 = vmatprep.subr.bf16.mxu0 %v3029
        %4436 = vmatpush1.bf16.msra.mxu0 %v3028
        %4437 = vmatprep.subr.bf16.mxu0 %v3033
        %4438 = vmatpush1.bf16.msra.mxu0 %v3032
        %4439 = vmatprep.subr.bf16.mxu0 %v3037
        %4440 = vmatpush1.bf16.msra.mxu0 %v3036
        %4441 = vmatprep.subr.bf16.mxu0 %v3041
        %4442 = vmatpush1.bf16.msra.mxu0 %v3040
        %4443 = vmatprep.subr.bf16.mxu0 %v3045
        %4444 = vmatpush1.bf16.msra.mxu0 %v3044
        %4445 = vmatprep.subr.bf16.mxu0 %v3049
        %4446 = vmatpush1.bf16.msra.mxu0 %v3048
        %4447 = vmatprep.subr.bf16.mxu0 %v3053
        %4448 = vmatpush1.bf16.msra.mxu0 %v3052
        %4449 = vmatprep.subr.bf16.mxu0 %v3057
        %4450 = vmatpush1.bf16.msra.mxu0 %v3056
        %4451 = vmatprep.subr.bf16.mxu0 %v3061
        %4452 = vmatpush1.bf16.msra.mxu0 %v3060
        %4453 = vmatprep.subr.bf16.mxu0 %v3065
        %4454 = vmatpush1.bf16.msra.mxu0 %v3064
        %4455 = vmatprep.subr.bf16.mxu0 %v3069
        %4456 = vmatpush1.bf16.msra.mxu0 %v3068
        %4457 = vmatprep.subr.bf16.mxu0 %v3073
        %4458 = vmatpush1.bf16.msra.mxu0 %v3072
        %4459 = vmatprep.subr.bf16.mxu0 %v3077
        %4460 = vmatpush1.bf16.msra.mxu0 %v3076
        %4461 = vmatprep.mubr.bf16.mxu0 %v1229
        %4462 = vmatmul.mubr.bf16.gmra.mrb[0].mxu0 %v1228
        %v4463 = vpop.f32.mrb[0].mxu0
        %v4464 = vadd.f32 %v4411, %v4463
        %v4465 = vpop.f32.mrb[0].mxu0
        %v4466 = vadd.f32 %v4413, %v4465
        %v4467 = vpop.f32.mrb[0].mxu0
        %v4468 = vadd.f32 %v4415, %v4467
        %v4469 = vpop.f32.mrb[0].mxu0
        %v4470 = vadd.f32 %v4417, %v4469
        %4471 = vmatprep.mubr.bf16.mxu0 %v1245
        %4472 = vmatmul.mubr.bf16.gmra.mrb[0].mxu0 %v1244
        %v4473 = vpop.f32.mrb[0].mxu0
        %v4474 = vadd.f32 %v4421, %v4473
        %v4475 = vpop.f32.mrb[0].mxu0
        %v4476 = vadd.f32 %v4423, %v4475
        %v4477 = vpop.f32.mrb[0].mxu0
        %v4478 = vadd.f32 %v4425, %v4477
        %v4479 = vpop.f32.mrb[0].mxu0
        %v4480 = vadd.f32 %v4427, %v4479
        %4481 = vdwg.mxu0
        %4482 = vmatprep.subr.bf16.mxu0 %v3081
        %4483 = vmatpush1.bf16.msra.mxu0 %v3080
        %4484 = vmatprep.subr.bf16.mxu0 %v3085
        %4485 = vmatpush1.bf16.msra.mxu0 %v3084
        %4486 = vmatprep.subr.bf16.mxu0 %v3089
        %4487 = vmatpush1.bf16.msra.mxu0 %v3088
        %4488 = vmatprep.subr.bf16.mxu0 %v3093
        %4489 = vmatpush1.bf16.msra.mxu0 %v3092
        %4490 = vmatprep.subr.bf16.mxu0 %v3097
        %4491 = vmatpush1.bf16.msra.mxu0 %v3096
        %4492 = vmatprep.subr.bf16.mxu0 %v3101
        %4493 = vmatpush1.bf16.msra.mxu0 %v3100
        %4494 = vmatprep.subr.bf16.mxu0 %v3105
        %4495 = vmatpush1.bf16.msra.mxu0 %v3104
        %4496 = vmatprep.subr.bf16.mxu0 %v3109
        %4497 = vmatpush1.bf16.msra.mxu0 %v3108
        %4498 = vmatprep.subr.bf16.mxu0 %v3113
        %4499 = vmatpush1.bf16.msra.mxu0 %v3112
        %4500 = vmatprep.subr.bf16.mxu0 %v3117
        %4501 = vmatpush1.bf16.msra.mxu0 %v3116
        %4502 = vmatprep.subr.bf16.mxu0 %v3121
        %4503 = vmatpush1.bf16.msra.mxu0 %v3120
        %4504 = vmatprep.subr.bf16.mxu0 %v3125
        %4505 = vmatpush1.bf16.msra.mxu0 %v3124
        %4506 = vmatprep.subr.bf16.mxu0 %v3129
        %4507 = vmatpush1.bf16.msra.mxu0 %v3128
        %4508 = vmatprep.subr.bf16.mxu0 %v3133
        %4509 = vmatpush1.bf16.msra.mxu0 %v3132
        %4510 = vmatprep.subr.bf16.mxu0 %v3137
        %4511 = vmatpush1.bf16.msra.mxu0 %v3136
        %4512 = vmatprep.subr.bf16.mxu0 %v3141
        %4513 = vmatpush1.bf16.msra.mxu0 %v3140
        %4514 = vmatprep.mubr.bf16.mxu0 %v1231
        %4515 = vmatmul.mubr.bf16.gmra.mrb[0].mxu0 %v1230
        %v4516 = vpop.f32.mrb[0].mxu0
        %v4517 = vadd.f32 %v4464, %v4516
        %v4518 = vpop.f32.mrb[0].mxu0
        %v4519 = vadd.f32 %v4466, %v4518
        %v4520 = vpop.f32.mrb[0].mxu0
        %v4521 = vadd.f32 %v4468, %v4520
        %v4522 = vpop.f32.mrb[0].mxu0
        %v4523 = vadd.f32 %v4470, %v4522
        %4524 = vmatprep.mubr.bf16.mxu0 %v1247
        %4525 = vmatmul.mubr.bf16.gmra.mrb[0].mxu0 %v1246
        %v4526 = vpop.f32.mrb[0].mxu0
        %v4527 = vadd.f32 %v4474, %v4526
        %v4528 = vpop.f32.mrb[0].mxu0
        %v4529 = vadd.f32 %v4476, %v4528
        %v4530 = vpop.f32.mrb[0].mxu0
        %v4531 = vadd.f32 %v4478, %v4530
        %v4532 = vpop.f32.mrb[0].mxu0
        %v4533 = vadd.f32 %v4480, %v4532
        %4534 = vdwg.mxu0
        %4535 = vmatprep.subr.bf16.mxu0 %v3145
        %4536 = vmatpush1.bf16.msra.mxu0 %v3144
        %4537 = vmatprep.subr.bf16.mxu0 %v3149
        %4538 = vmatpush1.bf16.msra.mxu0 %v3148
        %4539 = vmatprep.subr.bf16.mxu0 %v3153
        %4540 = vmatpush1.bf16.msra.mxu0 %v3152
        %4541 = vmatprep.subr.bf16.mxu0 %v3157
        %4542 = vmatpush1.bf16.msra.mxu0 %v3156
        %4543 = vmatprep.subr.bf16.mxu0 %v3161
        %4544 = vmatpush1.bf16.msra.mxu0 %v3160
        %4545 = vmatprep.subr.bf16.mxu0 %v3165
        %4546 = vmatpush1.bf16.msra.mxu0 %v3164
        %4547 = vmatprep.subr.bf16.mxu0 %v3169
        %4548 = vmatpush1.bf16.msra.mxu0 %v3168
        %4549 = vmatprep.subr.bf16.mxu0 %v3173
        %4550 = vmatpush1.bf16.msra.mxu0 %v3172
        %4551 = vmatprep.subr.bf16.mxu0 %v3177
        %4552 = vmatpush1.bf16.msra.mxu0 %v3176
        %4553 = vmatprep.subr.bf16.mxu0 %v3181
        %4554 = vmatpush1.bf16.msra.mxu0 %v3180
        %4555 = vmatprep.subr.bf16.mxu0 %v3185
        %4556 = vmatpush1.bf16.msra.mxu0 %v3184
        %4557 = vmatprep.subr.bf16.mxu0 %v3189
        %4558 = vmatpush1.bf16.msra.mxu0 %v3188
        %4559 = vmatprep.subr.bf16.mxu0 %v3193
        %4560 = vmatpush1.bf16.msra.mxu0 %v3192
        %4561 = vmatprep.subr.bf16.mxu0 %v3197
        %4562 = vmatpush1.bf16.msra.mxu0 %v3196
        %4563 = vmatprep.subr.bf16.mxu0 %v3201
        %4564 = vmatpush1.bf16.msra.mxu0 %v3200
        %4565 = vmatprep.subr.bf16.mxu0 %v3205
        %4566 = vmatpush1.bf16.msra.mxu0 %v3204
        %4567 = vmatprep.mubr.bf16.mxu0 %v1233
        %4568 = vmatmul.mubr.bf16.gmra.mrb[0].mxu0 %v1232
        %v4569 = vpop.f32.mrb[0].mxu0
        %v4570 = vadd.f32 %v4517, %v4569
        %v4571 = vpop.f32.mrb[0].mxu0
        %v4572 = vadd.f32 %v4519, %v4571
        %v4573 = vpop.f32.mrb[0].mxu0
        %v4574 = vadd.f32 %v4521, %v4573
        %v4575 = vpop.f32.mrb[0].mxu0
        %v4576 = vadd.f32 %v4523, %v4575
        %4577 = vmatprep.mubr.bf16.mxu0 %v1249
        %4578 = vmatmul.mubr.bf16.gmra.mrb[0].mxu0 %v1248
        %v4579 = vpop.f32.mrb[0].mxu0
        %v4580 = vadd.f32 %v4527, %v4579
        %v4581 = vpop.f32.mrb[0].mxu0
        %v4582 = vadd.f32 %v4529, %v4581
        %v4583 = vpop.f32.mrb[0].mxu0
        %v4584 = vadd.f32 %v4531, %v4583
        %v4585 = vpop.f32.mrb[0].mxu0
        %v4586 = vadd.f32 %v4533, %v4585
        %4587 = vdwg.mxu0
        %4588 = vmatprep.subr.bf16.mxu0 %v3209
        %4589 = vmatpush1.bf16.msra.mxu0 %v3208
        %4590 = vmatprep.subr.bf16.mxu0 %v3213
        %4591 = vmatpush1.bf16.msra.mxu0 %v3212
        %4592 = vmatprep.subr.bf16.mxu0 %v3217
        %4593 = vmatpush1.bf16.msra.mxu0 %v3216
        %4594 = vmatprep.subr.bf16.mxu0 %v3221
        %4595 = vmatpush1.bf16.msra.mxu0 %v3220
        %4596 = vmatprep.subr.bf16.mxu0 %v3225
        %4597 = vmatpush1.bf16.msra.mxu0 %v3224
        %4598 = vmatprep.subr.bf16.mxu0 %v3229
        %4599 = vmatpush1.bf16.msra.mxu0 %v3228
        %4600 = vmatprep.subr.bf16.mxu0 %v3233
        %4601 = vmatpush1.bf16.msra.mxu0 %v3232
        %4602 = vmatprep.subr.bf16.mxu0 %v3237
        %4603 = vmatpush1.bf16.msra.mxu0 %v3236
        %4604 = vmatprep.subr.bf16.mxu0 %v3241
        %4605 = vmatpush1.bf16.msra.mxu0 %v3240
        %4606 = vmatprep.subr.bf16.mxu0 %v3245
        %4607 = vmatpush1.bf16.msra.mxu0 %v3244
        %4608 = vmatprep.subr.bf16.mxu0 %v3249
        %4609 = vmatpush1.bf16.msra.mxu0 %v3248
        %4610 = vmatprep.subr.bf16.mxu0 %v3253
        %4611 = vmatpush1.bf16.msra.mxu0 %v3252
        %4612 = vmatprep.subr.bf16.mxu0 %v3257
        %4613 = vmatpush1.bf16.msra.mxu0 %v3256
        %4614 = vmatprep.subr.bf16.mxu0 %v3261
        %4615 = vmatpush1.bf16.msra.mxu0 %v3260
        %4616 = vmatprep.subr.bf16.mxu0 %v3265
        %4617 = vmatpush1.bf16.msra.mxu0 %v3264
        %4618 = vmatprep.subr.bf16.mxu0 %v3269
        %4619 = vmatpush1.bf16.msra.mxu0 %v3268
        %4620 = vmatprep.mubr.bf16.mxu0 %v1235
        %4621 = vmatmul.mubr.bf16.gmra.mrb[0].mxu0 %v1234
        %v4622 = vpop.f32.mrb[0].mxu0
        %v4623 = vadd.f32 %v4570, %v4622
        %v4624 = vpop.f32.mrb[0].mxu0
        %v4625 = vadd.f32 %v4572, %v4624
        %v4626 = vpop.f32.mrb[0].mxu0
        %v4627 = vadd.f32 %v4574, %v4626
        %v4628 = vpop.f32.mrb[0].mxu0
        %v4629 = vadd.f32 %v4576, %v4628
        %4630 = vmatprep.mubr.bf16.mxu0 %v1251
        %4631 = vmatmul.mubr.bf16.gmra.mrb[0].mxu0 %v1250
        %v4632 = vpop.f32.mrb[0].mxu0
        %v4633 = vadd.f32 %v4580, %v4632
        %v4634 = vpop.f32.mrb[0].mxu0
        %v4635 = vadd.f32 %v4582, %v4634
        %v4636 = vpop.f32.mrb[0].mxu0
        %v4637 = vadd.f32 %v4584, %v4636
        %v4638 = vpop.f32.mrb[0].mxu0
        %v4639 = vadd.f32 %v4586, %v4638
        %4640 = vdwg.mxu0
        %4641 = vmatprep.subr.bf16.mxu0 %v3273
        %4642 = vmatpush1.bf16.msra.mxu0 %v3272
        %4643 = vmatprep.subr.bf16.mxu0 %v3277
        %4644 = vmatpush1.bf16.msra.mxu0 %v3276
        %4645 = vmatprep.subr.bf16.mxu0 %v3281
        %4646 = vmatpush1.bf16.msra.mxu0 %v3280
        %4647 = vmatprep.subr.bf16.mxu0 %v3285
        %4648 = vmatpush1.bf16.msra.mxu0 %v3284
        %4649 = vmatprep.subr.bf16.mxu0 %v3289
        %4650 = vmatpush1.bf16.msra.mxu0 %v3288
        %4651 = vmatprep.subr.bf16.mxu0 %v3293
        %4652 = vmatpush1.bf16.msra.mxu0 %v3292
        %4653 = vmatprep.subr.bf16.mxu0 %v3297
        %4654 = vmatpush1.bf16.msra.mxu0 %v3296
        %4655 = vmatprep.subr.bf16.mxu0 %v3301
        %4656 = vmatpush1.bf16.msra.mxu0 %v3300
        %4657 = vmatprep.subr.bf16.mxu0 %v3305
        %4658 = vmatpush1.bf16.msra.mxu0 %v3304
        %4659 = vmatprep.subr.bf16.mxu0 %v3309
        %4660 = vmatpush1.bf16.msra.mxu0 %v3308
        %4661 = vmatprep.subr.bf16.mxu0 %v3313
        %4662 = vmatpush1.bf16.msra.mxu0 %v3312
        %4663 = vmatprep.subr.bf16.mxu0 %v3317
        %4664 = vmatpush1.bf16.msra.mxu0 %v3316
        %4665 = vmatprep.subr.bf16.mxu0 %v3321
        %4666 = vmatpush1.bf16.msra.mxu0 %v3320
        %4667 = vmatprep.subr.bf16.mxu0 %v3325
        %4668 = vmatpush1.bf16.msra.mxu0 %v3324
        %4669 = vmatprep.subr.bf16.mxu0 %v3329
        %4670 = vmatpush1.bf16.msra.mxu0 %v3328
        %4671 = vmatprep.subr.bf16.mxu0 %v3333
        %4672 = vmatpush1.bf16.msra.mxu0 %v3332
        %4673 = vmatprep.mubr.bf16.mxu0 %v1237
        %4674 = vmatmul.mubr.bf16.gmra.mrb[0].mxu0 %v1236
        %v4675 = vpop.f32.mrb[0].mxu0
        %v4676 = vadd.f32 %v4623, %v4675
        %v4677 = vpop.f32.mrb[0].mxu0
        %v4678 = vadd.f32 %v4625, %v4677
        %v4679 = vpop.f32.mrb[0].mxu0
        %v4680 = vadd.f32 %v4627, %v4679
        %v4681 = vpop.f32.mrb[0].mxu0
        %v4682 = vadd.f32 %v4629, %v4681
        %4683 = vmatprep.mubr.bf16.mxu0 %v1253
        %4684 = vmatmul.mubr.bf16.gmra.mrb[0].mxu0 %v1252
        %v4685 = vpop.f32.mrb[0].mxu0
        %v4686 = vadd.f32 %v4633, %v4685
        %v4687 = vpop.f32.mrb[0].mxu0
        %v4688 = vadd.f32 %v4635, %v4687
        %v4689 = vpop.f32.mrb[0].mxu0
        %v4690 = vadd.f32 %v4637, %v4689
        %v4691 = vpop.f32.mrb[0].mxu0
        %v4692 = vadd.f32 %v4639, %v4691
        %4693 = vdwg.mxu0
        %v4694 = vld [vmem:[%s536] sm:$0xff]
        %v4695 = vld [vmem:[%s536 + $0x8] sm:$0xff]
        %v4696 = vld [vmem:[%s536 + $0x10] sm:$0xff]
        %v4697 = vld [vmem:[%s536 + $0x18] sm:$0xff]
        %v4698 = vld [vmem:[%s536 + $0x20] sm:$0xff]
        %v4699 = vld [vmem:[%s536 + $0x28] sm:$0xff]
        %v4700 = vld [vmem:[%s536 + $0x30] sm:$0xff]
        %v4701 = vld [vmem:[%s536 + $0x38] sm:$0xff]
        %v4702 = vld [vmem:[%s536 + $0x40] sm:$0xff]
        %v4703 = vld [vmem:[%s536 + $0x48] sm:$0xff]
        %v4704 = vld [vmem:[%s536 + $0x50] sm:$0xff]
        %v4705 = vld [vmem:[%s536 + $0x58] sm:$0xff]
        %v4706 = vld [vmem:[%s536 + $0x60] sm:$0xff]
        %v4707 = vld [vmem:[%s536 + $0x68] sm:$0xff]
        %v4708 = vld [vmem:[%s536 + $0x70] sm:$0xff]
        %v4709 = vld [vmem:[%s536 + $0x78] sm:$0xff]
        %v4710 = vld [vmem:[%s536 + $0x80] sm:$0xff]
        %v4711 = vld [vmem:[%s536 + $0x88] sm:$0xff]
        %v4712 = vld [vmem:[%s536 + $0x90] sm:$0xff]
        %v4713 = vld [vmem:[%s536 + $0x98] sm:$0xff]
        %v4714 = vld [vmem:[%s536 + $0xa0] sm:$0x1]
        %v4715 = vld [vmem:[%s536 + $0xa8] sm:$0x1]
        %v4716 = vld [vmem:[%s536 + $0xb0] sm:$0x1]
        %v4717 = vld [vmem:[%s536 + $0xb8] sm:$0x1]
        %v4718 = vld [vmem:[%s536 + $0xc0] sm:$0xff]
        %v4719 = vld [vmem:[%s536 + $0xc8] sm:$0xff]
        %v4720 = vld [vmem:[%s536 + $0xd0] sm:$0xff]
        %v4721 = vld [vmem:[%s536 + $0xd8] sm:$0xff]
        %v4722 = vld [vmem:[%s536 + $0xe0] sm:$0xff]
        %v4723 = vld [vmem:[%s536 + $0xe8] sm:$0xff]
        %v4724 = vld [vmem:[%s536 + $0xf0] sm:$0xff]
        %v4725 = vld [vmem:[%s536 + $0xf8] sm:$0xff]
        %v4726 = vld [vmem:[%s536 + $0x100] sm:$0xff]
        %v4727 = vld [vmem:[%s536 + $0x108] sm:$0xff]
        %v4728 = vld [vmem:[%s536 + $0x110] sm:$0xff]
        %v4729 = vld [vmem:[%s536 + $0x118] sm:$0xff]
        %v4730 = vld [vmem:[%s536 + $0x120] sm:$0xff]
        %v4731 = vld [vmem:[%s536 + $0x128] sm:$0xff]
        %v4732 = vld [vmem:[%s536 + $0x130] sm:$0xff]
        %v4733 = vld [vmem:[%s536 + $0x138] sm:$0xff]
        %v4734 = vld [vmem:[%s536 + $0x140] sm:$0xff]
        %v4735 = vld [vmem:[%s536 + $0x148] sm:$0xff]
        %v4736 = vld [vmem:[%s536 + $0x150] sm:$0xff]
        %v4737 = vld [vmem:[%s536 + $0x158] sm:$0xff]
        %v4738 = vld [vmem:[%s536 + $0x160] sm:$0x1]
        %v4739 = vld [vmem:[%s536 + $0x168] sm:$0x1]
        %v4740 = vld [vmem:[%s536 + $0x170] sm:$0x1]
        %v4741 = vld [vmem:[%s536 + $0x178] sm:$0x1]
        %v4742 = vld [vmem:[%s543] sm:$0xff]
        %v4743 = vld [vmem:[%s543 + $0x8] sm:$0xff]
        %v4744 = vld [vmem:[%s543 + $0x10] sm:$0xff]
        %v4745 = vld [vmem:[%s543 + $0x18] sm:$0xff]
        %v4746 = vld [vmem:[%s548] sm:$0x1]
        %v4747 = vld [vmem:[%s548 + $0x1] sm:$0x1]
        %v4748 = vld [vmem:[%s555] sm:$0xff]
        %v4749 = vld [vmem:[%s555 + $0x8] sm:$0xff]
        %v4750 = vld [vmem:[%s555 + $0x10] sm:$0xff]
        %v4751 = vld [vmem:[%s555 + $0x18] sm:$0xff]
        %v4752 = vld [vmem:[%s7] sm:$0xf]
        %v4753 = vld [vmem:[%s8] sm:$0xf]
        %v4754 = vld [vmem:[%s9] sm:$0xf]
        %s4755 = sld [smem:[#allocation2]]
        %v4757 = vlaneseq
        %v4758 = vshrl.u32 %v4757, 7
        %v4759 = vsub.s32 0, %v4758
        %v4760 = vrot.slane %v4752, %v4759
        %v4761 = vlaneseq
        %v4762 = vshrl.u32 %v4761, 7
        %v4763 = vsub.s32 1, %v4762
        %v4764 = vrot.slane %v4752, %v4763
        %v4765 = vlaneseq
        %v4766 = vshrl.u32 %v4765, 7
        %v4767 = vsub.s32 2, %v4766
        %v4768 = vrot.slane %v4752, %v4767
        %v4769 = vlaneseq
        %v4770 = vshrl.u32 %v4769, 7
        %v4771 = vsub.s32 3, %v4770
        %v4772 = vrot.slane %v4752, %v4771
        %v4777 = vmul.f32 %v4252, %v4760
        %v4778 = vmul.f32 %v4254, %v4764
        %v4779 = vmul.f32 %v4676, %v4768
        %v4780 = vmul.f32 %v4678, %v4772
        %v4781 = vmul.f32 %v4256, %v4760
        %v4782 = vmul.f32 %v4258, %v4764
        %v4783 = vmul.f32 %v4680, %v4768
        %v4784 = vmul.f32 %v4682, %v4772
        %v4785 = vmul.f32 %v4262, %v4760
        %v4786 = vmul.f32 %v4264, %v4764
        %v4787 = vmul.f32 %v4686, %v4768
        %v4788 = vmul.f32 %v4688, %v4772
        %v4789 = vmul.f32 %v4266, %v4760
        %v4790 = vmul.f32 %v4268, %v4764
        %v4791 = vmul.f32 %v4690, %v4768
        %v4792 = vmul.f32 %v4692, %v4772
        %v4793 = vadd.f32 %v4777, %v4778
        %v4794 = vadd.f32 %v4793, %v4779
        %v4795 = vadd.f32 %v4794, %v4780
        %4796 = vadd.xlane.f32.xlu0 %v4795
        %v4797 = vpop.xlane.xlu0 %4796
        %v4798 = vadd.f32 %v4781, %v4782
        %v4799 = vadd.f32 %v4798, %v4783
        %v4800 = vadd.f32 %v4799, %v4784
        %4801 = vadd.xlane.f32.xlu0 %v4800
        %v4802 = vpop.xlane.xlu0 %4801
        %v4803 = vadd.f32 %v4785, %v4786
        %v4804 = vadd.f32 %v4803, %v4787
        %v4805 = vadd.f32 %v4804, %v4788
        %4806 = vadd.xlane.f32.xlu0 %v4805
        %v4807 = vpop.xlane.xlu0 %4806
        %v4808 = vadd.f32 %v4789, %v4790
        %v4809 = vadd.f32 %v4808, %v4791
        %v4810 = vadd.f32 %v4809, %v4792
        %4811 = vadd.xlane.f32.xlu0 %v4810
        %v4812 = vpop.xlane.xlu0 %4811
        %v4814 = vlaneseq
        %v4815 = vshrl.u32 %v4814, 7
        %v4816 = vsub.s32 0, %v4815
        %v4817 = vrot.slane %v4753, %v4816
        %v4818 = vlaneseq
        %v4819 = vshrl.u32 %v4818, 7
        %v4820 = vsub.s32 1, %v4819
        %v4821 = vrot.slane %v4753, %v4820
        %v4822 = vlaneseq
        %v4823 = vshrl.u32 %v4822, 7
        %v4824 = vsub.s32 2, %v4823
        %v4825 = vrot.slane %v4753, %v4824
        %v4826 = vlaneseq
        %v4827 = vshrl.u32 %v4826, 7
        %v4828 = vsub.s32 3, %v4827
        %v4829 = vrot.slane %v4753, %v4828
        %v4834 = vmul.f32 %v4694, %v4817
        %v4835 = vmul.f32 %v4695, %v4821
        %v4836 = vmul.f32 %v4696, %v4825
        %v4837 = vmul.f32 %v4697, %v4829
        %v4838 = vmul.f32 %v4698, %v4817
        %v4839 = vmul.f32 %v4699, %v4821
        %v4840 = vmul.f32 %v4700, %v4825
        %v4841 = vmul.f32 %v4701, %v4829
        %v4842 = vmul.f32 %v4702, %v4817
        %v4843 = vmul.f32 %v4703, %v4821
        %v4844 = vmul.f32 %v4704, %v4825
        %v4845 = vmul.f32 %v4705, %v4829
        %v4846 = vmul.f32 %v4706, %v4817
        %v4847 = vmul.f32 %v4707, %v4821
        %v4848 = vmul.f32 %v4708, %v4825
        %v4849 = vmul.f32 %v4709, %v4829
        %v4850 = vmul.f32 %v4710, %v4817
        %v4851 = vmul.f32 %v4711, %v4821
        %v4852 = vmul.f32 %v4712, %v4825
        %v4853 = vmul.f32 %v4713, %v4829
        %v4854 = vmul.f32 %v4714, %v4817
        %v4855 = vmul.f32 %v4715, %v4821
        %v4856 = vmul.f32 %v4716, %v4825
        %v4857 = vmul.f32 %v4717, %v4829
        %v4858 = vmul.f32 %v4718, %v4817
        %v4859 = vmul.f32 %v4719, %v4821
        %v4860 = vmul.f32 %v4720, %v4825
        %v4861 = vmul.f32 %v4721, %v4829
        %v4862 = vmul.f32 %v4722, %v4817
        %v4863 = vmul.f32 %v4723, %v4821
        %v4864 = vmul.f32 %v4724, %v4825
        %v4865 = vmul.f32 %v4725, %v4829
        %v4866 = vmul.f32 %v4726, %v4817
        %v4867 = vmul.f32 %v4727, %v4821
        %v4868 = vmul.f32 %v4728, %v4825
        %v4869 = vmul.f32 %v4729, %v4829
        %v4870 = vmul.f32 %v4730, %v4817
        %v4871 = vmul.f32 %v4731, %v4821
        %v4872 = vmul.f32 %v4732, %v4825
        %v4873 = vmul.f32 %v4733, %v4829
        %v4874 = vmul.f32 %v4734, %v4817
        %v4875 = vmul.f32 %v4735, %v4821
        %v4876 = vmul.f32 %v4736, %v4825
        %v4877 = vmul.f32 %v4737, %v4829
        %v4878 = vmul.f32 %v4738, %v4817
        %v4879 = vmul.f32 %v4739, %v4821
        %v4880 = vmul.f32 %v4740, %v4825
        %v4881 = vmul.f32 %v4741, %v4829
        %v4882 = vadd.f32 %v4834, %v4835
        %v4883 = vadd.f32 %v4882, %v4836
        %v4884 = vadd.f32 %v4883, %v4837
        %4885 = vadd.xlane.f32.xlu0 %v4884
        %v4886 = vpop.xlane.xlu0 %4885
        %v4887 = vadd.f32 %v4838, %v4839
        %v4888 = vadd.f32 %v4887, %v4840
        %v4889 = vadd.f32 %v4888, %v4841
        %4890 = vadd.xlane.f32.xlu0 %v4889
        %v4891 = vpop.xlane.xlu0 %4890
        %v4892 = vadd.f32 %v4842, %v4843
        %v4893 = vadd.f32 %v4892, %v4844
        %v4894 = vadd.f32 %v4893, %v4845
        %4895 = vadd.xlane.f32.xlu0 %v4894
        %v4896 = vpop.xlane.xlu0 %4895
        %v4897 = vadd.f32 %v4846, %v4847
        %v4898 = vadd.f32 %v4897, %v4848
        %v4899 = vadd.f32 %v4898, %v4849
        %4900 = vadd.xlane.f32.xlu0 %v4899
        %v4901 = vpop.xlane.xlu0 %4900
        %v4902 = vadd.f32 %v4850, %v4851
        %v4903 = vadd.f32 %v4902, %v4852
        %v4904 = vadd.f32 %v4903, %v4853
        %4905 = vadd.xlane.f32.xlu0 %v4904
        %v4906 = vpop.xlane.xlu0 %4905
        %vm4907 = vcmask 1040384
        %v4908 = vsel %vm4907, %v4854, 0.0
        %v4909 = vsel %vm4907, %v4855, 0.0
        %v4910 = vadd.f32 %v4908, %v4909
        %v4911 = vsel %vm4907, %v4856, 0.0
        %v4912 = vadd.f32 %v4910, %v4911
        %v4913 = vsel %vm4907, %v4857, 0.0
        %v4914 = vadd.f32 %v4912, %v4913
        %4915 = vadd.xlane.f32.xlu0 %v4914
        %v4916 = vpop.xlane.xlu0 %4915
        %v4917 = vadd.f32 %v4858, %v4859
        %v4918 = vadd.f32 %v4917, %v4860
        %v4919 = vadd.f32 %v4918, %v4861
        %4920 = vadd.xlane.f32.xlu0 %v4919
        %v4921 = vpop.xlane.xlu0 %4920
        %v4922 = vadd.f32 %v4862, %v4863
        %v4923 = vadd.f32 %v4922, %v4864
        %v4924 = vadd.f32 %v4923, %v4865
        %4925 = vadd.xlane.f32.xlu0 %v4924
        %v4926 = vpop.xlane.xlu0 %4925
        %v4927 = vadd.f32 %v4866, %v4867
        %v4928 = vadd.f32 %v4927, %v4868
        %v4929 = vadd.f32 %v4928, %v4869
        %4930 = vadd.xlane.f32.xlu0 %v4929
        %v4931 = vpop.xlane.xlu0 %4930
        %v4932 = vadd.f32 %v4870, %v4871
        %v4933 = vadd.f32 %v4932, %v4872
        %v4934 = vadd.f32 %v4933, %v4873
        %4935 = vadd.xlane.f32.xlu0 %v4934
        %v4936 = vpop.xlane.xlu0 %4935
        %v4937 = vadd.f32 %v4874, %v4875
        %v4938 = vadd.f32 %v4937, %v4876
        %v4939 = vadd.f32 %v4938, %v4877
        %4940 = vadd.xlane.f32.xlu0 %v4939
        %v4941 = vpop.xlane.xlu0 %4940
        %v4942 = vsel %vm4907, %v4878, 0.0
        %v4943 = vsel %vm4907, %v4879, 0.0
        %v4944 = vadd.f32 %v4942, %v4943
        %v4945 = vsel %vm4907, %v4880, 0.0
        %v4946 = vadd.f32 %v4944, %v4945
        %v4947 = vsel %vm4907, %v4881, 0.0
        %v4948 = vadd.f32 %v4946, %v4947
        %4949 = vadd.xlane.f32.xlu0 %v4948
        %v4950 = vpop.xlane.xlu0 %4949
        %v4952 = vlaneseq
        %v4953 = vshrl.u32 %v4952, 7
        %v4954 = vsub.s32 0, %v4953
        %v4955 = vrot.slane %v4754, %v4954
        %v4956 = vlaneseq
        %v4957 = vshrl.u32 %v4956, 7
        %v4958 = vsub.s32 1, %v4957
        %v4959 = vrot.slane %v4754, %v4958
        %v4960 = vlaneseq
        %v4961 = vshrl.u32 %v4960, 7
        %v4962 = vsub.s32 2, %v4961
        %v4963 = vrot.slane %v4754, %v4962
        %v4964 = vlaneseq
        %v4965 = vshrl.u32 %v4964, 7
        %v4966 = vsub.s32 3, %v4965
        %v4967 = vrot.slane %v4754, %v4966
        %v4972 = vmul.f32 %v4252, %v4955
        %v4973 = vmul.f32 %v4254, %v4959
        %v4974 = vmul.f32 %v4676, %v4963
        %v4975 = vmul.f32 %v4678, %v4967
        %v4976 = vmul.f32 %v4256, %v4955
        %v4977 = vmul.f32 %v4258, %v4959
        %v4978 = vmul.f32 %v4680, %v4963
        %v4979 = vmul.f32 %v4682, %v4967
        %v4980 = vmul.f32 %v4262, %v4955
        %v4981 = vmul.f32 %v4264, %v4959
        %v4982 = vmul.f32 %v4686, %v4963
        %v4983 = vmul.f32 %v4688, %v4967
        %v4984 = vmul.f32 %v4266, %v4955
        %v4985 = vmul.f32 %v4268, %v4959
        %v4986 = vmul.f32 %v4690, %v4963
        %v4987 = vmul.f32 %v4692, %v4967
        %4988 = vmatprep.subr.mxu0 %v4695
        %4989 = vmatpush1.xpose.msra.mxu0 %v4694
        %4990 = vmatprep.subr.mxu0 %v4699
        %4991 = vmatpush1.xpose.msra.mxu0 %v4698
        %4992 = vmatprep.subr.mxu0 %v4703
        %4993 = vmatpush1.xpose.msra.mxu0 %v4702
        %4994 = vmatprep.subr.mxu0 %v4707
        %4995 = vmatpush1.xpose.msra.mxu0 %v4706
        %4996 = vmatprep.subr.mxu0 %v4711
        %4997 = vmatpush1.xpose.msra.mxu0 %v4710
        %4998 = vmatprep.subr.mxu0 %v4715
        %4999 = vmatpush1.xpose.msra.mxu0 %v4714
        %5000 = vmatprep.subr.mxu0 0.0
        %5001 = vmatpush1.xpose.msra.mxu0 0.0
        %5002 = vmatprep.subr.mxu0 0.0
        %5003 = vmatpush1.xpose.msra.mxu0 0.0
        %5004 = vmatprep.subr.mxu0 0.0
        %5005 = vmatpush1.xpose.msra.mxu0 0.0
        %5006 = vmatprep.subr.mxu0 0.0
        %5007 = vmatpush1.xpose.msra.mxu0 0.0
        %5008 = vmatprep.subr.mxu0 0.0
        %5009 = vmatpush1.xpose.msra.mxu0 0.0
        %5010 = vmatprep.subr.mxu0 0.0
        %5011 = vmatpush1.xpose.msra.mxu0 0.0
        %5012 = vmatprep.subr.mxu0 0.0
        %5013 = vmatpush1.xpose.msra.mxu0 0.0
        %5014 = vmatprep.subr.mxu0 0.0
        %5015 = vmatpush1.xpose.msra.mxu0 0.0
        %5016 = vmatprep.subr.mxu0 0.0
        %5017 = vmatpush1.xpose.msra.mxu0 0.0
        %5018 = vmatprep.subr.mxu0 0.0
        %5019 = vmatpush1.xpose.msra.mxu0 0.0
        %5020 = vmatprep.subr.mxu0 0.0
        %5021 = vmatpush1.xpose.msra.mxu0 0.0
        %5022 = vmatprep.subr.mxu0 0.0
        %5023 = vmatpush1.xpose.msra.mxu0 0.0
        %5024 = vmatprep.subr.mxu0 0.0
        %5025 = vmatpush1.xpose.msra.mxu0 0.0
        %5026 = vmatprep.subr.mxu0 0.0
        %5027 = vmatpush1.xpose.msra.mxu0 0.0
        %5028 = vmatprep.subr.mxu0 0.0
        %5029 = vmatpush1.xpose.msra.mxu0 0.0
        %5030 = vmatprep.subr.mxu0 0.0
        %5031 = vmatpush1.xpose.msra.mxu0 0.0
        %5032 = vmatprep.subr.mxu0 0.0
        %5033 = vmatpush1.xpose.msra.mxu0 0.0
        %5034 = vmatprep.subr.mxu0 0.0
        %5035 = vmatpush1.xpose.msra.mxu0 0.0
        %5036 = vmatprep.subr.mxu0 0.0
        %5037 = vmatpush1.xpose.msra.mxu0 0.0
        %5038 = vmatprep.subr.mxu0 0.0
        %5039 = vmatpush1.xpose.msra.mxu0 0.0
        %5040 = vmatprep.subr.mxu0 0.0
        %5041 = vmatpush1.xpose.msra.mxu0 0.0
        %5042 = vmatprep.subr.mxu0 0.0
        %5043 = vmatpush1.xpose.msra.mxu0 0.0
        %5044 = vmatprep.subr.mxu0 0.0
        %5045 = vmatpush1.xpose.msra.mxu0 0.0
        %5046 = vmatprep.subr.mxu0 0.0
        %5047 = vmatpush1.xpose.msra.mxu0 0.0
        %5048 = vmatprep.subr.mxu0 0.0
        %5049 = vmatpush1.xpose.msra.mxu0 0.0
        %5050 = vmatprep.subr.mxu0 0.0
        %5051 = vmatpush1.xpose.msra.mxu0 0.0
        %5052 = vmatprep.mubr.f32.mxu0 %v4973
        %5053 = vmatmul.mubr.f32.gmra.mrb[0].mxu0 %v4972
        %v5054 = vpop.f32.mrb[0].mxu0
        %v5055 = vadd.f32 0.0, %v5054
        %v5056 = vpop.f32.mrb[0].mxu0
        %5057 = vmatprep.mubr.f32.mxu0 %v4977
        %5058 = vmatmul.mubr.f32.gmra.mrb[0].mxu0 %v4976
        %v5059 = vpop.f32.mrb[0].mxu0
        %v5060 = vadd.f32 0.0, %v5059
        %v5061 = vpop.f32.mrb[0].mxu0
        %5062 = vdwg.mxu0
        %5063 = vmatprep.subr.mxu0 %v4697
        %5064 = vmatpush1.xpose.msra.mxu0 %v4696
        %5065 = vmatprep.subr.mxu0 %v4701
        %5066 = vmatpush1.xpose.msra.mxu0 %v4700
        %5067 = vmatprep.subr.mxu0 %v4705
        %5068 = vmatpush1.xpose.msra.mxu0 %v4704
        %5069 = vmatprep.subr.mxu0 %v4709
        %5070 = vmatpush1.xpose.msra.mxu0 %v4708
        %5071 = vmatprep.subr.mxu0 %v4713
        %5072 = vmatpush1.xpose.msra.mxu0 %v4712
        %5073 = vmatprep.subr.mxu0 %v4717
        %5074 = vmatpush1.xpose.msra.mxu0 %v4716
        %5075 = vmatprep.subr.mxu0 0.0
        %5076 = vmatpush1.xpose.msra.mxu0 0.0
        %5077 = vmatprep.subr.mxu0 0.0
        %5078 = vmatpush1.xpose.msra.mxu0 0.0
        %5079 = vmatprep.subr.mxu0 0.0
        %5080 = vmatpush1.xpose.msra.mxu0 0.0
        %5081 = vmatprep.subr.mxu0 0.0
        %5082 = vmatpush1.xpose.msra.mxu0 0.0
        %5083 = vmatprep.subr.mxu0 0.0
        %5084 = vmatpush1.xpose.msra.mxu0 0.0
        %5085 = vmatprep.subr.mxu0 0.0
        %5086 = vmatpush1.xpose.msra.mxu0 0.0
        %5087 = vmatprep.subr.mxu0 0.0
        %5088 = vmatpush1.xpose.msra.mxu0 0.0
        %5089 = vmatprep.subr.mxu0 0.0
        %5090 = vmatpush1.xpose.msra.mxu0 0.0
        %5091 = vmatprep.subr.mxu0 0.0
        %5092 = vmatpush1.xpose.msra.mxu0 0.0
        %5093 = vmatprep.subr.mxu0 0.0
        %5094 = vmatpush1.xpose.msra.mxu0 0.0
        %5095 = vmatprep.subr.mxu0 0.0
        %5096 = vmatpush1.xpose.msra.mxu0 0.0
        %5097 = vmatprep.subr.mxu0 0.0
        %5098 = vmatpush1.xpose.msra.mxu0 0.0
        %5099 = vmatprep.subr.mxu0 0.0
        %5100 = vmatpush1.xpose.msra.mxu0 0.0
        %5101 = vmatprep.subr.mxu0 0.0
        %5102 = vmatpush1.xpose.msra.mxu0 0.0
        %5103 = vmatprep.subr.mxu0 0.0
        %5104 = vmatpush1.xpose.msra.mxu0 0.0
        %5105 = vmatprep.subr.mxu0 0.0
        %5106 = vmatpush1.xpose.msra.mxu0 0.0
        %5107 = vmatprep.subr.mxu0 0.0
        %5108 = vmatpush1.xpose.msra.mxu0 0.0
        %5109 = vmatprep.subr.mxu0 0.0
        %5110 = vmatpush1.xpose.msra.mxu0 0.0
        %5111 = vmatprep.subr.mxu0 0.0
        %5112 = vmatpush1.xpose.msra.mxu0 0.0
        %5113 = vmatprep.subr.mxu0 0.0
        %5114 = vmatpush1.xpose.msra.mxu0 0.0
        %5115 = vmatprep.subr.mxu0 0.0
        %5116 = vmatpush1.xpose.msra.mxu0 0.0
        %5117 = vmatprep.subr.mxu0 0.0
        %5118 = vmatpush1.xpose.msra.mxu0 0.0
        %5119 = vmatprep.subr.mxu0 0.0
        %5120 = vmatpush1.xpose.msra.mxu0 0.0
        %5121 = vmatprep.subr.mxu0 0.0
        %5122 = vmatpush1.xpose.msra.mxu0 0.0
        %5123 = vmatprep.subr.mxu0 0.0
        %5124 = vmatpush1.xpose.msra.mxu0 0.0
        %5125 = vmatprep.subr.mxu0 0.0
        %5126 = vmatpush1.xpose.msra.mxu0 0.0
        %5127 = vmatprep.mubr.f32.mxu0 %v4975
        %5128 = vmatmul.mubr.f32.gmra.mrb[0].mxu0 %v4974
        %v5129 = vpop.f32.mrb[0].mxu0
        %v5130 = vadd.f32 %v5055, %v5129
        %v5131 = vpop.f32.mrb[0].mxu0
        %5132 = vmatprep.mubr.f32.mxu0 %v4979
        %5133 = vmatmul.mubr.f32.gmra.mrb[0].mxu0 %v4978
        %v5134 = vpop.f32.mrb[0].mxu0
        %v5135 = vadd.f32 %v5060, %v5134
        %v5136 = vpop.f32.mrb[0].mxu0
        %5137 = vdwg.mxu0
        %5138 = vmatprep.subr.mxu0 %v4719
        %5139 = vmatpush1.xpose.msra.mxu0 %v4718
        %5140 = vmatprep.subr.mxu0 %v4723
        %5141 = vmatpush1.xpose.msra.mxu0 %v4722
        %5142 = vmatprep.subr.mxu0 %v4727
        %5143 = vmatpush1.xpose.msra.mxu0 %v4726
        %5144 = vmatprep.subr.mxu0 %v4731
        %5145 = vmatpush1.xpose.msra.mxu0 %v4730
        %5146 = vmatprep.subr.mxu0 %v4735
        %5147 = vmatpush1.xpose.msra.mxu0 %v4734
        %5148 = vmatprep.subr.mxu0 %v4739
        %5149 = vmatpush1.xpose.msra.mxu0 %v4738
        %5150 = vmatprep.subr.mxu0 0.0
        %5151 = vmatpush1.xpose.msra.mxu0 0.0
        %5152 = vmatprep.subr.mxu0 0.0
        %5153 = vmatpush1.xpose.msra.mxu0 0.0
        %5154 = vmatprep.subr.mxu0 0.0
        %5155 = vmatpush1.xpose.msra.mxu0 0.0
        %5156 = vmatprep.subr.mxu0 0.0
        %5157 = vmatpush1.xpose.msra.mxu0 0.0
        %5158 = vmatprep.subr.mxu0 0.0
        %5159 = vmatpush1.xpose.msra.mxu0 0.0
        %5160 = vmatprep.subr.mxu0 0.0
        %5161 = vmatpush1.xpose.msra.mxu0 0.0
        %5162 = vmatprep.subr.mxu0 0.0
        %5163 = vmatpush1.xpose.msra.mxu0 0.0
        %5164 = vmatprep.subr.mxu0 0.0
        %5165 = vmatpush1.xpose.msra.mxu0 0.0
        %5166 = vmatprep.subr.mxu0 0.0
        %5167 = vmatpush1.xpose.msra.mxu0 0.0
        %5168 = vmatprep.subr.mxu0 0.0
        %5169 = vmatpush1.xpose.msra.mxu0 0.0
        %5170 = vmatprep.subr.mxu0 0.0
        %5171 = vmatpush1.xpose.msra.mxu0 0.0
        %5172 = vmatprep.subr.mxu0 0.0
        %5173 = vmatpush1.xpose.msra.mxu0 0.0
        %5174 = vmatprep.subr.mxu0 0.0
        %5175 = vmatpush1.xpose.msra.mxu0 0.0
        %5176 = vmatprep.subr.mxu0 0.0
        %5177 = vmatpush1.xpose.msra.mxu0 0.0
        %5178 = vmatprep.subr.mxu0 0.0
        %5179 = vmatpush1.xpose.msra.mxu0 0.0
        %5180 = vmatprep.subr.mxu0 0.0
        %5181 = vmatpush1.xpose.msra.mxu0 0.0
        %5182 = vmatprep.subr.mxu0 0.0
        %5183 = vmatpush1.xpose.msra.mxu0 0.0
        %5184 = vmatprep.subr.mxu0 0.0
        %5185 = vmatpush1.xpose.msra.mxu0 0.0
        %5186 = vmatprep.subr.mxu0 0.0
        %5187 = vmatpush1.xpose.msra.mxu0 0.0
        %5188 = vmatprep.subr.mxu0 0.0
        %5189 = vmatpush1.xpose.msra.mxu0 0.0
        %5190 = vmatprep.subr.mxu0 0.0
        %5191 = vmatpush1.xpose.msra.mxu0 0.0
        %5192 = vmatprep.subr.mxu0 0.0
        %5193 = vmatpush1.xpose.msra.mxu0 0.0
        %5194 = vmatprep.subr.mxu0 0.0
        %5195 = vmatpush1.xpose.msra.mxu0 0.0
        %5196 = vmatprep.subr.mxu0 0.0
        %5197 = vmatpush1.xpose.msra.mxu0 0.0
        %5198 = vmatprep.subr.mxu0 0.0
        %5199 = vmatpush1.xpose.msra.mxu0 0.0
        %5200 = vmatprep.subr.mxu0 0.0
        %5201 = vmatpush1.xpose.msra.mxu0 0.0
        %5202 = vmatprep.mubr.f32.mxu0 %v4981
        %5203 = vmatmul.mubr.f32.gmra.mrb[0].mxu0 %v4980
        %v5204 = vpop.f32.mrb[0].mxu0
        %v5205 = vadd.f32 0.0, %v5204
        %v5206 = vpop.f32.mrb[0].mxu0
        %5207 = vmatprep.mubr.f32.mxu0 %v4985
        %5208 = vmatmul.mubr.f32.gmra.mrb[0].mxu0 %v4984
        %v5209 = vpop.f32.mrb[0].mxu0
        %v5210 = vadd.f32 0.0, %v5209
        %v5211 = vpop.f32.mrb[0].mxu0
        %5212 = vdwg.mxu0
        %5213 = vmatprep.subr.mxu0 %v4721
        %5214 = vmatpush1.xpose.msra.mxu0 %v4720
        %5215 = vmatprep.subr.mxu0 %v4725
        %5216 = vmatpush1.xpose.msra.mxu0 %v4724
        %5217 = vmatprep.subr.mxu0 %v4729
        %5218 = vmatpush1.xpose.msra.mxu0 %v4728
        %5219 = vmatprep.subr.mxu0 %v4733
        %5220 = vmatpush1.xpose.msra.mxu0 %v4732
        %5221 = vmatprep.subr.mxu0 %v4737
        %5222 = vmatpush1.xpose.msra.mxu0 %v4736
        %5223 = vmatprep.subr.mxu0 %v4741
        %5224 = vmatpush1.xpose.msra.mxu0 %v4740
        %5225 = vmatprep.subr.mxu0 0.0
        %5226 = vmatpush1.xpose.msra.mxu0 0.0
        %5227 = vmatprep.subr.mxu0 0.0
        %5228 = vmatpush1.xpose.msra.mxu0 0.0
        %5229 = vmatprep.subr.mxu0 0.0
        %5230 = vmatpush1.xpose.msra.mxu0 0.0
        %5231 = vmatprep.subr.mxu0 0.0
        %5232 = vmatpush1.xpose.msra.mxu0 0.0
        %5233 = vmatprep.subr.mxu0 0.0
        %5234 = vmatpush1.xpose.msra.mxu0 0.0
        %5235 = vmatprep.subr.mxu0 0.0
        %5236 = vmatpush1.xpose.msra.mxu0 0.0
        %5237 = vmatprep.subr.mxu0 0.0
        %5238 = vmatpush1.xpose.msra.mxu0 0.0
        %5239 = vmatprep.subr.mxu0 0.0
        %5240 = vmatpush1.xpose.msra.mxu0 0.0
        %5241 = vmatprep.subr.mxu0 0.0
        %5242 = vmatpush1.xpose.msra.mxu0 0.0
        %5243 = vmatprep.subr.mxu0 0.0
        %5244 = vmatpush1.xpose.msra.mxu0 0.0
        %5245 = vmatprep.subr.mxu0 0.0
        %5246 = vmatpush1.xpose.msra.mxu0 0.0
        %5247 = vmatprep.subr.mxu0 0.0
        %5248 = vmatpush1.xpose.msra.mxu0 0.0
        %5249 = vmatprep.subr.mxu0 0.0
        %5250 = vmatpush1.xpose.msra.mxu0 0.0
        %5251 = vmatprep.subr.mxu0 0.0
        %5252 = vmatpush1.xpose.msra.mxu0 0.0
        %5253 = vmatprep.subr.mxu0 0.0
        %5254 = vmatpush1.xpose.msra.mxu0 0.0
        %5255 = vmatprep.subr.mxu0 0.0
        %5256 = vmatpush1.xpose.msra.mxu0 0.0
        %5257 = vmatprep.subr.mxu0 0.0
        %5258 = vmatpush1.xpose.msra.mxu0 0.0
        %5259 = vmatprep.subr.mxu0 0.0
        %5260 = vmatpush1.xpose.msra.mxu0 0.0
        %5261 = vmatprep.subr.mxu0 0.0
        %5262 = vmatpush1.xpose.msra.mxu0 0.0
        %5263 = vmatprep.subr.mxu0 0.0
        %5264 = vmatpush1.xpose.msra.mxu0 0.0
        %5265 = vmatprep.subr.mxu0 0.0
        %5266 = vmatpush1.xpose.msra.mxu0 0.0
        %5267 = vmatprep.subr.mxu0 0.0
        %5268 = vmatpush1.xpose.msra.mxu0 0.0
        %5269 = vmatprep.subr.mxu0 0.0
        %5270 = vmatpush1.xpose.msra.mxu0 0.0
        %5271 = vmatprep.subr.mxu0 0.0
        %5272 = vmatpush1.xpose.msra.mxu0 0.0
        %5273 = vmatprep.subr.mxu0 0.0
        %5274 = vmatpush1.xpose.msra.mxu0 0.0
        %5275 = vmatprep.subr.mxu0 0.0
        %5276 = vmatpush1.xpose.msra.mxu0 0.0
        %5277 = vmatprep.mubr.f32.mxu0 %v4983
        %5278 = vmatmul.mubr.f32.gmra.mrb[0].mxu0 %v4982
        %v5279 = vpop.f32.mrb[0].mxu0
        %v5280 = vadd.f32 %v5205, %v5279
        %v5281 = vpop.f32.mrb[0].mxu0
        %5282 = vmatprep.mubr.f32.mxu0 %v4987
        %5283 = vmatmul.mubr.f32.gmra.mrb[0].mxu0 %v4986
        %v5284 = vpop.f32.mrb[0].mxu0
        %v5285 = vadd.f32 %v5210, %v5284
        %v5286 = vpop.f32.mrb[0].mxu0
        %5287 = vdwg.mxu0
        %v5300 = vlaneseq
        %v5301 = vand.u32 %v5300, 127
        %v5302 = vlaneseq
        %v5303 = vshrl.u32 %v5302, 7
        %v5304 = vsub.s32 %v5301, %v5303
        %v5305 = vrot.slane %v4886, %v5304
        %v5306 = vadd.s32 %v5301, 4294967288
        %v5307 = vlaneseq
        %v5308 = vshrl.u32 %v5307, 7
        %v5309 = vsub.s32 %v5306, %v5308
        %v5310 = vrot.slane %v4891, %v5309
        %vm5311 = vcmask 130112
        %v5312 = vsel %vm5311, %v5310, %v5305
        %v5313 = vadd.s32 %v5301, 4294967280
        %v5314 = vlaneseq
        %v5315 = vshrl.u32 %v5314, 7
        %v5316 = vsub.s32 %v5313, %v5315
        %v5317 = vrot.slane %v4896, %v5316
        %vm5318 = vcmask 195712
        %v5319 = vsel %vm5318, %v5317, %v5312
        %v5320 = vadd.s32 %v5301, 4294967272
        %v5321 = vlaneseq
        %v5322 = vshrl.u32 %v5321, 7
        %v5323 = vsub.s32 %v5320, %v5322
        %v5324 = vrot.slane %v4901, %v5323
        %vm5325 = vcmask 261312
        %v5326 = vsel %vm5325, %v5324, %v5319
        %v5327 = vadd.s32 %v5301, 4294967264
        %v5328 = vlaneseq
        %v5329 = vshrl.u32 %v5328, 7
        %v5330 = vsub.s32 %v5327, %v5329
        %v5331 = vrot.slane %v4906, %v5330
        %vm5332 = vcmask 326912
        %v5333 = vsel %vm5332, %v5331, %v5326
        %v5334 = vadd.s32 %v5301, 4294967256
        %v5335 = vlaneseq
        %v5336 = vshrl.u32 %v5335, 7
        %v5337 = vsub.s32 %v5334, %v5336
        %v5338 = vrot.slane %v4916, %v5337
        %vm5339 = vcmask 392512
        %v5340 = vsel %vm5339, %v5338, %v5333
        %v5341 = vlaneseq
        %v5342 = vshrl.u32 %v5341, 7
        %v5343 = vsub.s32 %v5301, %v5342
        %v5344 = vrot.slane %v4921, %v5343
        %v5345 = vlaneseq
        %v5346 = vshrl.u32 %v5345, 7
        %v5347 = vsub.s32 %v5306, %v5346
        %v5348 = vrot.slane %v4926, %v5347
        %v5349 = vsel %vm5311, %v5348, %v5344
        %v5350 = vlaneseq
        %v5351 = vshrl.u32 %v5350, 7
        %v5352 = vsub.s32 %v5313, %v5351
        %v5353 = vrot.slane %v4931, %v5352
        %v5354 = vsel %vm5318, %v5353, %v5349
        %v5355 = vlaneseq
        %v5356 = vshrl.u32 %v5355, 7
        %v5357 = vsub.s32 %v5320, %v5356
        %v5358 = vrot.slane %v4936, %v5357
        %v5359 = vsel %vm5325, %v5358, %v5354
        %v5360 = vlaneseq
        %v5361 = vshrl.u32 %v5360, 7
        %v5362 = vsub.s32 %v5327, %v5361
        %v5363 = vrot.slane %v4941, %v5362
        %v5364 = vsel %vm5332, %v5363, %v5359
        %v5365 = vlaneseq
        %v5366 = vshrl.u32 %v5365, 7
        %v5367 = vsub.s32 %v5334, %v5366
        %v5368 = vrot.slane %v4950, %v5367
        %v5369 = vsel %vm5339, %v5368, %v5364
        %vm5370 = vcmask 1042434
        %v5371 = vsel %vm5370, %v5340, %v5340
        %vm5372 = vcmask 1043459
        %v5373 = vsel %vm5372, %v5340, %v5371
        %vm5374 = vcmask 1044484
        %v5375 = vsel %vm5374, %v5340, %v5373
        %vm5376 = vcmask 1045509
        %v5377 = vsel %vm5376, %v5340, %v5375
        %vm5378 = vcmask 1046534
        %v5379 = vsel %vm5378, %v5340, %v5377
        %vm5380 = vcmask 1047559
        %v5381 = vsel %vm5380, %v5340, %v5379
        %v5382 = vsel %vm5370, %v5369, %v5369
        %v5383 = vsel %vm5372, %v5369, %v5382
        %v5384 = vsel %vm5374, %v5369, %v5383
        %v5385 = vsel %vm5376, %v5369, %v5384
        %v5386 = vsel %vm5378, %v5369, %v5385
        %v5387 = vsel %vm5380, %v5369, %v5386
        %v5390 = vadd.f32 %v4797, %v5381
        %v5391 = vadd.f32 %v4802, %v5381
        %v5392 = vadd.f32 %v4807, %v5387
        %v5393 = vadd.f32 %v4812, %v5387
        %v5394 = vadd.f32 %v5390, %v5130
        %v5395 = vadd.f32 %v5391, %v5135
        %v5396 = vadd.f32 %v5392, %v5280
        %v5397 = vadd.f32 %v5393, %v5285
        %v5398 = vstv %s4755
        %v5399 = vadd.f32 %v5394, %v5398
        %v5400 = vadd.f32 %v5395, %v5398
        %v5401 = vadd.f32 %v5396, %v5398
        %v5402 = vadd.f32 %v5397, %v5398
        %v5405 = vlaneseq
        %v5406 = vshrl.u32 %v5405, 7
        %v5407 = vsub.s32 0, %v5406
        %v5408 = vrot.slane %v4746, %v5407
        %v5409 = vlaneseq
        %v5410 = vshrl.u32 %v5409, 7
        %v5411 = vsub.s32 0, %v5410
        %v5412 = vrot.slane %v4747, %v5411
        %v5415 = vmul.f32 %v5399, %v5408
        %v5416 = vmul.f32 %v5400, %v5408
        %v5417 = vmul.f32 %v5401, %v5412
        %v5418 = vmul.f32 %v5402, %v5412
        %v5419 = vsub.f32 1.0, %v4746
        %v5420 = vsub.f32 1.0, %v4747
        %v5421 = vmul.f32 %v5419, -1e+30
        %v5422 = vmul.f32 %v5420, -1e+30
        %v5425 = vlaneseq
        %v5426 = vshrl.u32 %v5425, 7
        %v5427 = vsub.s32 0, %v5426
        %v5428 = vrot.slane %v5421, %v5427
        %v5429 = vlaneseq
        %v5430 = vshrl.u32 %v5429, 7
        %v5431 = vsub.s32 0, %v5430
        %v5432 = vrot.slane %v5422, %v5431
        %v5435 = vadd.f32 %v5415, %v5428
        %v5436 = vadd.f32 %v5416, %v5428
        %v5437 = vadd.f32 %v5417, %v5432
        %v5438 = vadd.f32 %v5418, %v5432
        %vm5439 = vcmask 334848
        %v5440 = vsel %vm5439, %v5435, -inf
        %5441 = vmax.xlane.f32.xlu0 %v5440
        %v5442 = vpop.xlane.xlu0 %5441
        %v5443 = vsel %vm5439, %v5436, -inf
        %5444 = vmax.xlane.f32.xlu0 %v5443
        %v5445 = vpop.xlane.xlu0 %5444
        %v5446 = vsel %vm5439, %v5437, -inf
        %5447 = vmax.xlane.f32.xlu0 %v5446
        %v5448 = vpop.xlane.xlu0 %5447
        %v5449 = vsel %vm5439, %v5438, -inf
        %5450 = vmax.xlane.f32.xlu0 %v5449
        %v5451 = vpop.xlane.xlu0 %5450
        %v5452 = vsub.f32 %v5435, %v5442
        %v5453 = vsub.f32 %v5436, %v5445
        %v5454 = vsub.f32 %v5437, %v5448
        %v5455 = vsub.f32 %v5438, %v5451
        %v5456 = vmul.f32 %v5452, 1.442695
        %v5457 = vpow.pop %v5456
        %v5458 = vmul.f32 %v5453, 1.442695
        %v5459 = vpow.pop %v5458
        %v5460 = vmul.f32 %v5454, 1.442695
        %v5461 = vpow.pop %v5460
        %v5462 = vmul.f32 %v5455, 1.442695
        %v5463 = vpow.pop %v5462
        %v5464 = vsel %vm5439, %v5457, 0.0
        %5465 = vadd.xlane.f32.xlu0 %v5464
        %v5466 = vpop.xlane.xlu0 %5465
        %v5467 = vsel %vm5439, %v5459, 0.0
        %5468 = vadd.xlane.f32.xlu0 %v5467
        %v5469 = vpop.xlane.xlu0 %5468
        %v5470 = vsel %vm5439, %v5461, 0.0
        %5471 = vadd.xlane.f32.xlu0 %v5470
        %v5472 = vpop.xlane.xlu0 %5471
        %v5473 = vsel %vm5439, %v5463, 0.0
        %5474 = vadd.xlane.f32.xlu0 %v5473
        %v5475 = vpop.xlane.xlu0 %5474
        %v5476 = vrcp.pop %v5466
        %v5477 = vrcp.pop %v5469
        %v5478 = vrcp.pop %v5472
        %v5479 = vrcp.pop %v5475
        %v5480 = vmul.f32 %v5457, %v5476
        %v5481 = vmul.f32 %v5459, %v5477
        %v5482 = vmul.f32 %v5461, %v5478
        %v5483 = vmul.f32 %v5463, %v5479
        %5485 = vset.pattern.permute.xlu0 0
        %5486 = vperm.xlu0 %5485, %v4742
        %v5487 = vpop.permute.xlu0 %5486
        %5490 = vset.pattern.permute.xlu0 0
        %5491 = vperm.xlu0 %5490, %v4743
        %v5492 = vpop.permute.xlu0 %5491
        %5495 = vset.pattern.permute.xlu0 0
        %5496 = vperm.xlu0 %5495, %v4744
        %v5497 = vpop.permute.xlu0 %5496
        %5500 = vset.pattern.permute.xlu0 0
        %5501 = vperm.xlu0 %5500, %v4745
        %v5502 = vpop.permute.xlu0 %5501
        %v5504 = vmul.f32 %v5399, %v5487
        %v5505 = vmul.f32 %v5400, %v5492
        %v5506 = vmul.f32 %v5401, %v5497
        %v5507 = vmul.f32 %v5402, %v5502
        %v5508 = vsub.f32 1.0, %v4742
        %v5509 = vsub.f32 1.0, %v4743
        %v5510 = vsub.f32 1.0, %v4744
        %v5511 = vsub.f32 1.0, %v4745
        %v5512 = vmul.f32 %v5508, -1e+30
        %v5513 = vmul.f32 %v5509, -1e+30
        %v5514 = vmul.f32 %v5510, -1e+30
        %v5515 = vmul.f32 %v5511, -1e+30
        %5517 = vset.pattern.permute.xlu0 0
        %5518 = vperm.xlu0 %5517, %v5512
        %v5519 = vpop.permute.xlu0 %5518
        %5522 = vset.pattern.permute.xlu0 0
        %5523 = vperm.xlu0 %5522, %v5513
        %v5524 = vpop.permute.xlu0 %5523
        %5527 = vset.pattern.permute.xlu0 0
        %5528 = vperm.xlu0 %5527, %v5514
        %v5529 = vpop.permute.xlu0 %5528
        %5532 = vset.pattern.permute.xlu0 0
        %5533 = vperm.xlu0 %5532, %v5515
        %v5534 = vpop.permute.xlu0 %5533
        %v5536 = vadd.f32 %v5504, %v5519
        %v5537 = vadd.f32 %v5505, %v5524
        %v5538 = vadd.f32 %v5506, %v5529
        %v5539 = vadd.f32 %v5507, %v5534
        %v5540 = vsel %vm5439, %v5536, -inf
        %v5541 = vsel %vm5439, %v5537, -inf
        %v5542 = vmax.f32 %v5540, %v5541
        %v5543 = vrot.slane %v5542, 4
        %v5544 = vmax.f32 %v5542, %v5543
        %v5545 = vrot.slane %v5544, 2
        %v5546 = vmax.f32 %v5544, %v5545
        %v5547 = vrot.slane %v5546, 1
        %v5548 = vmax.f32 %v5546, %v5547
        %v5549 = vsel %vm5439, %v5538, -inf
        %v5550 = vsel %vm5439, %v5539, -inf
        %v5551 = vmax.f32 %v5549, %v5550
        %v5552 = vrot.slane %v5551, 4
        %v5553 = vmax.f32 %v5551, %v5552
        %v5554 = vrot.slane %v5553, 2
        %v5555 = vmax.f32 %v5553, %v5554
        %v5556 = vrot.slane %v5555, 1
        %v5557 = vmax.f32 %v5555, %v5556
        %v5558 = vsub.f32 %v5536, %v5548
        %v5559 = vsub.f32 %v5537, %v5548
        %v5560 = vsub.f32 %v5538, %v5557
        %v5561 = vsub.f32 %v5539, %v5557
        %v5562 = vmul.f32 %v5558, 1.442695
        %v5563 = vpow.pop %v5562
        %v5564 = vmul.f32 %v5559, 1.442695
        %v5565 = vpow.pop %v5564
        %v5566 = vmul.f32 %v5560, 1.442695
        %v5567 = vpow.pop %v5566
        %v5568 = vmul.f32 %v5561, 1.442695
        %v5569 = vpow.pop %v5568
        %v5570 = vsel %vm5439, %v5563, 0.0
        %v5571 = vsel %vm5439, %v5565, 0.0
        %v5572 = vadd.f32 %v5570, %v5571
        %v5573 = vrot.slane %v5572, 4
        %v5574 = vadd.f32 %v5572, %v5573
        %v5575 = vrot.slane %v5574, 2
        %v5576 = vadd.f32 %v5574, %v5575
        %v5577 = vrot.slane %v5576, 1
        %v5578 = vadd.f32 %v5576, %v5577
        %v5579 = vsel %vm5439, %v5567, 0.0
        %v5580 = vsel %vm5439, %v5569, 0.0
        %v5581 = vadd.f32 %v5579, %v5580
        %v5582 = vrot.slane %v5581, 4
        %v5583 = vadd.f32 %v5581, %v5582
        %v5584 = vrot.slane %v5583, 2
        %v5585 = vadd.f32 %v5583, %v5584
        %v5586 = vrot.slane %v5585, 1
        %v5587 = vadd.f32 %v5585, %v5586
        %v5588 = vrcp.pop %v5578
        %v5589 = vrcp.pop %v5587
        %v5590 = vmul.f32 %v5563, %v5588
        %v5591 = vmul.f32 %v5565, %v5588
        %v5592 = vmul.f32 %v5567, %v5589
        %v5593 = vmul.f32 %v5569, %v5589
        %v5595 = vsel %vm5439, %v5480, 0
        %v5598 = vsel %vm5439, %v5481, 0
        %v5601 = vsel %vm4907, %v4714, 0
        %v5604 = vsel %vm4907, %v4715, 0
        %v5607 = vsel %vm4907, %v4716, 0
        %v5610 = vsel %vm4907, %v4717, 0
        %5612 = vmatprep.subr.mxu0 %v4695
        %5613 = vmatpush1.msra.mxu0 %v4694
        %5614 = vmatprep.subr.mxu0 %v4699
        %5615 = vmatpush1.msra.mxu0 %v4698
        %5616 = vmatprep.subr.mxu0 %v4703
        %5617 = vmatpush1.msra.mxu0 %v4702
        %5618 = vmatprep.subr.mxu0 %v4707
        %5619 = vmatpush1.msra.mxu0 %v4706
        %5620 = vmatprep.subr.mxu0 %v4711
        %5621 = vmatpush1.msra.mxu0 %v4710
        %5622 = vmatprep.subr.mxu0 %v5604
        %5623 = vmatpush1.msra.mxu0 %v5601
        %5624 = vmatprep.subr.mxu0 0.0
        %5625 = vmatpush1.msra.mxu0 0.0
        %5626 = vmatprep.subr.mxu0 0.0
        %5627 = vmatpush1.msra.mxu0 0.0
        %5628 = vmatprep.subr.mxu0 0.0
        %5629 = vmatpush1.msra.mxu0 0.0
        %5630 = vmatprep.subr.mxu0 0.0
        %5631 = vmatpush1.msra.mxu0 0.0
        %5632 = vmatprep.subr.mxu0 0.0
        %5633 = vmatpush1.msra.mxu0 0.0
        %5634 = vmatprep.subr.mxu0 0.0
        %5635 = vmatpush1.msra.mxu0 0.0
        %5636 = vmatprep.subr.mxu0 0.0
        %5637 = vmatpush1.msra.mxu0 0.0
        %5638 = vmatprep.subr.mxu0 0.0
        %5639 = vmatpush1.msra.mxu0 0.0
        %5640 = vmatprep.subr.mxu0 0.0
        %5641 = vmatpush1.msra.mxu0 0.0
        %5642 = vmatprep.subr.mxu0 0.0
        %5643 = vmatpush1.msra.mxu0 0.0
        %5644 = vmatprep.subr.mxu0 0.0
        %5645 = vmatpush1.msra.mxu0 0.0
        %5646 = vmatprep.subr.mxu0 0.0
        %5647 = vmatpush1.msra.mxu0 0.0
        %5648 = vmatprep.subr.mxu0 0.0
        %5649 = vmatpush1.msra.mxu0 0.0
        %5650 = vmatprep.subr.mxu0 0.0
        %5651 = vmatpush1.msra.mxu0 0.0
        %5652 = vmatprep.subr.mxu0 0.0
        %5653 = vmatpush1.msra.mxu0 0.0
        %5654 = vmatprep.subr.mxu0 0.0
        %5655 = vmatpush1.msra.mxu0 0.0
        %5656 = vmatprep.subr.mxu0 0.0
        %5657 = vmatpush1.msra.mxu0 0.0
        %5658 = vmatprep.subr.mxu0 0.0
        %5659 = vmatpush1.msra.mxu0 0.0
        %5660 = vmatprep.subr.mxu0 0.0
        %5661 = vmatpush1.msra.mxu0 0.0
        %5662 = vmatprep.subr.mxu0 0.0
        %5663 = vmatpush1.msra.mxu0 0.0
        %5664 = vmatprep.subr.mxu0 0.0
        %5665 = vmatpush1.msra.mxu0 0.0
        %5666 = vmatprep.subr.mxu0 0.0
        %5667 = vmatpush1.msra.mxu0 0.0
        %5668 = vmatprep.subr.mxu0 0.0
        %5669 = vmatpush1.msra.mxu0 0.0
        %5670 = vmatprep.subr.mxu0 0.0
        %5671 = vmatpush1.msra.mxu0 0.0
        %5672 = vmatprep.subr.mxu0 0.0
        %5673 = vmatpush1.msra.mxu0 0.0
        %5674 = vmatprep.subr.mxu0 0.0
        %5675 = vmatpush1.msra.mxu0 0.0
        %5676 = vmatprep.mubr.f32.mxu0 0.0
        %5677 = vmatmul.mubr.f32.gmra.mrb[0].mxu0 %v5595
        %v5678 = vpop.f32.mrb[0].mxu0
        %v5679 = vadd.f32 0.0, %v5678
        %v5680 = vpop.f32.mrb[0].mxu0
        %v5681 = vadd.f32 0.0, %v5680
        %5682 = vmatprep.mubr.f32.mxu0 0.0
        %5683 = vmatmul.mubr.f32.gmra.mrb[0].mxu0 %v5598
        %v5684 = vpop.f32.mrb[0].mxu0
        %v5685 = vadd.f32 0.0, %v5684
        %v5686 = vpop.f32.mrb[0].mxu0
        %v5687 = vadd.f32 0.0, %v5686
        %5688 = vdwg.mxu0
        %5689 = vmatprep.subr.mxu0 %v4697
        %5690 = vmatpush1.msra.mxu0 %v4696
        %5691 = vmatprep.subr.mxu0 %v4701
        %5692 = vmatpush1.msra.mxu0 %v4700
        %5693 = vmatprep.subr.mxu0 %v4705
        %5694 = vmatpush1.msra.mxu0 %v4704
        %5695 = vmatprep.subr.mxu0 %v4709
        %5696 = vmatpush1.msra.mxu0 %v4708
        %5697 = vmatprep.subr.mxu0 %v4713
        %5698 = vmatpush1.msra.mxu0 %v4712
        %5699 = vmatprep.subr.mxu0 %v5610
        %5700 = vmatpush1.msra.mxu0 %v5607
        %5701 = vmatprep.subr.mxu0 0.0
        %5702 = vmatpush1.msra.mxu0 0.0
        %5703 = vmatprep.subr.mxu0 0.0
        %5704 = vmatpush1.msra.mxu0 0.0
        %5705 = vmatprep.subr.mxu0 0.0
        %5706 = vmatpush1.msra.mxu0 0.0
        %5707 = vmatprep.subr.mxu0 0.0
        %5708 = vmatpush1.msra.mxu0 0.0
        %5709 = vmatprep.subr.mxu0 0.0
        %5710 = vmatpush1.msra.mxu0 0.0
        %5711 = vmatprep.subr.mxu0 0.0
        %5712 = vmatpush1.msra.mxu0 0.0
        %5713 = vmatprep.subr.mxu0 0.0
        %5714 = vmatpush1.msra.mxu0 0.0
        %5715 = vmatprep.subr.mxu0 0.0
        %5716 = vmatpush1.msra.mxu0 0.0
        %5717 = vmatprep.subr.mxu0 0.0
        %5718 = vmatpush1.msra.mxu0 0.0
        %5719 = vmatprep.subr.mxu0 0.0
        %5720 = vmatpush1.msra.mxu0 0.0
        %5721 = vmatprep.subr.mxu0 0.0
        %5722 = vmatpush1.msra.mxu0 0.0
        %5723 = vmatprep.subr.mxu0 0.0
        %5724 = vmatpush1.msra.mxu0 0.0
        %5725 = vmatprep.subr.mxu0 0.0
        %5726 = vmatpush1.msra.mxu0 0.0
        %5727 = vmatprep.subr.mxu0 0.0
        %5728 = vmatpush1.msra.mxu0 0.0
        %5729 = vmatprep.subr.mxu0 0.0
        %5730 = vmatpush1.msra.mxu0 0.0
        %5731 = vmatprep.subr.mxu0 0.0
        %5732 = vmatpush1.msra.mxu0 0.0
        %5733 = vmatprep.subr.mxu0 0.0
        %5734 = vmatpush1.msra.mxu0 0.0
        %5735 = vmatprep.subr.mxu0 0.0
        %5736 = vmatpush1.msra.mxu0 0.0
        %5737 = vmatprep.subr.mxu0 0.0
        %5738 = vmatpush1.msra.mxu0 0.0
        %5739 = vmatprep.subr.mxu0 0.0
        %5740 = vmatpush1.msra.mxu0 0.0
        %5741 = vmatprep.subr.mxu0 0.0
        %5742 = vmatpush1.msra.mxu0 0.0
        %5743 = vmatprep.subr.mxu0 0.0
        %5744 = vmatpush1.msra.mxu0 0.0
        %5745 = vmatprep.subr.mxu0 0.0
        %5746 = vmatpush1.msra.mxu0 0.0
        %5747 = vmatprep.subr.mxu0 0.0
        %5748 = vmatpush1.msra.mxu0 0.0
        %5749 = vmatprep.subr.mxu0 0.0
        %5750 = vmatpush1.msra.mxu0 0.0
        %5751 = vmatprep.subr.mxu0 0.0
        %5752 = vmatpush1.msra.mxu0 0.0
        %5753 = vmatprep.mubr.f32.mxu0 0.0
        %5754 = vmatmul.mubr.f32.gmra.mrb[0].mxu0 %v5595
        %v5755 = vpop.f32.mrb[0].mxu0
        %v5756 = vadd.f32 0.0, %v5755
        %v5757 = vpop.f32.mrb[0].mxu0
        %v5758 = vadd.f32 0.0, %v5757
        %5759 = vmatprep.mubr.f32.mxu0 0.0
        %5760 = vmatmul.mubr.f32.gmra.mrb[0].mxu0 %v5598
        %v5761 = vpop.f32.mrb[0].mxu0
        %v5762 = vadd.f32 0.0, %v5761
        %v5763 = vpop.f32.mrb[0].mxu0
        %v5764 = vadd.f32 0.0, %v5763
        %5765 = vdwg.mxu0
        %v5767 = vsel %vm5439, %v5482, 0
        %v5770 = vsel %vm5439, %v5483, 0
        %v5773 = vsel %vm4907, %v4738, 0
        %v5776 = vsel %vm4907, %v4739, 0
        %v5779 = vsel %vm4907, %v4740, 0
        %v5782 = vsel %vm4907, %v4741, 0
        %5784 = vmatprep.subr.mxu0 %v4719
        %5785 = vmatpush1.msra.mxu0 %v4718
        %5786 = vmatprep.subr.mxu0 %v4723
        %5787 = vmatpush1.msra.mxu0 %v4722
        %5788 = vmatprep.subr.mxu0 %v4727
        %5789 = vmatpush1.msra.mxu0 %v4726
        %5790 = vmatprep.subr.mxu0 %v4731
        %5791 = vmatpush1.msra.mxu0 %v4730
        %5792 = vmatprep.subr.mxu0 %v4735
        %5793 = vmatpush1.msra.mxu0 %v4734
        %5794 = vmatprep.subr.mxu0 %v5776
        %5795 = vmatpush1.msra.mxu0 %v5773
        %5796 = vmatprep.subr.mxu0 0.0
        %5797 = vmatpush1.msra.mxu0 0.0
        %5798 = vmatprep.subr.mxu0 0.0
        %5799 = vmatpush1.msra.mxu0 0.0
        %5800 = vmatprep.subr.mxu0 0.0
        %5801 = vmatpush1.msra.mxu0 0.0
        %5802 = vmatprep.subr.mxu0 0.0
        %5803 = vmatpush1.msra.mxu0 0.0
        %5804 = vmatprep.subr.mxu0 0.0
        %5805 = vmatpush1.msra.mxu0 0.0
        %5806 = vmatprep.subr.mxu0 0.0
        %5807 = vmatpush1.msra.mxu0 0.0
        %5808 = vmatprep.subr.mxu0 0.0
        %5809 = vmatpush1.msra.mxu0 0.0
        %5810 = vmatprep.subr.mxu0 0.0
        %5811 = vmatpush1.msra.mxu0 0.0
        %5812 = vmatprep.subr.mxu0 0.0
        %5813 = vmatpush1.msra.mxu0 0.0
        %5814 = vmatprep.subr.mxu0 0.0
        %5815 = vmatpush1.msra.mxu0 0.0
        %5816 = vmatprep.subr.mxu0 0.0
        %5817 = vmatpush1.msra.mxu0 0.0
        %5818 = vmatprep.subr.mxu0 0.0
        %5819 = vmatpush1.msra.mxu0 0.0
        %5820 = vmatprep.subr.mxu0 0.0
        %5821 = vmatpush1.msra.mxu0 0.0
        %5822 = vmatprep.subr.mxu0 0.0
        %5823 = vmatpush1.msra.mxu0 0.0
        %5824 = vmatprep.subr.mxu0 0.0
        %5825 = vmatpush1.msra.mxu0 0.0
        %5826 = vmatprep.subr.mxu0 0.0
        %5827 = vmatpush1.msra.mxu0 0.0
        %5828 = vmatprep.subr.mxu0 0.0
        %5829 = vmatpush1.msra.mxu0 0.0
        %5830 = vmatprep.subr.mxu0 0.0
        %5831 = vmatpush1.msra.mxu0 0.0
        %5832 = vmatprep.subr.mxu0 0.0
        %5833 = vmatpush1.msra.mxu0 0.0
        %5834 = vmatprep.subr.mxu0 0.0
        %5835 = vmatpush1.msra.mxu0 0.0
        %5836 = vmatprep.subr.mxu0 0.0
        %5837 = vmatpush1.msra.mxu0 0.0
        %5838 = vmatprep.subr.mxu0 0.0
        %5839 = vmatpush1.msra.mxu0 0.0
        %5840 = vmatprep.subr.mxu0 0.0
        %5841 = vmatpush1.msra.mxu0 0.0
        %5842 = vmatprep.subr.mxu0 0.0
        %5843 = vmatpush1.msra.mxu0 0.0
        %5844 = vmatprep.subr.mxu0 0.0
        %5845 = vmatpush1.msra.mxu0 0.0
        %5846 = vmatprep.subr.mxu0 0.0
        %5847 = vmatpush1.msra.mxu0 0.0
        %5848 = vmatprep.mubr.f32.mxu0 0.0
        %5849 = vmatmul.mubr.f32.gmra.mrb[0].mxu0 %v5767
        %v5850 = vpop.f32.mrb[0].mxu0
        %v5851 = vadd.f32 0.0, %v5850
        %v5852 = vpop.f32.mrb[0].mxu0
        %v5853 = vadd.f32 0.0, %v5852
        %5854 = vmatprep.mubr.f32.mxu0 0.0
        %5855 = vmatmul.mubr.f32.gmra.mrb[0].mxu0 %v5770
        %v5856 = vpop.f32.mrb[0].mxu0
        %v5857 = vadd.f32 0.0, %v5856
        %v5858 = vpop.f32.mrb[0].mxu0
        %v5859 = vadd.f32 0.0, %v5858
        %5860 = vdwg.mxu0
        %5861 = vmatprep.subr.mxu0 %v4721
        %5862 = vmatpush1.msra.mxu0 %v4720
        %5863 = vmatprep.subr.mxu0 %v4725
        %5864 = vmatpush1.msra.mxu0 %v4724
        %5865 = vmatprep.subr.mxu0 %v4729
        %5866 = vmatpush1.msra.mxu0 %v4728
        %5867 = vmatprep.subr.mxu0 %v4733
        %5868 = vmatpush1.msra.mxu0 %v4732
        %5869 = vmatprep.subr.mxu0 %v4737
        %5870 = vmatpush1.msra.mxu0 %v4736
        %5871 = vmatprep.subr.mxu0 %v5782
        %5872 = vmatpush1.msra.mxu0 %v5779
        %5873 = vmatprep.subr.mxu0 0.0
        %5874 = vmatpush1.msra.mxu0 0.0
        %5875 = vmatprep.subr.mxu0 0.0
        %5876 = vmatpush1.msra.mxu0 0.0
        %5877 = vmatprep.subr.mxu0 0.0
        %5878 = vmatpush1.msra.mxu0 0.0
        %5879 = vmatprep.subr.mxu0 0.0
        %5880 = vmatpush1.msra.mxu0 0.0
        %5881 = vmatprep.subr.mxu0 0.0
        %5882 = vmatpush1.msra.mxu0 0.0
        %5883 = vmatprep.subr.mxu0 0.0
        %5884 = vmatpush1.msra.mxu0 0.0
        %5885 = vmatprep.subr.mxu0 0.0
        %5886 = vmatpush1.msra.mxu0 0.0
        %5887 = vmatprep.subr.mxu0 0.0
        %5888 = vmatpush1.msra.mxu0 0.0
        %5889 = vmatprep.subr.mxu0 0.0
        %5890 = vmatpush1.msra.mxu0 0.0
        %5891 = vmatprep.subr.mxu0 0.0
        %5892 = vmatpush1.msra.mxu0 0.0
        %5893 = vmatprep.subr.mxu0 0.0
        %5894 = vmatpush1.msra.mxu0 0.0
        %5895 = vmatprep.subr.mxu0 0.0
        %5896 = vmatpush1.msra.mxu0 0.0
        %5897 = vmatprep.subr.mxu0 0.0
        %5898 = vmatpush1.msra.mxu0 0.0
        %5899 = vmatprep.subr.mxu0 0.0
        %5900 = vmatpush1.msra.mxu0 0.0
        %5901 = vmatprep.subr.mxu0 0.0
        %5902 = vmatpush1.msra.mxu0 0.0
        %5903 = vmatprep.subr.mxu0 0.0
        %5904 = vmatpush1.msra.mxu0 0.0
        %5905 = vmatprep.subr.mxu0 0.0
        %5906 = vmatpush1.msra.mxu0 0.0
        %5907 = vmatprep.subr.mxu0 0.0
        %5908 = vmatpush1.msra.mxu0 0.0
        %5909 = vmatprep.subr.mxu0 0.0
        %5910 = vmatpush1.msra.mxu0 0.0
        %5911 = vmatprep.subr.mxu0 0.0
        %5912 = vmatpush1.msra.mxu0 0.0
        %5913 = vmatprep.subr.mxu0 0.0
        %5914 = vmatpush1.msra.mxu0 0.0
        %5915 = vmatprep.subr.mxu0 0.0
        %5916 = vmatpush1.msra.mxu0 0.0
        %5917 = vmatprep.subr.mxu0 0.0
        %5918 = vmatpush1.msra.mxu0 0.0
        %5919 = vmatprep.subr.mxu0 0.0
        %5920 = vmatpush1.msra.mxu0 0.0
        %5921 = vmatprep.subr.mxu0 0.0
        %5922 = vmatpush1.msra.mxu0 0.0
        %5923 = vmatprep.subr.mxu0 0.0
        %5924 = vmatpush1.msra.mxu0 0.0
        %5925 = vmatprep.mubr.f32.mxu0 0.0
        %5926 = vmatmul.mubr.f32.gmra.mrb[0].mxu0 %v5767
        %v5927 = vpop.f32.mrb[0].mxu0
        %v5928 = vadd.f32 0.0, %v5927
        %v5929 = vpop.f32.mrb[0].mxu0
        %v5930 = vadd.f32 0.0, %v5929
        %5931 = vmatprep.mubr.f32.mxu0 0.0
        %5932 = vmatmul.mubr.f32.gmra.mrb[0].mxu0 %v5770
        %v5933 = vpop.f32.mrb[0].mxu0
        %v5934 = vadd.f32 0.0, %v5933
        %v5935 = vpop.f32.mrb[0].mxu0
        %v5936 = vadd.f32 0.0, %v5935
        %5937 = vdwg.mxu0
        %v5939 = vsel %vm5439, %v5590, 0
        %v5942 = vsel %vm5439, %v5591, 0
        %5944 = vmatprep.subr.mxu0 0.0
        %5945 = vmatpush1.xpose.msra.mxu0 %v5939
        %5946 = vmatprep.subr.mxu0 0.0
        %5947 = vmatpush1.xpose.msra.mxu0 %v5942
        %5948 = vmatprep.subr.mxu0 0.0
        %5949 = vmatpush1.xpose.msra.mxu0 0.0
        %5950 = vmatprep.subr.mxu0 0.0
        %5951 = vmatpush1.xpose.msra.mxu0 0.0
        %5952 = vmatprep.subr.mxu0 0.0
        %5953 = vmatpush1.xpose.msra.mxu0 0.0
        %5954 = vmatprep.subr.mxu0 0.0
        %5955 = vmatpush1.xpose.msra.mxu0 0.0
        %5956 = vmatprep.subr.mxu0 0.0
        %5957 = vmatpush1.xpose.msra.mxu0 0.0
        %5958 = vmatprep.subr.mxu0 0.0
        %5959 = vmatpush1.xpose.msra.mxu0 0.0
        %5960 = vmatprep.subr.mxu0 0.0
        %5961 = vmatpush1.xpose.msra.mxu0 0.0
        %5962 = vmatprep.subr.mxu0 0.0
        %5963 = vmatpush1.xpose.msra.mxu0 0.0
        %5964 = vmatprep.subr.mxu0 0.0
        %5965 = vmatpush1.xpose.msra.mxu0 0.0
        %5966 = vmatprep.subr.mxu0 0.0
        %5967 = vmatpush1.xpose.msra.mxu0 0.0
        %5968 = vmatprep.subr.mxu0 0.0
        %5969 = vmatpush1.xpose.msra.mxu0 0.0
        %5970 = vmatprep.subr.mxu0 0.0
        %5971 = vmatpush1.xpose.msra.mxu0 0.0
        %5972 = vmatprep.subr.mxu0 0.0
        %5973 = vmatpush1.xpose.msra.mxu0 0.0
        %5974 = vmatprep.subr.mxu0 0.0
        %5975 = vmatpush1.xpose.msra.mxu0 0.0
        %5976 = vmatprep.subr.mxu0 0.0
        %5977 = vmatpush1.xpose.msra.mxu0 0.0
        %5978 = vmatprep.subr.mxu0 0.0
        %5979 = vmatpush1.xpose.msra.mxu0 0.0
        %5980 = vmatprep.subr.mxu0 0.0
        %5981 = vmatpush1.xpose.msra.mxu0 0.0
        %5982 = vmatprep.subr.mxu0 0.0
        %5983 = vmatpush1.xpose.msra.mxu0 0.0
        %5984 = vmatprep.subr.mxu0 0.0
        %5985 = vmatpush1.xpose.msra.mxu0 0.0
        %5986 = vmatprep.subr.mxu0 0.0
        %5987 = vmatpush1.xpose.msra.mxu0 0.0
        %5988 = vmatprep.subr.mxu0 0.0
        %5989 = vmatpush1.xpose.msra.mxu0 0.0
        %5990 = vmatprep.subr.mxu0 0.0
        %5991 = vmatpush1.xpose.msra.mxu0 0.0
        %5992 = vmatprep.subr.mxu0 0.0
        %5993 = vmatpush1.xpose.msra.mxu0 0.0
        %5994 = vmatprep.subr.mxu0 0.0
        %5995 = vmatpush1.xpose.msra.mxu0 0.0
        %5996 = vmatprep.subr.mxu0 0.0
        %5997 = vmatpush1.xpose.msra.mxu0 0.0
        %5998 = vmatprep.subr.mxu0 0.0
        %5999 = vmatpush1.xpose.msra.mxu0 0.0
        %6000 = vmatprep.subr.mxu0 0.0
        %6001 = vmatpush1.xpose.msra.mxu0 0.0
        %6002 = vmatprep.subr.mxu0 0.0
        %6003 = vmatpush1.xpose.msra.mxu0 0.0
        %6004 = vmatprep.subr.mxu0 0.0
        %6005 = vmatpush1.xpose.msra.mxu0 0.0
        %6006 = vmatprep.subr.mxu0 0.0
        %6007 = vmatpush1.xpose.msra.mxu0 0.0
        %6008 = vmatprep.mubr.f32.mxu0 0.0
        %6009 = vmatmul.mubr.f32.gmra.mrb[0].mxu0 %v5595
        %v6010 = vpop.f32.mrb[0].mxu0
        %v6011 = vadd.f32 0.0, %v6010
        %v6012 = vpop.f32.mrb[0].mxu0
        %6013 = vmatprep.mubr.f32.mxu0 0.0
        %6014 = vmatmul.mubr.f32.gmra.mrb[0].mxu0 %v5598
        %v6015 = vpop.f32.mrb[0].mxu0
        %v6016 = vadd.f32 0.0, %v6015
        %v6017 = vpop.f32.mrb[0].mxu0
        %6018 = vdwg.mxu0
        %v6020 = vsel %vm5439, %v5592, 0
        %v6023 = vsel %vm5439, %v5593, 0
        %6025 = vmatprep.subr.mxu0 0.0
        %6026 = vmatpush1.xpose.msra.mxu0 %v6020
        %6027 = vmatprep.subr.mxu0 0.0
        %6028 = vmatpush1.xpose.msra.mxu0 %v6023
        %6029 = vmatprep.subr.mxu0 0.0
        %6030 = vmatpush1.xpose.msra.mxu0 0.0
        %6031 = vmatprep.subr.mxu0 0.0
        %6032 = vmatpush1.xpose.msra.mxu0 0.0
        %6033 = vmatprep.subr.mxu0 0.0
        %6034 = vmatpush1.xpose.msra.mxu0 0.0
        %6035 = vmatprep.subr.mxu0 0.0
        %6036 = vmatpush1.xpose.msra.mxu0 0.0
        %6037 = vmatprep.subr.mxu0 0.0
        %6038 = vmatpush1.xpose.msra.mxu0 0.0
        %6039 = vmatprep.subr.mxu0 0.0
        %6040 = vmatpush1.xpose.msra.mxu0 0.0
        %6041 = vmatprep.subr.mxu0 0.0
        %6042 = vmatpush1.xpose.msra.mxu0 0.0
        %6043 = vmatprep.subr.mxu0 0.0
        %6044 = vmatpush1.xpose.msra.mxu0 0.0
        %6045 = vmatprep.subr.mxu0 0.0
        %6046 = vmatpush1.xpose.msra.mxu0 0.0
        %6047 = vmatprep.subr.mxu0 0.0
        %6048 = vmatpush1.xpose.msra.mxu0 0.0
        %6049 = vmatprep.subr.mxu0 0.0
        %6050 = vmatpush1.xpose.msra.mxu0 0.0
        %6051 = vmatprep.subr.mxu0 0.0
        %6052 = vmatpush1.xpose.msra.mxu0 0.0
        %6053 = vmatprep.subr.mxu0 0.0
        %6054 = vmatpush1.xpose.msra.mxu0 0.0
        %6055 = vmatprep.subr.mxu0 0.0
        %6056 = vmatpush1.xpose.msra.mxu0 0.0
        %6057 = vmatprep.subr.mxu0 0.0
        %6058 = vmatpush1.xpose.msra.mxu0 0.0
        %6059 = vmatprep.subr.mxu0 0.0
        %6060 = vmatpush1.xpose.msra.mxu0 0.0
        %6061 = vmatprep.subr.mxu0 0.0
        %6062 = vmatpush1.xpose.msra.mxu0 0.0
        %6063 = vmatprep.subr.mxu0 0.0
        %6064 = vmatpush1.xpose.msra.mxu0 0.0
        %6065 = vmatprep.subr.mxu0 0.0
        %6066 = vmatpush1.xpose.msra.mxu0 0.0
        %6067 = vmatprep.subr.mxu0 0.0
        %6068 = vmatpush1.xpose.msra.mxu0 0.0
        %6069 = vmatprep.subr.mxu0 0.0
        %6070 = vmatpush1.xpose.msra.mxu0 0.0
        %6071 = vmatprep.subr.mxu0 0.0
        %6072 = vmatpush1.xpose.msra.mxu0 0.0
        %6073 = vmatprep.subr.mxu0 0.0
        %6074 = vmatpush1.xpose.msra.mxu0 0.0
        %6075 = vmatprep.subr.mxu0 0.0
        %6076 = vmatpush1.xpose.msra.mxu0 0.0
        %6077 = vmatprep.subr.mxu0 0.0
        %6078 = vmatpush1.xpose.msra.mxu0 0.0
        %6079 = vmatprep.subr.mxu0 0.0
        %6080 = vmatpush1.xpose.msra.mxu0 0.0
        %6081 = vmatprep.subr.mxu0 0.0
        %6082 = vmatpush1.xpose.msra.mxu0 0.0
        %6083 = vmatprep.subr.mxu0 0.0
        %6084 = vmatpush1.xpose.msra.mxu0 0.0
        %6085 = vmatprep.subr.mxu0 0.0
        %6086 = vmatpush1.xpose.msra.mxu0 0.0
        %6087 = vmatprep.subr.mxu0 0.0
        %6088 = vmatpush1.xpose.msra.mxu0 0.0
        %6089 = vmatprep.mubr.f32.mxu0 0.0
        %6090 = vmatmul.mubr.f32.gmra.mrb[0].mxu0 %v5767
        %v6091 = vpop.f32.mrb[0].mxu0
        %v6092 = vadd.f32 0.0, %v6091
        %v6093 = vpop.f32.mrb[0].mxu0
        %6094 = vmatprep.mubr.f32.mxu0 0.0
        %6095 = vmatmul.mubr.f32.gmra.mrb[0].mxu0 %v5770
        %v6096 = vpop.f32.mrb[0].mxu0
        %v6097 = vadd.f32 0.0, %v6096
        %v6098 = vpop.f32.mrb[0].mxu0
        %6099 = vdwg.mxu0
        %vm6100 = vcmask 130048
        %v6102 = vsel %vm6100, %v6011, 0
        %v6105 = vsel %vm6100, %v6016, 0
        %6107 = vmatprep.subr.mxu0 %v4254
        %6108 = vmatpush1.msra.mxu0 %v4252
        %6109 = vmatprep.subr.mxu0 %v4258
        %6110 = vmatpush1.msra.mxu0 %v4256
        %6111 = vmatprep.subr.mxu0 0.0
        %6112 = vmatpush1.msra.mxu0 0.0
        %6113 = vmatprep.subr.mxu0 0.0
        %6114 = vmatpush1.msra.mxu0 0.0
        %6115 = vmatprep.subr.mxu0 0.0
        %6116 = vmatpush1.msra.mxu0 0.0
        %6117 = vmatprep.subr.mxu0 0.0
        %6118 = vmatpush1.msra.mxu0 0.0
        %6119 = vmatprep.subr.mxu0 0.0
        %6120 = vmatpush1.msra.mxu0 0.0
        %6121 = vmatprep.subr.mxu0 0.0
        %6122 = vmatpush1.msra.mxu0 0.0
        %6123 = vmatprep.subr.mxu0 0.0
        %6124 = vmatpush1.msra.mxu0 0.0
        %6125 = vmatprep.subr.mxu0 0.0
        %6126 = vmatpush1.msra.mxu0 0.0
        %6127 = vmatprep.subr.mxu0 0.0
        %6128 = vmatpush1.msra.mxu0 0.0
        %6129 = vmatprep.subr.mxu0 0.0
        %6130 = vmatpush1.msra.mxu0 0.0
        %6131 = vmatprep.subr.mxu0 0.0
        %6132 = vmatpush1.msra.mxu0 0.0
        %6133 = vmatprep.subr.mxu0 0.0
        %6134 = vmatpush1.msra.mxu0 0.0
        %6135 = vmatprep.subr.mxu0 0.0
        %6136 = vmatpush1.msra.mxu0 0.0
        %6137 = vmatprep.subr.mxu0 0.0
        %6138 = vmatpush1.msra.mxu0 0.0
        %6139 = vmatprep.subr.mxu0 0.0
        %6140 = vmatpush1.msra.mxu0 0.0
        %6141 = vmatprep.subr.mxu0 0.0
        %6142 = vmatpush1.msra.mxu0 0.0
        %6143 = vmatprep.subr.mxu0 0.0
        %6144 = vmatpush1.msra.mxu0 0.0
        %6145 = vmatprep.subr.mxu0 0.0
        %6146 = vmatpush1.msra.mxu0 0.0
        %6147 = vmatprep.subr.mxu0 0.0
        %6148 = vmatpush1.msra.mxu0 0.0
        %6149 = vmatprep.subr.mxu0 0.0
        %6150 = vmatpush1.msra.mxu0 0.0
        %6151 = vmatprep.subr.mxu0 0.0
        %6152 = vmatpush1.msra.mxu0 0.0
        %6153 = vmatprep.subr.mxu0 0.0
        %6154 = vmatpush1.msra.mxu0 0.0
        %6155 = vmatprep.subr.mxu0 0.0
        %6156 = vmatpush1.msra.mxu0 0.0
        %6157 = vmatprep.subr.mxu0 0.0
        %6158 = vmatpush1.msra.mxu0 0.0
        %6159 = vmatprep.subr.mxu0 0.0
        %6160 = vmatpush1.msra.mxu0 0.0
        %6161 = vmatprep.subr.mxu0 0.0
        %6162 = vmatpush1.msra.mxu0 0.0
        %6163 = vmatprep.subr.mxu0 0.0
        %6164 = vmatpush1.msra.mxu0 0.0
        %6165 = vmatprep.subr.mxu0 0.0
        %6166 = vmatpush1.msra.mxu0 0.0
        %6167 = vmatprep.subr.mxu0 0.0
        %6168 = vmatpush1.msra.mxu0 0.0
        %6169 = vmatprep.subr.mxu0 0.0
        %6170 = vmatpush1.msra.mxu0 0.0
        %6171 = vmatprep.mubr.f32.mxu0 0.0
        %6172 = vmatmul.mubr.f32.gmra.mrb[0].mxu0 %v6102
        %v6173 = vpop.f32.mrb[0].mxu0
        %v6174 = vadd.f32 0.0, %v6173
        %v6175 = vpop.f32.mrb[0].mxu0
        %v6176 = vadd.f32 0.0, %v6175
        %6177 = vmatprep.mubr.f32.mxu0 0.0
        %6178 = vmatmul.mubr.f32.gmra.mrb[0].mxu0 %v6105
        %v6179 = vpop.f32.mrb[0].mxu0
        %v6180 = vadd.f32 0.0, %v6179
        %v6181 = vpop.f32.mrb[0].mxu0
        %v6182 = vadd.f32 0.0, %v6181
        %6183 = vdwg.mxu0
        %6184 = vmatprep.subr.mxu0 %v4678
        %6185 = vmatpush1.msra.mxu0 %v4676
        %6186 = vmatprep.subr.mxu0 %v4682
        %6187 = vmatpush1.msra.mxu0 %v4680
        %6188 = vmatprep.subr.mxu0 0.0
        %6189 = vmatpush1.msra.mxu0 0.0
        %6190 = vmatprep.subr.mxu0 0.0
        %6191 = vmatpush1.msra.mxu0 0.0
        %6192 = vmatprep.subr.mxu0 0.0
        %6193 = vmatpush1.msra.mxu0 0.0
        %6194 = vmatprep.subr.mxu0 0.0
        %6195 = vmatpush1.msra.mxu0 0.0
        %6196 = vmatprep.subr.mxu0 0.0
        %6197 = vmatpush1.msra.mxu0 0.0
        %6198 = vmatprep.subr.mxu0 0.0
        %6199 = vmatpush1.msra.mxu0 0.0
        %6200 = vmatprep.subr.mxu0 0.0
        %6201 = vmatpush1.msra.mxu0 0.0
        %6202 = vmatprep.subr.mxu0 0.0
        %6203 = vmatpush1.msra.mxu0 0.0
        %6204 = vmatprep.subr.mxu0 0.0
        %6205 = vmatpush1.msra.mxu0 0.0
        %6206 = vmatprep.subr.mxu0 0.0
        %6207 = vmatpush1.msra.mxu0 0.0
        %6208 = vmatprep.subr.mxu0 0.0
        %6209 = vmatpush1.msra.mxu0 0.0
        %6210 = vmatprep.subr.mxu0 0.0
        %6211 = vmatpush1.msra.mxu0 0.0
        %6212 = vmatprep.subr.mxu0 0.0
        %6213 = vmatpush1.msra.mxu0 0.0
        %6214 = vmatprep.subr.mxu0 0.0
        %6215 = vmatpush1.msra.mxu0 0.0
        %6216 = vmatprep.subr.mxu0 0.0
        %6217 = vmatpush1.msra.mxu0 0.0
        %6218 = vmatprep.subr.mxu0 0.0
        %6219 = vmatpush1.msra.mxu0 0.0
        %6220 = vmatprep.subr.mxu0 0.0
        %6221 = vmatpush1.msra.mxu0 0.0
        %6222 = vmatprep.subr.mxu0 0.0
        %6223 = vmatpush1.msra.mxu0 0.0
        %6224 = vmatprep.subr.mxu0 0.0
        %6225 = vmatpush1.msra.mxu0 0.0
        %6226 = vmatprep.subr.mxu0 0.0
        %6227 = vmatpush1.msra.mxu0 0.0
        %6228 = vmatprep.subr.mxu0 0.0
        %6229 = vmatpush1.msra.mxu0 0.0
        %6230 = vmatprep.subr.mxu0 0.0
        %6231 = vmatpush1.msra.mxu0 0.0
        %6232 = vmatprep.subr.mxu0 0.0
        %6233 = vmatpush1.msra.mxu0 0.0
        %6234 = vmatprep.subr.mxu0 0.0
        %6235 = vmatpush1.msra.mxu0 0.0
        %6236 = vmatprep.subr.mxu0 0.0
        %6237 = vmatpush1.msra.mxu0 0.0
        %6238 = vmatprep.subr.mxu0 0.0
        %6239 = vmatpush1.msra.mxu0 0.0
        %6240 = vmatprep.subr.mxu0 0.0
        %6241 = vmatpush1.msra.mxu0 0.0
        %6242 = vmatprep.subr.mxu0 0.0
        %6243 = vmatpush1.msra.mxu0 0.0
        %6244 = vmatprep.subr.mxu0 0.0
        %6245 = vmatpush1.msra.mxu0 0.0
        %6246 = vmatprep.subr.mxu0 0.0
        %6247 = vmatpush1.msra.mxu0 0.0
        %6248 = vmatprep.mubr.f32.mxu0 0.0
        %6249 = vmatmul.mubr.f32.gmra.mrb[0].mxu0 %v6102
        %v6250 = vpop.f32.mrb[0].mxu0
        %v6251 = vadd.f32 0.0, %v6250
        %v6252 = vpop.f32.mrb[0].mxu0
        %v6253 = vadd.f32 0.0, %v6252
        %6254 = vmatprep.mubr.f32.mxu0 0.0
        %6255 = vmatmul.mubr.f32.gmra.mrb[0].mxu0 %v6105
        %v6256 = vpop.f32.mrb[0].mxu0
        %v6257 = vadd.f32 0.0, %v6256
        %v6258 = vpop.f32.mrb[0].mxu0
        %v6259 = vadd.f32 0.0, %v6258
        %6260 = vdwg.mxu0
        %v6262 = vsel %vm6100, %v6092, 0
        %v6265 = vsel %vm6100, %v6097, 0
        %6267 = vmatprep.subr.mxu0 %v4264
        %6268 = vmatpush1.msra.mxu0 %v4262
        %6269 = vmatprep.subr.mxu0 %v4268
        %6270 = vmatpush1.msra.mxu0 %v4266
        %6271 = vmatprep.subr.mxu0 0.0
        %6272 = vmatpush1.msra.mxu0 0.0
        %6273 = vmatprep.subr.mxu0 0.0
        %6274 = vmatpush1.msra.mxu0 0.0
        %6275 = vmatprep.subr.mxu0 0.0
        %6276 = vmatpush1.msra.mxu0 0.0
        %6277 = vmatprep.subr.mxu0 0.0
        %6278 = vmatpush1.msra.mxu0 0.0
        %6279 = vmatprep.subr.mxu0 0.0
        %6280 = vmatpush1.msra.mxu0 0.0
        %6281 = vmatprep.subr.mxu0 0.0
        %6282 = vmatpush1.msra.mxu0 0.0
        %6283 = vmatprep.subr.mxu0 0.0
        %6284 = vmatpush1.msra.mxu0 0.0
        %6285 = vmatprep.subr.mxu0 0.0
        %6286 = vmatpush1.msra.mxu0 0.0
        %6287 = vmatprep.subr.mxu0 0.0
        %6288 = vmatpush1.msra.mxu0 0.0
        %6289 = vmatprep.subr.mxu0 0.0
        %6290 = vmatpush1.msra.mxu0 0.0
        %6291 = vmatprep.subr.mxu0 0.0
        %6292 = vmatpush1.msra.mxu0 0.0
        %6293 = vmatprep.subr.mxu0 0.0
        %6294 = vmatpush1.msra.mxu0 0.0
        %6295 = vmatprep.subr.mxu0 0.0
        %6296 = vmatpush1.msra.mxu0 0.0
        %6297 = vmatprep.subr.mxu0 0.0
        %6298 = vmatpush1.msra.mxu0 0.0
        %6299 = vmatprep.subr.mxu0 0.0
        %6300 = vmatpush1.msra.mxu0 0.0
        %6301 = vmatprep.subr.mxu0 0.0
        %6302 = vmatpush1.msra.mxu0 0.0
        %6303 = vmatprep.subr.mxu0 0.0
        %6304 = vmatpush1.msra.mxu0 0.0
        %6305 = vmatprep.subr.mxu0 0.0
        %6306 = vmatpush1.msra.mxu0 0.0
        %6307 = vmatprep.subr.mxu0 0.0
        %6308 = vmatpush1.msra.mxu0 0.0
        %6309 = vmatprep.subr.mxu0 0.0
        %6310 = vmatpush1.msra.mxu0 0.0
        %6311 = vmatprep.subr.mxu0 0.0
        %6312 = vmatpush1.msra.mxu0 0.0
        %6313 = vmatprep.subr.mxu0 0.0
        %6314 = vmatpush1.msra.mxu0 0.0
        %6315 = vmatprep.subr.mxu0 0.0
        %6316 = vmatpush1.msra.mxu0 0.0
        %6317 = vmatprep.subr.mxu0 0.0
        %6318 = vmatpush1.msra.mxu0 0.0
        %6319 = vmatprep.subr.mxu0 0.0
        %6320 = vmatpush1.msra.mxu0 0.0
        %6321 = vmatprep.subr.mxu0 0.0
        %6322 = vmatpush1.msra.mxu0 0.0
        %6323 = vmatprep.subr.mxu0 0.0
        %6324 = vmatpush1.msra.mxu0 0.0
        %6325 = vmatprep.subr.mxu0 0.0
        %6326 = vmatpush1.msra.mxu0 0.0
        %6327 = vmatprep.subr.mxu0 0.0
        %6328 = vmatpush1.msra.mxu0 0.0
        %6329 = vmatprep.subr.mxu0 0.0
        %6330 = vmatpush1.msra.mxu0 0.0
        %6331 = vmatprep.mubr.f32.mxu0 0.0
        %6332 = vmatmul.mubr.f32.gmra.mrb[0].mxu0 %v6262
        %v6333 = vpop.f32.mrb[0].mxu0
        %v6334 = vadd.f32 0.0, %v6333
        %v6335 = vpop.f32.mrb[0].mxu0
        %v6336 = vadd.f32 0.0, %v6335
        %6337 = vmatprep.mubr.f32.mxu0 0.0
        %6338 = vmatmul.mubr.f32.gmra.mrb[0].mxu0 %v6265
        %v6339 = vpop.f32.mrb[0].mxu0
        %v6340 = vadd.f32 0.0, %v6339
        %v6341 = vpop.f32.mrb[0].mxu0
        %v6342 = vadd.f32 0.0, %v6341
        %6343 = vdwg.mxu0
        %6344 = vmatprep.subr.mxu0 %v4688
        %6345 = vmatpush1.msra.mxu0 %v4686
        %6346 = vmatprep.subr.mxu0 %v4692
        %6347 = vmatpush1.msra.mxu0 %v4690
        %6348 = vmatprep.subr.mxu0 0.0
        %6349 = vmatpush1.msra.mxu0 0.0
        %6350 = vmatprep.subr.mxu0 0.0
        %6351 = vmatpush1.msra.mxu0 0.0
        %6352 = vmatprep.subr.mxu0 0.0
        %6353 = vmatpush1.msra.mxu0 0.0
        %6354 = vmatprep.subr.mxu0 0.0
        %6355 = vmatpush1.msra.mxu0 0.0
        %6356 = vmatprep.subr.mxu0 0.0
        %6357 = vmatpush1.msra.mxu0 0.0
        %6358 = vmatprep.subr.mxu0 0.0
        %6359 = vmatpush1.msra.mxu0 0.0
        %6360 = vmatprep.subr.mxu0 0.0
        %6361 = vmatpush1.msra.mxu0 0.0
        %6362 = vmatprep.subr.mxu0 0.0
        %6363 = vmatpush1.msra.mxu0 0.0
        %6364 = vmatprep.subr.mxu0 0.0
        %6365 = vmatpush1.msra.mxu0 0.0
        %6366 = vmatprep.subr.mxu0 0.0
        %6367 = vmatpush1.msra.mxu0 0.0
        %6368 = vmatprep.subr.mxu0 0.0
        %6369 = vmatpush1.msra.mxu0 0.0
        %6370 = vmatprep.subr.mxu0 0.0
        %6371 = vmatpush1.msra.mxu0 0.0
        %6372 = vmatprep.subr.mxu0 0.0
        %6373 = vmatpush1.msra.mxu0 0.0
        %6374 = vmatprep.subr.mxu0 0.0
        %6375 = vmatpush1.msra.mxu0 0.0
        %6376 = vmatprep.subr.mxu0 0.0
        %6377 = vmatpush1.msra.mxu0 0.0
        %6378 = vmatprep.subr.mxu0 0.0
        %6379 = vmatpush1.msra.mxu0 0.0
        %6380 = vmatprep.subr.mxu0 0.0
        %6381 = vmatpush1.msra.mxu0 0.0
        %6382 = vmatprep.subr.mxu0 0.0
        %6383 = vmatpush1.msra.mxu0 0.0
        %6384 = vmatprep.subr.mxu0 0.0
        %6385 = vmatpush1.msra.mxu0 0.0
        %6386 = vmatprep.subr.mxu0 0.0
        %6387 = vmatpush1.msra.mxu0 0.0
        %6388 = vmatprep.subr.mxu0 0.0
        %6389 = vmatpush1.msra.mxu0 0.0
        %6390 = vmatprep.subr.mxu0 0.0
        %6391 = vmatpush1.msra.mxu0 0.0
        %6392 = vmatprep.subr.mxu0 0.0
        %6393 = vmatpush1.msra.mxu0 0.0
        %6394 = vmatprep.subr.mxu0 0.0
        %6395 = vmatpush1.msra.mxu0 0.0
        %6396 = vmatprep.subr.mxu0 0.0
        %6397 = vmatpush1.msra.mxu0 0.0
        %6398 = vmatprep.subr.mxu0 0.0
        %6399 = vmatpush1.msra.mxu0 0.0
        %6400 = vmatprep.subr.mxu0 0.0
        %6401 = vmatpush1.msra.mxu0 0.0
        %6402 = vmatprep.subr.mxu0 0.0
        %6403 = vmatpush1.msra.mxu0 0.0
        %6404 = vmatprep.subr.mxu0 0.0
        %6405 = vmatpush1.msra.mxu0 0.0
        %6406 = vmatprep.subr.mxu0 0.0
        %6407 = vmatpush1.msra.mxu0 0.0
        %6408 = vmatprep.mubr.f32.mxu0 0.0
        %6409 = vmatmul.mubr.f32.gmra.mrb[0].mxu0 %v6262
        %v6410 = vpop.f32.mrb[0].mxu0
        %v6411 = vadd.f32 0.0, %v6410
        %v6412 = vpop.f32.mrb[0].mxu0
        %v6413 = vadd.f32 0.0, %v6412
        %6414 = vmatprep.mubr.f32.mxu0 0.0
        %6415 = vmatmul.mubr.f32.gmra.mrb[0].mxu0 %v6265
        %v6416 = vpop.f32.mrb[0].mxu0
        %v6417 = vadd.f32 0.0, %v6416
        %v6418 = vpop.f32.mrb[0].mxu0
        %v6419 = vadd.f32 0.0, %v6418
        %6420 = vdwg.mxu0
        %v6421 = vmul.f32 %v4748, %v5408
        %v6422 = vmul.f32 %v4749, %v5408
        %v6423 = vmul.f32 %v4750, %v5412
        %v6424 = vmul.f32 %v4751, %v5412
        %v6425 = vadd.f32 %v6421, %v5428
        %v6426 = vadd.f32 %v6422, %v5428
        %v6427 = vadd.f32 %v6423, %v5432
        %v6428 = vadd.f32 %v6424, %v5432
        %v6429 = vsel %vm5439, %v6425, -inf
        %6430 = vmax.xlane.f32.xlu0 %v6429
        %v6431 = vpop.xlane.xlu0 %6430
        %v6432 = vsel %vm5439, %v6426, -inf
        %6433 = vmax.xlane.f32.xlu0 %v6432
        %v6434 = vpop.xlane.xlu0 %6433
        %v6435 = vsel %vm5439, %v6427, -inf
        %6436 = vmax.xlane.f32.xlu0 %v6435
        %v6437 = vpop.xlane.xlu0 %6436
        %v6438 = vsel %vm5439, %v6428, -inf
        %6439 = vmax.xlane.f32.xlu0 %v6438
        %v6440 = vpop.xlane.xlu0 %6439
        %v6441 = vsub.f32 %v6425, %v6431
        %v6442 = vsub.f32 %v6426, %v6434
        %v6443 = vsub.f32 %v6427, %v6437
        %v6444 = vsub.f32 %v6428, %v6440
        %v6445 = vmul.f32 %v6441, 1.442695
        %v6446 = vpow.pop %v6445
        %v6447 = vmul.f32 %v6442, 1.442695
        %v6448 = vpow.pop %v6447
        %v6449 = vmul.f32 %v6443, 1.442695
        %v6450 = vpow.pop %v6449
        %v6451 = vmul.f32 %v6444, 1.442695
        %v6452 = vpow.pop %v6451
        %v6453 = vsel %vm5439, %v6446, 0.0
        %6454 = vadd.xlane.f32.xlu0 %v6453
        %v6455 = vpop.xlane.xlu0 %6454
        %v6456 = vsel %vm5439, %v6448, 0.0
        %6457 = vadd.xlane.f32.xlu0 %v6456
        %v6458 = vpop.xlane.xlu0 %6457
        %v6459 = vsel %vm5439, %v6450, 0.0
        %6460 = vadd.xlane.f32.xlu0 %v6459
        %v6461 = vpop.xlane.xlu0 %6460
        %v6462 = vsel %vm5439, %v6452, 0.0
        %6463 = vadd.xlane.f32.xlu0 %v6462
        %v6464 = vpop.xlane.xlu0 %6463
        %v6465 = vrcp.pop %v6455
        %v6466 = vrcp.pop %v6458
        %v6467 = vrcp.pop %v6461
        %v6468 = vrcp.pop %v6464
        %v6469 = vmul.f32 %v6446, %v6465
        %v6470 = vmul.f32 %v6448, %v6466
        %v6471 = vmul.f32 %v6450, %v6467
        %v6472 = vmul.f32 %v6452, %v6468
        %v6473 = vmul.f32 %v4748, %v5487
        %v6474 = vmul.f32 %v4749, %v5492
        %v6475 = vmul.f32 %v4750, %v5497
        %v6476 = vmul.f32 %v4751, %v5502
        %v6477 = vadd.f32 %v6473, %v5519
        %v6478 = vadd.f32 %v6474, %v5524
        %v6479 = vadd.f32 %v6475, %v5529
        %v6480 = vadd.f32 %v6476, %v5534
        %v6481 = vsel %vm5439, %v6477, -inf
        %v6482 = vsel %vm5439, %v6478, -inf
        %v6483 = vmax.f32 %v6481, %v6482
        %v6484 = vrot.slane %v6483, 4
        %v6485 = vmax.f32 %v6483, %v6484
        %v6486 = vrot.slane %v6485, 2
        %v6487 = vmax.f32 %v6485, %v6486
        %v6488 = vrot.slane %v6487, 1
        %v6489 = vmax.f32 %v6487, %v6488
        %v6490 = vsel %vm5439, %v6479, -inf
        %v6491 = vsel %vm5439, %v6480, -inf
        %v6492 = vmax.f32 %v6490, %v6491
        %v6493 = vrot.slane %v6492, 4
        %v6494 = vmax.f32 %v6492, %v6493
        %v6495 = vrot.slane %v6494, 2
        %v6496 = vmax.f32 %v6494, %v6495
        %v6497 = vrot.slane %v6496, 1
        %v6498 = vmax.f32 %v6496, %v6497
        %v6499 = vsub.f32 %v6477, %v6489
        %v6500 = vsub.f32 %v6478, %v6489
        %v6501 = vsub.f32 %v6479, %v6498
        %v6502 = vsub.f32 %v6480, %v6498
        %v6503 = vmul.f32 %v6499, 1.442695
        %v6504 = vpow.pop %v6503
        %v6505 = vmul.f32 %v6500, 1.442695
        %v6506 = vpow.pop %v6505
        %v6507 = vmul.f32 %v6501, 1.442695
        %v6508 = vpow.pop %v6507
        %v6509 = vmul.f32 %v6502, 1.442695
        %v6510 = vpow.pop %v6509
        %v6511 = vsel %vm5439, %v6504, 0.0
        %v6512 = vsel %vm5439, %v6506, 0.0
        %v6513 = vadd.f32 %v6511, %v6512
        %v6514 = vrot.slane %v6513, 4
        %v6515 = vadd.f32 %v6513, %v6514
        %v6516 = vrot.slane %v6515, 2
        %v6517 = vadd.f32 %v6515, %v6516
        %v6518 = vrot.slane %v6517, 1
        %v6519 = vadd.f32 %v6517, %v6518
        %v6520 = vsel %vm5439, %v6508, 0.0
        %v6521 = vsel %vm5439, %v6510, 0.0
        %v6522 = vadd.f32 %v6520, %v6521
        %v6523 = vrot.slane %v6522, 4
        %v6524 = vadd.f32 %v6522, %v6523
        %v6525 = vrot.slane %v6524, 2
        %v6526 = vadd.f32 %v6524, %v6525
        %v6527 = vrot.slane %v6526, 1
        %v6528 = vadd.f32 %v6526, %v6527
        %v6529 = vrcp.pop %v6519
        %v6530 = vrcp.pop %v6528
        %v6531 = vmul.f32 %v6504, %v6529
        %v6532 = vmul.f32 %v6506, %v6529
        %v6533 = vmul.f32 %v6508, %v6530
        %v6534 = vmul.f32 %v6510, %v6530
        %v6536 = vsel %vm5439, %v6469, 0
        %v6539 = vsel %vm5439, %v6470, 0
        %6541 = vmatprep.subr.mxu0 %v4695
        %6542 = vmatpush1.msra.mxu0 %v4694
        %6543 = vmatprep.subr.mxu0 %v4699
        %6544 = vmatpush1.msra.mxu0 %v4698
        %6545 = vmatprep.subr.mxu0 %v4703
        %6546 = vmatpush1.msra.mxu0 %v4702
        %6547 = vmatprep.subr.mxu0 %v4707
        %6548 = vmatpush1.msra.mxu0 %v4706
        %6549 = vmatprep.subr.mxu0 %v4711
        %6550 = vmatpush1.msra.mxu0 %v4710
        %6551 = vmatprep.subr.mxu0 %v5604
        %6552 = vmatpush1.msra.mxu0 %v5601
        %6553 = vmatprep.subr.mxu0 0.0
        %6554 = vmatpush1.msra.mxu0 0.0
        %6555 = vmatprep.subr.mxu0 0.0
        %6556 = vmatpush1.msra.mxu0 0.0
        %6557 = vmatprep.subr.mxu0 0.0
        %6558 = vmatpush1.msra.mxu0 0.0
        %6559 = vmatprep.subr.mxu0 0.0
        %6560 = vmatpush1.msra.mxu0 0.0
        %6561 = vmatprep.subr.mxu0 0.0
        %6562 = vmatpush1.msra.mxu0 0.0
        %6563 = vmatprep.subr.mxu0 0.0
        %6564 = vmatpush1.msra.mxu0 0.0
        %6565 = vmatprep.subr.mxu0 0.0
        %6566 = vmatpush1.msra.mxu0 0.0
        %6567 = vmatprep.subr.mxu0 0.0
        %6568 = vmatpush1.msra.mxu0 0.0
        %6569 = vmatprep.subr.mxu0 0.0
        %6570 = vmatpush1.msra.mxu0 0.0
        %6571 = vmatprep.subr.mxu0 0.0
        %6572 = vmatpush1.msra.mxu0 0.0
        %6573 = vmatprep.subr.mxu0 0.0
        %6574 = vmatpush1.msra.mxu0 0.0
        %6575 = vmatprep.subr.mxu0 0.0
        %6576 = vmatpush1.msra.mxu0 0.0
        %6577 = vmatprep.subr.mxu0 0.0
        %6578 = vmatpush1.msra.mxu0 0.0
        %6579 = vmatprep.subr.mxu0 0.0
        %6580 = vmatpush1.msra.mxu0 0.0
        %6581 = vmatprep.subr.mxu0 0.0
        %6582 = vmatpush1.msra.mxu0 0.0
        %6583 = vmatprep.subr.mxu0 0.0
        %6584 = vmatpush1.msra.mxu0 0.0
        %6585 = vmatprep.subr.mxu0 0.0
        %6586 = vmatpush1.msra.mxu0 0.0
        %6587 = vmatprep.subr.mxu0 0.0
        %6588 = vmatpush1.msra.mxu0 0.0
        %6589 = vmatprep.subr.mxu0 0.0
        %6590 = vmatpush1.msra.mxu0 0.0
        %6591 = vmatprep.subr.mxu0 0.0
        %6592 = vmatpush1.msra.mxu0 0.0
        %6593 = vmatprep.subr.mxu0 0.0
        %6594 = vmatpush1.msra.mxu0 0.0
        %6595 = vmatprep.subr.mxu0 0.0
        %6596 = vmatpush1.msra.mxu0 0.0
        %6597 = vmatprep.subr.mxu0 0.0
        %6598 = vmatpush1.msra.mxu0 0.0
        %6599 = vmatprep.subr.mxu0 0.0
        %6600 = vmatpush1.msra.mxu0 0.0
        %6601 = vmatprep.subr.mxu0 0.0
        %6602 = vmatpush1.msra.mxu0 0.0
        %6603 = vmatprep.subr.mxu0 0.0
        %6604 = vmatpush1.msra.mxu0 0.0
        %6605 = vmatprep.mubr.f32.mxu0 0.0
        %6606 = vmatmul.mubr.f32.gmra.mrb[0].mxu0 %v6536
        %v6607 = vpop.f32.mrb[0].mxu0
        %v6608 = vadd.f32 0.0, %v6607
        %v6609 = vpop.f32.mrb[0].mxu0
        %v6610 = vadd.f32 0.0, %v6609
        %6611 = vmatprep.mubr.f32.mxu0 0.0
        %6612 = vmatmul.mubr.f32.gmra.mrb[0].mxu0 %v6539
        %v6613 = vpop.f32.mrb[0].mxu0
        %v6614 = vadd.f32 0.0, %v6613
        %v6615 = vpop.f32.mrb[0].mxu0
        %v6616 = vadd.f32 0.0, %v6615
        %6617 = vdwg.mxu0
        %6618 = vmatprep.subr.mxu0 %v4697
        %6619 = vmatpush1.msra.mxu0 %v4696
        %6620 = vmatprep.subr.mxu0 %v4701
        %6621 = vmatpush1.msra.mxu0 %v4700
        %6622 = vmatprep.subr.mxu0 %v4705
        %6623 = vmatpush1.msra.mxu0 %v4704
        %6624 = vmatprep.subr.mxu0 %v4709
        %6625 = vmatpush1.msra.mxu0 %v4708
        %6626 = vmatprep.subr.mxu0 %v4713
        %6627 = vmatpush1.msra.mxu0 %v4712
        %6628 = vmatprep.subr.mxu0 %v5610
        %6629 = vmatpush1.msra.mxu0 %v5607
        %6630 = vmatprep.subr.mxu0 0.0
        %6631 = vmatpush1.msra.mxu0 0.0
        %6632 = vmatprep.subr.mxu0 0.0
        %6633 = vmatpush1.msra.mxu0 0.0
        %6634 = vmatprep.subr.mxu0 0.0
        %6635 = vmatpush1.msra.mxu0 0.0
        %6636 = vmatprep.subr.mxu0 0.0
        %6637 = vmatpush1.msra.mxu0 0.0
        %6638 = vmatprep.subr.mxu0 0.0
        %6639 = vmatpush1.msra.mxu0 0.0
        %6640 = vmatprep.subr.mxu0 0.0
        %6641 = vmatpush1.msra.mxu0 0.0
        %6642 = vmatprep.subr.mxu0 0.0
        %6643 = vmatpush1.msra.mxu0 0.0
        %6644 = vmatprep.subr.mxu0 0.0
        %6645 = vmatpush1.msra.mxu0 0.0
        %6646 = vmatprep.subr.mxu0 0.0
        %6647 = vmatpush1.msra.mxu0 0.0
        %6648 = vmatprep.subr.mxu0 0.0
        %6649 = vmatpush1.msra.mxu0 0.0
        %6650 = vmatprep.subr.mxu0 0.0
        %6651 = vmatpush1.msra.mxu0 0.0
        %6652 = vmatprep.subr.mxu0 0.0
        %6653 = vmatpush1.msra.mxu0 0.0
        %6654 = vmatprep.subr.mxu0 0.0
        %6655 = vmatpush1.msra.mxu0 0.0
        %6656 = vmatprep.subr.mxu0 0.0
        %6657 = vmatpush1.msra.mxu0 0.0
        %6658 = vmatprep.subr.mxu0 0.0
        %6659 = vmatpush1.msra.mxu0 0.0
        %6660 = vmatprep.subr.mxu0 0.0
        %6661 = vmatpush1.msra.mxu0 0.0
        %6662 = vmatprep.subr.mxu0 0.0
        %6663 = vmatpush1.msra.mxu0 0.0
        %6664 = vmatprep.subr.mxu0 0.0
        %6665 = vmatpush1.msra.mxu0 0.0
        %6666 = vmatprep.subr.mxu0 0.0
        %6667 = vmatpush1.msra.mxu0 0.0
        %6668 = vmatprep.subr.mxu0 0.0
        %6669 = vmatpush1.msra.mxu0 0.0
        %6670 = vmatprep.subr.mxu0 0.0
        %6671 = vmatpush1.msra.mxu0 0.0
        %6672 = vmatprep.subr.mxu0 0.0
        %6673 = vmatpush1.msra.mxu0 0.0
        %6674 = vmatprep.subr.mxu0 0.0
        %6675 = vmatpush1.msra.mxu0 0.0
        %6676 = vmatprep.subr.mxu0 0.0
        %6677 = vmatpush1.msra.mxu0 0.0
        %6678 = vmatprep.subr.mxu0 0.0
        %6679 = vmatpush1.msra.mxu0 0.0
        %6680 = vmatprep.subr.mxu0 0.0
        %6681 = vmatpush1.msra.mxu0 0.0
        %6682 = vmatprep.mubr.f32.mxu0 0.0
        %6683 = vmatmul.mubr.f32.gmra.mrb[0].mxu0 %v6536
        %v6684 = vpop.f32.mrb[0].mxu0
        %v6685 = vadd.f32 0.0, %v6684
        %v6686 = vpop.f32.mrb[0].mxu0
        %v6687 = vadd.f32 0.0, %v6686
        %6688 = vmatprep.mubr.f32.mxu0 0.0
        %6689 = vmatmul.mubr.f32.gmra.mrb[0].mxu0 %v6539
        %v6690 = vpop.f32.mrb[0].mxu0
        %v6691 = vadd.f32 0.0, %v6690
        %v6692 = vpop.f32.mrb[0].mxu0
        %v6693 = vadd.f32 0.0, %v6692
        %6694 = vdwg.mxu0
        %v6696 = vsel %vm5439, %v6471, 0
        %v6699 = vsel %vm5439, %v6472, 0
        %6701 = vmatprep.subr.mxu0 %v4719
        %6702 = vmatpush1.msra.mxu0 %v4718
        %6703 = vmatprep.subr.mxu0 %v4723
        %6704 = vmatpush1.msra.mxu0 %v4722
        %6705 = vmatprep.subr.mxu0 %v4727
        %6706 = vmatpush1.msra.mxu0 %v4726
        %6707 = vmatprep.subr.mxu0 %v4731
        %6708 = vmatpush1.msra.mxu0 %v4730
        %6709 = vmatprep.subr.mxu0 %v4735
        %6710 = vmatpush1.msra.mxu0 %v4734
        %6711 = vmatprep.subr.mxu0 %v5776
        %6712 = vmatpush1.msra.mxu0 %v5773
        %6713 = vmatprep.subr.mxu0 0.0
        %6714 = vmatpush1.msra.mxu0 0.0
        %6715 = vmatprep.subr.mxu0 0.0
        %6716 = vmatpush1.msra.mxu0 0.0
        %6717 = vmatprep.subr.mxu0 0.0
        %6718 = vmatpush1.msra.mxu0 0.0
        %6719 = vmatprep.subr.mxu0 0.0
        %6720 = vmatpush1.msra.mxu0 0.0
        %6721 = vmatprep.subr.mxu0 0.0
        %6722 = vmatpush1.msra.mxu0 0.0
        %6723 = vmatprep.subr.mxu0 0.0
        %6724 = vmatpush1.msra.mxu0 0.0
        %6725 = vmatprep.subr.mxu0 0.0
        %6726 = vmatpush1.msra.mxu0 0.0
        %6727 = vmatprep.subr.mxu0 0.0
        %6728 = vmatpush1.msra.mxu0 0.0
        %6729 = vmatprep.subr.mxu0 0.0
        %6730 = vmatpush1.msra.mxu0 0.0
        %6731 = vmatprep.subr.mxu0 0.0
        %6732 = vmatpush1.msra.mxu0 0.0
        %6733 = vmatprep.subr.mxu0 0.0
        %6734 = vmatpush1.msra.mxu0 0.0
        %6735 = vmatprep.subr.mxu0 0.0
        %6736 = vmatpush1.msra.mxu0 0.0
        %6737 = vmatprep.subr.mxu0 0.0
        %6738 = vmatpush1.msra.mxu0 0.0
        %6739 = vmatprep.subr.mxu0 0.0
        %6740 = vmatpush1.msra.mxu0 0.0
        %6741 = vmatprep.subr.mxu0 0.0
        %6742 = vmatpush1.msra.mxu0 0.0
        %6743 = vmatprep.subr.mxu0 0.0
        %6744 = vmatpush1.msra.mxu0 0.0
        %6745 = vmatprep.subr.mxu0 0.0
        %6746 = vmatpush1.msra.mxu0 0.0
        %6747 = vmatprep.subr.mxu0 0.0
        %6748 = vmatpush1.msra.mxu0 0.0
        %6749 = vmatprep.subr.mxu0 0.0
        %6750 = vmatpush1.msra.mxu0 0.0
        %6751 = vmatprep.subr.mxu0 0.0
        %6752 = vmatpush1.msra.mxu0 0.0
        %6753 = vmatprep.subr.mxu0 0.0
        %6754 = vmatpush1.msra.mxu0 0.0
        %6755 = vmatprep.subr.mxu0 0.0
        %6756 = vmatpush1.msra.mxu0 0.0
        %6757 = vmatprep.subr.mxu0 0.0
        %6758 = vmatpush1.msra.mxu0 0.0
        %6759 = vmatprep.subr.mxu0 0.0
        %6760 = vmatpush1.msra.mxu0 0.0
        %6761 = vmatprep.subr.mxu0 0.0
        %6762 = vmatpush1.msra.mxu0 0.0
        %6763 = vmatprep.subr.mxu0 0.0
        %6764 = vmatpush1.msra.mxu0 0.0
        %6765 = vmatprep.mubr.f32.mxu0 0.0
        %6766 = vmatmul.mubr.f32.gmra.mrb[0].mxu0 %v6696
        %v6767 = vpop.f32.mrb[0].mxu0
        %v6768 = vadd.f32 0.0, %v6767
        %v6769 = vpop.f32.mrb[0].mxu0
        %v6770 = vadd.f32 0.0, %v6769
        %6771 = vmatprep.mubr.f32.mxu0 0.0
        %6772 = vmatmul.mubr.f32.gmra.mrb[0].mxu0 %v6699
        %v6773 = vpop.f32.mrb[0].mxu0
        %v6774 = vadd.f32 0.0, %v6773
        %v6775 = vpop.f32.mrb[0].mxu0
        %v6776 = vadd.f32 0.0, %v6775
        %6777 = vdwg.mxu0
        %6778 = vmatprep.subr.mxu0 %v4721
        %6779 = vmatpush1.msra.mxu0 %v4720
        %6780 = vmatprep.subr.mxu0 %v4725
        %6781 = vmatpush1.msra.mxu0 %v4724
        %6782 = vmatprep.subr.mxu0 %v4729
        %6783 = vmatpush1.msra.mxu0 %v4728
        %6784 = vmatprep.subr.mxu0 %v4733
        %6785 = vmatpush1.msra.mxu0 %v4732
        %6786 = vmatprep.subr.mxu0 %v4737
        %6787 = vmatpush1.msra.mxu0 %v4736
        %6788 = vmatprep.subr.mxu0 %v5782
        %6789 = vmatpush1.msra.mxu0 %v5779
        %6790 = vmatprep.subr.mxu0 0.0
        %6791 = vmatpush1.msra.mxu0 0.0
        %6792 = vmatprep.subr.mxu0 0.0
        %6793 = vmatpush1.msra.mxu0 0.0
        %6794 = vmatprep.subr.mxu0 0.0
        %6795 = vmatpush1.msra.mxu0 0.0
        %6796 = vmatprep.subr.mxu0 0.0
        %6797 = vmatpush1.msra.mxu0 0.0
        %6798 = vmatprep.subr.mxu0 0.0
        %6799 = vmatpush1.msra.mxu0 0.0
        %6800 = vmatprep.subr.mxu0 0.0
        %6801 = vmatpush1.msra.mxu0 0.0
        %6802 = vmatprep.subr.mxu0 0.0
        %6803 = vmatpush1.msra.mxu0 0.0
        %6804 = vmatprep.subr.mxu0 0.0
        %6805 = vmatpush1.msra.mxu0 0.0
        %6806 = vmatprep.subr.mxu0 0.0
        %6807 = vmatpush1.msra.mxu0 0.0
        %6808 = vmatprep.subr.mxu0 0.0
        %6809 = vmatpush1.msra.mxu0 0.0
        %6810 = vmatprep.subr.mxu0 0.0
        %6811 = vmatpush1.msra.mxu0 0.0
        %6812 = vmatprep.subr.mxu0 0.0
        %6813 = vmatpush1.msra.mxu0 0.0
        %6814 = vmatprep.subr.mxu0 0.0
        %6815 = vmatpush1.msra.mxu0 0.0
        %6816 = vmatprep.subr.mxu0 0.0
        %6817 = vmatpush1.msra.mxu0 0.0
        %6818 = vmatprep.subr.mxu0 0.0
        %6819 = vmatpush1.msra.mxu0 0.0
        %6820 = vmatprep.subr.mxu0 0.0
        %6821 = vmatpush1.msra.mxu0 0.0
        %6822 = vmatprep.subr.mxu0 0.0
        %6823 = vmatpush1.msra.mxu0 0.0
        %6824 = vmatprep.subr.mxu0 0.0
        %6825 = vmatpush1.msra.mxu0 0.0
        %6826 = vmatprep.subr.mxu0 0.0
        %6827 = vmatpush1.msra.mxu0 0.0
        %6828 = vmatprep.subr.mxu0 0.0
        %6829 = vmatpush1.msra.mxu0 0.0
        %6830 = vmatprep.subr.mxu0 0.0
        %6831 = vmatpush1.msra.mxu0 0.0
        %6832 = vmatprep.subr.mxu0 0.0
        %6833 = vmatpush1.msra.mxu0 0.0
        %6834 = vmatprep.subr.mxu0 0.0
        %6835 = vmatpush1.msra.mxu0 0.0
        %6836 = vmatprep.subr.mxu0 0.0
        %6837 = vmatpush1.msra.mxu0 0.0
        %6838 = vmatprep.subr.mxu0 0.0
        %6839 = vmatpush1.msra.mxu0 0.0
        %6840 = vmatprep.subr.mxu0 0.0
        %6841 = vmatpush1.msra.mxu0 0.0
        %6842 = vmatprep.mubr.f32.mxu0 0.0
        %6843 = vmatmul.mubr.f32.gmra.mrb[0].mxu0 %v6696
        %v6844 = vpop.f32.mrb[0].mxu0
        %v6845 = vadd.f32 0.0, %v6844
        %v6846 = vpop.f32.mrb[0].mxu0
        %v6847 = vadd.f32 0.0, %v6846
        %6848 = vmatprep.mubr.f32.mxu0 0.0
        %6849 = vmatmul.mubr.f32.gmra.mrb[0].mxu0 %v6699
        %v6850 = vpop.f32.mrb[0].mxu0
        %v6851 = vadd.f32 0.0, %v6850
        %v6852 = vpop.f32.mrb[0].mxu0
        %v6853 = vadd.f32 0.0, %v6852
        %6854 = vdwg.mxu0
        %v6856 = vsel %vm5439, %v6531, 0
        %v6859 = vsel %vm5439, %v6532, 0
        %6861 = vmatprep.subr.mxu0 0.0
        %6862 = vmatpush1.xpose.msra.mxu0 %v6856
        %6863 = vmatprep.subr.mxu0 0.0
        %6864 = vmatpush1.xpose.msra.mxu0 %v6859
        %6865 = vmatprep.subr.mxu0 0.0
        %6866 = vmatpush1.xpose.msra.mxu0 0.0
        %6867 = vmatprep.subr.mxu0 0.0
        %6868 = vmatpush1.xpose.msra.mxu0 0.0
        %6869 = vmatprep.subr.mxu0 0.0
        %6870 = vmatpush1.xpose.msra.mxu0 0.0
        %6871 = vmatprep.subr.mxu0 0.0
        %6872 = vmatpush1.xpose.msra.mxu0 0.0
        %6873 = vmatprep.subr.mxu0 0.0
        %6874 = vmatpush1.xpose.msra.mxu0 0.0
        %6875 = vmatprep.subr.mxu0 0.0
        %6876 = vmatpush1.xpose.msra.mxu0 0.0
        %6877 = vmatprep.subr.mxu0 0.0
        %6878 = vmatpush1.xpose.msra.mxu0 0.0
        %6879 = vmatprep.subr.mxu0 0.0
        %6880 = vmatpush1.xpose.msra.mxu0 0.0
        %6881 = vmatprep.subr.mxu0 0.0
        %6882 = vmatpush1.xpose.msra.mxu0 0.0
        %6883 = vmatprep.subr.mxu0 0.0
        %6884 = vmatpush1.xpose.msra.mxu0 0.0
        %6885 = vmatprep.subr.mxu0 0.0
        %6886 = vmatpush1.xpose.msra.mxu0 0.0
        %6887 = vmatprep.subr.mxu0 0.0
        %6888 = vmatpush1.xpose.msra.mxu0 0.0
        %6889 = vmatprep.subr.mxu0 0.0
        %6890 = vmatpush1.xpose.msra.mxu0 0.0
        %6891 = vmatprep.subr.mxu0 0.0
        %6892 = vmatpush1.xpose.msra.mxu0 0.0
        %6893 = vmatprep.subr.mxu0 0.0
        %6894 = vmatpush1.xpose.msra.mxu0 0.0
        %6895 = vmatprep.subr.mxu0 0.0
        %6896 = vmatpush1.xpose.msra.mxu0 0.0
        %6897 = vmatprep.subr.mxu0 0.0
        %6898 = vmatpush1.xpose.msra.mxu0 0.0
        %6899 = vmatprep.subr.mxu0 0.0
        %6900 = vmatpush1.xpose.msra.mxu0 0.0
        %6901 = vmatprep.subr.mxu0 0.0
        %6902 = vmatpush1.xpose.msra.mxu0 0.0
        %6903 = vmatprep.subr.mxu0 0.0
        %6904 = vmatpush1.xpose.msra.mxu0 0.0
        %6905 = vmatprep.subr.mxu0 0.0
        %6906 = vmatpush1.xpose.msra.mxu0 0.0
        %6907 = vmatprep.subr.mxu0 0.0
        %6908 = vmatpush1.xpose.msra.mxu0 0.0
        %6909 = vmatprep.subr.mxu0 0.0
        %6910 = vmatpush1.xpose.msra.mxu0 0.0
        %6911 = vmatprep.subr.mxu0 0.0
        %6912 = vmatpush1.xpose.msra.mxu0 0.0
        %6913 = vmatprep.subr.mxu0 0.0
        %6914 = vmatpush1.xpose.msra.mxu0 0.0
        %6915 = vmatprep.subr.mxu0 0.0
        %6916 = vmatpush1.xpose.msra.mxu0 0.0
        %6917 = vmatprep.subr.mxu0 0.0
        %6918 = vmatpush1.xpose.msra.mxu0 0.0
        %6919 = vmatprep.subr.mxu0 0.0
        %6920 = vmatpush1.xpose.msra.mxu0 0.0
        %6921 = vmatprep.subr.mxu0 0.0
        %6922 = vmatpush1.xpose.msra.mxu0 0.0
        %6923 = vmatprep.subr.mxu0 0.0
        %6924 = vmatpush1.xpose.msra.mxu0 0.0
        %6925 = vmatprep.mubr.f32.mxu0 0.0
        %6926 = vmatmul.mubr.f32.gmra.mrb[0].mxu0 %v6536
        %v6927 = vpop.f32.mrb[0].mxu0
        %v6928 = vadd.f32 0.0, %v6927
        %v6929 = vpop.f32.mrb[0].mxu0
        %6930 = vmatprep.mubr.f32.mxu0 0.0
        %6931 = vmatmul.mubr.f32.gmra.mrb[0].mxu0 %v6539
        %v6932 = vpop.f32.mrb[0].mxu0
        %v6933 = vadd.f32 0.0, %v6932
        %v6934 = vpop.f32.mrb[0].mxu0
        %6935 = vdwg.mxu0
        %v6937 = vsel %vm5439, %v6533, 0
        %v6940 = vsel %vm5439, %v6534, 0
        %6942 = vmatprep.subr.mxu0 0.0
        %6943 = vmatpush1.xpose.msra.mxu0 %v6937
        %6944 = vmatprep.subr.mxu0 0.0
        %6945 = vmatpush1.xpose.msra.mxu0 %v6940
        %6946 = vmatprep.subr.mxu0 0.0
        %6947 = vmatpush1.xpose.msra.mxu0 0.0
        %6948 = vmatprep.subr.mxu0 0.0
        %6949 = vmatpush1.xpose.msra.mxu0 0.0
        %6950 = vmatprep.subr.mxu0 0.0
        %6951 = vmatpush1.xpose.msra.mxu0 0.0
        %6952 = vmatprep.subr.mxu0 0.0
        %6953 = vmatpush1.xpose.msra.mxu0 0.0
        %6954 = vmatprep.subr.mxu0 0.0
        %6955 = vmatpush1.xpose.msra.mxu0 0.0
        %6956 = vmatprep.subr.mxu0 0.0
        %6957 = vmatpush1.xpose.msra.mxu0 0.0
        %6958 = vmatprep.subr.mxu0 0.0
        %6959 = vmatpush1.xpose.msra.mxu0 0.0
        %6960 = vmatprep.subr.mxu0 0.0
        %6961 = vmatpush1.xpose.msra.mxu0 0.0
        %6962 = vmatprep.subr.mxu0 0.0
        %6963 = vmatpush1.xpose.msra.mxu0 0.0
        %6964 = vmatprep.subr.mxu0 0.0
        %6965 = vmatpush1.xpose.msra.mxu0 0.0
        %6966 = vmatprep.subr.mxu0 0.0
        %6967 = vmatpush1.xpose.msra.mxu0 0.0
        %6968 = vmatprep.subr.mxu0 0.0
        %6969 = vmatpush1.xpose.msra.mxu0 0.0
        %6970 = vmatprep.subr.mxu0 0.0
        %6971 = vmatpush1.xpose.msra.mxu0 0.0
        %6972 = vmatprep.subr.mxu0 0.0
        %6973 = vmatpush1.xpose.msra.mxu0 0.0
        %6974 = vmatprep.subr.mxu0 0.0
        %6975 = vmatpush1.xpose.msra.mxu0 0.0
        %6976 = vmatprep.subr.mxu0 0.0
        %6977 = vmatpush1.xpose.msra.mxu0 0.0
        %6978 = vmatprep.subr.mxu0 0.0
        %6979 = vmatpush1.xpose.msra.mxu0 0.0
        %6980 = vmatprep.subr.mxu0 0.0
        %6981 = vmatpush1.xpose.msra.mxu0 0.0
        %6982 = vmatprep.subr.mxu0 0.0
        %6983 = vmatpush1.xpose.msra.mxu0 0.0
        %6984 = vmatprep.subr.mxu0 0.0
        %6985 = vmatpush1.xpose.msra.mxu0 0.0
        %6986 = vmatprep.subr.mxu0 0.0
        %6987 = vmatpush1.xpose.msra.mxu0 0.0
        %6988 = vmatprep.subr.mxu0 0.0
        %6989 = vmatpush1.xpose.msra.mxu0 0.0
        %6990 = vmatprep.subr.mxu0 0.0
        %6991 = vmatpush1.xpose.msra.mxu0 0.0
        %6992 = vmatprep.subr.mxu0 0.0
        %6993 = vmatpush1.xpose.msra.mxu0 0.0
        %6994 = vmatprep.subr.mxu0 0.0
        %6995 = vmatpush1.xpose.msra.mxu0 0.0
        %6996 = vmatprep.subr.mxu0 0.0
        %6997 = vmatpush1.xpose.msra.mxu0 0.0
        %6998 = vmatprep.subr.mxu0 0.0
        %6999 = vmatpush1.xpose.msra.mxu0 0.0
        %7000 = vmatprep.subr.mxu0 0.0
        %7001 = vmatpush1.xpose.msra.mxu0 0.0
        %7002 = vmatprep.subr.mxu0 0.0
        %7003 = vmatpush1.xpose.msra.mxu0 0.0
        %7004 = vmatprep.subr.mxu0 0.0
        %7005 = vmatpush1.xpose.msra.mxu0 0.0
        %7006 = vmatprep.mubr.f32.mxu0 0.0
        %7007 = vmatmul.mubr.f32.gmra.mrb[0].mxu0 %v6696
        %v7008 = vpop.f32.mrb[0].mxu0
        %v7009 = vadd.f32 0.0, %v7008
        %v7010 = vpop.f32.mrb[0].mxu0
        %7011 = vmatprep.mubr.f32.mxu0 0.0
        %7012 = vmatmul.mubr.f32.gmra.mrb[0].mxu0 %v6699
        %v7013 = vpop.f32.mrb[0].mxu0
        %v7014 = vadd.f32 0.0, %v7013
        %v7015 = vpop.f32.mrb[0].mxu0
        %7016 = vdwg.mxu0
        %v7018 = vsel %vm6100, %v6928, 0
        %v7021 = vsel %vm6100, %v6933, 0
        %7023 = vmatprep.subr.mxu0 %v4254
        %7024 = vmatpush1.msra.mxu0 %v4252
        %7025 = vmatprep.subr.mxu0 %v4258
        %7026 = vmatpush1.msra.mxu0 %v4256
        %7027 = vmatprep.subr.mxu0 0.0
        %7028 = vmatpush1.msra.mxu0 0.0
        %7029 = vmatprep.subr.mxu0 0.0
        %7030 = vmatpush1.msra.mxu0 0.0
        %7031 = vmatprep.subr.mxu0 0.0
        %7032 = vmatpush1.msra.mxu0 0.0
        %7033 = vmatprep.subr.mxu0 0.0
        %7034 = vmatpush1.msra.mxu0 0.0
        %7035 = vmatprep.subr.mxu0 0.0
        %7036 = vmatpush1.msra.mxu0 0.0
        %7037 = vmatprep.subr.mxu0 0.0
        %7038 = vmatpush1.msra.mxu0 0.0
        %7039 = vmatprep.subr.mxu0 0.0
        %7040 = vmatpush1.msra.mxu0 0.0
        %7041 = vmatprep.subr.mxu0 0.0
        %7042 = vmatpush1.msra.mxu0 0.0
        %7043 = vmatprep.subr.mxu0 0.0
        %7044 = vmatpush1.msra.mxu0 0.0
        %7045 = vmatprep.subr.mxu0 0.0
        %7046 = vmatpush1.msra.mxu0 0.0
        %7047 = vmatprep.subr.mxu0 0.0
        %7048 = vmatpush1.msra.mxu0 0.0
        %7049 = vmatprep.subr.mxu0 0.0
        %7050 = vmatpush1.msra.mxu0 0.0
        %7051 = vmatprep.subr.mxu0 0.0
        %7052 = vmatpush1.msra.mxu0 0.0
        %7053 = vmatprep.subr.mxu0 0.0
        %7054 = vmatpush1.msra.mxu0 0.0
        %7055 = vmatprep.subr.mxu0 0.0
        %7056 = vmatpush1.msra.mxu0 0.0
        %7057 = vmatprep.subr.mxu0 0.0
        %7058 = vmatpush1.msra.mxu0 0.0
        %7059 = vmatprep.subr.mxu0 0.0
        %7060 = vmatpush1.msra.mxu0 0.0
        %7061 = vmatprep.subr.mxu0 0.0
        %7062 = vmatpush1.msra.mxu0 0.0
        %7063 = vmatprep.subr.mxu0 0.0
        %7064 = vmatpush1.msra.mxu0 0.0
        %7065 = vmatprep.subr.mxu0 0.0
        %7066 = vmatpush1.msra.mxu0 0.0
        %7067 = vmatprep.subr.mxu0 0.0
        %7068 = vmatpush1.msra.mxu0 0.0
        %7069 = vmatprep.subr.mxu0 0.0
        %7070 = vmatpush1.msra.mxu0 0.0
        %7071 = vmatprep.subr.mxu0 0.0
        %7072 = vmatpush1.msra.mxu0 0.0
        %7073 = vmatprep.subr.mxu0 0.0
        %7074 = vmatpush1.msra.mxu0 0.0
        %7075 = vmatprep.subr.mxu0 0.0
        %7076 = vmatpush1.msra.mxu0 0.0
        %7077 = vmatprep.subr.mxu0 0.0
        %7078 = vmatpush1.msra.mxu0 0.0
        %7079 = vmatprep.subr.mxu0 0.0
        %7080 = vmatpush1.msra.mxu0 0.0
        %7081 = vmatprep.subr.mxu0 0.0
        %7082 = vmatpush1.msra.mxu0 0.0
        %7083 = vmatprep.subr.mxu0 0.0
        %7084 = vmatpush1.msra.mxu0 0.0
        %7085 = vmatprep.subr.mxu0 0.0
        %7086 = vmatpush1.msra.mxu0 0.0
        %7087 = vmatprep.mubr.f32.mxu0 0.0
        %7088 = vmatmul.mubr.f32.gmra.mrb[0].mxu0 %v7018
        %v7089 = vpop.f32.mrb[0].mxu0
        %v7090 = vadd.f32 0.0, %v7089
        %v7091 = vpop.f32.mrb[0].mxu0
        %v7092 = vadd.f32 0.0, %v7091
        %7093 = vmatprep.mubr.f32.mxu0 0.0
        %7094 = vmatmul.mubr.f32.gmra.mrb[0].mxu0 %v7021
        %v7095 = vpop.f32.mrb[0].mxu0
        %v7096 = vadd.f32 0.0, %v7095
        %v7097 = vpop.f32.mrb[0].mxu0
        %v7098 = vadd.f32 0.0, %v7097
        %7099 = vdwg.mxu0
        %7100 = vmatprep.subr.mxu0 %v4678
        %7101 = vmatpush1.msra.mxu0 %v4676
        %7102 = vmatprep.subr.mxu0 %v4682
        %7103 = vmatpush1.msra.mxu0 %v4680
        %7104 = vmatprep.subr.mxu0 0.0
        %7105 = vmatpush1.msra.mxu0 0.0
        %7106 = vmatprep.subr.mxu0 0.0
        %7107 = vmatpush1.msra.mxu0 0.0
        %7108 = vmatprep.subr.mxu0 0.0
        %7109 = vmatpush1.msra.mxu0 0.0
        %7110 = vmatprep.subr.mxu0 0.0
        %7111 = vmatpush1.msra.mxu0 0.0
        %7112 = vmatprep.subr.mxu0 0.0
        %7113 = vmatpush1.msra.mxu0 0.0
        %7114 = vmatprep.subr.mxu0 0.0
        %7115 = vmatpush1.msra.mxu0 0.0
        %7116 = vmatprep.subr.mxu0 0.0
        %7117 = vmatpush1.msra.mxu0 0.0
        %7118 = vmatprep.subr.mxu0 0.0
        %7119 = vmatpush1.msra.mxu0 0.0
        %7120 = vmatprep.subr.mxu0 0.0
        %7121 = vmatpush1.msra.mxu0 0.0
        %7122 = vmatprep.subr.mxu0 0.0
        %7123 = vmatpush1.msra.mxu0 0.0
        %7124 = vmatprep.subr.mxu0 0.0
        %7125 = vmatpush1.msra.mxu0 0.0
        %7126 = vmatprep.subr.mxu0 0.0
        %7127 = vmatpush1.msra.mxu0 0.0
        %7128 = vmatprep.subr.mxu0 0.0
        %7129 = vmatpush1.msra.mxu0 0.0
        %7130 = vmatprep.subr.mxu0 0.0
        %7131 = vmatpush1.msra.mxu0 0.0
        %7132 = vmatprep.subr.mxu0 0.0
        %7133 = vmatpush1.msra.mxu0 0.0
        %7134 = vmatprep.subr.mxu0 0.0
        %7135 = vmatpush1.msra.mxu0 0.0
        %7136 = vmatprep.subr.mxu0 0.0
        %7137 = vmatpush1.msra.mxu0 0.0
        %7138 = vmatprep.subr.mxu0 0.0
        %7139 = vmatpush1.msra.mxu0 0.0
        %7140 = vmatprep.subr.mxu0 0.0
        %7141 = vmatpush1.msra.mxu0 0.0
        %7142 = vmatprep.subr.mxu0 0.0
        %7143 = vmatpush1.msra.mxu0 0.0
        %7144 = vmatprep.subr.mxu0 0.0
        %7145 = vmatpush1.msra.mxu0 0.0
        %7146 = vmatprep.subr.mxu0 0.0
        %7147 = vmatpush1.msra.mxu0 0.0
        %7148 = vmatprep.subr.mxu0 0.0
        %7149 = vmatpush1.msra.mxu0 0.0
        %7150 = vmatprep.subr.mxu0 0.0
        %7151 = vmatpush1.msra.mxu0 0.0
        %7152 = vmatprep.subr.mxu0 0.0
        %7153 = vmatpush1.msra.mxu0 0.0
        %7154 = vmatprep.subr.mxu0 0.0
        %7155 = vmatpush1.msra.mxu0 0.0
        %7156 = vmatprep.subr.mxu0 0.0
        %7157 = vmatpush1.msra.mxu0 0.0
        %7158 = vmatprep.subr.mxu0 0.0
        %7159 = vmatpush1.msra.mxu0 0.0
        %7160 = vmatprep.subr.mxu0 0.0
        %7161 = vmatpush1.msra.mxu0 0.0
        %7162 = vmatprep.subr.mxu0 0.0
        %7163 = vmatpush1.msra.mxu0 0.0
        %7164 = vmatprep.mubr.f32.mxu0 0.0
        %7165 = vmatmul.mubr.f32.gmra.mrb[0].mxu0 %v7018
        %v7166 = vpop.f32.mrb[0].mxu0
        %v7167 = vadd.f32 0.0, %v7166
        %v7168 = vpop.f32.mrb[0].mxu0
        %v7169 = vadd.f32 0.0, %v7168
        %7170 = vmatprep.mubr.f32.mxu0 0.0
        %7171 = vmatmul.mubr.f32.gmra.mrb[0].mxu0 %v7021
        %v7172 = vpop.f32.mrb[0].mxu0
        %v7173 = vadd.f32 0.0, %v7172
        %v7174 = vpop.f32.mrb[0].mxu0
        %v7175 = vadd.f32 0.0, %v7174
        %7176 = vdwg.mxu0
        %v7178 = vsel %vm6100, %v7009, 0
        %v7181 = vsel %vm6100, %v7014, 0
        %7183 = vmatprep.subr.mxu0 %v4264
        %7184 = vmatpush1.msra.mxu0 %v4262
        %7185 = vmatprep.subr.mxu0 %v4268
        %7186 = vmatpush1.msra.mxu0 %v4266
        %7187 = vmatprep.subr.mxu0 0.0
        %7188 = vmatpush1.msra.mxu0 0.0
        %7189 = vmatprep.subr.mxu0 0.0
        %7190 = vmatpush1.msra.mxu0 0.0
        %7191 = vmatprep.subr.mxu0 0.0
        %7192 = vmatpush1.msra.mxu0 0.0
        %7193 = vmatprep.subr.mxu0 0.0
        %7194 = vmatpush1.msra.mxu0 0.0
        %7195 = vmatprep.subr.mxu0 0.0
        %7196 = vmatpush1.msra.mxu0 0.0
        %7197 = vmatprep.subr.mxu0 0.0
        %7198 = vmatpush1.msra.mxu0 0.0
        %7199 = vmatprep.subr.mxu0 0.0
        %7200 = vmatpush1.msra.mxu0 0.0
        %7201 = vmatprep.subr.mxu0 0.0
        %7202 = vmatpush1.msra.mxu0 0.0
        %7203 = vmatprep.subr.mxu0 0.0
        %7204 = vmatpush1.msra.mxu0 0.0
        %7205 = vmatprep.subr.mxu0 0.0
        %7206 = vmatpush1.msra.mxu0 0.0
        %7207 = vmatprep.subr.mxu0 0.0
        %7208 = vmatpush1.msra.mxu0 0.0
        %7209 = vmatprep.subr.mxu0 0.0
        %7210 = vmatpush1.msra.mxu0 0.0
        %7211 = vmatprep.subr.mxu0 0.0
        %7212 = vmatpush1.msra.mxu0 0.0
        %7213 = vmatprep.subr.mxu0 0.0
        %7214 = vmatpush1.msra.mxu0 0.0
        %7215 = vmatprep.subr.mxu0 0.0
        %7216 = vmatpush1.msra.mxu0 0.0
        %7217 = vmatprep.subr.mxu0 0.0
        %7218 = vmatpush1.msra.mxu0 0.0
        %7219 = vmatprep.subr.mxu0 0.0
        %7220 = vmatpush1.msra.mxu0 0.0
        %7221 = vmatprep.subr.mxu0 0.0
        %7222 = vmatpush1.msra.mxu0 0.0
        %7223 = vmatprep.subr.mxu0 0.0
        %7224 = vmatpush1.msra.mxu0 0.0
        %7225 = vmatprep.subr.mxu0 0.0
        %7226 = vmatpush1.msra.mxu0 0.0
        %7227 = vmatprep.subr.mxu0 0.0
        %7228 = vmatpush1.msra.mxu0 0.0
        %7229 = vmatprep.subr.mxu0 0.0
        %7230 = vmatpush1.msra.mxu0 0.0
        %7231 = vmatprep.subr.mxu0 0.0
        %7232 = vmatpush1.msra.mxu0 0.0
        %7233 = vmatprep.subr.mxu0 0.0
        %7234 = vmatpush1.msra.mxu0 0.0
        %7235 = vmatprep.subr.mxu0 0.0
        %7236 = vmatpush1.msra.mxu0 0.0
        %7237 = vmatprep.subr.mxu0 0.0
        %7238 = vmatpush1.msra.mxu0 0.0
        %7239 = vmatprep.subr.mxu0 0.0
        %7240 = vmatpush1.msra.mxu0 0.0
        %7241 = vmatprep.subr.mxu0 0.0
        %7242 = vmatpush1.msra.mxu0 0.0
        %7243 = vmatprep.subr.mxu0 0.0
        %7244 = vmatpush1.msra.mxu0 0.0
        %7245 = vmatprep.subr.mxu0 0.0
        %7246 = vmatpush1.msra.mxu0 0.0
        %7247 = vmatprep.mubr.f32.mxu0 0.0
        %7248 = vmatmul.mubr.f32.gmra.mrb[0].mxu0 %v7178
        %v7249 = vpop.f32.mrb[0].mxu0
        %v7250 = vadd.f32 0.0, %v7249
        %v7251 = vpop.f32.mrb[0].mxu0
        %v7252 = vadd.f32 0.0, %v7251
        %7253 = vmatprep.mubr.f32.mxu0 0.0
        %7254 = vmatmul.mubr.f32.gmra.mrb[0].mxu0 %v7181
        %v7255 = vpop.f32.mrb[0].mxu0
        %v7256 = vadd.f32 0.0, %v7255
        %v7257 = vpop.f32.mrb[0].mxu0
        %v7258 = vadd.f32 0.0, %v7257
        %7259 = vdwg.mxu0
        %7260 = vmatprep.subr.mxu0 %v4688
        %7261 = vmatpush1.msra.mxu0 %v4686
        %7262 = vmatprep.subr.mxu0 %v4692
        %7263 = vmatpush1.msra.mxu0 %v4690
        %7264 = vmatprep.subr.mxu0 0.0
        %7265 = vmatpush1.msra.mxu0 0.0
        %7266 = vmatprep.subr.mxu0 0.0
        %7267 = vmatpush1.msra.mxu0 0.0
        %7268 = vmatprep.subr.mxu0 0.0
        %7269 = vmatpush1.msra.mxu0 0.0
        %7270 = vmatprep.subr.mxu0 0.0
        %7271 = vmatpush1.msra.mxu0 0.0
        %7272 = vmatprep.subr.mxu0 0.0
        %7273 = vmatpush1.msra.mxu0 0.0
        %7274 = vmatprep.subr.mxu0 0.0
        %7275 = vmatpush1.msra.mxu0 0.0
        %7276 = vmatprep.subr.mxu0 0.0
        %7277 = vmatpush1.msra.mxu0 0.0
        %7278 = vmatprep.subr.mxu0 0.0
        %7279 = vmatpush1.msra.mxu0 0.0
        %7280 = vmatprep.subr.mxu0 0.0
        %7281 = vmatpush1.msra.mxu0 0.0
        %7282 = vmatprep.subr.mxu0 0.0
        %7283 = vmatpush1.msra.mxu0 0.0
        %7284 = vmatprep.subr.mxu0 0.0
        %7285 = vmatpush1.msra.mxu0 0.0
        %7286 = vmatprep.subr.mxu0 0.0
        %7287 = vmatpush1.msra.mxu0 0.0
        %7288 = vmatprep.subr.mxu0 0.0
        %7289 = vmatpush1.msra.mxu0 0.0
        %7290 = vmatprep.subr.mxu0 0.0
        %7291 = vmatpush1.msra.mxu0 0.0
        %7292 = vmatprep.subr.mxu0 0.0
        %7293 = vmatpush1.msra.mxu0 0.0
        %7294 = vmatprep.subr.mxu0 0.0
        %7295 = vmatpush1.msra.mxu0 0.0
        %7296 = vmatprep.subr.mxu0 0.0
        %7297 = vmatpush1.msra.mxu0 0.0
        %7298 = vmatprep.subr.mxu0 0.0
        %7299 = vmatpush1.msra.mxu0 0.0
        %7300 = vmatprep.subr.mxu0 0.0
        %7301 = vmatpush1.msra.mxu0 0.0
        %7302 = vmatprep.subr.mxu0 0.0
        %7303 = vmatpush1.msra.mxu0 0.0
        %7304 = vmatprep.subr.mxu0 0.0
        %7305 = vmatpush1.msra.mxu0 0.0
        %7306 = vmatprep.subr.mxu0 0.0
        %7307 = vmatpush1.msra.mxu0 0.0
        %7308 = vmatprep.subr.mxu0 0.0
        %7309 = vmatpush1.msra.mxu0 0.0
        %7310 = vmatprep.subr.mxu0 0.0
        %7311 = vmatpush1.msra.mxu0 0.0
        %7312 = vmatprep.subr.mxu0 0.0
        %7313 = vmatpush1.msra.mxu0 0.0
        %7314 = vmatprep.subr.mxu0 0.0
        %7315 = vmatpush1.msra.mxu0 0.0
        %7316 = vmatprep.subr.mxu0 0.0
        %7317 = vmatpush1.msra.mxu0 0.0
        %7318 = vmatprep.subr.mxu0 0.0
        %7319 = vmatpush1.msra.mxu0 0.0
        %7320 = vmatprep.subr.mxu0 0.0
        %7321 = vmatpush1.msra.mxu0 0.0
        %7322 = vmatprep.subr.mxu0 0.0
        %7323 = vmatpush1.msra.mxu0 0.0
        %7324 = vmatprep.mubr.f32.mxu0 0.0
        %7325 = vmatmul.mubr.f32.gmra.mrb[0].mxu0 %v7178
        %v7326 = vpop.f32.mrb[0].mxu0
        %v7327 = vadd.f32 0.0, %v7326
        %v7328 = vpop.f32.mrb[0].mxu0
        %v7329 = vadd.f32 0.0, %v7328
        %7330 = vmatprep.mubr.f32.mxu0 0.0
        %7331 = vmatmul.mubr.f32.gmra.mrb[0].mxu0 %v7181
        %v7332 = vpop.f32.mrb[0].mxu0
        %v7333 = vadd.f32 0.0, %v7332
        %v7334 = vpop.f32.mrb[0].mxu0
        %v7335 = vadd.f32 0.0, %v7334
        %7336 = vdwg.mxu0
        %v7337 = vsub.f32 %v5679, %v6608
        %v7338 = vsub.f32 %v5681, %v6610
        %v7339 = vsub.f32 %v5756, %v6685
        %v7340 = vsub.f32 %v5758, %v6687
        %v7341 = vsub.f32 %v5685, %v6614
        %v7342 = vsub.f32 %v5687, %v6616
        %v7343 = vsub.f32 %v5762, %v6691
        %v7344 = vsub.f32 %v5764, %v6693
        %v7345 = vsub.f32 %v5851, %v6768
        %v7346 = vsub.f32 %v5853, %v6770
        %v7347 = vsub.f32 %v5928, %v6845
        %v7348 = vsub.f32 %v5930, %v6847
        %v7349 = vsub.f32 %v5857, %v6774
        %v7350 = vsub.f32 %v5859, %v6776
        %v7351 = vsub.f32 %v5934, %v6851
        %v7352 = vsub.f32 %v5936, %v6853
        %v7353 = vsub.f32 %v6174, %v7090
        %v7354 = vsub.f32 %v6176, %v7092
        %v7355 = vsub.f32 %v6251, %v7167
        %v7356 = vsub.f32 %v6253, %v7169
        %v7357 = vsub.f32 %v6180, %v7096
        %v7358 = vsub.f32 %v6182, %v7098
        %v7359 = vsub.f32 %v6257, %v7173
        %v7360 = vsub.f32 %v6259, %v7175
        %v7361 = vsub.f32 %v6334, %v7250
        %v7362 = vsub.f32 %v6336, %v7252
        %v7363 = vsub.f32 %v6411, %v7327
        %v7364 = vsub.f32 %v6413, %v7329
        %v7365 = vsub.f32 %v6340, %v7256
        %v7366 = vsub.f32 %v6342, %v7258
        %v7367 = vsub.f32 %v6417, %v7333
        %v7368 = vsub.f32 %v6419, %v7335
        %7369 = vst [vmem:[%s516] sm:$0xff] %v4252
        %7370 = vst [vmem:[%s516 + $0x8] sm:$0xff] %v4254
        %7371 = vst [vmem:[%s516 + $0x10] sm:$0xff] %v4676
        %7372 = vst [vmem:[%s516 + $0x18] sm:$0xff] %v4678
        %7373 = vst [vmem:[%s516 + $0x20] sm:$0xff] %v4256
        %7374 = vst [vmem:[%s516 + $0x28] sm:$0xff] %v4258
        %7375 = vst [vmem:[%s516 + $0x30] sm:$0xff] %v4680
        %7376 = vst [vmem:[%s516 + $0x38] sm:$0xff] %v4682
        %7377 = vst [vmem:[%s516 + $0x40] sm:$0xff] %v4262
        %7378 = vst [vmem:[%s516 + $0x48] sm:$0xff] %v4264
        %7379 = vst [vmem:[%s516 + $0x50] sm:$0xff] %v4686
        %7380 = vst [vmem:[%s516 + $0x58] sm:$0xff] %v4688
        %7381 = vst [vmem:[%s516 + $0x60] sm:$0xff] %v4266
        %7382 = vst [vmem:[%s516 + $0x68] sm:$0xff] %v4268
        %7383 = vst [vmem:[%s516 + $0x70] sm:$0xff] %v4690
        %7384 = vst [vmem:[%s516 + $0x78] sm:$0xff] %v4692
        %7385 = vst [vmem:[%s509] sm:$0xff] %v4252
        %7386 = vst [vmem:[%s509 + $0x8] sm:$0xff] %v4254
        %7387 = vst [vmem:[%s509 + $0x10] sm:$0xff] %v4676
        %7388 = vst [vmem:[%s509 + $0x18] sm:$0xff] %v4678
        %7389 = vst [vmem:[%s509 + $0x80] sm:$0xff] %v4256
        %7390 = vst [vmem:[%s509 + $0x88] sm:$0xff] %v4258
        %7391 = vst [vmem:[%s509 + $0x90] sm:$0xff] %v4680
        %7392 = vst [vmem:[%s509 + $0x98] sm:$0xff] %v4682
        %7393 = vst [vmem:[%s509 + $0x100] sm:$0xff] %v4262
        %7394 = vst [vmem:[%s509 + $0x108] sm:$0xff] %v4264
        %7395 = vst [vmem:[%s509 + $0x110] sm:$0xff] %v4686
        %7396 = vst [vmem:[%s509 + $0x118] sm:$0xff] %v4688
        %7397 = vst [vmem:[%s509 + $0x180] sm:$0xff] %v4266
        %7398 = vst [vmem:[%s509 + $0x188] sm:$0xff] %v4268
        %7399 = vst [vmem:[%s509 + $0x190] sm:$0xff] %v4690
        %7400 = vst [vmem:[%s509 + $0x198] sm:$0xff] %v4692
        %7401 = vst [vmem:[%s509 + $0x20] sm:$0xff] %v5679
        %7402 = vst [vmem:[%s509 + $0x28] sm:$0xff] %v5681
        %7403 = vst [vmem:[%s509 + $0x30] sm:$0xff] %v5756
        %7404 = vst [vmem:[%s509 + $0x38] sm:$0xff] %v5758
        %7405 = vst [vmem:[%s509 + $0xa0] sm:$0xff] %v5685
        %7406 = vst [vmem:[%s509 + $0xa8] sm:$0xff] %v5687
        %7407 = vst [vmem:[%s509 + $0xb0] sm:$0xff] %v5762
        %7408 = vst [vmem:[%s509 + $0xb8] sm:$0xff] %v5764
        %7409 = vst [vmem:[%s509 + $0x120] sm:$0xff] %v5851
        %7410 = vst [vmem:[%s509 + $0x128] sm:$0xff] %v5853
        %7411 = vst [vmem:[%s509 + $0x130] sm:$0xff] %v5928
        %7412 = vst [vmem:[%s509 + $0x138] sm:$0xff] %v5930
        %7413 = vst [vmem:[%s509 + $0x1a0] sm:$0xff] %v5857
        %7414 = vst [vmem:[%s509 + $0x1a8] sm:$0xff] %v5859
        %7415 = vst [vmem:[%s509 + $0x1b0] sm:$0xff] %v5934
        %7416 = vst [vmem:[%s509 + $0x1b8] sm:$0xff] %v5936
        %v7417 = vmul.f32 %v4252, %v5679
        %v7418 = vmul.f32 %v4254, %v5681
        %v7419 = vmul.f32 %v4676, %v5756
        %v7420 = vmul.f32 %v4678, %v5758
        %v7421 = vmul.f32 %v4256, %v5685
        %v7422 = vmul.f32 %v4258, %v5687
        %v7423 = vmul.f32 %v4680, %v5762
        %v7424 = vmul.f32 %v4682, %v5764
        %v7425 = vmul.f32 %v4262, %v5851
        %v7426 = vmul.f32 %v4264, %v5853
        %v7427 = vmul.f32 %v4686, %v5928
        %v7428 = vmul.f32 %v4688, %v5930
        %v7429 = vmul.f32 %v4266, %v5857
        %v7430 = vmul.f32 %v4268, %v5859
        %v7431 = vmul.f32 %v4690, %v5934
        %v7432 = vmul.f32 %v4692, %v5936
        %7433 = vst [vmem:[%s509 + $0x40] sm:$0xff] %v7417
        %7434 = vst [vmem:[%s509 + $0x48] sm:$0xff] %v7418
        %7435 = vst [vmem:[%s509 + $0x50] sm:$0xff] %v7419
        %7436 = vst [vmem:[%s509 + $0x58] sm:$0xff] %v7420
        %7437 = vst [vmem:[%s509 + $0xc0] sm:$0xff] %v7421
        %7438 = vst [vmem:[%s509 + $0xc8] sm:$0xff] %v7422
        %7439 = vst [vmem:[%s509 + $0xd0] sm:$0xff] %v7423
        %7440 = vst [vmem:[%s509 + $0xd8] sm:$0xff] %v7424
        %7441 = vst [vmem:[%s509 + $0x140] sm:$0xff] %v7425
        %7442 = vst [vmem:[%s509 + $0x148] sm:$0xff] %v7426
        %7443 = vst [vmem:[%s509 + $0x150] sm:$0xff] %v7427
        %7444 = vst [vmem:[%s509 + $0x158] sm:$0xff] %v7428
        %7445 = vst [vmem:[%s509 + $0x1c0] sm:$0xff] %v7429
        %7446 = vst [vmem:[%s509 + $0x1c8] sm:$0xff] %v7430
        %7447 = vst [vmem:[%s509 + $0x1d0] sm:$0xff] %v7431
        %7448 = vst [vmem:[%s509 + $0x1d8] sm:$0xff] %v7432
        %v7449 = vmul.f32 %v4252, %v6174
        %v7450 = vmul.f32 %v4254, %v6176
        %v7451 = vmul.f32 %v4676, %v6251
        %v7452 = vmul.f32 %v4678, %v6253
        %v7453 = vmul.f32 %v4256, %v6180
        %v7454 = vmul.f32 %v4258, %v6182
        %v7455 = vmul.f32 %v4680, %v6257
        %v7456 = vmul.f32 %v4682, %v6259
        %v7457 = vmul.f32 %v4262, %v6334
        %v7458 = vmul.f32 %v4264, %v6336
        %v7459 = vmul.f32 %v4686, %v6411
        %v7460 = vmul.f32 %v4688, %v6413
        %v7461 = vmul.f32 %v4266, %v6340
        %v7462 = vmul.f32 %v4268, %v6342
        %v7463 = vmul.f32 %v4690, %v6417
        %v7464 = vmul.f32 %v4692, %v6419
        %7465 = vst [vmem:[%s509 + $0x60] sm:$0xff] %v7449
        %7466 = vst [vmem:[%s509 + $0x68] sm:$0xff] %v7450
        %7467 = vst [vmem:[%s509 + $0x70] sm:$0xff] %v7451
        %7468 = vst [vmem:[%s509 + $0x78] sm:$0xff] %v7452
        %7469 = vst [vmem:[%s509 + $0xe0] sm:$0xff] %v7453
        %7470 = vst [vmem:[%s509 + $0xe8] sm:$0xff] %v7454
        %7471 = vst [vmem:[%s509 + $0xf0] sm:$0xff] %v7455
        %7472 = vst [vmem:[%s509 + $0xf8] sm:$0xff] %v7456
        %7473 = vst [vmem:[%s509 + $0x160] sm:$0xff] %v7457
        %7474 = vst [vmem:[%s509 + $0x168] sm:$0xff] %v7458
        %7475 = vst [vmem:[%s509 + $0x170] sm:$0xff] %v7459
        %7476 = vst [vmem:[%s509 + $0x178] sm:$0xff] %v7460
        %7477 = vst [vmem:[%s509 + $0x1e0] sm:$0xff] %v7461
        %7478 = vst [vmem:[%s509 + $0x1e8] sm:$0xff] %v7462
        %7479 = vst [vmem:[%s509 + $0x1f0] sm:$0xff] %v7463
        %7480 = vst [vmem:[%s509 + $0x1f8] sm:$0xff] %v7464
        %7481 = vst [vmem:[%s523] sm:$0xff] %v4252
        %7482 = vst [vmem:[%s523 + $0x8] sm:$0xff] %v4254
        %7483 = vst [vmem:[%s523 + $0x10] sm:$0xff] %v4676
        %7484 = vst [vmem:[%s523 + $0x18] sm:$0xff] %v4678
        %7485 = vst [vmem:[%s523 + $0x80] sm:$0xff] %v4256
        %7486 = vst [vmem:[%s523 + $0x88] sm:$0xff] %v4258
        %7487 = vst [vmem:[%s523 + $0x90] sm:$0xff] %v4680
        %7488 = vst [vmem:[%s523 + $0x98] sm:$0xff] %v4682
        %7489 = vst [vmem:[%s523 + $0x100] sm:$0xff] %v4262
        %7490 = vst [vmem:[%s523 + $0x108] sm:$0xff] %v4264
        %7491 = vst [vmem:[%s523 + $0x110] sm:$0xff] %v4686
        %7492 = vst [vmem:[%s523 + $0x118] sm:$0xff] %v4688
        %7493 = vst [vmem:[%s523 + $0x180] sm:$0xff] %v4266
        %7494 = vst [vmem:[%s523 + $0x188] sm:$0xff] %v4268
        %7495 = vst [vmem:[%s523 + $0x190] sm:$0xff] %v4690
        %7496 = vst [vmem:[%s523 + $0x198] sm:$0xff] %v4692
        %7497 = vst [vmem:[%s523 + $0x20] sm:$0xff] %v7337
        %7498 = vst [vmem:[%s523 + $0x28] sm:$0xff] %v7338
        %7499 = vst [vmem:[%s523 + $0x30] sm:$0xff] %v7339
        %7500 = vst [vmem:[%s523 + $0x38] sm:$0xff] %v7340
        %7501 = vst [vmem:[%s523 + $0xa0] sm:$0xff] %v7341
        %7502 = vst [vmem:[%s523 + $0xa8] sm:$0xff] %v7342
        %7503 = vst [vmem:[%s523 + $0xb0] sm:$0xff] %v7343
        %7504 = vst [vmem:[%s523 + $0xb8] sm:$0xff] %v7344
        %7505 = vst [vmem:[%s523 + $0x120] sm:$0xff] %v7345
        %7506 = vst [vmem:[%s523 + $0x128] sm:$0xff] %v7346
        %7507 = vst [vmem:[%s523 + $0x130] sm:$0xff] %v7347
        %7508 = vst [vmem:[%s523 + $0x138] sm:$0xff] %v7348
        %7509 = vst [vmem:[%s523 + $0x1a0] sm:$0xff] %v7349
        %7510 = vst [vmem:[%s523 + $0x1a8] sm:$0xff] %v7350
        %7511 = vst [vmem:[%s523 + $0x1b0] sm:$0xff] %v7351
        %7512 = vst [vmem:[%s523 + $0x1b8] sm:$0xff] %v7352
        %v7513 = vmul.f32 %v4252, %v7337
        %v7514 = vmul.f32 %v4254, %v7338
        %v7515 = vmul.f32 %v4676, %v7339
        %v7516 = vmul.f32 %v4678, %v7340
        %v7517 = vmul.f32 %v4256, %v7341
        %v7518 = vmul.f32 %v4258, %v7342
        %v7519 = vmul.f32 %v4680, %v7343
        %v7520 = vmul.f32 %v4682, %v7344
        %v7521 = vmul.f32 %v4262, %v7345
        %v7522 = vmul.f32 %v4264, %v7346
        %v7523 = vmul.f32 %v4686, %v7347
        %v7524 = vmul.f32 %v4688, %v7348
        %v7525 = vmul.f32 %v4266, %v7349
        %v7526 = vmul.f32 %v4268, %v7350
        %v7527 = vmul.f32 %v4690, %v7351
        %v7528 = vmul.f32 %v4692, %v7352
        %7529 = vst [vmem:[%s523 + $0x40] sm:$0xff] %v7513
        %7530 = vst [vmem:[%s523 + $0x48] sm:$0xff] %v7514
        %7531 = vst [vmem:[%s523 + $0x50] sm:$0xff] %v7515
        %7532 = vst [vmem:[%s523 + $0x58] sm:$0xff] %v7516
        %7533 = vst [vmem:[%s523 + $0xc0] sm:$0xff] %v7517
        %7534 = vst [vmem:[%s523 + $0xc8] sm:$0xff] %v7518
        %7535 = vst [vmem:[%s523 + $0xd0] sm:$0xff] %v7519
        %7536 = vst [vmem:[%s523 + $0xd8] sm:$0xff] %v7520
        %7537 = vst [vmem:[%s523 + $0x140] sm:$0xff] %v7521
        %7538 = vst [vmem:[%s523 + $0x148] sm:$0xff] %v7522
        %7539 = vst [vmem:[%s523 + $0x150] sm:$0xff] %v7523
        %7540 = vst [vmem:[%s523 + $0x158] sm:$0xff] %v7524
        %7541 = vst [vmem:[%s523 + $0x1c0] sm:$0xff] %v7525
        %7542 = vst [vmem:[%s523 + $0x1c8] sm:$0xff] %v7526
        %7543 = vst [vmem:[%s523 + $0x1d0] sm:$0xff] %v7527
        %7544 = vst [vmem:[%s523 + $0x1d8] sm:$0xff] %v7528
        %v7545 = vmul.f32 %v4252, %v7353
        %v7546 = vmul.f32 %v4254, %v7354
        %v7547 = vmul.f32 %v4676, %v7355
        %v7548 = vmul.f32 %v4678, %v7356
        %v7549 = vmul.f32 %v4256, %v7357
        %v7550 = vmul.f32 %v4258, %v7358
        %v7551 = vmul.f32 %v4680, %v7359
        %v7552 = vmul.f32 %v4682, %v7360
        %v7553 = vmul.f32 %v4262, %v7361
        %v7554 = vmul.f32 %v4264, %v7362
        %v7555 = vmul.f32 %v4686, %v7363
        %v7556 = vmul.f32 %v4688, %v7364
        %v7557 = vmul.f32 %v4266, %v7365
        %v7558 = vmul.f32 %v4268, %v7366
        %v7559 = vmul.f32 %v4690, %v7367
        %v7560 = vmul.f32 %v4692, %v7368
        %7561 = vst [vmem:[%s523 + $0x60] sm:$0xff] %v7545
        %7562 = vst [vmem:[%s523 + $0x68] sm:$0xff] %v7546
        %7563 = vst [vmem:[%s523 + $0x70] sm:$0xff] %v7547
        %7564 = vst [vmem:[%s523 + $0x78] sm:$0xff] %v7548
        %7565 = vst [vmem:[%s523 + $0xe0] sm:$0xff] %v7549
        %7566 = vst [vmem:[%s523 + $0xe8] sm:$0xff] %v7550
        %7567 = vst [vmem:[%s523 + $0xf0] sm:$0xff] %v7551
        %7568 = vst [vmem:[%s523 + $0xf8] sm:$0xff] %v7552
        %7569 = vst [vmem:[%s523 + $0x160] sm:$0xff] %v7553
        %7570 = vst [vmem:[%s523 + $0x168] sm:$0xff] %v7554
        %7571 = vst [vmem:[%s523 + $0x170] sm:$0xff] %v7555
        %7572 = vst [vmem:[%s523 + $0x178] sm:$0xff] %v7556
        %7573 = vst [vmem:[%s523 + $0x1e0] sm:$0xff] %v7557
        %7574 = vst [vmem:[%s523 + $0x1e8] sm:$0xff] %v7558
        %7575 = vst [vmem:[%s523 + $0x1f0] sm:$0xff] %v7559
        %7576 = vst [vmem:[%s523 + $0x1f8] sm:$0xff] %v7560
        %s7577 = sand.u32 %s296, 1
        %s7578 = scalar_lea.sflag [#allocation4], %s7577
        %s7579 = sand.u32 %s296, 1
        %s7580 = smul.addr %s7579, 512
        %s7581 = scalar_lea.vmem [#allocation3], %s7580
        %s7582 = sand.u32 %s32, 1
        %s7583 = scalar_lea.sflag [#allocation6], %s7582
        %s7584 = sand.u32 %s322, 1
        %s7585 = smul.addr %s7584, 128
        %s7586 = scalar_lea.vmem [#allocation5], %s7585
        %s7587 = sand.u32 %s32, 1
        %s7588 = scalar_lea.sflag [#allocation6], %s7587
        %s7589 = sand.u32 %s348, 1
        %s7590 = smul.addr %s7589, 512
        %s7591 = scalar_lea.vmem [#allocation7], %s7590
        // Predicated region
        $region65: #{vq_attention_counter.1} parent=63 // pred_check
          %p7592 = pneg %p306
        $region66: #{vq_attention_counter.1} parent=63 // pred_check_branch
          %7594 = sbr.rel (%p7592) target = $region68
        $region67: #{vq_attention_counter.1} parent=63 // pred_region
          %s7595 = smul.u32 2, %s32
          %s7597 = ssub.s32 8192, 8192
          %7598 = vsyncadd %s7578, %s7597
          %s7599 = smul.addr %s7595, 32
          %s7600 = smul.addr %s7599, 128
          %s7601 = scalar_lea.hbm %s11, %s7600
          %s7602 = sshll.u32 %s7581, 4
          %s7603 = int_to_ptr.vmem [resolvable:$true] %s7602
          %7608 = dma.vmem_to_hbm [thread:$0]  %s7603, 8192, %s7601, %s7578, 2048, 2048, 128
        $region68: #{vq_attention_counter.1} parent=63 // pred_fallthru
          _
        // Predicated region
        $region69: #{vq_attention_counter.1} parent=63 // pred_check
          %p7609 = pneg %p332
        $region70: #{vq_attention_counter.1} parent=63 // pred_check_branch
          %7611 = sbr.rel (%p7609) target = $region72
        $region71: #{vq_attention_counter.1} parent=63 // pred_region
          %s7612 = smul.u32 2, %s32
          %s7614 = ssub.s32 2048, 2048
          %7615 = vsyncadd %s7583, %s7614
          %s7616 = smul.addr %s7612, 8
          %s7617 = smul.addr %s7616, 128
          %s7618 = scalar_lea.hbm %s12, %s7617
          %s7619 = sshll.u32 %s7586, 4
          %s7620 = int_to_ptr.vmem [resolvable:$true] %s7619
          %7625 = dma.vmem_to_hbm [thread:$0]  %s7620, 2048, %s7618, %s7583, 512, 512, 32
        $region72: #{vq_attention_counter.1} parent=63 // pred_fallthru
          _
        // Predicated region
        $region73: #{vq_attention_counter.1} parent=63 // pred_check
          %p7626 = pneg %p358
        $region74: #{vq_attention_counter.1} parent=63 // pred_check_branch
          %7628 = sbr.rel (%p7626) target = $region76
        $region75: #{vq_attention_counter.1} parent=63 // pred_region
          %s7629 = smul.u32 2, %s32
          %s7631 = ssub.s32 8192, 8192
          %7632 = vsyncadd %s7588, %s7631
          %s7633 = smul.addr %s7629, 32
          %s7634 = smul.addr %s7633, 128
          %s7635 = scalar_lea.hbm %s13, %s7634
          %s7636 = sshll.u32 %s7591, 4
          %s7637 = int_to_ptr.vmem [resolvable:$true] %s7636
          %7642 = dma.vmem_to_hbm [thread:$0]  %s7637, 8192, %s7635, %s7588, 2048, 2048, 128
        $region76: #{vq_attention_counter.1} parent=63 // pred_fallthru
          _
      $region64: #{vq_attention_counter.1} parent=5 // pred_fallthru
        _
      %p7643 = scmp.le.s32.totalorder 2, %s27
      // Predicated region
      $region77: #{vq_attention_counter.1} parent=5 // pred_check
        %p7644 = pneg %p7643
      $region78: #{vq_attention_counter.1} parent=5 // pred_check_branch
        %7646 = sbr.rel (%p7644) target = $region80
      $region79: #{vq_attention_counter.1} parent=5 // pred_region
        %s7647 = ssub.s32 %s27, 2
        // Predicated region
        $region81: #{vq_attention_counter.1} parent=79 // pred_check
          %p7648 = pneg %p312
        $region82: #{vq_attention_counter.1} parent=79 // pred_check_branch
          %7650 = sbr.rel (%p7648) target = $region84
        $region83: #{vq_attention_counter.1} parent=79 // pred_region
          %s7651 = sand.u32 %s297, 1
          %s7652 = scalar_lea.sflag [#allocation4], %s7651
          %s7653 = sand.u32 %s297, 1
          %s7654 = smul.addr %s7653, 512
          %s7655 = scalar_lea.vmem [#allocation3], %s7654
          %7656 = dma.done %s7652, 8192
        $region84: #{vq_attention_counter.1} parent=79 // pred_fallthru
          _
        // Predicated region
        $region85: #{vq_attention_counter.1} parent=79 // pred_check
          %p7657 = pneg %p338
        $region86: #{vq_attention_counter.1} parent=79 // pred_check_branch
          %7659 = sbr.rel (%p7657) target = $region88
        $region87: #{vq_attention_counter.1} parent=79 // pred_region
          %s7660 = sand.u32 %s33, 1
          %s7661 = scalar_lea.sflag [#allocation6], %s7660
          %s7662 = sand.u32 %s323, 1
          %s7663 = smul.addr %s7662, 128
          %s7664 = scalar_lea.vmem [#allocation5], %s7663
          %7665 = dma.done %s7661, 2048
        $region88: #{vq_attention_counter.1} parent=79 // pred_fallthru
          _
        // Predicated region
        $region89: #{vq_attention_counter.1} parent=79 // pred_check
          %p7666 = pneg %p364
        $region90: #{vq_attention_counter.1} parent=79 // pred_check_branch
          %7668 = sbr.rel (%p7666) target = $region92
        $region91: #{vq_attention_counter.1} parent=79 // pred_region
          %s7669 = sand.u32 %s33, 1
          %s7670 = scalar_lea.sflag [#allocation6], %s7669
          %s7671 = sand.u32 %s349, 1
          %s7672 = smul.addr %s7671, 512
          %s7673 = scalar_lea.vmem [#allocation7], %s7672
          %7674 = dma.done %s7670, 8192
        $region92: #{vq_attention_counter.1} parent=79 // pred_fallthru
          _
      $region80: #{vq_attention_counter.1} parent=5 // pred_fallthru
        _
    $region6: #{vq_attention_counter.1} parent=1 // loop_footer
      %s31 = sadd.s32 1, %s27
    $region7: #{vq_attention_counter.1} parent=1 // loop_footer_branch
      %26 = sbr.rel target = $region3
    $region8: #{vq_attention_counter.1} parent=1 // loop_exit
      _
    %7675 = vsyncpa [#allocation4], 1
    %s7676 = scalar_lea.sflag [#allocation4], 1
    %7677 = vsyncpa %s7676, 1
    %7678 = vsyncpa [#allocation6], 1
    %s7679 = scalar_lea.sflag [#allocation6], 1
    %7680 = vsyncpa %s7679, 1

</llo_original>
